<compile_context>
chip_gen: v7x
topology: tpu7x:2x2x1
jax: 0.10.0
libtpu: 0.0.40
codegen_flags: <defaults>
</compile_context>

<pallas_src>
import functools

import jax
import jax.numpy as jnp
from jax.experimental import pallas as pl
from jax.experimental.pallas import tpu as pltpu

EPS = 1e-5
LANES = 128


def _round_up(x, m):
  return (x + m - 1) // m * m


def _resblock_kernel(xpad_ref, xres_ref, w1_ref, w2_ref, g1_ref, b1_ref,
                     g2_ref, b2_ref, out_ref, hpad_ref, *, mxu_dtype):
  """Fused ResidualBlock forward (NHWC, channels padded to a lane multiple).

  xpad_ref : (N, H+2, W+2, Cp)  spatially zero-padded, channel-padded input
  xres_ref : (N*H*W, Cp)        residual (unpadded input), lane-dense
  w1_ref   : (9, Cp, Cp)        conv1 tap weights, tap t = 3*dy + dx
  w2_ref   : (9, Cp, Cp)        conv2 tap weights
  g*_ref   : (1, Cp)            BN gamma (zero in padded channels)
  b*_ref   : (1, Cp)            BN beta  (zero in padded channels)
  out_ref  : (N*H*W, Cp)        output, lane-dense
  hpad_ref : (N, H+2, W+2, Cp)  scratch: spatially padded hidden activation
  """
  N, Hp, Wp, Cp = xpad_ref.shape
  H, W = Hp - 2, Wp - 2
  M = N * H * W
  inv_m = 1.0 / float(M)

  def conv3x3(src_ref, w_ref):
    # Batched tap-accumulate: one (M, Cp) x (Cp, Cp) MXU matmul per tap,
    # accumulated in f32.  No im2col materialisation, no per-image loop.
    acc = jnp.zeros((M, Cp), jnp.float32)
    for t in range(9):
      dy, dx = t // 3, t % 3
      tap = src_ref[:, dy:dy + H, dx:dx + W, :].reshape(M, Cp)
      acc = acc + jnp.dot(tap.astype(mxu_dtype), w_ref[t],
                          preferred_element_type=jnp.float32)
    return acc

  def batchnorm(y, g_ref, b_ref):
    # Single-pass batch statistics (biased variance, eps=1e-5).
    s = jnp.sum(y, axis=0, keepdims=True)
    ss = jnp.sum(y * y, axis=0, keepdims=True)
    mean = s * inv_m
    var = jnp.maximum(ss * inv_m - mean * mean, 0.0)
    scale = g_ref[...] * jax.lax.rsqrt(var + EPS)
    shift = b_ref[...] - mean * scale
    return y * scale + shift

  # ---- conv1 -> bn1 -> relu -------------------------------------------------
  y1 = conv3x3(xpad_ref, w1_ref)                               # (M, Cp) f32
  h = jnp.maximum(batchnorm(y1, g1_ref, b1_ref), 0.0)

  # ---- spatially re-pad the hidden activation for conv2 ----------------------
  # Zero only the four 1-pixel border strips; write the interior once.
  zrow = jnp.zeros((N, 1, Wp, Cp), hpad_ref.dtype)
  zcol = jnp.zeros((N, Hp, 1, Cp), hpad_ref.dtype)
  hpad_ref[:, 0:1, :, :] = zrow
  hpad_ref[:, Hp - 1:Hp, :, :] = zrow
  hpad_ref[:, :, 0:1, :] = zcol
  hpad_ref[:, :, Wp - 1:Wp, :] = zcol
  hpad_ref[:, 1:H + 1, 1:W + 1, :] = h.reshape(N, H, W, Cp)

  # ---- conv2 -> bn2 -> +residual -> relu -------------------------------------
  y2 = conv3x3(hpad_ref, w2_ref)                               # (M, Cp) f32
  o = batchnorm(y2, g2_ref, b2_ref) + xres_ref[...]
  out_ref[...] = jnp.maximum(o, 0.0).astype(out_ref.dtype)


@functools.partial(jax.jit, static_argnames=("mxu_dtype",))
def residual_block(x_nchw, w1_hwio, w2_hwio, gamma1, beta1, gamma2, beta2,
                   *, mxu_dtype=jnp.float32):
  """NCHW in / NCHW out, matching the PyTorch module's forward."""
  N, C, H, W = x_nchw.shape
  Cp = _round_up(max(C, LANES), LANES)        # lane-dense channel padding
  M = N * H * W
  cpad = Cp - C

  # Layout plumbing in XLA (free relative to the kernel).
  x = jnp.transpose(x_nchw, (0, 2, 3, 1)).astype(jnp.float32)          # NHWC
  xpad = jnp.pad(x, ((0, 0), (1, 1), (1, 1), (0, cpad)))               # spatial+chan pad
  xres = jnp.pad(x, ((0, 0), (0, 0), (0, 0), (0, cpad))).reshape(M, Cp)

  def prep_w(w):  # (3,3,C,C) HWIO -> (9, Cp, Cp) per-tap, MXU dtype
    w = jnp.pad(w.astype(jnp.float32), ((0, 0), (0, 0), (0, cpad), (0, cpad)))
    return w.reshape(9, Cp, Cp).astype(mxu_dtype)

  def prep_bn(p):  # (C,) -> (1, Cp), zero in padded channels
    return jnp.pad(p.astype(jnp.float32), (0, cpad)).reshape(1, Cp)

  w1t, w2t = prep_w(w1_hwio), prep_w(w2_hwio)
  g1, b1, g2, b2 = prep_bn(gamma1), prep_bn(beta1), prep_bn(gamma2), prep_bn(beta2)

  w_itemsize = jnp.dtype(mxu_dtype).itemsize
  bytes_in = (xpad.size + xres.size) * 4 + (w1t.size + w2t.size) * w_itemsize \
      + 4 * Cp * 4
  bytes_out = M * Cp * 4
  bytes_scratch = N * (H + 2) * (W + 2) * Cp * 4
  total_bytes = bytes_in + bytes_out + bytes_scratch
  vmem_limit = int(min(max(4 * total_bytes, 32 << 20), 64 << 20))

  vmem = pl.BlockSpec(memory_space=pltpu.MemorySpace.VMEM)
  kernel = functools.partial(_resblock_kernel, mxu_dtype=mxu_dtype)

  out = pl.pallas_call(
      kernel,
      out_shape=jax.ShapeDtypeStruct((M, Cp), jnp.float32),
      in_specs=[vmem] * 8,
      out_specs=vmem,
      scratch_shapes=[pltpu.VMEM((N, H + 2, W + 2, Cp), jnp.float32)],
      compiler_params=pltpu.CompilerParams(vmem_limit_bytes=vmem_limit),
      cost_estimate=pl.CostEstimate(
          flops=2 * 2 * 9 * M * Cp * Cp,
          transcendentals=2 * Cp,
          bytes_accessed=bytes_in + bytes_out),
  )(xpad, xres, w1t, w2t, g1, b1, g2, b2)

  out = out.reshape(N, H, W, Cp)[..., :C]
  return jnp.transpose(out, (0, 3, 1, 2))                               # NCHW


def _reference(x_nchw, w1, w2, g1, b1, g2, b2):
  """Pure-JAX f32 reference (same semantics) for correctness checking."""
  x = jnp.transpose(x_nchw, (0, 2, 3, 1)).astype(jnp.float32)

  def conv(h, w):
    return jax.lax.conv_general_dilated(
        h, w, window_strides=(1, 1), padding=((1, 1), (1, 1)),
        dimension_numbers=("NHWC", "HWIO", "NHWC"))

  def bn(y, g, b):
    m = y.mean(axis=(0, 1, 2), keepdims=True)
    v = ((y - m) ** 2).mean(axis=(0, 1, 2), keepdims=True)
    return (y - m) * jax.lax.rsqrt(v + EPS) * g.reshape(1, 1, 1, -1) \
        + b.reshape(1, 1, 1, -1)

  out = jnp.maximum(bn(conv(x, w1), g1, b1), 0.0)
  out = bn(conv(out, w2), g2, b2)
  out = jnp.maximum(out + x, 0.0)
  return jnp.transpose(out, (0, 3, 1, 2))


if __name__ == "__main__":
  N, C, H, W = 2, 8, 16, 16   # downsample=None => in_channels == out_channels
  key = jax.random.PRNGKey(0)
  kx, k1, k2, kg1, kb1, kg2, kb2 = jax.random.split(key, 7)

  x = jax.random.normal(kx, (N, C, H, W), dtype=jnp.float32)
  w1 = 0.1 * jax.random.normal(k1, (3, 3, C, C), dtype=jnp.float32)   # HWIO
  w2 = 0.1 * jax.random.normal(k2, (3, 3, C, C), dtype=jnp.float32)   # HWIO
  g1 = 1.0 + 0.1 * jax.random.normal(kg1, (C,), dtype=jnp.float32)
  b1 = 0.1 * jax.random.normal(kb1, (C,), dtype=jnp.float32)
  g2 = 1.0 + 0.1 * jax.random.normal(kg2, (C,), dtype=jnp.float32)
  b2 = 0.1 * jax.random.normal(kb2, (C,), dtype=jnp.float32)

  ref = _reference(x, w1, w2, g1, b1, g2, b2)

  # f32 MXU path (tight check).
  out = jax.block_until_ready(residual_block(x, w1, w2, g1, b1, g2, b2))
  assert out.shape == (N, C, H, W)
  assert jnp.allclose(out, ref, atol=1e-3, rtol=1e-3), \
      f"f32 max abs err {jnp.max(jnp.abs(out - ref))}"

  # bf16 MXU operands with f32 accumulation (v5e/v6e fast path; loose check).
  out_bf = jax.block_until_ready(
      residual_block(x, w1, w2, g1, b1, g2, b2, mxu_dtype=jnp.bfloat16))
  assert jnp.allclose(out_bf, ref, atol=1e-1, rtol=1e-1), \
      f"bf16 max abs err {jnp.max(jnp.abs(out_bf - ref))}"

  print("KERNEL_OK")
</pallas_src>

<mosaic_0001>
module attributes {stable_mosaic.version = 11 : i64} {
  func.func @_resblock_kernel(%arg0: memref<2x18x18x128xf32, #tpu.memory_space<vmem>>, %arg1: memref<512x128xf32, #tpu.memory_space<vmem>>, %arg2: memref<9x128x128xf32, #tpu.memory_space<vmem>>, %arg3: memref<9x128x128xf32, #tpu.memory_space<vmem>>, %arg4: memref<1x128xf32, #tpu.memory_space<vmem>>, %arg5: memref<1x128xf32, #tpu.memory_space<vmem>>, %arg6: memref<1x128xf32, #tpu.memory_space<vmem>>, %arg7: memref<1x128xf32, #tpu.memory_space<vmem>>, %arg8: memref<512x128xf32, #tpu.memory_space<vmem>>, %arg9: memref<2x18x18x128xf32, #tpu.memory_space<vmem>>) attributes {dimension_semantics = [], scalar_prefetch = 0 : i64, scratch_operands = 1 : i64, tpu.core_type = #tpu.core_type<tc>} {
    %cst = arith.constant 0.000000e+00 : f32
    %0 = vector.broadcast %cst : f32 to vector<512x128xf32>
    %c0 = arith.constant 0 : index
    %c0_0 = arith.constant 0 : index
    %c0_1 = arith.constant 0 : index
    %c0_2 = arith.constant 0 : index
    %1 = vector.load %arg0[%c0, %c0_0, %c0_1, %c0_2] : memref<2x18x18x128xf32, #tpu.memory_space<vmem>>, vector<2x16x16x128xf32>
    %2 = vector.shape_cast %1 : vector<2x16x16x128xf32> to vector<512x128xf32>
    %c0_3 = arith.constant 0 : index
    %c0_4 = arith.constant 0 : index
    %c0_5 = arith.constant 0 : index
    %3 = vector.load %arg2[%c0_3, %c0_4, %c0_5] : memref<9x128x128xf32, #tpu.memory_space<vmem>>, vector<1x128x128xf32>
    %4 = vector.shape_cast %3 : vector<1x128x128xf32> to vector<128x128xf32>
    %cst_6 = arith.constant dense<0.000000e+00> : vector<512x128xf32>
    %5 = tpu.matmul %2, %4, %cst_6 {dimension_numbers = #tpu.dot_dimension_numbers<[1], [0], [0], [1], [0, 0, 1, 1], [], []>} : vector<512x128xf32>, vector<128x128xf32>, vector<512x128xf32> -> vector<512x128xf32>
    %6 = arith.addf %0, %5 : vector<512x128xf32>
    %c0_7 = arith.constant 0 : index
    %c0_8 = arith.constant 0 : index
    %c1 = arith.constant 1 : index
    %c0_9 = arith.constant 0 : index
    %7 = vector.load %arg0[%c0_7, %c0_8, %c1, %c0_9] : memref<2x18x18x128xf32, #tpu.memory_space<vmem>>, vector<2x16x16x128xf32>
    %8 = vector.shape_cast %7 : vector<2x16x16x128xf32> to vector<512x128xf32>
    %c1_10 = arith.constant 1 : index
    %c0_11 = arith.constant 0 : index
    %c0_12 = arith.constant 0 : index
    %9 = vector.load %arg2[%c1_10, %c0_11, %c0_12] : memref<9x128x128xf32, #tpu.memory_space<vmem>>, vector<1x128x128xf32>
    %10 = vector.shape_cast %9 : vector<1x128x128xf32> to vector<128x128xf32>
    %cst_13 = arith.constant dense<0.000000e+00> : vector<512x128xf32>
    %11 = tpu.matmul %8, %10, %cst_13 {dimension_numbers = #tpu.dot_dimension_numbers<[1], [0], [0], [1], [0, 0, 1, 1], [], []>} : vector<512x128xf32>, vector<128x128xf32>, vector<512x128xf32> -> vector<512x128xf32>
    %12 = arith.addf %6, %11 : vector<512x128xf32>
    %c0_14 = arith.constant 0 : index
    %c0_15 = arith.constant 0 : index
    %c2 = arith.constant 2 : index
    %c0_16 = arith.constant 0 : index
    %13 = vector.load %arg0[%c0_14, %c0_15, %c2, %c0_16] : memref<2x18x18x128xf32, #tpu.memory_space<vmem>>, vector<2x16x16x128xf32>
    %14 = vector.shape_cast %13 : vector<2x16x16x128xf32> to vector<512x128xf32>
    %c2_17 = arith.constant 2 : index
    %c0_18 = arith.constant 0 : index
    %c0_19 = arith.constant 0 : index
    %15 = vector.load %arg2[%c2_17, %c0_18, %c0_19] : memref<9x128x128xf32, #tpu.memory_space<vmem>>, vector<1x128x128xf32>
    %16 = vector.shape_cast %15 : vector<1x128x128xf32> to vector<128x128xf32>
    %cst_20 = arith.constant dense<0.000000e+00> : vector<512x128xf32>
    %17 = tpu.matmul %14, %16, %cst_20 {dimension_numbers = #tpu.dot_dimension_numbers<[1], [0], [0], [1], [0, 0, 1, 1], [], []>} : vector<512x128xf32>, vector<128x128xf32>, vector<512x128xf32> -> vector<512x128xf32>
    %18 = arith.addf %12, %17 : vector<512x128xf32>
    %c0_21 = arith.constant 0 : index
    %c1_22 = arith.constant 1 : index
    %c0_23 = arith.constant 0 : index
    %c0_24 = arith.constant 0 : index
    %19 = vector.load %arg0[%c0_21, %c1_22, %c0_23, %c0_24] : memref<2x18x18x128xf32, #tpu.memory_space<vmem>>, vector<2x16x16x128xf32>
    %20 = vector.shape_cast %19 : vector<2x16x16x128xf32> to vector<512x128xf32>
    %c3 = arith.constant 3 : index
    %c0_25 = arith.constant 0 : index
    %c0_26 = arith.constant 0 : index
    %21 = vector.load %arg2[%c3, %c0_25, %c0_26] : memref<9x128x128xf32, #tpu.memory_space<vmem>>, vector<1x128x128xf32>
    %22 = vector.shape_cast %21 : vector<1x128x128xf32> to vector<128x128xf32>
    %cst_27 = arith.constant dense<0.000000e+00> : vector<512x128xf32>
    %23 = tpu.matmul %20, %22, %cst_27 {dimension_numbers = #tpu.dot_dimension_numbers<[1], [0], [0], [1], [0, 0, 1, 1], [], []>} : vector<512x128xf32>, vector<128x128xf32>, vector<512x128xf32> -> vector<512x128xf32>
    %24 = arith.addf %18, %23 : vector<512x128xf32>
    %c0_28 = arith.constant 0 : index
    %c1_29 = arith.constant 1 : index
    %c1_30 = arith.constant 1 : index
    %c0_31 = arith.constant 0 : index
    %25 = vector.load %arg0[%c0_28, %c1_29, %c1_30, %c0_31] : memref<2x18x18x128xf32, #tpu.memory_space<vmem>>, vector<2x16x16x128xf32>
    %26 = vector.shape_cast %25 : vector<2x16x16x128xf32> to vector<512x128xf32>
    %c4 = arith.constant 4 : index
    %c0_32 = arith.constant 0 : index
    %c0_33 = arith.constant 0 : index
    %27 = vector.load %arg2[%c4, %c0_32, %c0_33] : memref<9x128x128xf32, #tpu.memory_space<vmem>>, vector<1x128x128xf32>
    %28 = vector.shape_cast %27 : vector<1x128x128xf32> to vector<128x128xf32>
    %cst_34 = arith.constant dense<0.000000e+00> : vector<512x128xf32>
    %29 = tpu.matmul %26, %28, %cst_34 {dimension_numbers = #tpu.dot_dimension_numbers<[1], [0], [0], [1], [0, 0, 1, 1], [], []>} : vector<512x128xf32>, vector<128x128xf32>, vector<512x128xf32> -> vector<512x128xf32>
    %30 = arith.addf %24, %29 : vector<512x128xf32>
    %c0_35 = arith.constant 0 : index
    %c1_36 = arith.constant 1 : index
    %c2_37 = arith.constant 2 : index
    %c0_38 = arith.constant 0 : index
    %31 = vector.load %arg0[%c0_35, %c1_36, %c2_37, %c0_38] : memref<2x18x18x128xf32, #tpu.memory_space<vmem>>, vector<2x16x16x128xf32>
    %32 = vector.shape_cast %31 : vector<2x16x16x128xf32> to vector<512x128xf32>
    %c5 = arith.constant 5 : index
    %c0_39 = arith.constant 0 : index
    %c0_40 = arith.constant 0 : index
    %33 = vector.load %arg2[%c5, %c0_39, %c0_40] : memref<9x128x128xf32, #tpu.memory_space<vmem>>, vector<1x128x128xf32>
    %34 = vector.shape_cast %33 : vector<1x128x128xf32> to vector<128x128xf32>
    %cst_41 = arith.constant dense<0.000000e+00> : vector<512x128xf32>
    %35 = tpu.matmul %32, %34, %cst_41 {dimension_numbers = #tpu.dot_dimension_numbers<[1], [0], [0], [1], [0, 0, 1, 1], [], []>} : vector<512x128xf32>, vector<128x128xf32>, vector<512x128xf32> -> vector<512x128xf32>
    %36 = arith.addf %30, %35 : vector<512x128xf32>
    %c0_42 = arith.constant 0 : index
    %c2_43 = arith.constant 2 : index
    %c0_44 = arith.constant 0 : index
    %c0_45 = arith.constant 0 : index
    %37 = vector.load %arg0[%c0_42, %c2_43, %c0_44, %c0_45] : memref<2x18x18x128xf32, #tpu.memory_space<vmem>>, vector<2x16x16x128xf32>
    %38 = vector.shape_cast %37 : vector<2x16x16x128xf32> to vector<512x128xf32>
    %c6 = arith.constant 6 : index
    %c0_46 = arith.constant 0 : index
    %c0_47 = arith.constant 0 : index
    %39 = vector.load %arg2[%c6, %c0_46, %c0_47] : memref<9x128x128xf32, #tpu.memory_space<vmem>>, vector<1x128x128xf32>
    %40 = vector.shape_cast %39 : vector<1x128x128xf32> to vector<128x128xf32>
    %cst_48 = arith.constant dense<0.000000e+00> : vector<512x128xf32>
    %41 = tpu.matmul %38, %40, %cst_48 {dimension_numbers = #tpu.dot_dimension_numbers<[1], [0], [0], [1], [0, 0, 1, 1], [], []>} : vector<512x128xf32>, vector<128x128xf32>, vector<512x128xf32> -> vector<512x128xf32>
    %42 = arith.addf %36, %41 : vector<512x128xf32>
    %c0_49 = arith.constant 0 : index
    %c2_50 = arith.constant 2 : index
    %c1_51 = arith.constant 1 : index
    %c0_52 = arith.constant 0 : index
    %43 = vector.load %arg0[%c0_49, %c2_50, %c1_51, %c0_52] : memref<2x18x18x128xf32, #tpu.memory_space<vmem>>, vector<2x16x16x128xf32>
    %44 = vector.shape_cast %43 : vector<2x16x16x128xf32> to vector<512x128xf32>
    %c7 = arith.constant 7 : index
    %c0_53 = arith.constant 0 : index
    %c0_54 = arith.constant 0 : index
    %45 = vector.load %arg2[%c7, %c0_53, %c0_54] : memref<9x128x128xf32, #tpu.memory_space<vmem>>, vector<1x128x128xf32>
    %46 = vector.shape_cast %45 : vector<1x128x128xf32> to vector<128x128xf32>
    %cst_55 = arith.constant dense<0.000000e+00> : vector<512x128xf32>
    %47 = tpu.matmul %44, %46, %cst_55 {dimension_numbers = #tpu.dot_dimension_numbers<[1], [0], [0], [1], [0, 0, 1, 1], [], []>} : vector<512x128xf32>, vector<128x128xf32>, vector<512x128xf32> -> vector<512x128xf32>
    %48 = arith.addf %42, %47 : vector<512x128xf32>
    %c0_56 = arith.constant 0 : index
    %c2_57 = arith.constant 2 : index
    %c2_58 = arith.constant 2 : index
    %c0_59 = arith.constant 0 : index
    %49 = vector.load %arg0[%c0_56, %c2_57, %c2_58, %c0_59] : memref<2x18x18x128xf32, #tpu.memory_space<vmem>>, vector<2x16x16x128xf32>
    %50 = vector.shape_cast %49 : vector<2x16x16x128xf32> to vector<512x128xf32>
    %c8 = arith.constant 8 : index
    %c0_60 = arith.constant 0 : index
    %c0_61 = arith.constant 0 : index
    %51 = vector.load %arg2[%c8, %c0_60, %c0_61] : memref<9x128x128xf32, #tpu.memory_space<vmem>>, vector<1x128x128xf32>
    %52 = vector.shape_cast %51 : vector<1x128x128xf32> to vector<128x128xf32>
    %cst_62 = arith.constant dense<0.000000e+00> : vector<512x128xf32>
    %53 = tpu.matmul %50, %52, %cst_62 {dimension_numbers = #tpu.dot_dimension_numbers<[1], [0], [0], [1], [0, 0, 1, 1], [], []>} : vector<512x128xf32>, vector<128x128xf32>, vector<512x128xf32> -> vector<512x128xf32>
    %54 = arith.addf %48, %53 : vector<512x128xf32>
    %cst_63 = arith.constant dense<0.000000e+00> : vector<128xf32>
    %55 = vector.multi_reduction <add>, %54, %cst_63 [0] : vector<512x128xf32> to vector<128xf32>
    %56 = vector.shape_cast %55 : vector<128xf32> to vector<1x128xf32>
    %57 = arith.mulf %54, %54 : vector<512x128xf32>
    %cst_64 = arith.constant dense<0.000000e+00> : vector<128xf32>
    %58 = vector.multi_reduction <add>, %57, %cst_64 [0] : vector<512x128xf32> to vector<128xf32>
    %59 = vector.shape_cast %58 : vector<128xf32> to vector<1x128xf32>
    %cst_65 = arith.constant 0.001953125 : f32
    %60 = vector.broadcast %cst_65 : f32 to vector<1x128xf32>
    %61 = arith.mulf %56, %60 : vector<1x128xf32>
    %cst_66 = arith.constant 0.001953125 : f32
    %62 = vector.broadcast %cst_66 : f32 to vector<1x128xf32>
    %63 = arith.mulf %59, %62 : vector<1x128xf32>
    %64 = arith.mulf %61, %61 : vector<1x128xf32>
    %65 = arith.subf %63, %64 : vector<1x128xf32>
    %cst_67 = arith.constant 0.000000e+00 : f32
    %66 = vector.broadcast %cst_67 : f32 to vector<1x128xf32>
    %67 = arith.maximumf %65, %66 : vector<1x128xf32>
    %c0_68 = arith.constant 0 : index
    %c0_69 = arith.constant 0 : index
    %68 = vector.load %arg4[%c0_68, %c0_69] : memref<1x128xf32, #tpu.memory_space<vmem>>, vector<1x128xf32>
    %cst_70 = arith.constant 9.99999974E-6 : f32
    %69 = vector.broadcast %cst_70 : f32 to vector<1x128xf32>
    %70 = arith.addf %67, %69 : vector<1x128xf32>
    %71 = math.rsqrt %70 : vector<1x128xf32>
    %72 = arith.mulf %68, %71 : vector<1x128xf32>
    %c0_71 = arith.constant 0 : index
    %c0_72 = arith.constant 0 : index
    %73 = vector.load %arg5[%c0_71, %c0_72] : memref<1x128xf32, #tpu.memory_space<vmem>>, vector<1x128xf32>
    %74 = arith.mulf %61, %72 : vector<1x128xf32>
    %75 = arith.subf %73, %74 : vector<1x128xf32>
    %76 = vector.broadcast %72 : vector<1x128xf32> to vector<512x128xf32>
    %77 = arith.mulf %54, %76 : vector<512x128xf32>
    %78 = vector.broadcast %75 : vector<1x128xf32> to vector<512x128xf32>
    %79 = arith.addf %77, %78 : vector<512x128xf32>
    %cst_73 = arith.constant 0.000000e+00 : f32
    %80 = vector.broadcast %cst_73 : f32 to vector<512x128xf32>
    %81 = arith.maximumf %79, %80 : vector<512x128xf32>
    %cst_74 = arith.constant 0.000000e+00 : f32
    %82 = vector.broadcast %cst_74 : f32 to vector<2x1x18x128xf32>
    %cst_75 = arith.constant 0.000000e+00 : f32
    %83 = vector.broadcast %cst_75 : f32 to vector<2x18x1x128xf32>
    %c0_76 = arith.constant 0 : index
    %c0_77 = arith.constant 0 : index
    %c0_78 = arith.constant 0 : index
    %c0_79 = arith.constant 0 : index
    %84 = vector.load %arg9[%c0_76, %c0_77, %c0_78, %c0_79] : memref<2x18x18x128xf32, #tpu.memory_space<vmem>>, vector<2x1x18x128xf32>
    tpu.vector_store %arg9[%c0_76, %c0_77, %c0_78, %c0_79], %82 {strides = array<i32>} : memref<2x18x18x128xf32, #tpu.memory_space<vmem>>, vector<2x1x18x128xf32>,
    %c0_80 = arith.constant 0 : index
    %c17 = arith.constant 17 : index
    %c0_81 = arith.constant 0 : index
    %c0_82 = arith.constant 0 : index
    %85 = vector.load %arg9[%c0_80, %c17, %c0_81, %c0_82] : memref<2x18x18x128xf32, #tpu.memory_space<vmem>>, vector<2x1x18x128xf32>
    tpu.vector_store %arg9[%c0_80, %c17, %c0_81, %c0_82], %82 {strides = array<i32>} : memref<2x18x18x128xf32, #tpu.memory_space<vmem>>, vector<2x1x18x128xf32>,
    %c0_83 = arith.constant 0 : index
    %c0_84 = arith.constant 0 : index
    %c0_85 = arith.constant 0 : index
    %c0_86 = arith.constant 0 : index
    %86 = vector.load %arg9[%c0_83, %c0_84, %c0_85, %c0_86] : memref<2x18x18x128xf32, #tpu.memory_space<vmem>>, vector<2x18x1x128xf32>
    tpu.vector_store %arg9[%c0_83, %c0_84, %c0_85, %c0_86], %83 {strides = array<i32>} : memref<2x18x18x128xf32, #tpu.memory_space<vmem>>, vector<2x18x1x128xf32>,
    %c0_87 = arith.constant 0 : index
    %c0_88 = arith.constant 0 : index
    %c17_89 = arith.constant 17 : index
    %c0_90 = arith.constant 0 : index
    %87 = vector.load %arg9[%c0_87, %c0_88, %c17_89, %c0_90] : memref<2x18x18x128xf32, #tpu.memory_space<vmem>>, vector<2x18x1x128xf32>
    tpu.vector_store %arg9[%c0_87, %c0_88, %c17_89, %c0_90], %83 {strides = array<i32>} : memref<2x18x18x128xf32, #tpu.memory_space<vmem>>, vector<2x18x1x128xf32>,
    %88 = vector.shape_cast %81 : vector<512x128xf32> to vector<2x16x16x128xf32>
    %c0_91 = arith.constant 0 : index
    %c1_92 = arith.constant 1 : index
    %c1_93 = arith.constant 1 : index
    %c0_94 = arith.constant 0 : index
    %89 = vector.load %arg9[%c0_91, %c1_92, %c1_93, %c0_94] : memref<2x18x18x128xf32, #tpu.memory_space<vmem>>, vector<2x16x16x128xf32>
    tpu.vector_store %arg9[%c0_91, %c1_92, %c1_93, %c0_94], %88 {strides = array<i32>} : memref<2x18x18x128xf32, #tpu.memory_space<vmem>>, vector<2x16x16x128xf32>,
    %cst_95 = arith.constant 0.000000e+00 : f32
    %90 = vector.broadcast %cst_95 : f32 to vector<512x128xf32>
    %c0_96 = arith.constant 0 : index
    %c0_97 = arith.constant 0 : index
    %c0_98 = arith.constant 0 : index
    %c0_99 = arith.constant 0 : index
    %91 = vector.load %arg9[%c0_96, %c0_97, %c0_98, %c0_99] : memref<2x18x18x128xf32, #tpu.memory_space<vmem>>, vector<2x16x16x128xf32>
    %92 = vector.shape_cast %91 : vector<2x16x16x128xf32> to vector<512x128xf32>
    %c0_100 = arith.constant 0 : index
    %c0_101 = arith.constant 0 : index
    %c0_102 = arith.constant 0 : index
    %93 = vector.load %arg3[%c0_100, %c0_101, %c0_102] : memref<9x128x128xf32, #tpu.memory_space<vmem>>, vector<1x128x128xf32>
    %94 = vector.shape_cast %93 : vector<1x128x128xf32> to vector<128x128xf32>
    %cst_103 = arith.constant dense<0.000000e+00> : vector<512x128xf32>
    %95 = tpu.matmul %92, %94, %cst_103 {dimension_numbers = #tpu.dot_dimension_numbers<[1], [0], [0], [1], [0, 0, 1, 1], [], []>} : vector<512x128xf32>, vector<128x128xf32>, vector<512x128xf32> -> vector<512x128xf32>
    %96 = arith.addf %90, %95 : vector<512x128xf32>
    %c0_104 = arith.constant 0 : index
    %c0_105 = arith.constant 0 : index
    %c1_106 = arith.constant 1 : index
    %c0_107 = arith.constant 0 : index
    %97 = vector.load %arg9[%c0_104, %c0_105, %c1_106, %c0_107] : memref<2x18x18x128xf32, #tpu.memory_space<vmem>>, vector<2x16x16x128xf32>
    %98 = vector.shape_cast %97 : vector<2x16x16x128xf32> to vector<512x128xf32>
    %c1_108 = arith.constant 1 : index
    %c0_109 = arith.constant 0 : index
    %c0_110 = arith.constant 0 : index
    %99 = vector.load %arg3[%c1_108, %c0_109, %c0_110] : memref<9x128x128xf32, #tpu.memory_space<vmem>>, vector<1x128x128xf32>
    %100 = vector.shape_cast %99 : vector<1x128x128xf32> to vector<128x128xf32>
    %cst_111 = arith.constant dense<0.000000e+00> : vector<512x128xf32>
    %101 = tpu.matmul %98, %100, %cst_111 {dimension_numbers = #tpu.dot_dimension_numbers<[1], [0], [0], [1], [0, 0, 1, 1], [], []>} : vector<512x128xf32>, vector<128x128xf32>, vector<512x128xf32> -> vector<512x128xf32>
    %102 = arith.addf %96, %101 : vector<512x128xf32>
    %c0_112 = arith.constant 0 : index
    %c0_113 = arith.constant 0 : index
    %c2_114 = arith.constant 2 : index
    %c0_115 = arith.constant 0 : index
    %103 = vector.load %arg9[%c0_112, %c0_113, %c2_114, %c0_115] : memref<2x18x18x128xf32, #tpu.memory_space<vmem>>, vector<2x16x16x128xf32>
    %104 = vector.shape_cast %103 : vector<2x16x16x128xf32> to vector<512x128xf32>
    %c2_116 = arith.constant 2 : index
    %c0_117 = arith.constant 0 : index
    %c0_118 = arith.constant 0 : index
    %105 = vector.load %arg3[%c2_116, %c0_117, %c0_118] : memref<9x128x128xf32, #tpu.memory_space<vmem>>, vector<1x128x128xf32>
    %106 = vector.shape_cast %105 : vector<1x128x128xf32> to vector<128x128xf32>
    %cst_119 = arith.constant dense<0.000000e+00> : vector<512x128xf32>
    %107 = tpu.matmul %104, %106, %cst_119 {dimension_numbers = #tpu.dot_dimension_numbers<[1], [0], [0], [1], [0, 0, 1, 1], [], []>} : vector<512x128xf32>, vector<128x128xf32>, vector<512x128xf32> -> vector<512x128xf32>
    %108 = arith.addf %102, %107 : vector<512x128xf32>
    %c0_120 = arith.constant 0 : index
    %c1_121 = arith.constant 1 : index
    %c0_122 = arith.constant 0 : index
    %c0_123 = arith.constant 0 : index
    %109 = vector.load %arg9[%c0_120, %c1_121, %c0_122, %c0_123] : memref<2x18x18x128xf32, #tpu.memory_space<vmem>>, vector<2x16x16x128xf32>
    %110 = vector.shape_cast %109 : vector<2x16x16x128xf32> to vector<512x128xf32>
    %c3_124 = arith.constant 3 : index
    %c0_125 = arith.constant 0 : index
    %c0_126 = arith.constant 0 : index
    %111 = vector.load %arg3[%c3_124, %c0_125, %c0_126] : memref<9x128x128xf32, #tpu.memory_space<vmem>>, vector<1x128x128xf32>
    %112 = vector.shape_cast %111 : vector<1x128x128xf32> to vector<128x128xf32>
    %cst_127 = arith.constant dense<0.000000e+00> : vector<512x128xf32>
    %113 = tpu.matmul %110, %112, %cst_127 {dimension_numbers = #tpu.dot_dimension_numbers<[1], [0], [0], [1], [0, 0, 1, 1], [], []>} : vector<512x128xf32>, vector<128x128xf32>, vector<512x128xf32> -> vector<512x128xf32>
    %114 = arith.addf %108, %113 : vector<512x128xf32>
    %c0_128 = arith.constant 0 : index
    %c1_129 = arith.constant 1 : index
    %c1_130 = arith.constant 1 : index
    %c0_131 = arith.constant 0 : index
    %115 = vector.load %arg9[%c0_128, %c1_129, %c1_130, %c0_131] : memref<2x18x18x128xf32, #tpu.memory_space<vmem>>, vector<2x16x16x128xf32>
    %116 = vector.shape_cast %115 : vector<2x16x16x128xf32> to vector<512x128xf32>
    %c4_132 = arith.constant 4 : index
    %c0_133 = arith.constant 0 : index
    %c0_134 = arith.constant 0 : index
    %117 = vector.load %arg3[%c4_132, %c0_133, %c0_134] : memref<9x128x128xf32, #tpu.memory_space<vmem>>, vector<1x128x128xf32>
    %118 = vector.shape_cast %117 : vector<1x128x128xf32> to vector<128x128xf32>
    %cst_135 = arith.constant dense<0.000000e+00> : vector<512x128xf32>
    %119 = tpu.matmul %116, %118, %cst_135 {dimension_numbers = #tpu.dot_dimension_numbers<[1], [0], [0], [1], [0, 0, 1, 1], [], []>} : vector<512x128xf32>, vector<128x128xf32>, vector<512x128xf32> -> vector<512x128xf32>
    %120 = arith.addf %114, %119 : vector<512x128xf32>
    %c0_136 = arith.constant 0 : index
    %c1_137 = arith.constant 1 : index
    %c2_138 = arith.constant 2 : index
    %c0_139 = arith.constant 0 : index
    %121 = vector.load %arg9[%c0_136, %c1_137, %c2_138, %c0_139] : memref<2x18x18x128xf32, #tpu.memory_space<vmem>>, vector<2x16x16x128xf32>
    %122 = vector.shape_cast %121 : vector<2x16x16x128xf32> to vector<512x128xf32>
    %c5_140 = arith.constant 5 : index
    %c0_141 = arith.constant 0 : index
    %c0_142 = arith.constant 0 : index
    %123 = vector.load %arg3[%c5_140, %c0_141, %c0_142] : memref<9x128x128xf32, #tpu.memory_space<vmem>>, vector<1x128x128xf32>
    %124 = vector.shape_cast %123 : vector<1x128x128xf32> to vector<128x128xf32>
    %cst_143 = arith.constant dense<0.000000e+00> : vector<512x128xf32>
    %125 = tpu.matmul %122, %124, %cst_143 {dimension_numbers = #tpu.dot_dimension_numbers<[1], [0], [0], [1], [0, 0, 1, 1], [], []>} : vector<512x128xf32>, vector<128x128xf32>, vector<512x128xf32> -> vector<512x128xf32>
    %126 = arith.addf %120, %125 : vector<512x128xf32>
    %c0_144 = arith.constant 0 : index
    %c2_145 = arith.constant 2 : index
    %c0_146 = arith.constant 0 : index
    %c0_147 = arith.constant 0 : index
    %127 = vector.load %arg9[%c0_144, %c2_145, %c0_146, %c0_147] : memref<2x18x18x128xf32, #tpu.memory_space<vmem>>, vector<2x16x16x128xf32>
    %128 = vector.shape_cast %127 : vector<2x16x16x128xf32> to vector<512x128xf32>
    %c6_148 = arith.constant 6 : index
    %c0_149 = arith.constant 0 : index
    %c0_150 = arith.constant 0 : index
    %129 = vector.load %arg3[%c6_148, %c0_149, %c0_150] : memref<9x128x128xf32, #tpu.memory_space<vmem>>, vector<1x128x128xf32>
    %130 = vector.shape_cast %129 : vector<1x128x128xf32> to vector<128x128xf32>
    %cst_151 = arith.constant dense<0.000000e+00> : vector<512x128xf32>
    %131 = tpu.matmul %128, %130, %cst_151 {dimension_numbers = #tpu.dot_dimension_numbers<[1], [0], [0], [1], [0, 0, 1, 1], [], []>} : vector<512x128xf32>, vector<128x128xf32>, vector<512x128xf32> -> vector<512x128xf32>
    %132 = arith.addf %126, %131 : vector<512x128xf32>
    %c0_152 = arith.constant 0 : index
    %c2_153 = arith.constant 2 : index
    %c1_154 = arith.constant 1 : index
    %c0_155 = arith.constant 0 : index
    %133 = vector.load %arg9[%c0_152, %c2_153, %c1_154, %c0_155] : memref<2x18x18x128xf32, #tpu.memory_space<vmem>>, vector<2x16x16x128xf32>
    %134 = vector.shape_cast %133 : vector<2x16x16x128xf32> to vector<512x128xf32>
    %c7_156 = arith.constant 7 : index
    %c0_157 = arith.constant 0 : index
    %c0_158 = arith.constant 0 : index
    %135 = vector.load %arg3[%c7_156, %c0_157, %c0_158] : memref<9x128x128xf32, #tpu.memory_space<vmem>>, vector<1x128x128xf32>
    %136 = vector.shape_cast %135 : vector<1x128x128xf32> to vector<128x128xf32>
    %cst_159 = arith.constant dense<0.000000e+00> : vector<512x128xf32>
    %137 = tpu.matmul %134, %136, %cst_159 {dimension_numbers = #tpu.dot_dimension_numbers<[1], [0], [0], [1], [0, 0, 1, 1], [], []>} : vector<512x128xf32>, vector<128x128xf32>, vector<512x128xf32> -> vector<512x128xf32>
    %138 = arith.addf %132, %137 : vector<512x128xf32>
    %c0_160 = arith.constant 0 : index
    %c2_161 = arith.constant 2 : index
    %c2_162 = arith.constant 2 : index
    %c0_163 = arith.constant 0 : index
    %139 = vector.load %arg9[%c0_160, %c2_161, %c2_162, %c0_163] : memref<2x18x18x128xf32, #tpu.memory_space<vmem>>, vector<2x16x16x128xf32>
    %140 = vector.shape_cast %139 : vector<2x16x16x128xf32> to vector<512x128xf32>
    %c8_164 = arith.constant 8 : index
    %c0_165 = arith.constant 0 : index
    %c0_166 = arith.constant 0 : index
    %141 = vector.load %arg3[%c8_164, %c0_165, %c0_166] : memref<9x128x128xf32, #tpu.memory_space<vmem>>, vector<1x128x128xf32>
    %142 = vector.shape_cast %141 : vector<1x128x128xf32> to vector<128x128xf32>
    %cst_167 = arith.constant dense<0.000000e+00> : vector<512x128xf32>
    %143 = tpu.matmul %140, %142, %cst_167 {dimension_numbers = #tpu.dot_dimension_numbers<[1], [0], [0], [1], [0, 0, 1, 1], [], []>} : vector<512x128xf32>, vector<128x128xf32>, vector<512x128xf32> -> vector<512x128xf32>
    %144 = arith.addf %138, %143 : vector<512x128xf32>
    %cst_168 = arith.constant dense<0.000000e+00> : vector<128xf32>
    %145 = vector.multi_reduction <add>, %144, %cst_168 [0] : vector<512x128xf32> to vector<128xf32>
    %146 = vector.shape_cast %145 : vector<128xf32> to vector<1x128xf32>
    %147 = arith.mulf %144, %144 : vector<512x128xf32>
    %cst_169 = arith.constant dense<0.000000e+00> : vector<128xf32>
    %148 = vector.multi_reduction <add>, %147, %cst_169 [0] : vector<512x128xf32> to vector<128xf32>
    %149 = vector.shape_cast %148 : vector<128xf32> to vector<1x128xf32>
    %cst_170 = arith.constant 0.001953125 : f32
    %150 = vector.broadcast %cst_170 : f32 to vector<1x128xf32>
    %151 = arith.mulf %146, %150 : vector<1x128xf32>
    %cst_171 = arith.constant 0.001953125 : f32
    %152 = vector.broadcast %cst_171 : f32 to vector<1x128xf32>
    %153 = arith.mulf %149, %152 : vector<1x128xf32>
    %154 = arith.mulf %151, %151 : vector<1x128xf32>
    %155 = arith.subf %153, %154 : vector<1x128xf32>
    %cst_172 = arith.constant 0.000000e+00 : f32
    %156 = vector.broadcast %cst_172 : f32 to vector<1x128xf32>
    %157 = arith.maximumf %155, %156 : vector<1x128xf32>
    %c0_173 = arith.constant 0 : index
    %c0_174 = arith.constant 0 : index
    %158 = vector.load %arg6[%c0_173, %c0_174] : memref<1x128xf32, #tpu.memory_space<vmem>>, vector<1x128xf32>
    %cst_175 = arith.constant 9.99999974E-6 : f32
    %159 = vector.broadcast %cst_175 : f32 to vector<1x128xf32>
    %160 = arith.addf %157, %159 : vector<1x128xf32>
    %161 = math.rsqrt %160 : vector<1x128xf32>
    %162 = arith.mulf %158, %161 : vector<1x128xf32>
    %c0_176 = arith.constant 0 : index
    %c0_177 = arith.constant 0 : index
    %163 = vector.load %arg7[%c0_176, %c0_177] : memref<1x128xf32, #tpu.memory_space<vmem>>, vector<1x128xf32>
    %164 = arith.mulf %151, %162 : vector<1x128xf32>
    %165 = arith.subf %163, %164 : vector<1x128xf32>
    %166 = vector.broadcast %162 : vector<1x128xf32> to vector<512x128xf32>
    %167 = arith.mulf %144, %166 : vector<512x128xf32>
    %168 = vector.broadcast %165 : vector<1x128xf32> to vector<512x128xf32>
    %169 = arith.addf %167, %168 : vector<512x128xf32>
    %c0_178 = arith.constant 0 : index
    %c0_179 = arith.constant 0 : index
    %170 = vector.load %arg1[%c0_178, %c0_179] : memref<512x128xf32, #tpu.memory_space<vmem>>, vector<512x128xf32>
    %171 = arith.addf %169, %170 : vector<512x128xf32>
    %cst_180 = arith.constant 0.000000e+00 : f32
    %172 = vector.broadcast %cst_180 : f32 to vector<512x128xf32>
    %173 = arith.maximumf %171, %172 : vector<512x128xf32>
    %c0_181 = arith.constant 0 : index
    %c0_182 = arith.constant 0 : index
    %174 = vector.load %arg8[%c0_181, %c0_182] : memref<512x128xf32, #tpu.memory_space<vmem>>, vector<512x128xf32>
    tpu.vector_store %arg8[%c0_181, %c0_182], %173 {strides = array<i32>} : memref<512x128xf32, #tpu.memory_space<vmem>>, vector<512x128xf32>,
    return
  }
}

</mosaic_0001>

<llo_original>
// kernel: residual_block.1
$region0: #{residual_block.1}
  #allocation0 [shape = 'u32[]', space=smem, size = 0x4, offset = 0x4, fixed_abs, tag = 'smem constant byte address 0x4 - core index']
  #allocation1 [shape = 'u32[144,128]{1,0:T(1,128)}', space=vmem, size = 0x12000, scoped, tag = 'internal scratch']
  #allocation2 [shape = 'f32[2,18,18,128]{3,2,1,0:T(8,128)}', space=vmem, size = 0x6c000, scoped, tag = 'scratch operand']
  %s0 = inlined_call_operand.vmem [shape: f32[2,18,18,128], index: 0, kind: input, shape index: {}]
  %s1 = inlined_call_operand.vmem [shape: f32[512,128], index: 1, kind: input, shape index: {}]
  %s2 = inlined_call_operand.vmem [shape: f32[9,128,128], index: 2, kind: input, shape index: {}]
  %s3 = inlined_call_operand.vmem [shape: f32[9,128,128], index: 3, kind: input, shape index: {}]
  %s4 = inlined_call_operand.vmem [shape: f32[1,128], index: 4, kind: input, shape index: {}]
  %s5 = inlined_call_operand.vmem [shape: f32[1,128], index: 5, kind: input, shape index: {}]
  %s6 = inlined_call_operand.vmem [shape: f32[1,128], index: 6, kind: input, shape index: {}]
  %s7 = inlined_call_operand.vmem [shape: f32[1,128], index: 7, kind: input, shape index: {}]
  %s8 = inlined_call_operand.vmem [shape: f32[512,128], index: 8, kind: output, shape index: {}]
  %s9 = sld [smem:[#allocation0]]
  $region42: #{residual_block.1} parent=0
    _
  %s11 = ssub.s32 1, %s9
  %s12 = scalar_select 0, %s11, %s9
  // Predicated region
  $region2: #{residual_block.1} parent=0 // pred_check
    _
  $region3: #{residual_block.1} parent=0 // pred_check_branch
    %14 = sbr.rel (0) target = $region5
  $region4: #{residual_block.1} parent=0 // pred_region
    _
  $region5: #{residual_block.1} parent=0 // pred_fallthru
    _
  // Predicated region
  $region6: #{residual_block.1} parent=0 // pred_check
    _
  $region7: #{residual_block.1} parent=0 // pred_check_branch
    %16 = sbr.rel (0) target = $region9
  $region8: #{residual_block.1} parent=0 // pred_region
    _
  $region9: #{residual_block.1} parent=0 // pred_fallthru
    _
  // Predicated region
  $region10: #{residual_block.1} parent=0 // pred_check
    _
  $region11: #{residual_block.1} parent=0 // pred_check_branch
    %18 = sbr.rel (0) target = $region13
  $region12: #{residual_block.1} parent=0 // pred_region
    _
  $region13: #{residual_block.1} parent=0 // pred_fallthru
    _
  // Predicated region
  $region14: #{residual_block.1} parent=0 // pred_check
    _
  $region15: #{residual_block.1} parent=0 // pred_check_branch
    %20 = sbr.rel (0) target = $region17
  $region16: #{residual_block.1} parent=0 // pred_region
    _
  $region17: #{residual_block.1} parent=0 // pred_fallthru
    _
  // Predicated region
  $region18: #{residual_block.1} parent=0 // pred_check
    _
  $region19: #{residual_block.1} parent=0 // pred_check_branch
    %22 = sbr.rel (0) target = $region21
  $region20: #{residual_block.1} parent=0 // pred_region
    _
  $region21: #{residual_block.1} parent=0 // pred_fallthru
    _
  // Predicated region
  $region22: #{residual_block.1} parent=0 // pred_check
    _
  $region23: #{residual_block.1} parent=0 // pred_check_branch
    %24 = sbr.rel (0) target = $region25
  $region24: #{residual_block.1} parent=0 // pred_region
    _
  $region25: #{residual_block.1} parent=0 // pred_fallthru
    _
  // Predicated region
  $region26: #{residual_block.1} parent=0 // pred_check
    _
  $region27: #{residual_block.1} parent=0 // pred_check_branch
    %26 = sbr.rel (0) target = $region29
  $region28: #{residual_block.1} parent=0 // pred_region
    _
  $region29: #{residual_block.1} parent=0 // pred_fallthru
    _
  // Predicated region
  $region30: #{residual_block.1} parent=0 // pred_check
    _
  $region31: #{residual_block.1} parent=0 // pred_check_branch
    %28 = sbr.rel (0) target = $region33
  $region32: #{residual_block.1} parent=0 // pred_region
    _
  $region33: #{residual_block.1} parent=0 // pred_fallthru
    _
  %v29 = vld [vmem:[%s0] sm:$0xff]
  %v30 = vld [vmem:[%s0 + $0x8] sm:$0xff]
  %v31 = vld [vmem:[%s0 + $0x18] sm:$0xff]
  %v32 = vld [vmem:[%s0 + $0x20] sm:$0xff]
  %v33 = vld [vmem:[%s0 + $0x30] sm:$0xff]
  %v34 = vld [vmem:[%s0 + $0x38] sm:$0xff]
  %v35 = vld [vmem:[%s0 + $0x48] sm:$0xff]
  %v36 = vld [vmem:[%s0 + $0x50] sm:$0xff]
  %v37 = vld [vmem:[%s0 + $0x60] sm:$0xff]
  %v38 = vld [vmem:[%s0 + $0x68] sm:$0xff]
  %v39 = vld [vmem:[%s0 + $0x78] sm:$0xff]
  %v40 = vld [vmem:[%s0 + $0x80] sm:$0xff]
  %v41 = vld [vmem:[%s0 + $0x90] sm:$0xff]
  %v42 = vld [vmem:[%s0 + $0x98] sm:$0xff]
  %v43 = vld [vmem:[%s0 + $0xa8] sm:$0xff]
  %v44 = vld [vmem:[%s0 + $0xb0] sm:$0xff]
  %v45 = vld [vmem:[%s0 + $0xc0] sm:$0xff]
  %v46 = vld [vmem:[%s0 + $0xc8] sm:$0xff]
  %v47 = vld [vmem:[%s0 + $0xd8] sm:$0xff]
  %v48 = vld [vmem:[%s0 + $0xe0] sm:$0xff]
  %v49 = vld [vmem:[%s0 + $0xf0] sm:$0xff]
  %v50 = vld [vmem:[%s0 + $0xf8] sm:$0xff]
  %v51 = vld [vmem:[%s0 + $0x108] sm:$0xff]
  %v52 = vld [vmem:[%s0 + $0x110] sm:$0xff]
  %v53 = vld [vmem:[%s0 + $0x120] sm:$0xff]
  %v54 = vld [vmem:[%s0 + $0x128] sm:$0xff]
  %v55 = vld [vmem:[%s0 + $0x138] sm:$0xff]
  %v56 = vld [vmem:[%s0 + $0x140] sm:$0xff]
  %v57 = vld [vmem:[%s0 + $0x150] sm:$0xff]
  %v58 = vld [vmem:[%s0 + $0x158] sm:$0xff]
  %v59 = vld [vmem:[%s0 + $0x168] sm:$0xff]
  %v60 = vld [vmem:[%s0 + $0x170] sm:$0xff]
  %v61 = vld [vmem:[%s0 + $0x1b0] sm:$0xff]
  %v62 = vld [vmem:[%s0 + $0x1b8] sm:$0xff]
  %v63 = vld [vmem:[%s0 + $0x1c8] sm:$0xff]
  %v64 = vld [vmem:[%s0 + $0x1d0] sm:$0xff]
  %v65 = vld [vmem:[%s0 + $0x1e0] sm:$0xff]
  %v66 = vld [vmem:[%s0 + $0x1e8] sm:$0xff]
  %v67 = vld [vmem:[%s0 + $0x1f8] sm:$0xff]
  %v68 = vld [vmem:[%s0 + $0x200] sm:$0xff]
  %v69 = vld [vmem:[%s0 + $0x210] sm:$0xff]
  %v70 = vld [vmem:[%s0 + $0x218] sm:$0xff]
  %v71 = vld [vmem:[%s0 + $0x228] sm:$0xff]
  %v72 = vld [vmem:[%s0 + $0x230] sm:$0xff]
  %v73 = vld [vmem:[%s0 + $0x240] sm:$0xff]
  %v74 = vld [vmem:[%s0 + $0x248] sm:$0xff]
  %v75 = vld [vmem:[%s0 + $0x258] sm:$0xff]
  %v76 = vld [vmem:[%s0 + $0x260] sm:$0xff]
  %v77 = vld [vmem:[%s0 + $0x270] sm:$0xff]
  %v78 = vld [vmem:[%s0 + $0x278] sm:$0xff]
  %v79 = vld [vmem:[%s0 + $0x288] sm:$0xff]
  %v80 = vld [vmem:[%s0 + $0x290] sm:$0xff]
  %v81 = vld [vmem:[%s0 + $0x2a0] sm:$0xff]
  %v82 = vld [vmem:[%s0 + $0x2a8] sm:$0xff]
  %v83 = vld [vmem:[%s0 + $0x2b8] sm:$0xff]
  %v84 = vld [vmem:[%s0 + $0x2c0] sm:$0xff]
  %v85 = vld [vmem:[%s0 + $0x2d0] sm:$0xff]
  %v86 = vld [vmem:[%s0 + $0x2d8] sm:$0xff]
  %v87 = vld [vmem:[%s0 + $0x2e8] sm:$0xff]
  %v88 = vld [vmem:[%s0 + $0x2f0] sm:$0xff]
  %v89 = vld [vmem:[%s0 + $0x300] sm:$0xff]
  %v90 = vld [vmem:[%s0 + $0x308] sm:$0xff]
  %v91 = vld [vmem:[%s0 + $0x318] sm:$0xff]
  %v92 = vld [vmem:[%s0 + $0x320] sm:$0xff]
  %v93 = vld [vmem:[%s2] sm:$0xff]
  %v94 = vld [vmem:[%s2 + $0x8] sm:$0xff]
  %v95 = vld [vmem:[%s2 + $0x10] sm:$0xff]
  %v96 = vld [vmem:[%s2 + $0x18] sm:$0xff]
  %v97 = vld [vmem:[%s2 + $0x20] sm:$0xff]
  %v98 = vld [vmem:[%s2 + $0x28] sm:$0xff]
  %v99 = vld [vmem:[%s2 + $0x30] sm:$0xff]
  %v100 = vld [vmem:[%s2 + $0x38] sm:$0xff]
  %v101 = vld [vmem:[%s2 + $0x40] sm:$0xff]
  %v102 = vld [vmem:[%s2 + $0x48] sm:$0xff]
  %v103 = vld [vmem:[%s2 + $0x50] sm:$0xff]
  %v104 = vld [vmem:[%s2 + $0x58] sm:$0xff]
  %v105 = vld [vmem:[%s2 + $0x60] sm:$0xff]
  %v106 = vld [vmem:[%s2 + $0x68] sm:$0xff]
  %v107 = vld [vmem:[%s2 + $0x70] sm:$0xff]
  %v108 = vld [vmem:[%s2 + $0x78] sm:$0xff]
  %v109 = vld [vmem:[%s0 + $0x1] sm:$0xff]
  %v110 = vld [vmem:[%s0 + $0x9] sm:$0xff]
  %v111 = vld [vmem:[%s0 + $0x19] sm:$0xff]
  %v112 = vld [vmem:[%s0 + $0x21] sm:$0xff]
  %v113 = vld [vmem:[%s0 + $0x31] sm:$0xff]
  %v114 = vld [vmem:[%s0 + $0x39] sm:$0xff]
  %v115 = vld [vmem:[%s0 + $0x49] sm:$0xff]
  %v116 = vld [vmem:[%s0 + $0x51] sm:$0xff]
  %v117 = vld [vmem:[%s0 + $0x61] sm:$0xff]
  %v118 = vld [vmem:[%s0 + $0x69] sm:$0xff]
  %v119 = vld [vmem:[%s0 + $0x79] sm:$0xff]
  %v120 = vld [vmem:[%s0 + $0x81] sm:$0xff]
  %v121 = vld [vmem:[%s0 + $0x91] sm:$0xff]
  %v122 = vld [vmem:[%s0 + $0x99] sm:$0xff]
  %v123 = vld [vmem:[%s0 + $0xa9] sm:$0xff]
  %v124 = vld [vmem:[%s0 + $0xb1] sm:$0xff]
  %v125 = vld [vmem:[%s0 + $0xc1] sm:$0xff]
  %v126 = vld [vmem:[%s0 + $0xc9] sm:$0xff]
  %v127 = vld [vmem:[%s0 + $0xd9] sm:$0xff]
  %v128 = vld [vmem:[%s0 + $0xe1] sm:$0xff]
  %v129 = vld [vmem:[%s0 + $0xf1] sm:$0xff]
  %v130 = vld [vmem:[%s0 + $0xf9] sm:$0xff]
  %v131 = vld [vmem:[%s0 + $0x109] sm:$0xff]
  %v132 = vld [vmem:[%s0 + $0x111] sm:$0xff]
  %v133 = vld [vmem:[%s0 + $0x121] sm:$0xff]
  %v134 = vld [vmem:[%s0 + $0x129] sm:$0xff]
  %v135 = vld [vmem:[%s0 + $0x139] sm:$0xff]
  %v136 = vld [vmem:[%s0 + $0x141] sm:$0xff]
  %v137 = vld [vmem:[%s0 + $0x151] sm:$0xff]
  %v138 = vld [vmem:[%s0 + $0x159] sm:$0xff]
  %v139 = vld [vmem:[%s0 + $0x169] sm:$0xff]
  %v140 = vld [vmem:[%s0 + $0x171] sm:$0xff]
  %v141 = vld [vmem:[%s0 + $0x1b1] sm:$0xff]
  %v142 = vld [vmem:[%s0 + $0x1b9] sm:$0xff]
  %v143 = vld [vmem:[%s0 + $0x1c9] sm:$0xff]
  %v144 = vld [vmem:[%s0 + $0x1d1] sm:$0xff]
  %v145 = vld [vmem:[%s0 + $0x1e1] sm:$0xff]
  %v146 = vld [vmem:[%s0 + $0x1e9] sm:$0xff]
  %v147 = vld [vmem:[%s0 + $0x1f9] sm:$0xff]
  %v148 = vld [vmem:[%s0 + $0x201] sm:$0xff]
  %v149 = vld [vmem:[%s0 + $0x211] sm:$0xff]
  %v150 = vld [vmem:[%s0 + $0x219] sm:$0xff]
  %v151 = vld [vmem:[%s0 + $0x229] sm:$0xff]
  %v152 = vld [vmem:[%s0 + $0x231] sm:$0xff]
  %v153 = vld [vmem:[%s0 + $0x241] sm:$0xff]
  %v154 = vld [vmem:[%s0 + $0x249] sm:$0xff]
  %v155 = vld [vmem:[%s0 + $0x259] sm:$0xff]
  %v156 = vld [vmem:[%s0 + $0x261] sm:$0xff]
  %v157 = vld [vmem:[%s0 + $0x271] sm:$0xff]
  %v158 = vld [vmem:[%s0 + $0x279] sm:$0xff]
  %v159 = vld [vmem:[%s0 + $0x289] sm:$0xff]
  %v160 = vld [vmem:[%s0 + $0x291] sm:$0xff]
  %v161 = vld [vmem:[%s0 + $0x2a1] sm:$0xff]
  %v162 = vld [vmem:[%s0 + $0x2a9] sm:$0xff]
  %v163 = vld [vmem:[%s0 + $0x2b9] sm:$0xff]
  %v164 = vld [vmem:[%s0 + $0x2c1] sm:$0xff]
  %v165 = vld [vmem:[%s0 + $0x2d1] sm:$0xff]
  %v166 = vld [vmem:[%s0 + $0x2d9] sm:$0xff]
  %v167 = vld [vmem:[%s0 + $0x2e9] sm:$0xff]
  %v168 = vld [vmem:[%s0 + $0x2f1] sm:$0xff]
  %v169 = vld [vmem:[%s0 + $0x301] sm:$0xff]
  %v170 = vld [vmem:[%s0 + $0x309] sm:$0xff]
  %v171 = vld [vmem:[%s0 + $0x319] sm:$0xff]
  %v172 = vld [vmem:[%s0 + $0x321] sm:$0xff]
  %s173 = scalar_lea.vmem %s2, 128
  %v174 = vld [vmem:[%s173] sm:$0xff]
  %v175 = vld [vmem:[%s173 + $0x8] sm:$0xff]
  %v176 = vld [vmem:[%s173 + $0x10] sm:$0xff]
  %v177 = vld [vmem:[%s173 + $0x18] sm:$0xff]
  %v178 = vld [vmem:[%s173 + $0x20] sm:$0xff]
  %v179 = vld [vmem:[%s173 + $0x28] sm:$0xff]
  %v180 = vld [vmem:[%s173 + $0x30] sm:$0xff]
  %v181 = vld [vmem:[%s173 + $0x38] sm:$0xff]
  %v182 = vld [vmem:[%s173 + $0x40] sm:$0xff]
  %v183 = vld [vmem:[%s173 + $0x48] sm:$0xff]
  %v184 = vld [vmem:[%s173 + $0x50] sm:$0xff]
  %v185 = vld [vmem:[%s173 + $0x58] sm:$0xff]
  %v186 = vld [vmem:[%s173 + $0x60] sm:$0xff]
  %v187 = vld [vmem:[%s173 + $0x68] sm:$0xff]
  %v188 = vld [vmem:[%s173 + $0x70] sm:$0xff]
  %v189 = vld [vmem:[%s173 + $0x78] sm:$0xff]
  %190 = vmatprep.subr.mxu0 0.0
  %191 = vmatpush1.msra.mxu0 %v174
  %192 = vmatprep.subr.mxu0 0.0
  %193 = vmatpush1.msra.mxu0 %v175
  %194 = vmatprep.subr.mxu0 0.0
  %195 = vmatpush1.msra.mxu0 %v176
  %196 = vmatprep.subr.mxu0 0.0
  %197 = vmatpush1.msra.mxu0 %v177
  %198 = vmatprep.subr.mxu0 0.0
  %199 = vmatpush1.msra.mxu0 %v178
  %200 = vmatprep.subr.mxu0 0.0
  %201 = vmatpush1.msra.mxu0 %v179
  %202 = vmatprep.subr.mxu0 0.0
  %203 = vmatpush1.msra.mxu0 %v180
  %204 = vmatprep.subr.mxu0 0.0
  %205 = vmatpush1.msra.mxu0 %v181
  %206 = vmatprep.subr.mxu0 0.0
  %207 = vmatpush1.msra.mxu0 %v182
  %208 = vmatprep.subr.mxu0 0.0
  %209 = vmatpush1.msra.mxu0 %v183
  %210 = vmatprep.subr.mxu0 0.0
  %211 = vmatpush1.msra.mxu0 %v184
  %212 = vmatprep.subr.mxu0 0.0
  %213 = vmatpush1.msra.mxu0 %v185
  %214 = vmatprep.subr.mxu0 0.0
  %215 = vmatpush1.msra.mxu0 %v186
  %216 = vmatprep.subr.mxu0 0.0
  %217 = vmatpush1.msra.mxu0 %v187
  %218 = vmatprep.subr.mxu0 0.0
  %219 = vmatpush1.msra.mxu0 %v188
  %220 = vmatprep.subr.mxu0 0.0
  %221 = vmatpush1.msra.mxu0 %v189
  %222 = vmatprep.subr.mxu0 0.0
  %223 = vmatpush1.msra.mxu0 0.0
  %224 = vmatprep.subr.mxu0 0.0
  %225 = vmatpush1.msra.mxu0 0.0
  %226 = vmatprep.subr.mxu0 0.0
  %227 = vmatpush1.msra.mxu0 0.0
  %228 = vmatprep.subr.mxu0 0.0
  %229 = vmatpush1.msra.mxu0 0.0
  %230 = vmatprep.subr.mxu0 0.0
  %231 = vmatpush1.msra.mxu0 0.0
  %232 = vmatprep.subr.mxu0 0.0
  %233 = vmatpush1.msra.mxu0 0.0
  %234 = vmatprep.subr.mxu0 0.0
  %235 = vmatpush1.msra.mxu0 0.0
  %236 = vmatprep.subr.mxu0 0.0
  %237 = vmatpush1.msra.mxu0 0.0
  %238 = vmatprep.subr.mxu0 0.0
  %239 = vmatpush1.msra.mxu0 0.0
  %240 = vmatprep.subr.mxu0 0.0
  %241 = vmatpush1.msra.mxu0 0.0
  %242 = vmatprep.subr.mxu0 0.0
  %243 = vmatpush1.msra.mxu0 0.0
  %244 = vmatprep.subr.mxu0 0.0
  %245 = vmatpush1.msra.mxu0 0.0
  %246 = vmatprep.subr.mxu0 0.0
  %247 = vmatpush1.msra.mxu0 0.0
  %248 = vmatprep.subr.mxu0 0.0
  %249 = vmatpush1.msra.mxu0 0.0
  %250 = vmatprep.subr.mxu0 0.0
  %251 = vmatpush1.msra.mxu0 0.0
  %252 = vmatprep.subr.mxu0 0.0
  %253 = vmatpush1.msra.mxu0 0.0
  %254 = vmatprep.mubr.f32.mxu0 0.0
  %255 = vmatmul.mubr.f32.gmra.mrb[0].mxu0 %v109
  %v256 = vpop.f32.mrb[0].mxu0
  %v257 = vadd.f32 0.0, %v256
  %v258 = vpop.f32.mrb[0].mxu0
  %259 = vmatprep.mubr.f32.mxu0 0.0
  %260 = vmatmul.mubr.f32.gmra.mrb[0].mxu0 %v110
  %v261 = vpop.f32.mrb[0].mxu0
  %v262 = vadd.f32 0.0, %v261
  %v263 = vpop.f32.mrb[0].mxu0
  %264 = vmatprep.mubr.f32.mxu0 0.0
  %265 = vmatmul.mubr.f32.gmra.mrb[0].mxu0 %v111
  %v266 = vpop.f32.mrb[0].mxu0
  %v267 = vadd.f32 0.0, %v266
  %v268 = vpop.f32.mrb[0].mxu0
  %269 = vmatprep.mubr.f32.mxu0 0.0
  %270 = vmatmul.mubr.f32.gmra.mrb[0].mxu0 %v112
  %v271 = vpop.f32.mrb[0].mxu0
  %v272 = vadd.f32 0.0, %v271
  %v273 = vpop.f32.mrb[0].mxu0
  %274 = vmatprep.mubr.f32.mxu0 0.0
  %275 = vmatmul.mubr.f32.gmra.mrb[0].mxu0 %v113
  %v276 = vpop.f32.mrb[0].mxu0
  %v277 = vadd.f32 0.0, %v276
  %v278 = vpop.f32.mrb[0].mxu0
  %279 = vmatprep.mubr.f32.mxu0 0.0
  %280 = vmatmul.mubr.f32.gmra.mrb[0].mxu0 %v114
  %v281 = vpop.f32.mrb[0].mxu0
  %v282 = vadd.f32 0.0, %v281
  %v283 = vpop.f32.mrb[0].mxu0
  %284 = vmatprep.mubr.f32.mxu0 0.0
  %285 = vmatmul.mubr.f32.gmra.mrb[0].mxu0 %v115
  %v286 = vpop.f32.mrb[0].mxu0
  %v287 = vadd.f32 0.0, %v286
  %v288 = vpop.f32.mrb[0].mxu0
  %289 = vmatprep.mubr.f32.mxu0 0.0
  %290 = vmatmul.mubr.f32.gmra.mrb[0].mxu0 %v116
  %v291 = vpop.f32.mrb[0].mxu0
  %v292 = vadd.f32 0.0, %v291
  %v293 = vpop.f32.mrb[0].mxu0
  %294 = vmatprep.mubr.f32.mxu0 0.0
  %295 = vmatmul.mubr.f32.gmra.mrb[0].mxu0 %v117
  %v296 = vpop.f32.mrb[0].mxu0
  %v297 = vadd.f32 0.0, %v296
  %v298 = vpop.f32.mrb[0].mxu0
  %299 = vmatprep.mubr.f32.mxu0 0.0
  %300 = vmatmul.mubr.f32.gmra.mrb[0].mxu0 %v118
  %v301 = vpop.f32.mrb[0].mxu0
  %v302 = vadd.f32 0.0, %v301
  %v303 = vpop.f32.mrb[0].mxu0
  %304 = vmatprep.mubr.f32.mxu0 0.0
  %305 = vmatmul.mubr.f32.gmra.mrb[0].mxu0 %v119
  %v306 = vpop.f32.mrb[0].mxu0
  %v307 = vadd.f32 0.0, %v306
  %v308 = vpop.f32.mrb[0].mxu0
  %309 = vmatprep.mubr.f32.mxu0 0.0
  %310 = vmatmul.mubr.f32.gmra.mrb[0].mxu0 %v120
  %v311 = vpop.f32.mrb[0].mxu0
  %v312 = vadd.f32 0.0, %v311
  %v313 = vpop.f32.mrb[0].mxu0
  %314 = vmatprep.mubr.f32.mxu0 0.0
  %315 = vmatmul.mubr.f32.gmra.mrb[0].mxu0 %v121
  %v316 = vpop.f32.mrb[0].mxu0
  %v317 = vadd.f32 0.0, %v316
  %v318 = vpop.f32.mrb[0].mxu0
  %319 = vmatprep.mubr.f32.mxu0 0.0
  %320 = vmatmul.mubr.f32.gmra.mrb[0].mxu0 %v122
  %v321 = vpop.f32.mrb[0].mxu0
  %v322 = vadd.f32 0.0, %v321
  %v323 = vpop.f32.mrb[0].mxu0
  %324 = vmatprep.mubr.f32.mxu0 0.0
  %325 = vmatmul.mubr.f32.gmra.mrb[0].mxu0 %v123
  %v326 = vpop.f32.mrb[0].mxu0
  %v327 = vadd.f32 0.0, %v326
  %v328 = vpop.f32.mrb[0].mxu0
  %329 = vmatprep.mubr.f32.mxu0 0.0
  %330 = vmatmul.mubr.f32.gmra.mrb[0].mxu0 %v124
  %v331 = vpop.f32.mrb[0].mxu0
  %v332 = vadd.f32 0.0, %v331
  %v333 = vpop.f32.mrb[0].mxu0
  %334 = vmatprep.mubr.f32.mxu0 0.0
  %335 = vmatmul.mubr.f32.gmra.mrb[0].mxu0 %v125
  %v336 = vpop.f32.mrb[0].mxu0
  %v337 = vadd.f32 0.0, %v336
  %v338 = vpop.f32.mrb[0].mxu0
  %339 = vmatprep.mubr.f32.mxu0 0.0
  %340 = vmatmul.mubr.f32.gmra.mrb[0].mxu0 %v126
  %v341 = vpop.f32.mrb[0].mxu0
  %v342 = vadd.f32 0.0, %v341
  %v343 = vpop.f32.mrb[0].mxu0
  %344 = vmatprep.mubr.f32.mxu0 0.0
  %345 = vmatmul.mubr.f32.gmra.mrb[0].mxu0 %v127
  %v346 = vpop.f32.mrb[0].mxu0
  %v347 = vadd.f32 0.0, %v346
  %v348 = vpop.f32.mrb[0].mxu0
  %349 = vmatprep.mubr.f32.mxu0 0.0
  %350 = vmatmul.mubr.f32.gmra.mrb[0].mxu0 %v128
  %v351 = vpop.f32.mrb[0].mxu0
  %v352 = vadd.f32 0.0, %v351
  %v353 = vpop.f32.mrb[0].mxu0
  %354 = vmatprep.mubr.f32.mxu0 0.0
  %355 = vmatmul.mubr.f32.gmra.mrb[0].mxu0 %v129
  %v356 = vpop.f32.mrb[0].mxu0
  %v357 = vadd.f32 0.0, %v356
  %v358 = vpop.f32.mrb[0].mxu0
  %359 = vmatprep.mubr.f32.mxu0 0.0
  %360 = vmatmul.mubr.f32.gmra.mrb[0].mxu0 %v130
  %v361 = vpop.f32.mrb[0].mxu0
  %v362 = vadd.f32 0.0, %v361
  %v363 = vpop.f32.mrb[0].mxu0
  %364 = vmatprep.mubr.f32.mxu0 0.0
  %365 = vmatmul.mubr.f32.gmra.mrb[0].mxu0 %v131
  %v366 = vpop.f32.mrb[0].mxu0
  %v367 = vadd.f32 0.0, %v366
  %v368 = vpop.f32.mrb[0].mxu0
  %369 = vmatprep.mubr.f32.mxu0 0.0
  %370 = vmatmul.mubr.f32.gmra.mrb[0].mxu0 %v132
  %v371 = vpop.f32.mrb[0].mxu0
  %v372 = vadd.f32 0.0, %v371
  %v373 = vpop.f32.mrb[0].mxu0
  %374 = vmatprep.mubr.f32.mxu0 0.0
  %375 = vmatmul.mubr.f32.gmra.mrb[0].mxu0 %v133
  %v376 = vpop.f32.mrb[0].mxu0
  %v377 = vadd.f32 0.0, %v376
  %v378 = vpop.f32.mrb[0].mxu0
  %379 = vmatprep.mubr.f32.mxu0 0.0
  %380 = vmatmul.mubr.f32.gmra.mrb[0].mxu0 %v134
  %v381 = vpop.f32.mrb[0].mxu0
  %v382 = vadd.f32 0.0, %v381
  %v383 = vpop.f32.mrb[0].mxu0
  %384 = vmatprep.mubr.f32.mxu0 0.0
  %385 = vmatmul.mubr.f32.gmra.mrb[0].mxu0 %v135
  %v386 = vpop.f32.mrb[0].mxu0
  %v387 = vadd.f32 0.0, %v386
  %v388 = vpop.f32.mrb[0].mxu0
  %389 = vmatprep.mubr.f32.mxu0 0.0
  %390 = vmatmul.mubr.f32.gmra.mrb[0].mxu0 %v136
  %v391 = vpop.f32.mrb[0].mxu0
  %v392 = vadd.f32 0.0, %v391
  %v393 = vpop.f32.mrb[0].mxu0
  %394 = vmatprep.mubr.f32.mxu0 0.0
  %395 = vmatmul.mubr.f32.gmra.mrb[0].mxu0 %v137
  %v396 = vpop.f32.mrb[0].mxu0
  %v397 = vadd.f32 0.0, %v396
  %v398 = vpop.f32.mrb[0].mxu0
  %399 = vmatprep.mubr.f32.mxu0 0.0
  %400 = vmatmul.mubr.f32.gmra.mrb[0].mxu0 %v138
  %v401 = vpop.f32.mrb[0].mxu0
  %v402 = vadd.f32 0.0, %v401
  %v403 = vpop.f32.mrb[0].mxu0
  %404 = vmatprep.mubr.f32.mxu0 0.0
  %405 = vmatmul.mubr.f32.gmra.mrb[0].mxu0 %v139
  %v406 = vpop.f32.mrb[0].mxu0
  %v407 = vadd.f32 0.0, %v406
  %v408 = vpop.f32.mrb[0].mxu0
  %409 = vmatprep.mubr.f32.mxu0 0.0
  %410 = vmatmul.mubr.f32.gmra.mrb[0].mxu0 %v140
  %v411 = vpop.f32.mrb[0].mxu0
  %v412 = vadd.f32 0.0, %v411
  %v413 = vpop.f32.mrb[0].mxu0
  %414 = vmatprep.mubr.f32.mxu0 0.0
  %415 = vmatmul.mubr.f32.gmra.mrb[0].mxu0 %v141
  %v416 = vpop.f32.mrb[0].mxu0
  %v417 = vadd.f32 0.0, %v416
  %v418 = vpop.f32.mrb[0].mxu0
  %419 = vmatprep.mubr.f32.mxu0 0.0
  %420 = vmatmul.mubr.f32.gmra.mrb[0].mxu0 %v142
  %v421 = vpop.f32.mrb[0].mxu0
  %v422 = vadd.f32 0.0, %v421
  %v423 = vpop.f32.mrb[0].mxu0
  %424 = vmatprep.mubr.f32.mxu0 0.0
  %425 = vmatmul.mubr.f32.gmra.mrb[0].mxu0 %v143
  %v426 = vpop.f32.mrb[0].mxu0
  %v427 = vadd.f32 0.0, %v426
  %v428 = vpop.f32.mrb[0].mxu0
  %429 = vmatprep.mubr.f32.mxu0 0.0
  %430 = vmatmul.mubr.f32.gmra.mrb[0].mxu0 %v144
  %v431 = vpop.f32.mrb[0].mxu0
  %v432 = vadd.f32 0.0, %v431
  %v433 = vpop.f32.mrb[0].mxu0
  %434 = vmatprep.mubr.f32.mxu0 0.0
  %435 = vmatmul.mubr.f32.gmra.mrb[0].mxu0 %v145
  %v436 = vpop.f32.mrb[0].mxu0
  %v437 = vadd.f32 0.0, %v436
  %v438 = vpop.f32.mrb[0].mxu0
  %439 = vmatprep.mubr.f32.mxu0 0.0
  %440 = vmatmul.mubr.f32.gmra.mrb[0].mxu0 %v146
  %v441 = vpop.f32.mrb[0].mxu0
  %v442 = vadd.f32 0.0, %v441
  %v443 = vpop.f32.mrb[0].mxu0
  %444 = vmatprep.mubr.f32.mxu0 0.0
  %445 = vmatmul.mubr.f32.gmra.mrb[0].mxu0 %v147
  %v446 = vpop.f32.mrb[0].mxu0
  %v447 = vadd.f32 0.0, %v446
  %v448 = vpop.f32.mrb[0].mxu0
  %449 = vmatprep.mubr.f32.mxu0 0.0
  %450 = vmatmul.mubr.f32.gmra.mrb[0].mxu0 %v148
  %v451 = vpop.f32.mrb[0].mxu0
  %v452 = vadd.f32 0.0, %v451
  %v453 = vpop.f32.mrb[0].mxu0
  %454 = vmatprep.mubr.f32.mxu0 0.0
  %455 = vmatmul.mubr.f32.gmra.mrb[0].mxu0 %v149
  %v456 = vpop.f32.mrb[0].mxu0
  %v457 = vadd.f32 0.0, %v456
  %v458 = vpop.f32.mrb[0].mxu0
  %459 = vmatprep.mubr.f32.mxu0 0.0
  %460 = vmatmul.mubr.f32.gmra.mrb[0].mxu0 %v150
  %v461 = vpop.f32.mrb[0].mxu0
  %v462 = vadd.f32 0.0, %v461
  %v463 = vpop.f32.mrb[0].mxu0
  %464 = vmatprep.mubr.f32.mxu0 0.0
  %465 = vmatmul.mubr.f32.gmra.mrb[0].mxu0 %v151
  %v466 = vpop.f32.mrb[0].mxu0
  %v467 = vadd.f32 0.0, %v466
  %v468 = vpop.f32.mrb[0].mxu0
  %469 = vmatprep.mubr.f32.mxu0 0.0
  %470 = vmatmul.mubr.f32.gmra.mrb[0].mxu0 %v152
  %v471 = vpop.f32.mrb[0].mxu0
  %v472 = vadd.f32 0.0, %v471
  %v473 = vpop.f32.mrb[0].mxu0
  %474 = vmatprep.mubr.f32.mxu0 0.0
  %475 = vmatmul.mubr.f32.gmra.mrb[0].mxu0 %v153
  %v476 = vpop.f32.mrb[0].mxu0
  %v477 = vadd.f32 0.0, %v476
  %v478 = vpop.f32.mrb[0].mxu0
  %479 = vmatprep.mubr.f32.mxu0 0.0
  %480 = vmatmul.mubr.f32.gmra.mrb[0].mxu0 %v154
  %v481 = vpop.f32.mrb[0].mxu0
  %v482 = vadd.f32 0.0, %v481
  %v483 = vpop.f32.mrb[0].mxu0
  %484 = vmatprep.mubr.f32.mxu0 0.0
  %485 = vmatmul.mubr.f32.gmra.mrb[0].mxu0 %v155
  %v486 = vpop.f32.mrb[0].mxu0
  %v487 = vadd.f32 0.0, %v486
  %v488 = vpop.f32.mrb[0].mxu0
  %489 = vmatprep.mubr.f32.mxu0 0.0
  %490 = vmatmul.mubr.f32.gmra.mrb[0].mxu0 %v156
  %v491 = vpop.f32.mrb[0].mxu0
  %v492 = vadd.f32 0.0, %v491
  %v493 = vpop.f32.mrb[0].mxu0
  %494 = vmatprep.mubr.f32.mxu0 0.0
  %495 = vmatmul.mubr.f32.gmra.mrb[0].mxu0 %v157
  %v496 = vpop.f32.mrb[0].mxu0
  %v497 = vadd.f32 0.0, %v496
  %v498 = vpop.f32.mrb[0].mxu0
  %499 = vmatprep.mubr.f32.mxu0 0.0
  %500 = vmatmul.mubr.f32.gmra.mrb[0].mxu0 %v158
  %v501 = vpop.f32.mrb[0].mxu0
  %v502 = vadd.f32 0.0, %v501
  %v503 = vpop.f32.mrb[0].mxu0
  %504 = vmatprep.mubr.f32.mxu0 0.0
  %505 = vmatmul.mubr.f32.gmra.mrb[0].mxu0 %v159
  %v506 = vpop.f32.mrb[0].mxu0
  %v507 = vadd.f32 0.0, %v506
  %v508 = vpop.f32.mrb[0].mxu0
  %509 = vmatprep.mubr.f32.mxu0 0.0
  %510 = vmatmul.mubr.f32.gmra.mrb[0].mxu0 %v160
  %v511 = vpop.f32.mrb[0].mxu0
  %v512 = vadd.f32 0.0, %v511
  %v513 = vpop.f32.mrb[0].mxu0
  %514 = vmatprep.mubr.f32.mxu0 0.0
  %515 = vmatmul.mubr.f32.gmra.mrb[0].mxu0 %v161
  %v516 = vpop.f32.mrb[0].mxu0
  %v517 = vadd.f32 0.0, %v516
  %v518 = vpop.f32.mrb[0].mxu0
  %519 = vmatprep.mubr.f32.mxu0 0.0
  %520 = vmatmul.mubr.f32.gmra.mrb[0].mxu0 %v162
  %v521 = vpop.f32.mrb[0].mxu0
  %v522 = vadd.f32 0.0, %v521
  %v523 = vpop.f32.mrb[0].mxu0
  %524 = vmatprep.mubr.f32.mxu0 0.0
  %525 = vmatmul.mubr.f32.gmra.mrb[0].mxu0 %v163
  %v526 = vpop.f32.mrb[0].mxu0
  %v527 = vadd.f32 0.0, %v526
  %v528 = vpop.f32.mrb[0].mxu0
  %529 = vmatprep.mubr.f32.mxu0 0.0
  %530 = vmatmul.mubr.f32.gmra.mrb[0].mxu0 %v164
  %v531 = vpop.f32.mrb[0].mxu0
  %v532 = vadd.f32 0.0, %v531
  %v533 = vpop.f32.mrb[0].mxu0
  %534 = vmatprep.mubr.f32.mxu0 0.0
  %535 = vmatmul.mubr.f32.gmra.mrb[0].mxu0 %v165
  %v536 = vpop.f32.mrb[0].mxu0
  %v537 = vadd.f32 0.0, %v536
  %v538 = vpop.f32.mrb[0].mxu0
  %539 = vmatprep.mubr.f32.mxu0 0.0
  %540 = vmatmul.mubr.f32.gmra.mrb[0].mxu0 %v166
  %v541 = vpop.f32.mrb[0].mxu0
  %v542 = vadd.f32 0.0, %v541
  %v543 = vpop.f32.mrb[0].mxu0
  %544 = vmatprep.mubr.f32.mxu0 0.0
  %545 = vmatmul.mubr.f32.gmra.mrb[0].mxu0 %v167
  %v546 = vpop.f32.mrb[0].mxu0
  %v547 = vadd.f32 0.0, %v546
  %v548 = vpop.f32.mrb[0].mxu0
  %549 = vmatprep.mubr.f32.mxu0 0.0
  %550 = vmatmul.mubr.f32.gmra.mrb[0].mxu0 %v168
  %v551 = vpop.f32.mrb[0].mxu0
  %v552 = vadd.f32 0.0, %v551
  %v553 = vpop.f32.mrb[0].mxu0
  %554 = vmatprep.mubr.f32.mxu0 0.0
  %555 = vmatmul.mubr.f32.gmra.mrb[0].mxu0 %v169
  %v556 = vpop.f32.mrb[0].mxu0
  %v557 = vadd.f32 0.0, %v556
  %v558 = vpop.f32.mrb[0].mxu0
  %559 = vmatprep.mubr.f32.mxu0 0.0
  %560 = vmatmul.mubr.f32.gmra.mrb[0].mxu0 %v170
  %v561 = vpop.f32.mrb[0].mxu0
  %v562 = vadd.f32 0.0, %v561
  %v563 = vpop.f32.mrb[0].mxu0
  %564 = vmatprep.mubr.f32.mxu0 0.0
  %565 = vmatmul.mubr.f32.gmra.mrb[0].mxu0 %v171
  %v566 = vpop.f32.mrb[0].mxu0
  %v567 = vadd.f32 0.0, %v566
  %v568 = vpop.f32.mrb[0].mxu0
  %569 = vmatprep.mubr.f32.mxu0 0.0
  %570 = vmatmul.mubr.f32.gmra.mrb[0].mxu0 %v172
  %v571 = vpop.f32.mrb[0].mxu0
  %v572 = vadd.f32 0.0, %v571
  %v573 = vpop.f32.mrb[0].mxu0
  %574 = vdwg.mxu0
  %575 = vmatprep.subr.mxu0 0.0
  %576 = vmatpush1.msra.mxu0 %v93
  %577 = vmatprep.subr.mxu0 0.0
  %578 = vmatpush1.msra.mxu0 %v94
  %579 = vmatprep.subr.mxu0 0.0
  %580 = vmatpush1.msra.mxu0 %v95
  %581 = vmatprep.subr.mxu0 0.0
  %582 = vmatpush1.msra.mxu0 %v96
  %583 = vmatprep.subr.mxu0 0.0
  %584 = vmatpush1.msra.mxu0 %v97
  %585 = vmatprep.subr.mxu0 0.0
  %586 = vmatpush1.msra.mxu0 %v98
  %587 = vmatprep.subr.mxu0 0.0
  %588 = vmatpush1.msra.mxu0 %v99
  %589 = vmatprep.subr.mxu0 0.0
  %590 = vmatpush1.msra.mxu0 %v100
  %591 = vmatprep.subr.mxu0 0.0
  %592 = vmatpush1.msra.mxu0 %v101
  %593 = vmatprep.subr.mxu0 0.0
  %594 = vmatpush1.msra.mxu0 %v102
  %595 = vmatprep.subr.mxu0 0.0
  %596 = vmatpush1.msra.mxu0 %v103
  %597 = vmatprep.subr.mxu0 0.0
  %598 = vmatpush1.msra.mxu0 %v104
  %599 = vmatprep.subr.mxu0 0.0
  %600 = vmatpush1.msra.mxu0 %v105
  %601 = vmatprep.subr.mxu0 0.0
  %602 = vmatpush1.msra.mxu0 %v106
  %603 = vmatprep.subr.mxu0 0.0
  %604 = vmatpush1.msra.mxu0 %v107
  %605 = vmatprep.subr.mxu0 0.0
  %606 = vmatpush1.msra.mxu0 %v108
  %607 = vmatprep.subr.mxu0 0.0
  %608 = vmatpush1.msra.mxu0 0.0
  %609 = vmatprep.subr.mxu0 0.0
  %610 = vmatpush1.msra.mxu0 0.0
  %611 = vmatprep.subr.mxu0 0.0
  %612 = vmatpush1.msra.mxu0 0.0
  %613 = vmatprep.subr.mxu0 0.0
  %614 = vmatpush1.msra.mxu0 0.0
  %615 = vmatprep.subr.mxu0 0.0
  %616 = vmatpush1.msra.mxu0 0.0
  %617 = vmatprep.subr.mxu0 0.0
  %618 = vmatpush1.msra.mxu0 0.0
  %619 = vmatprep.subr.mxu0 0.0
  %620 = vmatpush1.msra.mxu0 0.0
  %621 = vmatprep.subr.mxu0 0.0
  %622 = vmatpush1.msra.mxu0 0.0
  %623 = vmatprep.subr.mxu0 0.0
  %624 = vmatpush1.msra.mxu0 0.0
  %625 = vmatprep.subr.mxu0 0.0
  %626 = vmatpush1.msra.mxu0 0.0
  %627 = vmatprep.subr.mxu0 0.0
  %628 = vmatpush1.msra.mxu0 0.0
  %629 = vmatprep.subr.mxu0 0.0
  %630 = vmatpush1.msra.mxu0 0.0
  %631 = vmatprep.subr.mxu0 0.0
  %632 = vmatpush1.msra.mxu0 0.0
  %633 = vmatprep.subr.mxu0 0.0
  %634 = vmatpush1.msra.mxu0 0.0
  %635 = vmatprep.subr.mxu0 0.0
  %636 = vmatpush1.msra.mxu0 0.0
  %637 = vmatprep.subr.mxu0 0.0
  %638 = vmatpush1.msra.mxu0 0.0
  %639 = vmatprep.mubr.f32.mxu0 0.0
  %640 = vmatmul.mubr.f32.gmra.mrb[0].mxu0 %v29
  %v641 = vpop.f32.mrb[0].mxu0
  %v642 = vadd.f32 %v257, %v641
  %v643 = vpop.f32.mrb[0].mxu0
  %644 = vmatprep.mubr.f32.mxu0 0.0
  %645 = vmatmul.mubr.f32.gmra.mrb[0].mxu0 %v30
  %v646 = vpop.f32.mrb[0].mxu0
  %v647 = vadd.f32 %v262, %v646
  %v648 = vpop.f32.mrb[0].mxu0
  %649 = vmatprep.mubr.f32.mxu0 0.0
  %650 = vmatmul.mubr.f32.gmra.mrb[0].mxu0 %v31
  %v651 = vpop.f32.mrb[0].mxu0
  %v652 = vadd.f32 %v267, %v651
  %v653 = vpop.f32.mrb[0].mxu0
  %654 = vmatprep.mubr.f32.mxu0 0.0
  %655 = vmatmul.mubr.f32.gmra.mrb[0].mxu0 %v32
  %v656 = vpop.f32.mrb[0].mxu0
  %v657 = vadd.f32 %v272, %v656
  %v658 = vpop.f32.mrb[0].mxu0
  %659 = vmatprep.mubr.f32.mxu0 0.0
  %660 = vmatmul.mubr.f32.gmra.mrb[0].mxu0 %v33
  %v661 = vpop.f32.mrb[0].mxu0
  %v662 = vadd.f32 %v277, %v661
  %v663 = vpop.f32.mrb[0].mxu0
  %664 = vmatprep.mubr.f32.mxu0 0.0
  %665 = vmatmul.mubr.f32.gmra.mrb[0].mxu0 %v34
  %v666 = vpop.f32.mrb[0].mxu0
  %v667 = vadd.f32 %v282, %v666
  %v668 = vpop.f32.mrb[0].mxu0
  %669 = vmatprep.mubr.f32.mxu0 0.0
  %670 = vmatmul.mubr.f32.gmra.mrb[0].mxu0 %v35
  %v671 = vpop.f32.mrb[0].mxu0
  %v672 = vadd.f32 %v287, %v671
  %v673 = vpop.f32.mrb[0].mxu0
  %674 = vmatprep.mubr.f32.mxu0 0.0
  %675 = vmatmul.mubr.f32.gmra.mrb[0].mxu0 %v36
  %v676 = vpop.f32.mrb[0].mxu0
  %v677 = vadd.f32 %v292, %v676
  %v678 = vpop.f32.mrb[0].mxu0
  %679 = vmatprep.mubr.f32.mxu0 0.0
  %680 = vmatmul.mubr.f32.gmra.mrb[0].mxu0 %v37
  %v681 = vpop.f32.mrb[0].mxu0
  %v682 = vadd.f32 %v297, %v681
  %v683 = vpop.f32.mrb[0].mxu0
  %684 = vmatprep.mubr.f32.mxu0 0.0
  %685 = vmatmul.mubr.f32.gmra.mrb[0].mxu0 %v38
  %v686 = vpop.f32.mrb[0].mxu0
  %v687 = vadd.f32 %v302, %v686
  %v688 = vpop.f32.mrb[0].mxu0
  %689 = vmatprep.mubr.f32.mxu0 0.0
  %690 = vmatmul.mubr.f32.gmra.mrb[0].mxu0 %v39
  %v691 = vpop.f32.mrb[0].mxu0
  %v692 = vadd.f32 %v307, %v691
  %v693 = vpop.f32.mrb[0].mxu0
  %694 = vmatprep.mubr.f32.mxu0 0.0
  %695 = vmatmul.mubr.f32.gmra.mrb[0].mxu0 %v40
  %v696 = vpop.f32.mrb[0].mxu0
  %v697 = vadd.f32 %v312, %v696
  %v698 = vpop.f32.mrb[0].mxu0
  %699 = vmatprep.mubr.f32.mxu0 0.0
  %700 = vmatmul.mubr.f32.gmra.mrb[0].mxu0 %v41
  %v701 = vpop.f32.mrb[0].mxu0
  %v702 = vadd.f32 %v317, %v701
  %v703 = vpop.f32.mrb[0].mxu0
  %704 = vmatprep.mubr.f32.mxu0 0.0
  %705 = vmatmul.mubr.f32.gmra.mrb[0].mxu0 %v42
  %v706 = vpop.f32.mrb[0].mxu0
  %v707 = vadd.f32 %v322, %v706
  %v708 = vpop.f32.mrb[0].mxu0
  %709 = vmatprep.mubr.f32.mxu0 0.0
  %710 = vmatmul.mubr.f32.gmra.mrb[0].mxu0 %v43
  %v711 = vpop.f32.mrb[0].mxu0
  %v712 = vadd.f32 %v327, %v711
  %v713 = vpop.f32.mrb[0].mxu0
  %714 = vmatprep.mubr.f32.mxu0 0.0
  %715 = vmatmul.mubr.f32.gmra.mrb[0].mxu0 %v44
  %v716 = vpop.f32.mrb[0].mxu0
  %v717 = vadd.f32 %v332, %v716
  %v718 = vpop.f32.mrb[0].mxu0
  %719 = vmatprep.mubr.f32.mxu0 0.0
  %720 = vmatmul.mubr.f32.gmra.mrb[0].mxu0 %v45
  %v721 = vpop.f32.mrb[0].mxu0
  %v722 = vadd.f32 %v337, %v721
  %v723 = vpop.f32.mrb[0].mxu0
  %724 = vmatprep.mubr.f32.mxu0 0.0
  %725 = vmatmul.mubr.f32.gmra.mrb[0].mxu0 %v46
  %v726 = vpop.f32.mrb[0].mxu0
  %v727 = vadd.f32 %v342, %v726
  %v728 = vpop.f32.mrb[0].mxu0
  %729 = vmatprep.mubr.f32.mxu0 0.0
  %730 = vmatmul.mubr.f32.gmra.mrb[0].mxu0 %v47
  %v731 = vpop.f32.mrb[0].mxu0
  %v732 = vadd.f32 %v347, %v731
  %v733 = vpop.f32.mrb[0].mxu0
  %734 = vmatprep.mubr.f32.mxu0 0.0
  %735 = vmatmul.mubr.f32.gmra.mrb[0].mxu0 %v48
  %v736 = vpop.f32.mrb[0].mxu0
  %v737 = vadd.f32 %v352, %v736
  %v738 = vpop.f32.mrb[0].mxu0
  %739 = vmatprep.mubr.f32.mxu0 0.0
  %740 = vmatmul.mubr.f32.gmra.mrb[0].mxu0 %v49
  %v741 = vpop.f32.mrb[0].mxu0
  %v742 = vadd.f32 %v357, %v741
  %v743 = vpop.f32.mrb[0].mxu0
  %744 = vmatprep.mubr.f32.mxu0 0.0
  %745 = vmatmul.mubr.f32.gmra.mrb[0].mxu0 %v50
  %v746 = vpop.f32.mrb[0].mxu0
  %v747 = vadd.f32 %v362, %v746
  %v748 = vpop.f32.mrb[0].mxu0
  %749 = vmatprep.mubr.f32.mxu0 0.0
  %750 = vmatmul.mubr.f32.gmra.mrb[0].mxu0 %v51
  %v751 = vpop.f32.mrb[0].mxu0
  %v752 = vadd.f32 %v367, %v751
  %v753 = vpop.f32.mrb[0].mxu0
  %754 = vmatprep.mubr.f32.mxu0 0.0
  %755 = vmatmul.mubr.f32.gmra.mrb[0].mxu0 %v52
  %v756 = vpop.f32.mrb[0].mxu0
  %v757 = vadd.f32 %v372, %v756
  %v758 = vpop.f32.mrb[0].mxu0
  %759 = vmatprep.mubr.f32.mxu0 0.0
  %760 = vmatmul.mubr.f32.gmra.mrb[0].mxu0 %v53
  %v761 = vpop.f32.mrb[0].mxu0
  %v762 = vadd.f32 %v377, %v761
  %v763 = vpop.f32.mrb[0].mxu0
  %764 = vmatprep.mubr.f32.mxu0 0.0
  %765 = vmatmul.mubr.f32.gmra.mrb[0].mxu0 %v54
  %v766 = vpop.f32.mrb[0].mxu0
  %v767 = vadd.f32 %v382, %v766
  %v768 = vpop.f32.mrb[0].mxu0
  %769 = vmatprep.mubr.f32.mxu0 0.0
  %770 = vmatmul.mubr.f32.gmra.mrb[0].mxu0 %v55
  %v771 = vpop.f32.mrb[0].mxu0
  %v772 = vadd.f32 %v387, %v771
  %v773 = vpop.f32.mrb[0].mxu0
  %774 = vmatprep.mubr.f32.mxu0 0.0
  %775 = vmatmul.mubr.f32.gmra.mrb[0].mxu0 %v56
  %v776 = vpop.f32.mrb[0].mxu0
  %v777 = vadd.f32 %v392, %v776
  %v778 = vpop.f32.mrb[0].mxu0
  %779 = vmatprep.mubr.f32.mxu0 0.0
  %780 = vmatmul.mubr.f32.gmra.mrb[0].mxu0 %v57
  %v781 = vpop.f32.mrb[0].mxu0
  %v782 = vadd.f32 %v397, %v781
  %v783 = vpop.f32.mrb[0].mxu0
  %784 = vmatprep.mubr.f32.mxu0 0.0
  %785 = vmatmul.mubr.f32.gmra.mrb[0].mxu0 %v58
  %v786 = vpop.f32.mrb[0].mxu0
  %v787 = vadd.f32 %v402, %v786
  %v788 = vpop.f32.mrb[0].mxu0
  %789 = vmatprep.mubr.f32.mxu0 0.0
  %790 = vmatmul.mubr.f32.gmra.mrb[0].mxu0 %v59
  %v791 = vpop.f32.mrb[0].mxu0
  %v792 = vadd.f32 %v407, %v791
  %v793 = vpop.f32.mrb[0].mxu0
  %794 = vmatprep.mubr.f32.mxu0 0.0
  %795 = vmatmul.mubr.f32.gmra.mrb[0].mxu0 %v60
  %v796 = vpop.f32.mrb[0].mxu0
  %v797 = vadd.f32 %v412, %v796
  %v798 = vpop.f32.mrb[0].mxu0
  %799 = vmatprep.mubr.f32.mxu0 0.0
  %800 = vmatmul.mubr.f32.gmra.mrb[0].mxu0 %v61
  %v801 = vpop.f32.mrb[0].mxu0
  %v802 = vadd.f32 %v417, %v801
  %v803 = vpop.f32.mrb[0].mxu0
  %804 = vmatprep.mubr.f32.mxu0 0.0
  %805 = vmatmul.mubr.f32.gmra.mrb[0].mxu0 %v62
  %v806 = vpop.f32.mrb[0].mxu0
  %v807 = vadd.f32 %v422, %v806
  %v808 = vpop.f32.mrb[0].mxu0
  %809 = vmatprep.mubr.f32.mxu0 0.0
  %810 = vmatmul.mubr.f32.gmra.mrb[0].mxu0 %v63
  %v811 = vpop.f32.mrb[0].mxu0
  %v812 = vadd.f32 %v427, %v811
  %v813 = vpop.f32.mrb[0].mxu0
  %814 = vmatprep.mubr.f32.mxu0 0.0
  %815 = vmatmul.mubr.f32.gmra.mrb[0].mxu0 %v64
  %v816 = vpop.f32.mrb[0].mxu0
  %v817 = vadd.f32 %v432, %v816
  %v818 = vpop.f32.mrb[0].mxu0
  %819 = vmatprep.mubr.f32.mxu0 0.0
  %820 = vmatmul.mubr.f32.gmra.mrb[0].mxu0 %v65
  %v821 = vpop.f32.mrb[0].mxu0
  %v822 = vadd.f32 %v437, %v821
  %v823 = vpop.f32.mrb[0].mxu0
  %824 = vmatprep.mubr.f32.mxu0 0.0
  %825 = vmatmul.mubr.f32.gmra.mrb[0].mxu0 %v66
  %v826 = vpop.f32.mrb[0].mxu0
  %v827 = vadd.f32 %v442, %v826
  %v828 = vpop.f32.mrb[0].mxu0
  %829 = vmatprep.mubr.f32.mxu0 0.0
  %830 = vmatmul.mubr.f32.gmra.mrb[0].mxu0 %v67
  %v831 = vpop.f32.mrb[0].mxu0
  %v832 = vadd.f32 %v447, %v831
  %v833 = vpop.f32.mrb[0].mxu0
  %834 = vmatprep.mubr.f32.mxu0 0.0
  %835 = vmatmul.mubr.f32.gmra.mrb[0].mxu0 %v68
  %v836 = vpop.f32.mrb[0].mxu0
  %v837 = vadd.f32 %v452, %v836
  %v838 = vpop.f32.mrb[0].mxu0
  %839 = vmatprep.mubr.f32.mxu0 0.0
  %840 = vmatmul.mubr.f32.gmra.mrb[0].mxu0 %v69
  %v841 = vpop.f32.mrb[0].mxu0
  %v842 = vadd.f32 %v457, %v841
  %v843 = vpop.f32.mrb[0].mxu0
  %844 = vmatprep.mubr.f32.mxu0 0.0
  %845 = vmatmul.mubr.f32.gmra.mrb[0].mxu0 %v70
  %v846 = vpop.f32.mrb[0].mxu0
  %v847 = vadd.f32 %v462, %v846
  %v848 = vpop.f32.mrb[0].mxu0
  %849 = vmatprep.mubr.f32.mxu0 0.0
  %850 = vmatmul.mubr.f32.gmra.mrb[0].mxu0 %v71
  %v851 = vpop.f32.mrb[0].mxu0
  %v852 = vadd.f32 %v467, %v851
  %v853 = vpop.f32.mrb[0].mxu0
  %854 = vmatprep.mubr.f32.mxu0 0.0
  %855 = vmatmul.mubr.f32.gmra.mrb[0].mxu0 %v72
  %v856 = vpop.f32.mrb[0].mxu0
  %v857 = vadd.f32 %v472, %v856
  %v858 = vpop.f32.mrb[0].mxu0
  %859 = vmatprep.mubr.f32.mxu0 0.0
  %860 = vmatmul.mubr.f32.gmra.mrb[0].mxu0 %v73
  %v861 = vpop.f32.mrb[0].mxu0
  %v862 = vadd.f32 %v477, %v861
  %v863 = vpop.f32.mrb[0].mxu0
  %864 = vmatprep.mubr.f32.mxu0 0.0
  %865 = vmatmul.mubr.f32.gmra.mrb[0].mxu0 %v74
  %v866 = vpop.f32.mrb[0].mxu0
  %v867 = vadd.f32 %v482, %v866
  %v868 = vpop.f32.mrb[0].mxu0
  %869 = vmatprep.mubr.f32.mxu0 0.0
  %870 = vmatmul.mubr.f32.gmra.mrb[0].mxu0 %v75
  %v871 = vpop.f32.mrb[0].mxu0
  %v872 = vadd.f32 %v487, %v871
  %v873 = vpop.f32.mrb[0].mxu0
  %874 = vmatprep.mubr.f32.mxu0 0.0
  %875 = vmatmul.mubr.f32.gmra.mrb[0].mxu0 %v76
  %v876 = vpop.f32.mrb[0].mxu0
  %v877 = vadd.f32 %v492, %v876
  %v878 = vpop.f32.mrb[0].mxu0
  %879 = vmatprep.mubr.f32.mxu0 0.0
  %880 = vmatmul.mubr.f32.gmra.mrb[0].mxu0 %v77
  %v881 = vpop.f32.mrb[0].mxu0
  %v882 = vadd.f32 %v497, %v881
  %v883 = vpop.f32.mrb[0].mxu0
  %884 = vmatprep.mubr.f32.mxu0 0.0
  %885 = vmatmul.mubr.f32.gmra.mrb[0].mxu0 %v78
  %v886 = vpop.f32.mrb[0].mxu0
  %v887 = vadd.f32 %v502, %v886
  %v888 = vpop.f32.mrb[0].mxu0
  %889 = vmatprep.mubr.f32.mxu0 0.0
  %890 = vmatmul.mubr.f32.gmra.mrb[0].mxu0 %v79
  %v891 = vpop.f32.mrb[0].mxu0
  %v892 = vadd.f32 %v507, %v891
  %v893 = vpop.f32.mrb[0].mxu0
  %894 = vmatprep.mubr.f32.mxu0 0.0
  %895 = vmatmul.mubr.f32.gmra.mrb[0].mxu0 %v80
  %v896 = vpop.f32.mrb[0].mxu0
  %v897 = vadd.f32 %v512, %v896
  %v898 = vpop.f32.mrb[0].mxu0
  %899 = vmatprep.mubr.f32.mxu0 0.0
  %900 = vmatmul.mubr.f32.gmra.mrb[0].mxu0 %v81
  %v901 = vpop.f32.mrb[0].mxu0
  %v902 = vadd.f32 %v517, %v901
  %v903 = vpop.f32.mrb[0].mxu0
  %904 = vmatprep.mubr.f32.mxu0 0.0
  %905 = vmatmul.mubr.f32.gmra.mrb[0].mxu0 %v82
  %v906 = vpop.f32.mrb[0].mxu0
  %v907 = vadd.f32 %v522, %v906
  %v908 = vpop.f32.mrb[0].mxu0
  %909 = vmatprep.mubr.f32.mxu0 0.0
  %910 = vmatmul.mubr.f32.gmra.mrb[0].mxu0 %v83
  %v911 = vpop.f32.mrb[0].mxu0
  %v912 = vadd.f32 %v527, %v911
  %v913 = vpop.f32.mrb[0].mxu0
  %914 = vmatprep.mubr.f32.mxu0 0.0
  %915 = vmatmul.mubr.f32.gmra.mrb[0].mxu0 %v84
  %v916 = vpop.f32.mrb[0].mxu0
  %v917 = vadd.f32 %v532, %v916
  %v918 = vpop.f32.mrb[0].mxu0
  %919 = vmatprep.mubr.f32.mxu0 0.0
  %920 = vmatmul.mubr.f32.gmra.mrb[0].mxu0 %v85
  %v921 = vpop.f32.mrb[0].mxu0
  %v922 = vadd.f32 %v537, %v921
  %v923 = vpop.f32.mrb[0].mxu0
  %924 = vmatprep.mubr.f32.mxu0 0.0
  %925 = vmatmul.mubr.f32.gmra.mrb[0].mxu0 %v86
  %v926 = vpop.f32.mrb[0].mxu0
  %v927 = vadd.f32 %v542, %v926
  %v928 = vpop.f32.mrb[0].mxu0
  %929 = vmatprep.mubr.f32.mxu0 0.0
  %930 = vmatmul.mubr.f32.gmra.mrb[0].mxu0 %v87
  %v931 = vpop.f32.mrb[0].mxu0
  %v932 = vadd.f32 %v547, %v931
  %v933 = vpop.f32.mrb[0].mxu0
  %934 = vmatprep.mubr.f32.mxu0 0.0
  %935 = vmatmul.mubr.f32.gmra.mrb[0].mxu0 %v88
  %v936 = vpop.f32.mrb[0].mxu0
  %v937 = vadd.f32 %v552, %v936
  %v938 = vpop.f32.mrb[0].mxu0
  %939 = vmatprep.mubr.f32.mxu0 0.0
  %940 = vmatmul.mubr.f32.gmra.mrb[0].mxu0 %v89
  %v941 = vpop.f32.mrb[0].mxu0
  %v942 = vadd.f32 %v557, %v941
  %v943 = vpop.f32.mrb[0].mxu0
  %944 = vmatprep.mubr.f32.mxu0 0.0
  %945 = vmatmul.mubr.f32.gmra.mrb[0].mxu0 %v90
  %v946 = vpop.f32.mrb[0].mxu0
  %v947 = vadd.f32 %v562, %v946
  %v948 = vpop.f32.mrb[0].mxu0
  %949 = vmatprep.mubr.f32.mxu0 0.0
  %950 = vmatmul.mubr.f32.gmra.mrb[0].mxu0 %v91
  %v951 = vpop.f32.mrb[0].mxu0
  %v952 = vadd.f32 %v567, %v951
  %v953 = vpop.f32.mrb[0].mxu0
  %954 = vmatprep.mubr.f32.mxu0 0.0
  %955 = vmatmul.mubr.f32.gmra.mrb[0].mxu0 %v92
  %v956 = vpop.f32.mrb[0].mxu0
  %v957 = vadd.f32 %v572, %v956
  %v958 = vpop.f32.mrb[0].mxu0
  %959 = vdwg.mxu0
  %v960 = vld [vmem:[%s0 + $0x2] sm:$0xff]
  %v961 = vld [vmem:[%s0 + $0xa] sm:$0xff]
  %v962 = vld [vmem:[%s0 + $0x1a] sm:$0xff]
  %v963 = vld [vmem:[%s0 + $0x22] sm:$0xff]
  %v964 = vld [vmem:[%s0 + $0x32] sm:$0xff]
  %v965 = vld [vmem:[%s0 + $0x3a] sm:$0xff]
  %v966 = vld [vmem:[%s0 + $0x4a] sm:$0xff]
  %v967 = vld [vmem:[%s0 + $0x52] sm:$0xff]
  %v968 = vld [vmem:[%s0 + $0x62] sm:$0xff]
  %v969 = vld [vmem:[%s0 + $0x6a] sm:$0xff]
  %v970 = vld [vmem:[%s0 + $0x7a] sm:$0xff]
  %v971 = vld [vmem:[%s0 + $0x82] sm:$0xff]
  %v972 = vld [vmem:[%s0 + $0x92] sm:$0xff]
  %v973 = vld [vmem:[%s0 + $0x9a] sm:$0xff]
  %v974 = vld [vmem:[%s0 + $0xaa] sm:$0xff]
  %v975 = vld [vmem:[%s0 + $0xb2] sm:$0xff]
  %v976 = vld [vmem:[%s0 + $0xc2] sm:$0xff]
  %v977 = vld [vmem:[%s0 + $0xca] sm:$0xff]
  %v978 = vld [vmem:[%s0 + $0xda] sm:$0xff]
  %v979 = vld [vmem:[%s0 + $0xe2] sm:$0xff]
  %v980 = vld [vmem:[%s0 + $0xf2] sm:$0xff]
  %v981 = vld [vmem:[%s0 + $0xfa] sm:$0xff]
  %v982 = vld [vmem:[%s0 + $0x10a] sm:$0xff]
  %v983 = vld [vmem:[%s0 + $0x112] sm:$0xff]
  %v984 = vld [vmem:[%s0 + $0x122] sm:$0xff]
  %v985 = vld [vmem:[%s0 + $0x12a] sm:$0xff]
  %v986 = vld [vmem:[%s0 + $0x13a] sm:$0xff]
  %v987 = vld [vmem:[%s0 + $0x142] sm:$0xff]
  %v988 = vld [vmem:[%s0 + $0x152] sm:$0xff]
  %v989 = vld [vmem:[%s0 + $0x15a] sm:$0xff]
  %v990 = vld [vmem:[%s0 + $0x16a] sm:$0xff]
  %v991 = vld [vmem:[%s0 + $0x172] sm:$0xff]
  %v992 = vld [vmem:[%s0 + $0x1b2] sm:$0xff]
  %v993 = vld [vmem:[%s0 + $0x1ba] sm:$0xff]
  %v994 = vld [vmem:[%s0 + $0x1ca] sm:$0xff]
  %v995 = vld [vmem:[%s0 + $0x1d2] sm:$0xff]
  %v996 = vld [vmem:[%s0 + $0x1e2] sm:$0xff]
  %v997 = vld [vmem:[%s0 + $0x1ea] sm:$0xff]
  %v998 = vld [vmem:[%s0 + $0x1fa] sm:$0xff]
  %v999 = vld [vmem:[%s0 + $0x202] sm:$0xff]
  %v1000 = vld [vmem:[%s0 + $0x212] sm:$0xff]
  %v1001 = vld [vmem:[%s0 + $0x21a] sm:$0xff]
  %v1002 = vld [vmem:[%s0 + $0x22a] sm:$0xff]
  %v1003 = vld [vmem:[%s0 + $0x232] sm:$0xff]
  %v1004 = vld [vmem:[%s0 + $0x242] sm:$0xff]
  %v1005 = vld [vmem:[%s0 + $0x24a] sm:$0xff]
  %v1006 = vld [vmem:[%s0 + $0x25a] sm:$0xff]
  %v1007 = vld [vmem:[%s0 + $0x262] sm:$0xff]
  %v1008 = vld [vmem:[%s0 + $0x272] sm:$0xff]
  %v1009 = vld [vmem:[%s0 + $0x27a] sm:$0xff]
  %v1010 = vld [vmem:[%s0 + $0x28a] sm:$0xff]
  %v1011 = vld [vmem:[%s0 + $0x292] sm:$0xff]
  %v1012 = vld [vmem:[%s0 + $0x2a2] sm:$0xff]
  %v1013 = vld [vmem:[%s0 + $0x2aa] sm:$0xff]
  %v1014 = vld [vmem:[%s0 + $0x2ba] sm:$0xff]
  %v1015 = vld [vmem:[%s0 + $0x2c2] sm:$0xff]
  %v1016 = vld [vmem:[%s0 + $0x2d2] sm:$0xff]
  %v1017 = vld [vmem:[%s0 + $0x2da] sm:$0xff]
  %v1018 = vld [vmem:[%s0 + $0x2ea] sm:$0xff]
  %v1019 = vld [vmem:[%s0 + $0x2f2] sm:$0xff]
  %v1020 = vld [vmem:[%s0 + $0x302] sm:$0xff]
  %v1021 = vld [vmem:[%s0 + $0x30a] sm:$0xff]
  %v1022 = vld [vmem:[%s0 + $0x31a] sm:$0xff]
  %v1023 = vld [vmem:[%s0 + $0x322] sm:$0xff]
  %s1024 = scalar_lea.vmem %s2, 256
  %v1025 = vld [vmem:[%s1024] sm:$0xff]
  %v1026 = vld [vmem:[%s1024 + $0x8] sm:$0xff]
  %v1027 = vld [vmem:[%s1024 + $0x10] sm:$0xff]
  %v1028 = vld [vmem:[%s1024 + $0x18] sm:$0xff]
  %v1029 = vld [vmem:[%s1024 + $0x20] sm:$0xff]
  %v1030 = vld [vmem:[%s1024 + $0x28] sm:$0xff]
  %v1031 = vld [vmem:[%s1024 + $0x30] sm:$0xff]
  %v1032 = vld [vmem:[%s1024 + $0x38] sm:$0xff]
  %v1033 = vld [vmem:[%s1024 + $0x40] sm:$0xff]
  %v1034 = vld [vmem:[%s1024 + $0x48] sm:$0xff]
  %v1035 = vld [vmem:[%s1024 + $0x50] sm:$0xff]
  %v1036 = vld [vmem:[%s1024 + $0x58] sm:$0xff]
  %v1037 = vld [vmem:[%s1024 + $0x60] sm:$0xff]
  %v1038 = vld [vmem:[%s1024 + $0x68] sm:$0xff]
  %v1039 = vld [vmem:[%s1024 + $0x70] sm:$0xff]
  %v1040 = vld [vmem:[%s1024 + $0x78] sm:$0xff]
  %1041 = vmatprep.subr.mxu0 0.0
  %1042 = vmatpush1.msra.mxu0 %v1025
  %1043 = vmatprep.subr.mxu0 0.0
  %1044 = vmatpush1.msra.mxu0 %v1026
  %1045 = vmatprep.subr.mxu0 0.0
  %1046 = vmatpush1.msra.mxu0 %v1027
  %1047 = vmatprep.subr.mxu0 0.0
  %1048 = vmatpush1.msra.mxu0 %v1028
  %1049 = vmatprep.subr.mxu0 0.0
  %1050 = vmatpush1.msra.mxu0 %v1029
  %1051 = vmatprep.subr.mxu0 0.0
  %1052 = vmatpush1.msra.mxu0 %v1030
  %1053 = vmatprep.subr.mxu0 0.0
  %1054 = vmatpush1.msra.mxu0 %v1031
  %1055 = vmatprep.subr.mxu0 0.0
  %1056 = vmatpush1.msra.mxu0 %v1032
  %1057 = vmatprep.subr.mxu0 0.0
  %1058 = vmatpush1.msra.mxu0 %v1033
  %1059 = vmatprep.subr.mxu0 0.0
  %1060 = vmatpush1.msra.mxu0 %v1034
  %1061 = vmatprep.subr.mxu0 0.0
  %1062 = vmatpush1.msra.mxu0 %v1035
  %1063 = vmatprep.subr.mxu0 0.0
  %1064 = vmatpush1.msra.mxu0 %v1036
  %1065 = vmatprep.subr.mxu0 0.0
  %1066 = vmatpush1.msra.mxu0 %v1037
  %1067 = vmatprep.subr.mxu0 0.0
  %1068 = vmatpush1.msra.mxu0 %v1038
  %1069 = vmatprep.subr.mxu0 0.0
  %1070 = vmatpush1.msra.mxu0 %v1039
  %1071 = vmatprep.subr.mxu0 0.0
  %1072 = vmatpush1.msra.mxu0 %v1040
  %1073 = vmatprep.subr.mxu0 0.0
  %1074 = vmatpush1.msra.mxu0 0.0
  %1075 = vmatprep.subr.mxu0 0.0
  %1076 = vmatpush1.msra.mxu0 0.0
  %1077 = vmatprep.subr.mxu0 0.0
  %1078 = vmatpush1.msra.mxu0 0.0
  %1079 = vmatprep.subr.mxu0 0.0
  %1080 = vmatpush1.msra.mxu0 0.0
  %1081 = vmatprep.subr.mxu0 0.0
  %1082 = vmatpush1.msra.mxu0 0.0
  %1083 = vmatprep.subr.mxu0 0.0
  %1084 = vmatpush1.msra.mxu0 0.0
  %1085 = vmatprep.subr.mxu0 0.0
  %1086 = vmatpush1.msra.mxu0 0.0
  %1087 = vmatprep.subr.mxu0 0.0
  %1088 = vmatpush1.msra.mxu0 0.0
  %1089 = vmatprep.subr.mxu0 0.0
  %1090 = vmatpush1.msra.mxu0 0.0
  %1091 = vmatprep.subr.mxu0 0.0
  %1092 = vmatpush1.msra.mxu0 0.0
  %1093 = vmatprep.subr.mxu0 0.0
  %1094 = vmatpush1.msra.mxu0 0.0
  %1095 = vmatprep.subr.mxu0 0.0
  %1096 = vmatpush1.msra.mxu0 0.0
  %1097 = vmatprep.subr.mxu0 0.0
  %1098 = vmatpush1.msra.mxu0 0.0
  %1099 = vmatprep.subr.mxu0 0.0
  %1100 = vmatpush1.msra.mxu0 0.0
  %1101 = vmatprep.subr.mxu0 0.0
  %1102 = vmatpush1.msra.mxu0 0.0
  %1103 = vmatprep.subr.mxu0 0.0
  %1104 = vmatpush1.msra.mxu0 0.0
  %1105 = vmatprep.mubr.f32.mxu0 0.0
  %1106 = vmatmul.mubr.f32.gmra.mrb[0].mxu0 %v960
  %v1107 = vpop.f32.mrb[0].mxu0
  %v1108 = vadd.f32 0.0, %v1107
  %v1109 = vpop.f32.mrb[0].mxu0
  %1110 = vmatprep.mubr.f32.mxu0 0.0
  %1111 = vmatmul.mubr.f32.gmra.mrb[0].mxu0 %v961
  %v1112 = vpop.f32.mrb[0].mxu0
  %v1113 = vadd.f32 0.0, %v1112
  %v1114 = vpop.f32.mrb[0].mxu0
  %1115 = vmatprep.mubr.f32.mxu0 0.0
  %1116 = vmatmul.mubr.f32.gmra.mrb[0].mxu0 %v962
  %v1117 = vpop.f32.mrb[0].mxu0
  %v1118 = vadd.f32 0.0, %v1117
  %v1119 = vpop.f32.mrb[0].mxu0
  %1120 = vmatprep.mubr.f32.mxu0 0.0
  %1121 = vmatmul.mubr.f32.gmra.mrb[0].mxu0 %v963
  %v1122 = vpop.f32.mrb[0].mxu0
  %v1123 = vadd.f32 0.0, %v1122
  %v1124 = vpop.f32.mrb[0].mxu0
  %1125 = vmatprep.mubr.f32.mxu0 0.0
  %1126 = vmatmul.mubr.f32.gmra.mrb[0].mxu0 %v964
  %v1127 = vpop.f32.mrb[0].mxu0
  %v1128 = vadd.f32 0.0, %v1127
  %v1129 = vpop.f32.mrb[0].mxu0
  %1130 = vmatprep.mubr.f32.mxu0 0.0
  %1131 = vmatmul.mubr.f32.gmra.mrb[0].mxu0 %v965
  %v1132 = vpop.f32.mrb[0].mxu0
  %v1133 = vadd.f32 0.0, %v1132
  %v1134 = vpop.f32.mrb[0].mxu0
  %1135 = vmatprep.mubr.f32.mxu0 0.0
  %1136 = vmatmul.mubr.f32.gmra.mrb[0].mxu0 %v966
  %v1137 = vpop.f32.mrb[0].mxu0
  %v1138 = vadd.f32 0.0, %v1137
  %v1139 = vpop.f32.mrb[0].mxu0
  %1140 = vmatprep.mubr.f32.mxu0 0.0
  %1141 = vmatmul.mubr.f32.gmra.mrb[0].mxu0 %v967
  %v1142 = vpop.f32.mrb[0].mxu0
  %v1143 = vadd.f32 0.0, %v1142
  %v1144 = vpop.f32.mrb[0].mxu0
  %1145 = vmatprep.mubr.f32.mxu0 0.0
  %1146 = vmatmul.mubr.f32.gmra.mrb[0].mxu0 %v968
  %v1147 = vpop.f32.mrb[0].mxu0
  %v1148 = vadd.f32 0.0, %v1147
  %v1149 = vpop.f32.mrb[0].mxu0
  %1150 = vmatprep.mubr.f32.mxu0 0.0
  %1151 = vmatmul.mubr.f32.gmra.mrb[0].mxu0 %v969
  %v1152 = vpop.f32.mrb[0].mxu0
  %v1153 = vadd.f32 0.0, %v1152
  %v1154 = vpop.f32.mrb[0].mxu0
  %1155 = vmatprep.mubr.f32.mxu0 0.0
  %1156 = vmatmul.mubr.f32.gmra.mrb[0].mxu0 %v970
  %v1157 = vpop.f32.mrb[0].mxu0
  %v1158 = vadd.f32 0.0, %v1157
  %v1159 = vpop.f32.mrb[0].mxu0
  %1160 = vmatprep.mubr.f32.mxu0 0.0
  %1161 = vmatmul.mubr.f32.gmra.mrb[0].mxu0 %v971
  %v1162 = vpop.f32.mrb[0].mxu0
  %v1163 = vadd.f32 0.0, %v1162
  %v1164 = vpop.f32.mrb[0].mxu0
  %1165 = vmatprep.mubr.f32.mxu0 0.0
  %1166 = vmatmul.mubr.f32.gmra.mrb[0].mxu0 %v972
  %v1167 = vpop.f32.mrb[0].mxu0
  %v1168 = vadd.f32 0.0, %v1167
  %v1169 = vpop.f32.mrb[0].mxu0
  %1170 = vmatprep.mubr.f32.mxu0 0.0
  %1171 = vmatmul.mubr.f32.gmra.mrb[0].mxu0 %v973
  %v1172 = vpop.f32.mrb[0].mxu0
  %v1173 = vadd.f32 0.0, %v1172
  %v1174 = vpop.f32.mrb[0].mxu0
  %1175 = vmatprep.mubr.f32.mxu0 0.0
  %1176 = vmatmul.mubr.f32.gmra.mrb[0].mxu0 %v974
  %v1177 = vpop.f32.mrb[0].mxu0
  %v1178 = vadd.f32 0.0, %v1177
  %v1179 = vpop.f32.mrb[0].mxu0
  %1180 = vmatprep.mubr.f32.mxu0 0.0
  %1181 = vmatmul.mubr.f32.gmra.mrb[0].mxu0 %v975
  %v1182 = vpop.f32.mrb[0].mxu0
  %v1183 = vadd.f32 0.0, %v1182
  %v1184 = vpop.f32.mrb[0].mxu0
  %1185 = vmatprep.mubr.f32.mxu0 0.0
  %1186 = vmatmul.mubr.f32.gmra.mrb[0].mxu0 %v976
  %v1187 = vpop.f32.mrb[0].mxu0
  %v1188 = vadd.f32 0.0, %v1187
  %v1189 = vpop.f32.mrb[0].mxu0
  %1190 = vmatprep.mubr.f32.mxu0 0.0
  %1191 = vmatmul.mubr.f32.gmra.mrb[0].mxu0 %v977
  %v1192 = vpop.f32.mrb[0].mxu0
  %v1193 = vadd.f32 0.0, %v1192
  %v1194 = vpop.f32.mrb[0].mxu0
  %1195 = vmatprep.mubr.f32.mxu0 0.0
  %1196 = vmatmul.mubr.f32.gmra.mrb[0].mxu0 %v978
  %v1197 = vpop.f32.mrb[0].mxu0
  %v1198 = vadd.f32 0.0, %v1197
  %v1199 = vpop.f32.mrb[0].mxu0
  %1200 = vmatprep.mubr.f32.mxu0 0.0
  %1201 = vmatmul.mubr.f32.gmra.mrb[0].mxu0 %v979
  %v1202 = vpop.f32.mrb[0].mxu0
  %v1203 = vadd.f32 0.0, %v1202
  %v1204 = vpop.f32.mrb[0].mxu0
  %1205 = vmatprep.mubr.f32.mxu0 0.0
  %1206 = vmatmul.mubr.f32.gmra.mrb[0].mxu0 %v980
  %v1207 = vpop.f32.mrb[0].mxu0
  %v1208 = vadd.f32 0.0, %v1207
  %v1209 = vpop.f32.mrb[0].mxu0
  %1210 = vmatprep.mubr.f32.mxu0 0.0
  %1211 = vmatmul.mubr.f32.gmra.mrb[0].mxu0 %v981
  %v1212 = vpop.f32.mrb[0].mxu0
  %v1213 = vadd.f32 0.0, %v1212
  %v1214 = vpop.f32.mrb[0].mxu0
  %1215 = vmatprep.mubr.f32.mxu0 0.0
  %1216 = vmatmul.mubr.f32.gmra.mrb[0].mxu0 %v982
  %v1217 = vpop.f32.mrb[0].mxu0
  %v1218 = vadd.f32 0.0, %v1217
  %v1219 = vpop.f32.mrb[0].mxu0
  %1220 = vmatprep.mubr.f32.mxu0 0.0
  %1221 = vmatmul.mubr.f32.gmra.mrb[0].mxu0 %v983
  %v1222 = vpop.f32.mrb[0].mxu0
  %v1223 = vadd.f32 0.0, %v1222
  %v1224 = vpop.f32.mrb[0].mxu0
  %1225 = vmatprep.mubr.f32.mxu0 0.0
  %1226 = vmatmul.mubr.f32.gmra.mrb[0].mxu0 %v984
  %v1227 = vpop.f32.mrb[0].mxu0
  %v1228 = vadd.f32 0.0, %v1227
  %v1229 = vpop.f32.mrb[0].mxu0
  %1230 = vmatprep.mubr.f32.mxu0 0.0
  %1231 = vmatmul.mubr.f32.gmra.mrb[0].mxu0 %v985
  %v1232 = vpop.f32.mrb[0].mxu0
  %v1233 = vadd.f32 0.0, %v1232
  %v1234 = vpop.f32.mrb[0].mxu0
  %1235 = vmatprep.mubr.f32.mxu0 0.0
  %1236 = vmatmul.mubr.f32.gmra.mrb[0].mxu0 %v986
  %v1237 = vpop.f32.mrb[0].mxu0
  %v1238 = vadd.f32 0.0, %v1237
  %v1239 = vpop.f32.mrb[0].mxu0
  %1240 = vmatprep.mubr.f32.mxu0 0.0
  %1241 = vmatmul.mubr.f32.gmra.mrb[0].mxu0 %v987
  %v1242 = vpop.f32.mrb[0].mxu0
  %v1243 = vadd.f32 0.0, %v1242
  %v1244 = vpop.f32.mrb[0].mxu0
  %1245 = vmatprep.mubr.f32.mxu0 0.0
  %1246 = vmatmul.mubr.f32.gmra.mrb[0].mxu0 %v988
  %v1247 = vpop.f32.mrb[0].mxu0
  %v1248 = vadd.f32 0.0, %v1247
  %v1249 = vpop.f32.mrb[0].mxu0
  %1250 = vmatprep.mubr.f32.mxu0 0.0
  %1251 = vmatmul.mubr.f32.gmra.mrb[0].mxu0 %v989
  %v1252 = vpop.f32.mrb[0].mxu0
  %v1253 = vadd.f32 0.0, %v1252
  %v1254 = vpop.f32.mrb[0].mxu0
  %1255 = vmatprep.mubr.f32.mxu0 0.0
  %1256 = vmatmul.mubr.f32.gmra.mrb[0].mxu0 %v990
  %v1257 = vpop.f32.mrb[0].mxu0
  %v1258 = vadd.f32 0.0, %v1257
  %v1259 = vpop.f32.mrb[0].mxu0
  %1260 = vmatprep.mubr.f32.mxu0 0.0
  %1261 = vmatmul.mubr.f32.gmra.mrb[0].mxu0 %v991
  %v1262 = vpop.f32.mrb[0].mxu0
  %v1263 = vadd.f32 0.0, %v1262
  %v1264 = vpop.f32.mrb[0].mxu0
  %1265 = vmatprep.mubr.f32.mxu0 0.0
  %1266 = vmatmul.mubr.f32.gmra.mrb[0].mxu0 %v992
  %v1267 = vpop.f32.mrb[0].mxu0
  %v1268 = vadd.f32 0.0, %v1267
  %v1269 = vpop.f32.mrb[0].mxu0
  %1270 = vmatprep.mubr.f32.mxu0 0.0
  %1271 = vmatmul.mubr.f32.gmra.mrb[0].mxu0 %v993
  %v1272 = vpop.f32.mrb[0].mxu0
  %v1273 = vadd.f32 0.0, %v1272
  %v1274 = vpop.f32.mrb[0].mxu0
  %1275 = vmatprep.mubr.f32.mxu0 0.0
  %1276 = vmatmul.mubr.f32.gmra.mrb[0].mxu0 %v994
  %v1277 = vpop.f32.mrb[0].mxu0
  %v1278 = vadd.f32 0.0, %v1277
  %v1279 = vpop.f32.mrb[0].mxu0
  %1280 = vmatprep.mubr.f32.mxu0 0.0
  %1281 = vmatmul.mubr.f32.gmra.mrb[0].mxu0 %v995
  %v1282 = vpop.f32.mrb[0].mxu0
  %v1283 = vadd.f32 0.0, %v1282
  %v1284 = vpop.f32.mrb[0].mxu0
  %1285 = vmatprep.mubr.f32.mxu0 0.0
  %1286 = vmatmul.mubr.f32.gmra.mrb[0].mxu0 %v996
  %v1287 = vpop.f32.mrb[0].mxu0
  %v1288 = vadd.f32 0.0, %v1287
  %v1289 = vpop.f32.mrb[0].mxu0
  %1290 = vmatprep.mubr.f32.mxu0 0.0
  %1291 = vmatmul.mubr.f32.gmra.mrb[0].mxu0 %v997
  %v1292 = vpop.f32.mrb[0].mxu0
  %v1293 = vadd.f32 0.0, %v1292
  %v1294 = vpop.f32.mrb[0].mxu0
  %1295 = vmatprep.mubr.f32.mxu0 0.0
  %1296 = vmatmul.mubr.f32.gmra.mrb[0].mxu0 %v998
  %v1297 = vpop.f32.mrb[0].mxu0
  %v1298 = vadd.f32 0.0, %v1297
  %v1299 = vpop.f32.mrb[0].mxu0
  %1300 = vmatprep.mubr.f32.mxu0 0.0
  %1301 = vmatmul.mubr.f32.gmra.mrb[0].mxu0 %v999
  %v1302 = vpop.f32.mrb[0].mxu0
  %v1303 = vadd.f32 0.0, %v1302
  %v1304 = vpop.f32.mrb[0].mxu0
  %1305 = vmatprep.mubr.f32.mxu0 0.0
  %1306 = vmatmul.mubr.f32.gmra.mrb[0].mxu0 %v1000
  %v1307 = vpop.f32.mrb[0].mxu0
  %v1308 = vadd.f32 0.0, %v1307
  %v1309 = vpop.f32.mrb[0].mxu0
  %1310 = vmatprep.mubr.f32.mxu0 0.0
  %1311 = vmatmul.mubr.f32.gmra.mrb[0].mxu0 %v1001
  %v1312 = vpop.f32.mrb[0].mxu0
  %v1313 = vadd.f32 0.0, %v1312
  %v1314 = vpop.f32.mrb[0].mxu0
  %1315 = vmatprep.mubr.f32.mxu0 0.0
  %1316 = vmatmul.mubr.f32.gmra.mrb[0].mxu0 %v1002
  %v1317 = vpop.f32.mrb[0].mxu0
  %v1318 = vadd.f32 0.0, %v1317
  %v1319 = vpop.f32.mrb[0].mxu0
  %1320 = vmatprep.mubr.f32.mxu0 0.0
  %1321 = vmatmul.mubr.f32.gmra.mrb[0].mxu0 %v1003
  %v1322 = vpop.f32.mrb[0].mxu0
  %v1323 = vadd.f32 0.0, %v1322
  %v1324 = vpop.f32.mrb[0].mxu0
  %1325 = vmatprep.mubr.f32.mxu0 0.0
  %1326 = vmatmul.mubr.f32.gmra.mrb[0].mxu0 %v1004
  %v1327 = vpop.f32.mrb[0].mxu0
  %v1328 = vadd.f32 0.0, %v1327
  %v1329 = vpop.f32.mrb[0].mxu0
  %1330 = vmatprep.mubr.f32.mxu0 0.0
  %1331 = vmatmul.mubr.f32.gmra.mrb[0].mxu0 %v1005
  %v1332 = vpop.f32.mrb[0].mxu0
  %v1333 = vadd.f32 0.0, %v1332
  %v1334 = vpop.f32.mrb[0].mxu0
  %1335 = vmatprep.mubr.f32.mxu0 0.0
  %1336 = vmatmul.mubr.f32.gmra.mrb[0].mxu0 %v1006
  %v1337 = vpop.f32.mrb[0].mxu0
  %v1338 = vadd.f32 0.0, %v1337
  %v1339 = vpop.f32.mrb[0].mxu0
  %1340 = vmatprep.mubr.f32.mxu0 0.0
  %1341 = vmatmul.mubr.f32.gmra.mrb[0].mxu0 %v1007
  %v1342 = vpop.f32.mrb[0].mxu0
  %v1343 = vadd.f32 0.0, %v1342
  %v1344 = vpop.f32.mrb[0].mxu0
  %1345 = vmatprep.mubr.f32.mxu0 0.0
  %1346 = vmatmul.mubr.f32.gmra.mrb[0].mxu0 %v1008
  %v1347 = vpop.f32.mrb[0].mxu0
  %v1348 = vadd.f32 0.0, %v1347
  %v1349 = vpop.f32.mrb[0].mxu0
  %1350 = vmatprep.mubr.f32.mxu0 0.0
  %1351 = vmatmul.mubr.f32.gmra.mrb[0].mxu0 %v1009
  %v1352 = vpop.f32.mrb[0].mxu0
  %v1353 = vadd.f32 0.0, %v1352
  %v1354 = vpop.f32.mrb[0].mxu0
  %1355 = vmatprep.mubr.f32.mxu0 0.0
  %1356 = vmatmul.mubr.f32.gmra.mrb[0].mxu0 %v1010
  %v1357 = vpop.f32.mrb[0].mxu0
  %v1358 = vadd.f32 0.0, %v1357
  %v1359 = vpop.f32.mrb[0].mxu0
  %1360 = vmatprep.mubr.f32.mxu0 0.0
  %1361 = vmatmul.mubr.f32.gmra.mrb[0].mxu0 %v1011
  %v1362 = vpop.f32.mrb[0].mxu0
  %v1363 = vadd.f32 0.0, %v1362
  %v1364 = vpop.f32.mrb[0].mxu0
  %1365 = vmatprep.mubr.f32.mxu0 0.0
  %1366 = vmatmul.mubr.f32.gmra.mrb[0].mxu0 %v1012
  %v1367 = vpop.f32.mrb[0].mxu0
  %v1368 = vadd.f32 0.0, %v1367
  %v1369 = vpop.f32.mrb[0].mxu0
  %1370 = vmatprep.mubr.f32.mxu0 0.0
  %1371 = vmatmul.mubr.f32.gmra.mrb[0].mxu0 %v1013
  %v1372 = vpop.f32.mrb[0].mxu0
  %v1373 = vadd.f32 0.0, %v1372
  %v1374 = vpop.f32.mrb[0].mxu0
  %1375 = vmatprep.mubr.f32.mxu0 0.0
  %1376 = vmatmul.mubr.f32.gmra.mrb[0].mxu0 %v1014
  %v1377 = vpop.f32.mrb[0].mxu0
  %v1378 = vadd.f32 0.0, %v1377
  %v1379 = vpop.f32.mrb[0].mxu0
  %1380 = vmatprep.mubr.f32.mxu0 0.0
  %1381 = vmatmul.mubr.f32.gmra.mrb[0].mxu0 %v1015
  %v1382 = vpop.f32.mrb[0].mxu0
  %v1383 = vadd.f32 0.0, %v1382
  %v1384 = vpop.f32.mrb[0].mxu0
  %1385 = vmatprep.mubr.f32.mxu0 0.0
  %1386 = vmatmul.mubr.f32.gmra.mrb[0].mxu0 %v1016
  %v1387 = vpop.f32.mrb[0].mxu0
  %v1388 = vadd.f32 0.0, %v1387
  %v1389 = vpop.f32.mrb[0].mxu0
  %1390 = vmatprep.mubr.f32.mxu0 0.0
  %1391 = vmatmul.mubr.f32.gmra.mrb[0].mxu0 %v1017
  %v1392 = vpop.f32.mrb[0].mxu0
  %v1393 = vadd.f32 0.0, %v1392
  %v1394 = vpop.f32.mrb[0].mxu0
  %1395 = vmatprep.mubr.f32.mxu0 0.0
  %1396 = vmatmul.mubr.f32.gmra.mrb[0].mxu0 %v1018
  %v1397 = vpop.f32.mrb[0].mxu0
  %v1398 = vadd.f32 0.0, %v1397
  %v1399 = vpop.f32.mrb[0].mxu0
  %1400 = vmatprep.mubr.f32.mxu0 0.0
  %1401 = vmatmul.mubr.f32.gmra.mrb[0].mxu0 %v1019
  %v1402 = vpop.f32.mrb[0].mxu0
  %v1403 = vadd.f32 0.0, %v1402
  %v1404 = vpop.f32.mrb[0].mxu0
  %1405 = vmatprep.mubr.f32.mxu0 0.0
  %1406 = vmatmul.mubr.f32.gmra.mrb[0].mxu0 %v1020
  %v1407 = vpop.f32.mrb[0].mxu0
  %v1408 = vadd.f32 0.0, %v1407
  %v1409 = vpop.f32.mrb[0].mxu0
  %1410 = vmatprep.mubr.f32.mxu0 0.0
  %1411 = vmatmul.mubr.f32.gmra.mrb[0].mxu0 %v1021
  %v1412 = vpop.f32.mrb[0].mxu0
  %v1413 = vadd.f32 0.0, %v1412
  %v1414 = vpop.f32.mrb[0].mxu0
  %1415 = vmatprep.mubr.f32.mxu0 0.0
  %1416 = vmatmul.mubr.f32.gmra.mrb[0].mxu0 %v1022
  %v1417 = vpop.f32.mrb[0].mxu0
  %v1418 = vadd.f32 0.0, %v1417
  %v1419 = vpop.f32.mrb[0].mxu0
  %1420 = vmatprep.mubr.f32.mxu0 0.0
  %1421 = vmatmul.mubr.f32.gmra.mrb[0].mxu0 %v1023
  %v1422 = vpop.f32.mrb[0].mxu0
  %v1423 = vadd.f32 0.0, %v1422
  %v1424 = vpop.f32.mrb[0].mxu0
  %1425 = vdwg.mxu0
  %v1426 = vadd.f32 %v642, %v1108
  %v1427 = vadd.f32 %v647, %v1113
  %v1428 = vadd.f32 %v652, %v1118
  %v1429 = vadd.f32 %v657, %v1123
  %v1430 = vadd.f32 %v662, %v1128
  %v1431 = vadd.f32 %v667, %v1133
  %v1432 = vadd.f32 %v672, %v1138
  %v1433 = vadd.f32 %v677, %v1143
  %v1434 = vadd.f32 %v682, %v1148
  %v1435 = vadd.f32 %v687, %v1153
  %v1436 = vadd.f32 %v692, %v1158
  %v1437 = vadd.f32 %v697, %v1163
  %v1438 = vadd.f32 %v702, %v1168
  %v1439 = vadd.f32 %v707, %v1173
  %v1440 = vadd.f32 %v712, %v1178
  %v1441 = vadd.f32 %v717, %v1183
  %v1442 = vadd.f32 %v722, %v1188
  %v1443 = vadd.f32 %v727, %v1193
  %v1444 = vadd.f32 %v732, %v1198
  %v1445 = vadd.f32 %v737, %v1203
  %v1446 = vadd.f32 %v742, %v1208
  %v1447 = vadd.f32 %v747, %v1213
  %v1448 = vadd.f32 %v752, %v1218
  %v1449 = vadd.f32 %v757, %v1223
  %v1450 = vadd.f32 %v762, %v1228
  %v1451 = vadd.f32 %v767, %v1233
  %v1452 = vadd.f32 %v772, %v1238
  %v1453 = vadd.f32 %v777, %v1243
  %v1454 = vadd.f32 %v782, %v1248
  %v1455 = vadd.f32 %v787, %v1253
  %v1456 = vadd.f32 %v792, %v1258
  %v1457 = vadd.f32 %v797, %v1263
  %v1458 = vadd.f32 %v802, %v1268
  %v1459 = vadd.f32 %v807, %v1273
  %v1460 = vadd.f32 %v812, %v1278
  %v1461 = vadd.f32 %v817, %v1283
  %v1462 = vadd.f32 %v822, %v1288
  %v1463 = vadd.f32 %v827, %v1293
  %v1464 = vadd.f32 %v832, %v1298
  %v1465 = vadd.f32 %v837, %v1303
  %v1466 = vadd.f32 %v842, %v1308
  %v1467 = vadd.f32 %v847, %v1313
  %v1468 = vadd.f32 %v852, %v1318
  %v1469 = vadd.f32 %v857, %v1323
  %v1470 = vadd.f32 %v862, %v1328
  %v1471 = vadd.f32 %v867, %v1333
  %v1472 = vadd.f32 %v872, %v1338
  %v1473 = vadd.f32 %v877, %v1343
  %v1474 = vadd.f32 %v882, %v1348
  %v1475 = vadd.f32 %v887, %v1353
  %v1476 = vadd.f32 %v892, %v1358
  %v1477 = vadd.f32 %v897, %v1363
  %v1478 = vadd.f32 %v902, %v1368
  %v1479 = vadd.f32 %v907, %v1373
  %v1480 = vadd.f32 %v912, %v1378
  %v1481 = vadd.f32 %v917, %v1383
  %v1482 = vadd.f32 %v922, %v1388
  %v1483 = vadd.f32 %v927, %v1393
  %v1484 = vadd.f32 %v932, %v1398
  %v1485 = vadd.f32 %v937, %v1403
  %v1486 = vadd.f32 %v942, %v1408
  %v1487 = vadd.f32 %v947, %v1413
  %v1488 = vadd.f32 %v952, %v1418
  %v1489 = vadd.f32 %v957, %v1423
  %s1490 = scalar_lea.vmem %s0, 24
  %v1491 = vld [vmem:[%s1490] sm:$0xff]
  %v1492 = vld [vmem:[%s1490 + $0x8] sm:$0xff]
  %v1493 = vld [vmem:[%s1490 + $0x18] sm:$0xff]
  %v1494 = vld [vmem:[%s1490 + $0x20] sm:$0xff]
  %v1495 = vld [vmem:[%s1490 + $0x30] sm:$0xff]
  %v1496 = vld [vmem:[%s1490 + $0x38] sm:$0xff]
  %v1497 = vld [vmem:[%s1490 + $0x48] sm:$0xff]
  %v1498 = vld [vmem:[%s1490 + $0x50] sm:$0xff]
  %v1499 = vld [vmem:[%s1490 + $0x60] sm:$0xff]
  %v1500 = vld [vmem:[%s1490 + $0x68] sm:$0xff]
  %v1501 = vld [vmem:[%s1490 + $0x78] sm:$0xff]
  %v1502 = vld [vmem:[%s1490 + $0x80] sm:$0xff]
  %v1503 = vld [vmem:[%s1490 + $0x90] sm:$0xff]
  %v1504 = vld [vmem:[%s1490 + $0x98] sm:$0xff]
  %v1505 = vld [vmem:[%s1490 + $0xa8] sm:$0xff]
  %v1506 = vld [vmem:[%s1490 + $0xb0] sm:$0xff]
  %v1507 = vld [vmem:[%s1490 + $0xc0] sm:$0xff]
  %v1508 = vld [vmem:[%s1490 + $0xc8] sm:$0xff]
  %v1509 = vld [vmem:[%s1490 + $0xd8] sm:$0xff]
  %v1510 = vld [vmem:[%s1490 + $0xe0] sm:$0xff]
  %v1511 = vld [vmem:[%s1490 + $0xf0] sm:$0xff]
  %v1512 = vld [vmem:[%s1490 + $0xf8] sm:$0xff]
  %v1513 = vld [vmem:[%s1490 + $0x108] sm:$0xff]
  %v1514 = vld [vmem:[%s1490 + $0x110] sm:$0xff]
  %v1515 = vld [vmem:[%s1490 + $0x120] sm:$0xff]
  %v1516 = vld [vmem:[%s1490 + $0x128] sm:$0xff]
  %v1517 = vld [vmem:[%s1490 + $0x138] sm:$0xff]
  %v1518 = vld [vmem:[%s1490 + $0x140] sm:$0xff]
  %v1519 = vld [vmem:[%s1490 + $0x150] sm:$0xff]
  %v1520 = vld [vmem:[%s1490 + $0x158] sm:$0xff]
  %v1521 = vld [vmem:[%s1490 + $0x168] sm:$0xff]
  %v1522 = vld [vmem:[%s1490 + $0x170] sm:$0xff]
  %v1523 = vld [vmem:[%s1490 + $0x1b0] sm:$0xff]
  %v1524 = vld [vmem:[%s1490 + $0x1b8] sm:$0xff]
  %v1525 = vld [vmem:[%s1490 + $0x1c8] sm:$0xff]
  %v1526 = vld [vmem:[%s1490 + $0x1d0] sm:$0xff]
  %v1527 = vld [vmem:[%s1490 + $0x1e0] sm:$0xff]
  %v1528 = vld [vmem:[%s1490 + $0x1e8] sm:$0xff]
  %v1529 = vld [vmem:[%s1490 + $0x1f8] sm:$0xff]
  %v1530 = vld [vmem:[%s1490 + $0x200] sm:$0xff]
  %v1531 = vld [vmem:[%s1490 + $0x210] sm:$0xff]
  %v1532 = vld [vmem:[%s1490 + $0x218] sm:$0xff]
  %v1533 = vld [vmem:[%s1490 + $0x228] sm:$0xff]
  %v1534 = vld [vmem:[%s1490 + $0x230] sm:$0xff]
  %v1535 = vld [vmem:[%s1490 + $0x240] sm:$0xff]
  %v1536 = vld [vmem:[%s1490 + $0x248] sm:$0xff]
  %v1537 = vld [vmem:[%s1490 + $0x258] sm:$0xff]
  %v1538 = vld [vmem:[%s1490 + $0x260] sm:$0xff]
  %v1539 = vld [vmem:[%s1490 + $0x270] sm:$0xff]
  %v1540 = vld [vmem:[%s1490 + $0x278] sm:$0xff]
  %v1541 = vld [vmem:[%s1490 + $0x288] sm:$0xff]
  %v1542 = vld [vmem:[%s1490 + $0x290] sm:$0xff]
  %v1543 = vld [vmem:[%s1490 + $0x2a0] sm:$0xff]
  %v1544 = vld [vmem:[%s1490 + $0x2a8] sm:$0xff]
  %v1545 = vld [vmem:[%s1490 + $0x2b8] sm:$0xff]
  %v1546 = vld [vmem:[%s1490 + $0x2c0] sm:$0xff]
  %v1547 = vld [vmem:[%s1490 + $0x2d0] sm:$0xff]
  %v1548 = vld [vmem:[%s1490 + $0x2d8] sm:$0xff]
  %v1549 = vld [vmem:[%s1490 + $0x2e8] sm:$0xff]
  %v1550 = vld [vmem:[%s1490 + $0x2f0] sm:$0xff]
  %v1551 = vld [vmem:[%s1490 + $0x300] sm:$0xff]
  %v1552 = vld [vmem:[%s1490 + $0x308] sm:$0xff]
  %v1553 = vld [vmem:[%s1490 + $0x318] sm:$0xff]
  %v1554 = vld [vmem:[%s1490 + $0x320] sm:$0xff]
  %s1555 = scalar_lea.vmem %s2, 384
  %v1556 = vld [vmem:[%s1555] sm:$0xff]
  %v1557 = vld [vmem:[%s1555 + $0x8] sm:$0xff]
  %v1558 = vld [vmem:[%s1555 + $0x10] sm:$0xff]
  %v1559 = vld [vmem:[%s1555 + $0x18] sm:$0xff]
  %v1560 = vld [vmem:[%s1555 + $0x20] sm:$0xff]
  %v1561 = vld [vmem:[%s1555 + $0x28] sm:$0xff]
  %v1562 = vld [vmem:[%s1555 + $0x30] sm:$0xff]
  %v1563 = vld [vmem:[%s1555 + $0x38] sm:$0xff]
  %v1564 = vld [vmem:[%s1555 + $0x40] sm:$0xff]
  %v1565 = vld [vmem:[%s1555 + $0x48] sm:$0xff]
  %v1566 = vld [vmem:[%s1555 + $0x50] sm:$0xff]
  %v1567 = vld [vmem:[%s1555 + $0x58] sm:$0xff]
  %v1568 = vld [vmem:[%s1555 + $0x60] sm:$0xff]
  %v1569 = vld [vmem:[%s1555 + $0x68] sm:$0xff]
  %v1570 = vld [vmem:[%s1555 + $0x70] sm:$0xff]
  %v1571 = vld [vmem:[%s1555 + $0x78] sm:$0xff]
  %1572 = vmatprep.subr.mxu0 0.0
  %1573 = vmatpush1.msra.mxu0 %v1556
  %1574 = vmatprep.subr.mxu0 0.0
  %1575 = vmatpush1.msra.mxu0 %v1557
  %1576 = vmatprep.subr.mxu0 0.0
  %1577 = vmatpush1.msra.mxu0 %v1558
  %1578 = vmatprep.subr.mxu0 0.0
  %1579 = vmatpush1.msra.mxu0 %v1559
  %1580 = vmatprep.subr.mxu0 0.0
  %1581 = vmatpush1.msra.mxu0 %v1560
  %1582 = vmatprep.subr.mxu0 0.0
  %1583 = vmatpush1.msra.mxu0 %v1561
  %1584 = vmatprep.subr.mxu0 0.0
  %1585 = vmatpush1.msra.mxu0 %v1562
  %1586 = vmatprep.subr.mxu0 0.0
  %1587 = vmatpush1.msra.mxu0 %v1563
  %1588 = vmatprep.subr.mxu0 0.0
  %1589 = vmatpush1.msra.mxu0 %v1564
  %1590 = vmatprep.subr.mxu0 0.0
  %1591 = vmatpush1.msra.mxu0 %v1565
  %1592 = vmatprep.subr.mxu0 0.0
  %1593 = vmatpush1.msra.mxu0 %v1566
  %1594 = vmatprep.subr.mxu0 0.0
  %1595 = vmatpush1.msra.mxu0 %v1567
  %1596 = vmatprep.subr.mxu0 0.0
  %1597 = vmatpush1.msra.mxu0 %v1568
  %1598 = vmatprep.subr.mxu0 0.0
  %1599 = vmatpush1.msra.mxu0 %v1569
  %1600 = vmatprep.subr.mxu0 0.0
  %1601 = vmatpush1.msra.mxu0 %v1570
  %1602 = vmatprep.subr.mxu0 0.0
  %1603 = vmatpush1.msra.mxu0 %v1571
  %1604 = vmatprep.subr.mxu0 0.0
  %1605 = vmatpush1.msra.mxu0 0.0
  %1606 = vmatprep.subr.mxu0 0.0
  %1607 = vmatpush1.msra.mxu0 0.0
  %1608 = vmatprep.subr.mxu0 0.0
  %1609 = vmatpush1.msra.mxu0 0.0
  %1610 = vmatprep.subr.mxu0 0.0
  %1611 = vmatpush1.msra.mxu0 0.0
  %1612 = vmatprep.subr.mxu0 0.0
  %1613 = vmatpush1.msra.mxu0 0.0
  %1614 = vmatprep.subr.mxu0 0.0
  %1615 = vmatpush1.msra.mxu0 0.0
  %1616 = vmatprep.subr.mxu0 0.0
  %1617 = vmatpush1.msra.mxu0 0.0
  %1618 = vmatprep.subr.mxu0 0.0
  %1619 = vmatpush1.msra.mxu0 0.0
  %1620 = vmatprep.subr.mxu0 0.0
  %1621 = vmatpush1.msra.mxu0 0.0
  %1622 = vmatprep.subr.mxu0 0.0
  %1623 = vmatpush1.msra.mxu0 0.0
  %1624 = vmatprep.subr.mxu0 0.0
  %1625 = vmatpush1.msra.mxu0 0.0
  %1626 = vmatprep.subr.mxu0 0.0
  %1627 = vmatpush1.msra.mxu0 0.0
  %1628 = vmatprep.subr.mxu0 0.0
  %1629 = vmatpush1.msra.mxu0 0.0
  %1630 = vmatprep.subr.mxu0 0.0
  %1631 = vmatpush1.msra.mxu0 0.0
  %1632 = vmatprep.subr.mxu0 0.0
  %1633 = vmatpush1.msra.mxu0 0.0
  %1634 = vmatprep.subr.mxu0 0.0
  %1635 = vmatpush1.msra.mxu0 0.0
  %1636 = vmatprep.mubr.f32.mxu0 0.0
  %1637 = vmatmul.mubr.f32.gmra.mrb[0].mxu0 %v1491
  %v1638 = vpop.f32.mrb[0].mxu0
  %v1639 = vadd.f32 0.0, %v1638
  %v1640 = vpop.f32.mrb[0].mxu0
  %1641 = vmatprep.mubr.f32.mxu0 0.0
  %1642 = vmatmul.mubr.f32.gmra.mrb[0].mxu0 %v1492
  %v1643 = vpop.f32.mrb[0].mxu0
  %v1644 = vadd.f32 0.0, %v1643
  %v1645 = vpop.f32.mrb[0].mxu0
  %1646 = vmatprep.mubr.f32.mxu0 0.0
  %1647 = vmatmul.mubr.f32.gmra.mrb[0].mxu0 %v1493
  %v1648 = vpop.f32.mrb[0].mxu0
  %v1649 = vadd.f32 0.0, %v1648
  %v1650 = vpop.f32.mrb[0].mxu0
  %1651 = vmatprep.mubr.f32.mxu0 0.0
  %1652 = vmatmul.mubr.f32.gmra.mrb[0].mxu0 %v1494
  %v1653 = vpop.f32.mrb[0].mxu0
  %v1654 = vadd.f32 0.0, %v1653
  %v1655 = vpop.f32.mrb[0].mxu0
  %1656 = vmatprep.mubr.f32.mxu0 0.0
  %1657 = vmatmul.mubr.f32.gmra.mrb[0].mxu0 %v1495
  %v1658 = vpop.f32.mrb[0].mxu0
  %v1659 = vadd.f32 0.0, %v1658
  %v1660 = vpop.f32.mrb[0].mxu0
  %1661 = vmatprep.mubr.f32.mxu0 0.0
  %1662 = vmatmul.mubr.f32.gmra.mrb[0].mxu0 %v1496
  %v1663 = vpop.f32.mrb[0].mxu0
  %v1664 = vadd.f32 0.0, %v1663
  %v1665 = vpop.f32.mrb[0].mxu0
  %1666 = vmatprep.mubr.f32.mxu0 0.0
  %1667 = vmatmul.mubr.f32.gmra.mrb[0].mxu0 %v1497
  %v1668 = vpop.f32.mrb[0].mxu0
  %v1669 = vadd.f32 0.0, %v1668
  %v1670 = vpop.f32.mrb[0].mxu0
  %1671 = vmatprep.mubr.f32.mxu0 0.0
  %1672 = vmatmul.mubr.f32.gmra.mrb[0].mxu0 %v1498
  %v1673 = vpop.f32.mrb[0].mxu0
  %v1674 = vadd.f32 0.0, %v1673
  %v1675 = vpop.f32.mrb[0].mxu0
  %1676 = vmatprep.mubr.f32.mxu0 0.0
  %1677 = vmatmul.mubr.f32.gmra.mrb[0].mxu0 %v1499
  %v1678 = vpop.f32.mrb[0].mxu0
  %v1679 = vadd.f32 0.0, %v1678
  %v1680 = vpop.f32.mrb[0].mxu0
  %1681 = vmatprep.mubr.f32.mxu0 0.0
  %1682 = vmatmul.mubr.f32.gmra.mrb[0].mxu0 %v1500
  %v1683 = vpop.f32.mrb[0].mxu0
  %v1684 = vadd.f32 0.0, %v1683
  %v1685 = vpop.f32.mrb[0].mxu0
  %1686 = vmatprep.mubr.f32.mxu0 0.0
  %1687 = vmatmul.mubr.f32.gmra.mrb[0].mxu0 %v1501
  %v1688 = vpop.f32.mrb[0].mxu0
  %v1689 = vadd.f32 0.0, %v1688
  %v1690 = vpop.f32.mrb[0].mxu0
  %1691 = vmatprep.mubr.f32.mxu0 0.0
  %1692 = vmatmul.mubr.f32.gmra.mrb[0].mxu0 %v1502
  %v1693 = vpop.f32.mrb[0].mxu0
  %v1694 = vadd.f32 0.0, %v1693
  %v1695 = vpop.f32.mrb[0].mxu0
  %1696 = vmatprep.mubr.f32.mxu0 0.0
  %1697 = vmatmul.mubr.f32.gmra.mrb[0].mxu0 %v1503
  %v1698 = vpop.f32.mrb[0].mxu0
  %v1699 = vadd.f32 0.0, %v1698
  %v1700 = vpop.f32.mrb[0].mxu0
  %1701 = vmatprep.mubr.f32.mxu0 0.0
  %1702 = vmatmul.mubr.f32.gmra.mrb[0].mxu0 %v1504
  %v1703 = vpop.f32.mrb[0].mxu0
  %v1704 = vadd.f32 0.0, %v1703
  %v1705 = vpop.f32.mrb[0].mxu0
  %1706 = vmatprep.mubr.f32.mxu0 0.0
  %1707 = vmatmul.mubr.f32.gmra.mrb[0].mxu0 %v1505
  %v1708 = vpop.f32.mrb[0].mxu0
  %v1709 = vadd.f32 0.0, %v1708
  %v1710 = vpop.f32.mrb[0].mxu0
  %1711 = vmatprep.mubr.f32.mxu0 0.0
  %1712 = vmatmul.mubr.f32.gmra.mrb[0].mxu0 %v1506
  %v1713 = vpop.f32.mrb[0].mxu0
  %v1714 = vadd.f32 0.0, %v1713
  %v1715 = vpop.f32.mrb[0].mxu0
  %1716 = vmatprep.mubr.f32.mxu0 0.0
  %1717 = vmatmul.mubr.f32.gmra.mrb[0].mxu0 %v1507
  %v1718 = vpop.f32.mrb[0].mxu0
  %v1719 = vadd.f32 0.0, %v1718
  %v1720 = vpop.f32.mrb[0].mxu0
  %1721 = vmatprep.mubr.f32.mxu0 0.0
  %1722 = vmatmul.mubr.f32.gmra.mrb[0].mxu0 %v1508
  %v1723 = vpop.f32.mrb[0].mxu0
  %v1724 = vadd.f32 0.0, %v1723
  %v1725 = vpop.f32.mrb[0].mxu0
  %1726 = vmatprep.mubr.f32.mxu0 0.0
  %1727 = vmatmul.mubr.f32.gmra.mrb[0].mxu0 %v1509
  %v1728 = vpop.f32.mrb[0].mxu0
  %v1729 = vadd.f32 0.0, %v1728
  %v1730 = vpop.f32.mrb[0].mxu0
  %1731 = vmatprep.mubr.f32.mxu0 0.0
  %1732 = vmatmul.mubr.f32.gmra.mrb[0].mxu0 %v1510
  %v1733 = vpop.f32.mrb[0].mxu0
  %v1734 = vadd.f32 0.0, %v1733
  %v1735 = vpop.f32.mrb[0].mxu0
  %1736 = vmatprep.mubr.f32.mxu0 0.0
  %1737 = vmatmul.mubr.f32.gmra.mrb[0].mxu0 %v1511
  %v1738 = vpop.f32.mrb[0].mxu0
  %v1739 = vadd.f32 0.0, %v1738
  %v1740 = vpop.f32.mrb[0].mxu0
  %1741 = vmatprep.mubr.f32.mxu0 0.0
  %1742 = vmatmul.mubr.f32.gmra.mrb[0].mxu0 %v1512
  %v1743 = vpop.f32.mrb[0].mxu0
  %v1744 = vadd.f32 0.0, %v1743
  %v1745 = vpop.f32.mrb[0].mxu0
  %1746 = vmatprep.mubr.f32.mxu0 0.0
  %1747 = vmatmul.mubr.f32.gmra.mrb[0].mxu0 %v1513
  %v1748 = vpop.f32.mrb[0].mxu0
  %v1749 = vadd.f32 0.0, %v1748
  %v1750 = vpop.f32.mrb[0].mxu0
  %1751 = vmatprep.mubr.f32.mxu0 0.0
  %1752 = vmatmul.mubr.f32.gmra.mrb[0].mxu0 %v1514
  %v1753 = vpop.f32.mrb[0].mxu0
  %v1754 = vadd.f32 0.0, %v1753
  %v1755 = vpop.f32.mrb[0].mxu0
  %1756 = vmatprep.mubr.f32.mxu0 0.0
  %1757 = vmatmul.mubr.f32.gmra.mrb[0].mxu0 %v1515
  %v1758 = vpop.f32.mrb[0].mxu0
  %v1759 = vadd.f32 0.0, %v1758
  %v1760 = vpop.f32.mrb[0].mxu0
  %1761 = vmatprep.mubr.f32.mxu0 0.0
  %1762 = vmatmul.mubr.f32.gmra.mrb[0].mxu0 %v1516
  %v1763 = vpop.f32.mrb[0].mxu0
  %v1764 = vadd.f32 0.0, %v1763
  %v1765 = vpop.f32.mrb[0].mxu0
  %1766 = vmatprep.mubr.f32.mxu0 0.0
  %1767 = vmatmul.mubr.f32.gmra.mrb[0].mxu0 %v1517
  %v1768 = vpop.f32.mrb[0].mxu0
  %v1769 = vadd.f32 0.0, %v1768
  %v1770 = vpop.f32.mrb[0].mxu0
  %1771 = vmatprep.mubr.f32.mxu0 0.0
  %1772 = vmatmul.mubr.f32.gmra.mrb[0].mxu0 %v1518
  %v1773 = vpop.f32.mrb[0].mxu0
  %v1774 = vadd.f32 0.0, %v1773
  %v1775 = vpop.f32.mrb[0].mxu0
  %1776 = vmatprep.mubr.f32.mxu0 0.0
  %1777 = vmatmul.mubr.f32.gmra.mrb[0].mxu0 %v1519
  %v1778 = vpop.f32.mrb[0].mxu0
  %v1779 = vadd.f32 0.0, %v1778
  %v1780 = vpop.f32.mrb[0].mxu0
  %1781 = vmatprep.mubr.f32.mxu0 0.0
  %1782 = vmatmul.mubr.f32.gmra.mrb[0].mxu0 %v1520
  %v1783 = vpop.f32.mrb[0].mxu0
  %v1784 = vadd.f32 0.0, %v1783
  %v1785 = vpop.f32.mrb[0].mxu0
  %1786 = vmatprep.mubr.f32.mxu0 0.0
  %1787 = vmatmul.mubr.f32.gmra.mrb[0].mxu0 %v1521
  %v1788 = vpop.f32.mrb[0].mxu0
  %v1789 = vadd.f32 0.0, %v1788
  %v1790 = vpop.f32.mrb[0].mxu0
  %1791 = vmatprep.mubr.f32.mxu0 0.0
  %1792 = vmatmul.mubr.f32.gmra.mrb[0].mxu0 %v1522
  %v1793 = vpop.f32.mrb[0].mxu0
  %v1794 = vadd.f32 0.0, %v1793
  %v1795 = vpop.f32.mrb[0].mxu0
  %1796 = vmatprep.mubr.f32.mxu0 0.0
  %1797 = vmatmul.mubr.f32.gmra.mrb[0].mxu0 %v1523
  %v1798 = vpop.f32.mrb[0].mxu0
  %v1799 = vadd.f32 0.0, %v1798
  %v1800 = vpop.f32.mrb[0].mxu0
  %1801 = vmatprep.mubr.f32.mxu0 0.0
  %1802 = vmatmul.mubr.f32.gmra.mrb[0].mxu0 %v1524
  %v1803 = vpop.f32.mrb[0].mxu0
  %v1804 = vadd.f32 0.0, %v1803
  %v1805 = vpop.f32.mrb[0].mxu0
  %1806 = vmatprep.mubr.f32.mxu0 0.0
  %1807 = vmatmul.mubr.f32.gmra.mrb[0].mxu0 %v1525
  %v1808 = vpop.f32.mrb[0].mxu0
  %v1809 = vadd.f32 0.0, %v1808
  %v1810 = vpop.f32.mrb[0].mxu0
  %1811 = vmatprep.mubr.f32.mxu0 0.0
  %1812 = vmatmul.mubr.f32.gmra.mrb[0].mxu0 %v1526
  %v1813 = vpop.f32.mrb[0].mxu0
  %v1814 = vadd.f32 0.0, %v1813
  %v1815 = vpop.f32.mrb[0].mxu0
  %1816 = vmatprep.mubr.f32.mxu0 0.0
  %1817 = vmatmul.mubr.f32.gmra.mrb[0].mxu0 %v1527
  %v1818 = vpop.f32.mrb[0].mxu0
  %v1819 = vadd.f32 0.0, %v1818
  %v1820 = vpop.f32.mrb[0].mxu0
  %1821 = vmatprep.mubr.f32.mxu0 0.0
  %1822 = vmatmul.mubr.f32.gmra.mrb[0].mxu0 %v1528
  %v1823 = vpop.f32.mrb[0].mxu0
  %v1824 = vadd.f32 0.0, %v1823
  %v1825 = vpop.f32.mrb[0].mxu0
  %1826 = vmatprep.mubr.f32.mxu0 0.0
  %1827 = vmatmul.mubr.f32.gmra.mrb[0].mxu0 %v1529
  %v1828 = vpop.f32.mrb[0].mxu0
  %v1829 = vadd.f32 0.0, %v1828
  %v1830 = vpop.f32.mrb[0].mxu0
  %1831 = vmatprep.mubr.f32.mxu0 0.0
  %1832 = vmatmul.mubr.f32.gmra.mrb[0].mxu0 %v1530
  %v1833 = vpop.f32.mrb[0].mxu0
  %v1834 = vadd.f32 0.0, %v1833
  %v1835 = vpop.f32.mrb[0].mxu0
  %1836 = vmatprep.mubr.f32.mxu0 0.0
  %1837 = vmatmul.mubr.f32.gmra.mrb[0].mxu0 %v1531
  %v1838 = vpop.f32.mrb[0].mxu0
  %v1839 = vadd.f32 0.0, %v1838
  %v1840 = vpop.f32.mrb[0].mxu0
  %1841 = vmatprep.mubr.f32.mxu0 0.0
  %1842 = vmatmul.mubr.f32.gmra.mrb[0].mxu0 %v1532
  %v1843 = vpop.f32.mrb[0].mxu0
  %v1844 = vadd.f32 0.0, %v1843
  %v1845 = vpop.f32.mrb[0].mxu0
  %1846 = vmatprep.mubr.f32.mxu0 0.0
  %1847 = vmatmul.mubr.f32.gmra.mrb[0].mxu0 %v1533
  %v1848 = vpop.f32.mrb[0].mxu0
  %v1849 = vadd.f32 0.0, %v1848
  %v1850 = vpop.f32.mrb[0].mxu0
  %1851 = vmatprep.mubr.f32.mxu0 0.0
  %1852 = vmatmul.mubr.f32.gmra.mrb[0].mxu0 %v1534
  %v1853 = vpop.f32.mrb[0].mxu0
  %v1854 = vadd.f32 0.0, %v1853
  %v1855 = vpop.f32.mrb[0].mxu0
  %1856 = vmatprep.mubr.f32.mxu0 0.0
  %1857 = vmatmul.mubr.f32.gmra.mrb[0].mxu0 %v1535
  %v1858 = vpop.f32.mrb[0].mxu0
  %v1859 = vadd.f32 0.0, %v1858
  %v1860 = vpop.f32.mrb[0].mxu0
  %1861 = vmatprep.mubr.f32.mxu0 0.0
  %1862 = vmatmul.mubr.f32.gmra.mrb[0].mxu0 %v1536
  %v1863 = vpop.f32.mrb[0].mxu0
  %v1864 = vadd.f32 0.0, %v1863
  %v1865 = vpop.f32.mrb[0].mxu0
  %1866 = vmatprep.mubr.f32.mxu0 0.0
  %1867 = vmatmul.mubr.f32.gmra.mrb[0].mxu0 %v1537
  %v1868 = vpop.f32.mrb[0].mxu0
  %v1869 = vadd.f32 0.0, %v1868
  %v1870 = vpop.f32.mrb[0].mxu0
  %1871 = vmatprep.mubr.f32.mxu0 0.0
  %1872 = vmatmul.mubr.f32.gmra.mrb[0].mxu0 %v1538
  %v1873 = vpop.f32.mrb[0].mxu0
  %v1874 = vadd.f32 0.0, %v1873
  %v1875 = vpop.f32.mrb[0].mxu0
  %1876 = vmatprep.mubr.f32.mxu0 0.0
  %1877 = vmatmul.mubr.f32.gmra.mrb[0].mxu0 %v1539
  %v1878 = vpop.f32.mrb[0].mxu0
  %v1879 = vadd.f32 0.0, %v1878
  %v1880 = vpop.f32.mrb[0].mxu0
  %1881 = vmatprep.mubr.f32.mxu0 0.0
  %1882 = vmatmul.mubr.f32.gmra.mrb[0].mxu0 %v1540
  %v1883 = vpop.f32.mrb[0].mxu0
  %v1884 = vadd.f32 0.0, %v1883
  %v1885 = vpop.f32.mrb[0].mxu0
  %1886 = vmatprep.mubr.f32.mxu0 0.0
  %1887 = vmatmul.mubr.f32.gmra.mrb[0].mxu0 %v1541
  %v1888 = vpop.f32.mrb[0].mxu0
  %v1889 = vadd.f32 0.0, %v1888
  %v1890 = vpop.f32.mrb[0].mxu0
  %1891 = vmatprep.mubr.f32.mxu0 0.0
  %1892 = vmatmul.mubr.f32.gmra.mrb[0].mxu0 %v1542
  %v1893 = vpop.f32.mrb[0].mxu0
  %v1894 = vadd.f32 0.0, %v1893
  %v1895 = vpop.f32.mrb[0].mxu0
  %1896 = vmatprep.mubr.f32.mxu0 0.0
  %1897 = vmatmul.mubr.f32.gmra.mrb[0].mxu0 %v1543
  %v1898 = vpop.f32.mrb[0].mxu0
  %v1899 = vadd.f32 0.0, %v1898
  %v1900 = vpop.f32.mrb[0].mxu0
  %1901 = vmatprep.mubr.f32.mxu0 0.0
  %1902 = vmatmul.mubr.f32.gmra.mrb[0].mxu0 %v1544
  %v1903 = vpop.f32.mrb[0].mxu0
  %v1904 = vadd.f32 0.0, %v1903
  %v1905 = vpop.f32.mrb[0].mxu0
  %1906 = vmatprep.mubr.f32.mxu0 0.0
  %1907 = vmatmul.mubr.f32.gmra.mrb[0].mxu0 %v1545
  %v1908 = vpop.f32.mrb[0].mxu0
  %v1909 = vadd.f32 0.0, %v1908
  %v1910 = vpop.f32.mrb[0].mxu0
  %1911 = vmatprep.mubr.f32.mxu0 0.0
  %1912 = vmatmul.mubr.f32.gmra.mrb[0].mxu0 %v1546
  %v1913 = vpop.f32.mrb[0].mxu0
  %v1914 = vadd.f32 0.0, %v1913
  %v1915 = vpop.f32.mrb[0].mxu0
  %1916 = vmatprep.mubr.f32.mxu0 0.0
  %1917 = vmatmul.mubr.f32.gmra.mrb[0].mxu0 %v1547
  %v1918 = vpop.f32.mrb[0].mxu0
  %v1919 = vadd.f32 0.0, %v1918
  %v1920 = vpop.f32.mrb[0].mxu0
  %1921 = vmatprep.mubr.f32.mxu0 0.0
  %1922 = vmatmul.mubr.f32.gmra.mrb[0].mxu0 %v1548
  %v1923 = vpop.f32.mrb[0].mxu0
  %v1924 = vadd.f32 0.0, %v1923
  %v1925 = vpop.f32.mrb[0].mxu0
  %1926 = vmatprep.mubr.f32.mxu0 0.0
  %1927 = vmatmul.mubr.f32.gmra.mrb[0].mxu0 %v1549
  %v1928 = vpop.f32.mrb[0].mxu0
  %v1929 = vadd.f32 0.0, %v1928
  %v1930 = vpop.f32.mrb[0].mxu0
  %1931 = vmatprep.mubr.f32.mxu0 0.0
  %1932 = vmatmul.mubr.f32.gmra.mrb[0].mxu0 %v1550
  %v1933 = vpop.f32.mrb[0].mxu0
  %v1934 = vadd.f32 0.0, %v1933
  %v1935 = vpop.f32.mrb[0].mxu0
  %1936 = vmatprep.mubr.f32.mxu0 0.0
  %1937 = vmatmul.mubr.f32.gmra.mrb[0].mxu0 %v1551
  %v1938 = vpop.f32.mrb[0].mxu0
  %v1939 = vadd.f32 0.0, %v1938
  %v1940 = vpop.f32.mrb[0].mxu0
  %1941 = vmatprep.mubr.f32.mxu0 0.0
  %1942 = vmatmul.mubr.f32.gmra.mrb[0].mxu0 %v1552
  %v1943 = vpop.f32.mrb[0].mxu0
  %v1944 = vadd.f32 0.0, %v1943
  %v1945 = vpop.f32.mrb[0].mxu0
  %1946 = vmatprep.mubr.f32.mxu0 0.0
  %1947 = vmatmul.mubr.f32.gmra.mrb[0].mxu0 %v1553
  %v1948 = vpop.f32.mrb[0].mxu0
  %v1949 = vadd.f32 0.0, %v1948
  %v1950 = vpop.f32.mrb[0].mxu0
  %1951 = vmatprep.mubr.f32.mxu0 0.0
  %1952 = vmatmul.mubr.f32.gmra.mrb[0].mxu0 %v1554
  %v1953 = vpop.f32.mrb[0].mxu0
  %v1954 = vadd.f32 0.0, %v1953
  %v1955 = vpop.f32.mrb[0].mxu0
  %1956 = vdwg.mxu0
  %v1957 = vadd.f32 %v1426, %v1639
  %v1958 = vadd.f32 %v1427, %v1644
  %v1959 = vadd.f32 %v1428, %v1649
  %v1960 = vadd.f32 %v1429, %v1654
  %v1961 = vadd.f32 %v1430, %v1659
  %v1962 = vadd.f32 %v1431, %v1664
  %v1963 = vadd.f32 %v1432, %v1669
  %v1964 = vadd.f32 %v1433, %v1674
  %v1965 = vadd.f32 %v1434, %v1679
  %v1966 = vadd.f32 %v1435, %v1684
  %v1967 = vadd.f32 %v1436, %v1689
  %v1968 = vadd.f32 %v1437, %v1694
  %v1969 = vadd.f32 %v1438, %v1699
  %v1970 = vadd.f32 %v1439, %v1704
  %v1971 = vadd.f32 %v1440, %v1709
  %v1972 = vadd.f32 %v1441, %v1714
  %v1973 = vadd.f32 %v1442, %v1719
  %v1974 = vadd.f32 %v1443, %v1724
  %v1975 = vadd.f32 %v1444, %v1729
  %v1976 = vadd.f32 %v1445, %v1734
  %v1977 = vadd.f32 %v1446, %v1739
  %v1978 = vadd.f32 %v1447, %v1744
  %v1979 = vadd.f32 %v1448, %v1749
  %v1980 = vadd.f32 %v1449, %v1754
  %v1981 = vadd.f32 %v1450, %v1759
  %v1982 = vadd.f32 %v1451, %v1764
  %v1983 = vadd.f32 %v1452, %v1769
  %v1984 = vadd.f32 %v1453, %v1774
  %v1985 = vadd.f32 %v1454, %v1779
  %v1986 = vadd.f32 %v1455, %v1784
  %v1987 = vadd.f32 %v1456, %v1789
  %v1988 = vadd.f32 %v1457, %v1794
  %v1989 = vadd.f32 %v1458, %v1799
  %v1990 = vadd.f32 %v1459, %v1804
  %v1991 = vadd.f32 %v1460, %v1809
  %v1992 = vadd.f32 %v1461, %v1814
  %v1993 = vadd.f32 %v1462, %v1819
  %v1994 = vadd.f32 %v1463, %v1824
  %v1995 = vadd.f32 %v1464, %v1829
  %v1996 = vadd.f32 %v1465, %v1834
  %v1997 = vadd.f32 %v1466, %v1839
  %v1998 = vadd.f32 %v1467, %v1844
  %v1999 = vadd.f32 %v1468, %v1849
  %v2000 = vadd.f32 %v1469, %v1854
  %v2001 = vadd.f32 %v1470, %v1859
  %v2002 = vadd.f32 %v1471, %v1864
  %v2003 = vadd.f32 %v1472, %v1869
  %v2004 = vadd.f32 %v1473, %v1874
  %v2005 = vadd.f32 %v1474, %v1879
  %v2006 = vadd.f32 %v1475, %v1884
  %v2007 = vadd.f32 %v1476, %v1889
  %v2008 = vadd.f32 %v1477, %v1894
  %v2009 = vadd.f32 %v1478, %v1899
  %v2010 = vadd.f32 %v1479, %v1904
  %v2011 = vadd.f32 %v1480, %v1909
  %v2012 = vadd.f32 %v1481, %v1914
  %v2013 = vadd.f32 %v1482, %v1919
  %v2014 = vadd.f32 %v1483, %v1924
  %v2015 = vadd.f32 %v1484, %v1929
  %v2016 = vadd.f32 %v1485, %v1934
  %v2017 = vadd.f32 %v1486, %v1939
  %v2018 = vadd.f32 %v1487, %v1944
  %v2019 = vadd.f32 %v1488, %v1949
  %v2020 = vadd.f32 %v1489, %v1954
  %v2021 = vld [vmem:[%s1490 + $0x1] sm:$0xff]
  %v2022 = vld [vmem:[%s1490 + $0x9] sm:$0xff]
  %v2023 = vld [vmem:[%s1490 + $0x19] sm:$0xff]
  %v2024 = vld [vmem:[%s1490 + $0x21] sm:$0xff]
  %v2025 = vld [vmem:[%s1490 + $0x31] sm:$0xff]
  %v2026 = vld [vmem:[%s1490 + $0x39] sm:$0xff]
  %v2027 = vld [vmem:[%s1490 + $0x49] sm:$0xff]
  %v2028 = vld [vmem:[%s1490 + $0x51] sm:$0xff]
  %v2029 = vld [vmem:[%s1490 + $0x61] sm:$0xff]
  %v2030 = vld [vmem:[%s1490 + $0x69] sm:$0xff]
  %v2031 = vld [vmem:[%s1490 + $0x79] sm:$0xff]
  %v2032 = vld [vmem:[%s1490 + $0x81] sm:$0xff]
  %v2033 = vld [vmem:[%s1490 + $0x91] sm:$0xff]
  %v2034 = vld [vmem:[%s1490 + $0x99] sm:$0xff]
  %v2035 = vld [vmem:[%s1490 + $0xa9] sm:$0xff]
  %v2036 = vld [vmem:[%s1490 + $0xb1] sm:$0xff]
  %v2037 = vld [vmem:[%s1490 + $0xc1] sm:$0xff]
  %v2038 = vld [vmem:[%s1490 + $0xc9] sm:$0xff]
  %v2039 = vld [vmem:[%s1490 + $0xd9] sm:$0xff]
  %v2040 = vld [vmem:[%s1490 + $0xe1] sm:$0xff]
  %v2041 = vld [vmem:[%s1490 + $0xf1] sm:$0xff]
  %v2042 = vld [vmem:[%s1490 + $0xf9] sm:$0xff]
  %v2043 = vld [vmem:[%s1490 + $0x109] sm:$0xff]
  %v2044 = vld [vmem:[%s1490 + $0x111] sm:$0xff]
  %v2045 = vld [vmem:[%s1490 + $0x121] sm:$0xff]
  %v2046 = vld [vmem:[%s1490 + $0x129] sm:$0xff]
  %v2047 = vld [vmem:[%s1490 + $0x139] sm:$0xff]
  %v2048 = vld [vmem:[%s1490 + $0x141] sm:$0xff]
  %v2049 = vld [vmem:[%s1490 + $0x151] sm:$0xff]
  %v2050 = vld [vmem:[%s1490 + $0x159] sm:$0xff]
  %v2051 = vld [vmem:[%s1490 + $0x169] sm:$0xff]
  %v2052 = vld [vmem:[%s1490 + $0x171] sm:$0xff]
  %v2053 = vld [vmem:[%s1490 + $0x1b1] sm:$0xff]
  %v2054 = vld [vmem:[%s1490 + $0x1b9] sm:$0xff]
  %v2055 = vld [vmem:[%s1490 + $0x1c9] sm:$0xff]
  %v2056 = vld [vmem:[%s1490 + $0x1d1] sm:$0xff]
  %v2057 = vld [vmem:[%s1490 + $0x1e1] sm:$0xff]
  %v2058 = vld [vmem:[%s1490 + $0x1e9] sm:$0xff]
  %v2059 = vld [vmem:[%s1490 + $0x1f9] sm:$0xff]
  %v2060 = vld [vmem:[%s1490 + $0x201] sm:$0xff]
  %v2061 = vld [vmem:[%s1490 + $0x211] sm:$0xff]
  %v2062 = vld [vmem:[%s1490 + $0x219] sm:$0xff]
  %v2063 = vld [vmem:[%s1490 + $0x229] sm:$0xff]
  %v2064 = vld [vmem:[%s1490 + $0x231] sm:$0xff]
  %v2065 = vld [vmem:[%s1490 + $0x241] sm:$0xff]
  %v2066 = vld [vmem:[%s1490 + $0x249] sm:$0xff]
  %v2067 = vld [vmem:[%s1490 + $0x259] sm:$0xff]
  %v2068 = vld [vmem:[%s1490 + $0x261] sm:$0xff]
  %v2069 = vld [vmem:[%s1490 + $0x271] sm:$0xff]
  %v2070 = vld [vmem:[%s1490 + $0x279] sm:$0xff]
  %v2071 = vld [vmem:[%s1490 + $0x289] sm:$0xff]
  %v2072 = vld [vmem:[%s1490 + $0x291] sm:$0xff]
  %v2073 = vld [vmem:[%s1490 + $0x2a1] sm:$0xff]
  %v2074 = vld [vmem:[%s1490 + $0x2a9] sm:$0xff]
  %v2075 = vld [vmem:[%s1490 + $0x2b9] sm:$0xff]
  %v2076 = vld [vmem:[%s1490 + $0x2c1] sm:$0xff]
  %v2077 = vld [vmem:[%s1490 + $0x2d1] sm:$0xff]
  %v2078 = vld [vmem:[%s1490 + $0x2d9] sm:$0xff]
  %v2079 = vld [vmem:[%s1490 + $0x2e9] sm:$0xff]
  %v2080 = vld [vmem:[%s1490 + $0x2f1] sm:$0xff]
  %v2081 = vld [vmem:[%s1490 + $0x301] sm:$0xff]
  %v2082 = vld [vmem:[%s1490 + $0x309] sm:$0xff]
  %v2083 = vld [vmem:[%s1490 + $0x319] sm:$0xff]
  %v2084 = vld [vmem:[%s1490 + $0x321] sm:$0xff]
  %s2085 = scalar_lea.vmem %s2, 512
  %v2086 = vld [vmem:[%s2085] sm:$0xff]
  %v2087 = vld [vmem:[%s2085 + $0x8] sm:$0xff]
  %v2088 = vld [vmem:[%s2085 + $0x10] sm:$0xff]
  %v2089 = vld [vmem:[%s2085 + $0x18] sm:$0xff]
  %v2090 = vld [vmem:[%s2085 + $0x20] sm:$0xff]
  %v2091 = vld [vmem:[%s2085 + $0x28] sm:$0xff]
  %v2092 = vld [vmem:[%s2085 + $0x30] sm:$0xff]
  %v2093 = vld [vmem:[%s2085 + $0x38] sm:$0xff]
  %v2094 = vld [vmem:[%s2085 + $0x40] sm:$0xff]
  %v2095 = vld [vmem:[%s2085 + $0x48] sm:$0xff]
  %v2096 = vld [vmem:[%s2085 + $0x50] sm:$0xff]
  %v2097 = vld [vmem:[%s2085 + $0x58] sm:$0xff]
  %v2098 = vld [vmem:[%s2085 + $0x60] sm:$0xff]
  %v2099 = vld [vmem:[%s2085 + $0x68] sm:$0xff]
  %v2100 = vld [vmem:[%s2085 + $0x70] sm:$0xff]
  %v2101 = vld [vmem:[%s2085 + $0x78] sm:$0xff]
  %2102 = vmatprep.subr.mxu0 0.0
  %2103 = vmatpush1.msra.mxu0 %v2086
  %2104 = vmatprep.subr.mxu0 0.0
  %2105 = vmatpush1.msra.mxu0 %v2087
  %2106 = vmatprep.subr.mxu0 0.0
  %2107 = vmatpush1.msra.mxu0 %v2088
  %2108 = vmatprep.subr.mxu0 0.0
  %2109 = vmatpush1.msra.mxu0 %v2089
  %2110 = vmatprep.subr.mxu0 0.0
  %2111 = vmatpush1.msra.mxu0 %v2090
  %2112 = vmatprep.subr.mxu0 0.0
  %2113 = vmatpush1.msra.mxu0 %v2091
  %2114 = vmatprep.subr.mxu0 0.0
  %2115 = vmatpush1.msra.mxu0 %v2092
  %2116 = vmatprep.subr.mxu0 0.0
  %2117 = vmatpush1.msra.mxu0 %v2093
  %2118 = vmatprep.subr.mxu0 0.0
  %2119 = vmatpush1.msra.mxu0 %v2094
  %2120 = vmatprep.subr.mxu0 0.0
  %2121 = vmatpush1.msra.mxu0 %v2095
  %2122 = vmatprep.subr.mxu0 0.0
  %2123 = vmatpush1.msra.mxu0 %v2096
  %2124 = vmatprep.subr.mxu0 0.0
  %2125 = vmatpush1.msra.mxu0 %v2097
  %2126 = vmatprep.subr.mxu0 0.0
  %2127 = vmatpush1.msra.mxu0 %v2098
  %2128 = vmatprep.subr.mxu0 0.0
  %2129 = vmatpush1.msra.mxu0 %v2099
  %2130 = vmatprep.subr.mxu0 0.0
  %2131 = vmatpush1.msra.mxu0 %v2100
  %2132 = vmatprep.subr.mxu0 0.0
  %2133 = vmatpush1.msra.mxu0 %v2101
  %2134 = vmatprep.subr.mxu0 0.0
  %2135 = vmatpush1.msra.mxu0 0.0
  %2136 = vmatprep.subr.mxu0 0.0
  %2137 = vmatpush1.msra.mxu0 0.0
  %2138 = vmatprep.subr.mxu0 0.0
  %2139 = vmatpush1.msra.mxu0 0.0
  %2140 = vmatprep.subr.mxu0 0.0
  %2141 = vmatpush1.msra.mxu0 0.0
  %2142 = vmatprep.subr.mxu0 0.0
  %2143 = vmatpush1.msra.mxu0 0.0
  %2144 = vmatprep.subr.mxu0 0.0
  %2145 = vmatpush1.msra.mxu0 0.0
  %2146 = vmatprep.subr.mxu0 0.0
  %2147 = vmatpush1.msra.mxu0 0.0
  %2148 = vmatprep.subr.mxu0 0.0
  %2149 = vmatpush1.msra.mxu0 0.0
  %2150 = vmatprep.subr.mxu0 0.0
  %2151 = vmatpush1.msra.mxu0 0.0
  %2152 = vmatprep.subr.mxu0 0.0
  %2153 = vmatpush1.msra.mxu0 0.0
  %2154 = vmatprep.subr.mxu0 0.0
  %2155 = vmatpush1.msra.mxu0 0.0
  %2156 = vmatprep.subr.mxu0 0.0
  %2157 = vmatpush1.msra.mxu0 0.0
  %2158 = vmatprep.subr.mxu0 0.0
  %2159 = vmatpush1.msra.mxu0 0.0
  %2160 = vmatprep.subr.mxu0 0.0
  %2161 = vmatpush1.msra.mxu0 0.0
  %2162 = vmatprep.subr.mxu0 0.0
  %2163 = vmatpush1.msra.mxu0 0.0
  %2164 = vmatprep.subr.mxu0 0.0
  %2165 = vmatpush1.msra.mxu0 0.0
  %2166 = vmatprep.mubr.f32.mxu0 0.0
  %2167 = vmatmul.mubr.f32.gmra.mrb[0].mxu0 %v2021
  %v2168 = vpop.f32.mrb[0].mxu0
  %v2169 = vadd.f32 0.0, %v2168
  %v2170 = vpop.f32.mrb[0].mxu0
  %2171 = vmatprep.mubr.f32.mxu0 0.0
  %2172 = vmatmul.mubr.f32.gmra.mrb[0].mxu0 %v2022
  %v2173 = vpop.f32.mrb[0].mxu0
  %v2174 = vadd.f32 0.0, %v2173
  %v2175 = vpop.f32.mrb[0].mxu0
  %2176 = vmatprep.mubr.f32.mxu0 0.0
  %2177 = vmatmul.mubr.f32.gmra.mrb[0].mxu0 %v2023
  %v2178 = vpop.f32.mrb[0].mxu0
  %v2179 = vadd.f32 0.0, %v2178
  %v2180 = vpop.f32.mrb[0].mxu0
  %2181 = vmatprep.mubr.f32.mxu0 0.0
  %2182 = vmatmul.mubr.f32.gmra.mrb[0].mxu0 %v2024
  %v2183 = vpop.f32.mrb[0].mxu0
  %v2184 = vadd.f32 0.0, %v2183
  %v2185 = vpop.f32.mrb[0].mxu0
  %2186 = vmatprep.mubr.f32.mxu0 0.0
  %2187 = vmatmul.mubr.f32.gmra.mrb[0].mxu0 %v2025
  %v2188 = vpop.f32.mrb[0].mxu0
  %v2189 = vadd.f32 0.0, %v2188
  %v2190 = vpop.f32.mrb[0].mxu0
  %2191 = vmatprep.mubr.f32.mxu0 0.0
  %2192 = vmatmul.mubr.f32.gmra.mrb[0].mxu0 %v2026
  %v2193 = vpop.f32.mrb[0].mxu0
  %v2194 = vadd.f32 0.0, %v2193
  %v2195 = vpop.f32.mrb[0].mxu0
  %2196 = vmatprep.mubr.f32.mxu0 0.0
  %2197 = vmatmul.mubr.f32.gmra.mrb[0].mxu0 %v2027
  %v2198 = vpop.f32.mrb[0].mxu0
  %v2199 = vadd.f32 0.0, %v2198
  %v2200 = vpop.f32.mrb[0].mxu0
  %2201 = vmatprep.mubr.f32.mxu0 0.0
  %2202 = vmatmul.mubr.f32.gmra.mrb[0].mxu0 %v2028
  %v2203 = vpop.f32.mrb[0].mxu0
  %v2204 = vadd.f32 0.0, %v2203
  %v2205 = vpop.f32.mrb[0].mxu0
  %2206 = vmatprep.mubr.f32.mxu0 0.0
  %2207 = vmatmul.mubr.f32.gmra.mrb[0].mxu0 %v2029
  %v2208 = vpop.f32.mrb[0].mxu0
  %v2209 = vadd.f32 0.0, %v2208
  %v2210 = vpop.f32.mrb[0].mxu0
  %2211 = vmatprep.mubr.f32.mxu0 0.0
  %2212 = vmatmul.mubr.f32.gmra.mrb[0].mxu0 %v2030
  %v2213 = vpop.f32.mrb[0].mxu0
  %v2214 = vadd.f32 0.0, %v2213
  %v2215 = vpop.f32.mrb[0].mxu0
  %2216 = vmatprep.mubr.f32.mxu0 0.0
  %2217 = vmatmul.mubr.f32.gmra.mrb[0].mxu0 %v2031
  %v2218 = vpop.f32.mrb[0].mxu0
  %v2219 = vadd.f32 0.0, %v2218
  %v2220 = vpop.f32.mrb[0].mxu0
  %2221 = vmatprep.mubr.f32.mxu0 0.0
  %2222 = vmatmul.mubr.f32.gmra.mrb[0].mxu0 %v2032
  %v2223 = vpop.f32.mrb[0].mxu0
  %v2224 = vadd.f32 0.0, %v2223
  %v2225 = vpop.f32.mrb[0].mxu0
  %2226 = vmatprep.mubr.f32.mxu0 0.0
  %2227 = vmatmul.mubr.f32.gmra.mrb[0].mxu0 %v2033
  %v2228 = vpop.f32.mrb[0].mxu0
  %v2229 = vadd.f32 0.0, %v2228
  %v2230 = vpop.f32.mrb[0].mxu0
  %2231 = vmatprep.mubr.f32.mxu0 0.0
  %2232 = vmatmul.mubr.f32.gmra.mrb[0].mxu0 %v2034
  %v2233 = vpop.f32.mrb[0].mxu0
  %v2234 = vadd.f32 0.0, %v2233
  %v2235 = vpop.f32.mrb[0].mxu0
  %2236 = vmatprep.mubr.f32.mxu0 0.0
  %2237 = vmatmul.mubr.f32.gmra.mrb[0].mxu0 %v2035
  %v2238 = vpop.f32.mrb[0].mxu0
  %v2239 = vadd.f32 0.0, %v2238
  %v2240 = vpop.f32.mrb[0].mxu0
  %2241 = vmatprep.mubr.f32.mxu0 0.0
  %2242 = vmatmul.mubr.f32.gmra.mrb[0].mxu0 %v2036
  %v2243 = vpop.f32.mrb[0].mxu0
  %v2244 = vadd.f32 0.0, %v2243
  %v2245 = vpop.f32.mrb[0].mxu0
  %2246 = vmatprep.mubr.f32.mxu0 0.0
  %2247 = vmatmul.mubr.f32.gmra.mrb[0].mxu0 %v2037
  %v2248 = vpop.f32.mrb[0].mxu0
  %v2249 = vadd.f32 0.0, %v2248
  %v2250 = vpop.f32.mrb[0].mxu0
  %2251 = vmatprep.mubr.f32.mxu0 0.0
  %2252 = vmatmul.mubr.f32.gmra.mrb[0].mxu0 %v2038
  %v2253 = vpop.f32.mrb[0].mxu0
  %v2254 = vadd.f32 0.0, %v2253
  %v2255 = vpop.f32.mrb[0].mxu0
  %2256 = vmatprep.mubr.f32.mxu0 0.0
  %2257 = vmatmul.mubr.f32.gmra.mrb[0].mxu0 %v2039
  %v2258 = vpop.f32.mrb[0].mxu0
  %v2259 = vadd.f32 0.0, %v2258
  %v2260 = vpop.f32.mrb[0].mxu0
  %2261 = vmatprep.mubr.f32.mxu0 0.0
  %2262 = vmatmul.mubr.f32.gmra.mrb[0].mxu0 %v2040
  %v2263 = vpop.f32.mrb[0].mxu0
  %v2264 = vadd.f32 0.0, %v2263
  %v2265 = vpop.f32.mrb[0].mxu0
  %2266 = vmatprep.mubr.f32.mxu0 0.0
  %2267 = vmatmul.mubr.f32.gmra.mrb[0].mxu0 %v2041
  %v2268 = vpop.f32.mrb[0].mxu0
  %v2269 = vadd.f32 0.0, %v2268
  %v2270 = vpop.f32.mrb[0].mxu0
  %2271 = vmatprep.mubr.f32.mxu0 0.0
  %2272 = vmatmul.mubr.f32.gmra.mrb[0].mxu0 %v2042
  %v2273 = vpop.f32.mrb[0].mxu0
  %v2274 = vadd.f32 0.0, %v2273
  %v2275 = vpop.f32.mrb[0].mxu0
  %2276 = vmatprep.mubr.f32.mxu0 0.0
  %2277 = vmatmul.mubr.f32.gmra.mrb[0].mxu0 %v2043
  %v2278 = vpop.f32.mrb[0].mxu0
  %v2279 = vadd.f32 0.0, %v2278
  %v2280 = vpop.f32.mrb[0].mxu0
  %2281 = vmatprep.mubr.f32.mxu0 0.0
  %2282 = vmatmul.mubr.f32.gmra.mrb[0].mxu0 %v2044
  %v2283 = vpop.f32.mrb[0].mxu0
  %v2284 = vadd.f32 0.0, %v2283
  %v2285 = vpop.f32.mrb[0].mxu0
  %2286 = vmatprep.mubr.f32.mxu0 0.0
  %2287 = vmatmul.mubr.f32.gmra.mrb[0].mxu0 %v2045
  %v2288 = vpop.f32.mrb[0].mxu0
  %v2289 = vadd.f32 0.0, %v2288
  %v2290 = vpop.f32.mrb[0].mxu0
  %2291 = vmatprep.mubr.f32.mxu0 0.0
  %2292 = vmatmul.mubr.f32.gmra.mrb[0].mxu0 %v2046
  %v2293 = vpop.f32.mrb[0].mxu0
  %v2294 = vadd.f32 0.0, %v2293
  %v2295 = vpop.f32.mrb[0].mxu0
  %2296 = vmatprep.mubr.f32.mxu0 0.0
  %2297 = vmatmul.mubr.f32.gmra.mrb[0].mxu0 %v2047
  %v2298 = vpop.f32.mrb[0].mxu0
  %v2299 = vadd.f32 0.0, %v2298
  %v2300 = vpop.f32.mrb[0].mxu0
  %2301 = vmatprep.mubr.f32.mxu0 0.0
  %2302 = vmatmul.mubr.f32.gmra.mrb[0].mxu0 %v2048
  %v2303 = vpop.f32.mrb[0].mxu0
  %v2304 = vadd.f32 0.0, %v2303
  %v2305 = vpop.f32.mrb[0].mxu0
  %2306 = vmatprep.mubr.f32.mxu0 0.0
  %2307 = vmatmul.mubr.f32.gmra.mrb[0].mxu0 %v2049
  %v2308 = vpop.f32.mrb[0].mxu0
  %v2309 = vadd.f32 0.0, %v2308
  %v2310 = vpop.f32.mrb[0].mxu0
  %2311 = vmatprep.mubr.f32.mxu0 0.0
  %2312 = vmatmul.mubr.f32.gmra.mrb[0].mxu0 %v2050
  %v2313 = vpop.f32.mrb[0].mxu0
  %v2314 = vadd.f32 0.0, %v2313
  %v2315 = vpop.f32.mrb[0].mxu0
  %2316 = vmatprep.mubr.f32.mxu0 0.0
  %2317 = vmatmul.mubr.f32.gmra.mrb[0].mxu0 %v2051
  %v2318 = vpop.f32.mrb[0].mxu0
  %v2319 = vadd.f32 0.0, %v2318
  %v2320 = vpop.f32.mrb[0].mxu0
  %2321 = vmatprep.mubr.f32.mxu0 0.0
  %2322 = vmatmul.mubr.f32.gmra.mrb[0].mxu0 %v2052
  %v2323 = vpop.f32.mrb[0].mxu0
  %v2324 = vadd.f32 0.0, %v2323
  %v2325 = vpop.f32.mrb[0].mxu0
  %2326 = vmatprep.mubr.f32.mxu0 0.0
  %2327 = vmatmul.mubr.f32.gmra.mrb[0].mxu0 %v2053
  %v2328 = vpop.f32.mrb[0].mxu0
  %v2329 = vadd.f32 0.0, %v2328
  %v2330 = vpop.f32.mrb[0].mxu0
  %2331 = vmatprep.mubr.f32.mxu0 0.0
  %2332 = vmatmul.mubr.f32.gmra.mrb[0].mxu0 %v2054
  %v2333 = vpop.f32.mrb[0].mxu0
  %v2334 = vadd.f32 0.0, %v2333
  %v2335 = vpop.f32.mrb[0].mxu0
  %2336 = vmatprep.mubr.f32.mxu0 0.0
  %2337 = vmatmul.mubr.f32.gmra.mrb[0].mxu0 %v2055
  %v2338 = vpop.f32.mrb[0].mxu0
  %v2339 = vadd.f32 0.0, %v2338
  %v2340 = vpop.f32.mrb[0].mxu0
  %2341 = vmatprep.mubr.f32.mxu0 0.0
  %2342 = vmatmul.mubr.f32.gmra.mrb[0].mxu0 %v2056
  %v2343 = vpop.f32.mrb[0].mxu0
  %v2344 = vadd.f32 0.0, %v2343
  %v2345 = vpop.f32.mrb[0].mxu0
  %2346 = vmatprep.mubr.f32.mxu0 0.0
  %2347 = vmatmul.mubr.f32.gmra.mrb[0].mxu0 %v2057
  %v2348 = vpop.f32.mrb[0].mxu0
  %v2349 = vadd.f32 0.0, %v2348
  %v2350 = vpop.f32.mrb[0].mxu0
  %2351 = vmatprep.mubr.f32.mxu0 0.0
  %2352 = vmatmul.mubr.f32.gmra.mrb[0].mxu0 %v2058
  %v2353 = vpop.f32.mrb[0].mxu0
  %v2354 = vadd.f32 0.0, %v2353
  %v2355 = vpop.f32.mrb[0].mxu0
  %2356 = vmatprep.mubr.f32.mxu0 0.0
  %2357 = vmatmul.mubr.f32.gmra.mrb[0].mxu0 %v2059
  %v2358 = vpop.f32.mrb[0].mxu0
  %v2359 = vadd.f32 0.0, %v2358
  %v2360 = vpop.f32.mrb[0].mxu0
  %2361 = vmatprep.mubr.f32.mxu0 0.0
  %2362 = vmatmul.mubr.f32.gmra.mrb[0].mxu0 %v2060
  %v2363 = vpop.f32.mrb[0].mxu0
  %v2364 = vadd.f32 0.0, %v2363
  %v2365 = vpop.f32.mrb[0].mxu0
  %2366 = vmatprep.mubr.f32.mxu0 0.0
  %2367 = vmatmul.mubr.f32.gmra.mrb[0].mxu0 %v2061
  %v2368 = vpop.f32.mrb[0].mxu0
  %v2369 = vadd.f32 0.0, %v2368
  %v2370 = vpop.f32.mrb[0].mxu0
  %2371 = vmatprep.mubr.f32.mxu0 0.0
  %2372 = vmatmul.mubr.f32.gmra.mrb[0].mxu0 %v2062
  %v2373 = vpop.f32.mrb[0].mxu0
  %v2374 = vadd.f32 0.0, %v2373
  %v2375 = vpop.f32.mrb[0].mxu0
  %2376 = vmatprep.mubr.f32.mxu0 0.0
  %2377 = vmatmul.mubr.f32.gmra.mrb[0].mxu0 %v2063
  %v2378 = vpop.f32.mrb[0].mxu0
  %v2379 = vadd.f32 0.0, %v2378
  %v2380 = vpop.f32.mrb[0].mxu0
  %2381 = vmatprep.mubr.f32.mxu0 0.0
  %2382 = vmatmul.mubr.f32.gmra.mrb[0].mxu0 %v2064
  %v2383 = vpop.f32.mrb[0].mxu0
  %v2384 = vadd.f32 0.0, %v2383
  %v2385 = vpop.f32.mrb[0].mxu0
  %2386 = vmatprep.mubr.f32.mxu0 0.0
  %2387 = vmatmul.mubr.f32.gmra.mrb[0].mxu0 %v2065
  %v2388 = vpop.f32.mrb[0].mxu0
  %v2389 = vadd.f32 0.0, %v2388
  %v2390 = vpop.f32.mrb[0].mxu0
  %2391 = vmatprep.mubr.f32.mxu0 0.0
  %2392 = vmatmul.mubr.f32.gmra.mrb[0].mxu0 %v2066
  %v2393 = vpop.f32.mrb[0].mxu0
  %v2394 = vadd.f32 0.0, %v2393
  %v2395 = vpop.f32.mrb[0].mxu0
  %2396 = vmatprep.mubr.f32.mxu0 0.0
  %2397 = vmatmul.mubr.f32.gmra.mrb[0].mxu0 %v2067
  %v2398 = vpop.f32.mrb[0].mxu0
  %v2399 = vadd.f32 0.0, %v2398
  %v2400 = vpop.f32.mrb[0].mxu0
  %2401 = vmatprep.mubr.f32.mxu0 0.0
  %2402 = vmatmul.mubr.f32.gmra.mrb[0].mxu0 %v2068
  %v2403 = vpop.f32.mrb[0].mxu0
  %v2404 = vadd.f32 0.0, %v2403
  %v2405 = vpop.f32.mrb[0].mxu0
  %2406 = vmatprep.mubr.f32.mxu0 0.0
  %2407 = vmatmul.mubr.f32.gmra.mrb[0].mxu0 %v2069
  %v2408 = vpop.f32.mrb[0].mxu0
  %v2409 = vadd.f32 0.0, %v2408
  %v2410 = vpop.f32.mrb[0].mxu0
  %2411 = vmatprep.mubr.f32.mxu0 0.0
  %2412 = vmatmul.mubr.f32.gmra.mrb[0].mxu0 %v2070
  %v2413 = vpop.f32.mrb[0].mxu0
  %v2414 = vadd.f32 0.0, %v2413
  %v2415 = vpop.f32.mrb[0].mxu0
  %2416 = vmatprep.mubr.f32.mxu0 0.0
  %2417 = vmatmul.mubr.f32.gmra.mrb[0].mxu0 %v2071
  %v2418 = vpop.f32.mrb[0].mxu0
  %v2419 = vadd.f32 0.0, %v2418
  %v2420 = vpop.f32.mrb[0].mxu0
  %2421 = vmatprep.mubr.f32.mxu0 0.0
  %2422 = vmatmul.mubr.f32.gmra.mrb[0].mxu0 %v2072
  %v2423 = vpop.f32.mrb[0].mxu0
  %v2424 = vadd.f32 0.0, %v2423
  %v2425 = vpop.f32.mrb[0].mxu0
  %2426 = vmatprep.mubr.f32.mxu0 0.0
  %2427 = vmatmul.mubr.f32.gmra.mrb[0].mxu0 %v2073
  %v2428 = vpop.f32.mrb[0].mxu0
  %v2429 = vadd.f32 0.0, %v2428
  %v2430 = vpop.f32.mrb[0].mxu0
  %2431 = vmatprep.mubr.f32.mxu0 0.0
  %2432 = vmatmul.mubr.f32.gmra.mrb[0].mxu0 %v2074
  %v2433 = vpop.f32.mrb[0].mxu0
  %v2434 = vadd.f32 0.0, %v2433
  %v2435 = vpop.f32.mrb[0].mxu0
  %2436 = vmatprep.mubr.f32.mxu0 0.0
  %2437 = vmatmul.mubr.f32.gmra.mrb[0].mxu0 %v2075
  %v2438 = vpop.f32.mrb[0].mxu0
  %v2439 = vadd.f32 0.0, %v2438
  %v2440 = vpop.f32.mrb[0].mxu0
  %2441 = vmatprep.mubr.f32.mxu0 0.0
  %2442 = vmatmul.mubr.f32.gmra.mrb[0].mxu0 %v2076
  %v2443 = vpop.f32.mrb[0].mxu0
  %v2444 = vadd.f32 0.0, %v2443
  %v2445 = vpop.f32.mrb[0].mxu0
  %2446 = vmatprep.mubr.f32.mxu0 0.0
  %2447 = vmatmul.mubr.f32.gmra.mrb[0].mxu0 %v2077
  %v2448 = vpop.f32.mrb[0].mxu0
  %v2449 = vadd.f32 0.0, %v2448
  %v2450 = vpop.f32.mrb[0].mxu0
  %2451 = vmatprep.mubr.f32.mxu0 0.0
  %2452 = vmatmul.mubr.f32.gmra.mrb[0].mxu0 %v2078
  %v2453 = vpop.f32.mrb[0].mxu0
  %v2454 = vadd.f32 0.0, %v2453
  %v2455 = vpop.f32.mrb[0].mxu0
  %2456 = vmatprep.mubr.f32.mxu0 0.0
  %2457 = vmatmul.mubr.f32.gmra.mrb[0].mxu0 %v2079
  %v2458 = vpop.f32.mrb[0].mxu0
  %v2459 = vadd.f32 0.0, %v2458
  %v2460 = vpop.f32.mrb[0].mxu0
  %2461 = vmatprep.mubr.f32.mxu0 0.0
  %2462 = vmatmul.mubr.f32.gmra.mrb[0].mxu0 %v2080
  %v2463 = vpop.f32.mrb[0].mxu0
  %v2464 = vadd.f32 0.0, %v2463
  %v2465 = vpop.f32.mrb[0].mxu0
  %2466 = vmatprep.mubr.f32.mxu0 0.0
  %2467 = vmatmul.mubr.f32.gmra.mrb[0].mxu0 %v2081
  %v2468 = vpop.f32.mrb[0].mxu0
  %v2469 = vadd.f32 0.0, %v2468
  %v2470 = vpop.f32.mrb[0].mxu0
  %2471 = vmatprep.mubr.f32.mxu0 0.0
  %2472 = vmatmul.mubr.f32.gmra.mrb[0].mxu0 %v2082
  %v2473 = vpop.f32.mrb[0].mxu0
  %v2474 = vadd.f32 0.0, %v2473
  %v2475 = vpop.f32.mrb[0].mxu0
  %2476 = vmatprep.mubr.f32.mxu0 0.0
  %2477 = vmatmul.mubr.f32.gmra.mrb[0].mxu0 %v2083
  %v2478 = vpop.f32.mrb[0].mxu0
  %v2479 = vadd.f32 0.0, %v2478
  %v2480 = vpop.f32.mrb[0].mxu0
  %2481 = vmatprep.mubr.f32.mxu0 0.0
  %2482 = vmatmul.mubr.f32.gmra.mrb[0].mxu0 %v2084
  %v2483 = vpop.f32.mrb[0].mxu0
  %v2484 = vadd.f32 0.0, %v2483
  %v2485 = vpop.f32.mrb[0].mxu0
  %2486 = vdwg.mxu0
  %v2487 = vadd.f32 %v1957, %v2169
  %v2488 = vadd.f32 %v1958, %v2174
  %v2489 = vadd.f32 %v1959, %v2179
  %v2490 = vadd.f32 %v1960, %v2184
  %v2491 = vadd.f32 %v1961, %v2189
  %v2492 = vadd.f32 %v1962, %v2194
  %v2493 = vadd.f32 %v1963, %v2199
  %v2494 = vadd.f32 %v1964, %v2204
  %v2495 = vadd.f32 %v1965, %v2209
  %v2496 = vadd.f32 %v1966, %v2214
  %v2497 = vadd.f32 %v1967, %v2219
  %v2498 = vadd.f32 %v1968, %v2224
  %v2499 = vadd.f32 %v1969, %v2229
  %v2500 = vadd.f32 %v1970, %v2234
  %v2501 = vadd.f32 %v1971, %v2239
  %v2502 = vadd.f32 %v1972, %v2244
  %v2503 = vadd.f32 %v1973, %v2249
  %v2504 = vadd.f32 %v1974, %v2254
  %v2505 = vadd.f32 %v1975, %v2259
  %v2506 = vadd.f32 %v1976, %v2264
  %v2507 = vadd.f32 %v1977, %v2269
  %v2508 = vadd.f32 %v1978, %v2274
  %v2509 = vadd.f32 %v1979, %v2279
  %v2510 = vadd.f32 %v1980, %v2284
  %v2511 = vadd.f32 %v1981, %v2289
  %v2512 = vadd.f32 %v1982, %v2294
  %v2513 = vadd.f32 %v1983, %v2299
  %v2514 = vadd.f32 %v1984, %v2304
  %v2515 = vadd.f32 %v1985, %v2309
  %v2516 = vadd.f32 %v1986, %v2314
  %v2517 = vadd.f32 %v1987, %v2319
  %v2518 = vadd.f32 %v1988, %v2324
  %v2519 = vadd.f32 %v1989, %v2329
  %v2520 = vadd.f32 %v1990, %v2334
  %v2521 = vadd.f32 %v1991, %v2339
  %v2522 = vadd.f32 %v1992, %v2344
  %v2523 = vadd.f32 %v1993, %v2349
  %v2524 = vadd.f32 %v1994, %v2354
  %v2525 = vadd.f32 %v1995, %v2359
  %v2526 = vadd.f32 %v1996, %v2364
  %v2527 = vadd.f32 %v1997, %v2369
  %v2528 = vadd.f32 %v1998, %v2374
  %v2529 = vadd.f32 %v1999, %v2379
  %v2530 = vadd.f32 %v2000, %v2384
  %v2531 = vadd.f32 %v2001, %v2389
  %v2532 = vadd.f32 %v2002, %v2394
  %v2533 = vadd.f32 %v2003, %v2399
  %v2534 = vadd.f32 %v2004, %v2404
  %v2535 = vadd.f32 %v2005, %v2409
  %v2536 = vadd.f32 %v2006, %v2414
  %v2537 = vadd.f32 %v2007, %v2419
  %v2538 = vadd.f32 %v2008, %v2424
  %v2539 = vadd.f32 %v2009, %v2429
  %v2540 = vadd.f32 %v2010, %v2434
  %v2541 = vadd.f32 %v2011, %v2439
  %v2542 = vadd.f32 %v2012, %v2444
  %v2543 = vadd.f32 %v2013, %v2449
  %v2544 = vadd.f32 %v2014, %v2454
  %v2545 = vadd.f32 %v2015, %v2459
  %v2546 = vadd.f32 %v2016, %v2464
  %v2547 = vadd.f32 %v2017, %v2469
  %v2548 = vadd.f32 %v2018, %v2474
  %v2549 = vadd.f32 %v2019, %v2479
  %v2550 = vadd.f32 %v2020, %v2484
  %v2551 = vld [vmem:[%s1490 + $0x2] sm:$0xff]
  %v2552 = vld [vmem:[%s1490 + $0xa] sm:$0xff]
  %v2553 = vld [vmem:[%s1490 + $0x1a] sm:$0xff]
  %v2554 = vld [vmem:[%s1490 + $0x22] sm:$0xff]
  %v2555 = vld [vmem:[%s1490 + $0x32] sm:$0xff]
  %v2556 = vld [vmem:[%s1490 + $0x3a] sm:$0xff]
  %v2557 = vld [vmem:[%s1490 + $0x4a] sm:$0xff]
  %v2558 = vld [vmem:[%s1490 + $0x52] sm:$0xff]
  %v2559 = vld [vmem:[%s1490 + $0x62] sm:$0xff]
  %v2560 = vld [vmem:[%s1490 + $0x6a] sm:$0xff]
  %v2561 = vld [vmem:[%s1490 + $0x7a] sm:$0xff]
  %v2562 = vld [vmem:[%s1490 + $0x82] sm:$0xff]
  %v2563 = vld [vmem:[%s1490 + $0x92] sm:$0xff]
  %v2564 = vld [vmem:[%s1490 + $0x9a] sm:$0xff]
  %v2565 = vld [vmem:[%s1490 + $0xaa] sm:$0xff]
  %v2566 = vld [vmem:[%s1490 + $0xb2] sm:$0xff]
  %v2567 = vld [vmem:[%s1490 + $0xc2] sm:$0xff]
  %v2568 = vld [vmem:[%s1490 + $0xca] sm:$0xff]
  %v2569 = vld [vmem:[%s1490 + $0xda] sm:$0xff]
  %v2570 = vld [vmem:[%s1490 + $0xe2] sm:$0xff]
  %v2571 = vld [vmem:[%s1490 + $0xf2] sm:$0xff]
  %v2572 = vld [vmem:[%s1490 + $0xfa] sm:$0xff]
  %v2573 = vld [vmem:[%s1490 + $0x10a] sm:$0xff]
  %v2574 = vld [vmem:[%s1490 + $0x112] sm:$0xff]
  %v2575 = vld [vmem:[%s1490 + $0x122] sm:$0xff]
  %v2576 = vld [vmem:[%s1490 + $0x12a] sm:$0xff]
  %v2577 = vld [vmem:[%s1490 + $0x13a] sm:$0xff]
  %v2578 = vld [vmem:[%s1490 + $0x142] sm:$0xff]
  %v2579 = vld [vmem:[%s1490 + $0x152] sm:$0xff]
  %v2580 = vld [vmem:[%s1490 + $0x15a] sm:$0xff]
  %v2581 = vld [vmem:[%s1490 + $0x16a] sm:$0xff]
  %v2582 = vld [vmem:[%s1490 + $0x172] sm:$0xff]
  %v2583 = vld [vmem:[%s1490 + $0x1b2] sm:$0xff]
  %v2584 = vld [vmem:[%s1490 + $0x1ba] sm:$0xff]
  %v2585 = vld [vmem:[%s1490 + $0x1ca] sm:$0xff]
  %v2586 = vld [vmem:[%s1490 + $0x1d2] sm:$0xff]
  %v2587 = vld [vmem:[%s1490 + $0x1e2] sm:$0xff]
  %v2588 = vld [vmem:[%s1490 + $0x1ea] sm:$0xff]
  %v2589 = vld [vmem:[%s1490 + $0x1fa] sm:$0xff]
  %v2590 = vld [vmem:[%s1490 + $0x202] sm:$0xff]
  %v2591 = vld [vmem:[%s1490 + $0x212] sm:$0xff]
  %v2592 = vld [vmem:[%s1490 + $0x21a] sm:$0xff]
  %v2593 = vld [vmem:[%s1490 + $0x22a] sm:$0xff]
  %v2594 = vld [vmem:[%s1490 + $0x232] sm:$0xff]
  %v2595 = vld [vmem:[%s1490 + $0x242] sm:$0xff]
  %v2596 = vld [vmem:[%s1490 + $0x24a] sm:$0xff]
  %v2597 = vld [vmem:[%s1490 + $0x25a] sm:$0xff]
  %v2598 = vld [vmem:[%s1490 + $0x262] sm:$0xff]
  %v2599 = vld [vmem:[%s1490 + $0x272] sm:$0xff]
  %v2600 = vld [vmem:[%s1490 + $0x27a] sm:$0xff]
  %v2601 = vld [vmem:[%s1490 + $0x28a] sm:$0xff]
  %v2602 = vld [vmem:[%s1490 + $0x292] sm:$0xff]
  %v2603 = vld [vmem:[%s1490 + $0x2a2] sm:$0xff]
  %v2604 = vld [vmem:[%s1490 + $0x2aa] sm:$0xff]
  %v2605 = vld [vmem:[%s1490 + $0x2ba] sm:$0xff]
  %v2606 = vld [vmem:[%s1490 + $0x2c2] sm:$0xff]
  %v2607 = vld [vmem:[%s1490 + $0x2d2] sm:$0xff]
  %v2608 = vld [vmem:[%s1490 + $0x2da] sm:$0xff]
  %v2609 = vld [vmem:[%s1490 + $0x2ea] sm:$0xff]
  %v2610 = vld [vmem:[%s1490 + $0x2f2] sm:$0xff]
  %v2611 = vld [vmem:[%s1490 + $0x302] sm:$0xff]
  %v2612 = vld [vmem:[%s1490 + $0x30a] sm:$0xff]
  %v2613 = vld [vmem:[%s1490 + $0x31a] sm:$0xff]
  %v2614 = vld [vmem:[%s1490 + $0x322] sm:$0xff]
  %s2615 = scalar_lea.vmem %s2, 640
  %v2616 = vld [vmem:[%s2615] sm:$0xff]
  %v2617 = vld [vmem:[%s2615 + $0x8] sm:$0xff]
  %v2618 = vld [vmem:[%s2615 + $0x10] sm:$0xff]
  %v2619 = vld [vmem:[%s2615 + $0x18] sm:$0xff]
  %v2620 = vld [vmem:[%s2615 + $0x20] sm:$0xff]
  %v2621 = vld [vmem:[%s2615 + $0x28] sm:$0xff]
  %v2622 = vld [vmem:[%s2615 + $0x30] sm:$0xff]
  %v2623 = vld [vmem:[%s2615 + $0x38] sm:$0xff]
  %v2624 = vld [vmem:[%s2615 + $0x40] sm:$0xff]
  %v2625 = vld [vmem:[%s2615 + $0x48] sm:$0xff]
  %v2626 = vld [vmem:[%s2615 + $0x50] sm:$0xff]
  %v2627 = vld [vmem:[%s2615 + $0x58] sm:$0xff]
  %v2628 = vld [vmem:[%s2615 + $0x60] sm:$0xff]
  %v2629 = vld [vmem:[%s2615 + $0x68] sm:$0xff]
  %v2630 = vld [vmem:[%s2615 + $0x70] sm:$0xff]
  %v2631 = vld [vmem:[%s2615 + $0x78] sm:$0xff]
  %2632 = vmatprep.subr.mxu0 0.0
  %2633 = vmatpush1.msra.mxu0 %v2616
  %2634 = vmatprep.subr.mxu0 0.0
  %2635 = vmatpush1.msra.mxu0 %v2617
  %2636 = vmatprep.subr.mxu0 0.0
  %2637 = vmatpush1.msra.mxu0 %v2618
  %2638 = vmatprep.subr.mxu0 0.0
  %2639 = vmatpush1.msra.mxu0 %v2619
  %2640 = vmatprep.subr.mxu0 0.0
  %2641 = vmatpush1.msra.mxu0 %v2620
  %2642 = vmatprep.subr.mxu0 0.0
  %2643 = vmatpush1.msra.mxu0 %v2621
  %2644 = vmatprep.subr.mxu0 0.0
  %2645 = vmatpush1.msra.mxu0 %v2622
  %2646 = vmatprep.subr.mxu0 0.0
  %2647 = vmatpush1.msra.mxu0 %v2623
  %2648 = vmatprep.subr.mxu0 0.0
  %2649 = vmatpush1.msra.mxu0 %v2624
  %2650 = vmatprep.subr.mxu0 0.0
  %2651 = vmatpush1.msra.mxu0 %v2625
  %2652 = vmatprep.subr.mxu0 0.0
  %2653 = vmatpush1.msra.mxu0 %v2626
  %2654 = vmatprep.subr.mxu0 0.0
  %2655 = vmatpush1.msra.mxu0 %v2627
  %2656 = vmatprep.subr.mxu0 0.0
  %2657 = vmatpush1.msra.mxu0 %v2628
  %2658 = vmatprep.subr.mxu0 0.0
  %2659 = vmatpush1.msra.mxu0 %v2629
  %2660 = vmatprep.subr.mxu0 0.0
  %2661 = vmatpush1.msra.mxu0 %v2630
  %2662 = vmatprep.subr.mxu0 0.0
  %2663 = vmatpush1.msra.mxu0 %v2631
  %2664 = vmatprep.subr.mxu0 0.0
  %2665 = vmatpush1.msra.mxu0 0.0
  %2666 = vmatprep.subr.mxu0 0.0
  %2667 = vmatpush1.msra.mxu0 0.0
  %2668 = vmatprep.subr.mxu0 0.0
  %2669 = vmatpush1.msra.mxu0 0.0
  %2670 = vmatprep.subr.mxu0 0.0
  %2671 = vmatpush1.msra.mxu0 0.0
  %2672 = vmatprep.subr.mxu0 0.0
  %2673 = vmatpush1.msra.mxu0 0.0
  %2674 = vmatprep.subr.mxu0 0.0
  %2675 = vmatpush1.msra.mxu0 0.0
  %2676 = vmatprep.subr.mxu0 0.0
  %2677 = vmatpush1.msra.mxu0 0.0
  %2678 = vmatprep.subr.mxu0 0.0
  %2679 = vmatpush1.msra.mxu0 0.0
  %2680 = vmatprep.subr.mxu0 0.0
  %2681 = vmatpush1.msra.mxu0 0.0
  %2682 = vmatprep.subr.mxu0 0.0
  %2683 = vmatpush1.msra.mxu0 0.0
  %2684 = vmatprep.subr.mxu0 0.0
  %2685 = vmatpush1.msra.mxu0 0.0
  %2686 = vmatprep.subr.mxu0 0.0
  %2687 = vmatpush1.msra.mxu0 0.0
  %2688 = vmatprep.subr.mxu0 0.0
  %2689 = vmatpush1.msra.mxu0 0.0
  %2690 = vmatprep.subr.mxu0 0.0
  %2691 = vmatpush1.msra.mxu0 0.0
  %2692 = vmatprep.subr.mxu0 0.0
  %2693 = vmatpush1.msra.mxu0 0.0
  %2694 = vmatprep.subr.mxu0 0.0
  %2695 = vmatpush1.msra.mxu0 0.0
  %2696 = vmatprep.mubr.f32.mxu0 0.0
  %2697 = vmatmul.mubr.f32.gmra.mrb[0].mxu0 %v2551
  %v2698 = vpop.f32.mrb[0].mxu0
  %v2699 = vadd.f32 0.0, %v2698
  %v2700 = vpop.f32.mrb[0].mxu0
  %2701 = vmatprep.mubr.f32.mxu0 0.0
  %2702 = vmatmul.mubr.f32.gmra.mrb[0].mxu0 %v2552
  %v2703 = vpop.f32.mrb[0].mxu0
  %v2704 = vadd.f32 0.0, %v2703
  %v2705 = vpop.f32.mrb[0].mxu0
  %2706 = vmatprep.mubr.f32.mxu0 0.0
  %2707 = vmatmul.mubr.f32.gmra.mrb[0].mxu0 %v2553
  %v2708 = vpop.f32.mrb[0].mxu0
  %v2709 = vadd.f32 0.0, %v2708
  %v2710 = vpop.f32.mrb[0].mxu0
  %2711 = vmatprep.mubr.f32.mxu0 0.0
  %2712 = vmatmul.mubr.f32.gmra.mrb[0].mxu0 %v2554
  %v2713 = vpop.f32.mrb[0].mxu0
  %v2714 = vadd.f32 0.0, %v2713
  %v2715 = vpop.f32.mrb[0].mxu0
  %2716 = vmatprep.mubr.f32.mxu0 0.0
  %2717 = vmatmul.mubr.f32.gmra.mrb[0].mxu0 %v2555
  %v2718 = vpop.f32.mrb[0].mxu0
  %v2719 = vadd.f32 0.0, %v2718
  %v2720 = vpop.f32.mrb[0].mxu0
  %2721 = vmatprep.mubr.f32.mxu0 0.0
  %2722 = vmatmul.mubr.f32.gmra.mrb[0].mxu0 %v2556
  %v2723 = vpop.f32.mrb[0].mxu0
  %v2724 = vadd.f32 0.0, %v2723
  %v2725 = vpop.f32.mrb[0].mxu0
  %2726 = vmatprep.mubr.f32.mxu0 0.0
  %2727 = vmatmul.mubr.f32.gmra.mrb[0].mxu0 %v2557
  %v2728 = vpop.f32.mrb[0].mxu0
  %v2729 = vadd.f32 0.0, %v2728
  %v2730 = vpop.f32.mrb[0].mxu0
  %2731 = vmatprep.mubr.f32.mxu0 0.0
  %2732 = vmatmul.mubr.f32.gmra.mrb[0].mxu0 %v2558
  %v2733 = vpop.f32.mrb[0].mxu0
  %v2734 = vadd.f32 0.0, %v2733
  %v2735 = vpop.f32.mrb[0].mxu0
  %2736 = vmatprep.mubr.f32.mxu0 0.0
  %2737 = vmatmul.mubr.f32.gmra.mrb[0].mxu0 %v2559
  %v2738 = vpop.f32.mrb[0].mxu0
  %v2739 = vadd.f32 0.0, %v2738
  %v2740 = vpop.f32.mrb[0].mxu0
  %2741 = vmatprep.mubr.f32.mxu0 0.0
  %2742 = vmatmul.mubr.f32.gmra.mrb[0].mxu0 %v2560
  %v2743 = vpop.f32.mrb[0].mxu0
  %v2744 = vadd.f32 0.0, %v2743
  %v2745 = vpop.f32.mrb[0].mxu0
  %2746 = vmatprep.mubr.f32.mxu0 0.0
  %2747 = vmatmul.mubr.f32.gmra.mrb[0].mxu0 %v2561
  %v2748 = vpop.f32.mrb[0].mxu0
  %v2749 = vadd.f32 0.0, %v2748
  %v2750 = vpop.f32.mrb[0].mxu0
  %2751 = vmatprep.mubr.f32.mxu0 0.0
  %2752 = vmatmul.mubr.f32.gmra.mrb[0].mxu0 %v2562
  %v2753 = vpop.f32.mrb[0].mxu0
  %v2754 = vadd.f32 0.0, %v2753
  %v2755 = vpop.f32.mrb[0].mxu0
  %2756 = vmatprep.mubr.f32.mxu0 0.0
  %2757 = vmatmul.mubr.f32.gmra.mrb[0].mxu0 %v2563
  %v2758 = vpop.f32.mrb[0].mxu0
  %v2759 = vadd.f32 0.0, %v2758
  %v2760 = vpop.f32.mrb[0].mxu0
  %2761 = vmatprep.mubr.f32.mxu0 0.0
  %2762 = vmatmul.mubr.f32.gmra.mrb[0].mxu0 %v2564
  %v2763 = vpop.f32.mrb[0].mxu0
  %v2764 = vadd.f32 0.0, %v2763
  %v2765 = vpop.f32.mrb[0].mxu0
  %2766 = vmatprep.mubr.f32.mxu0 0.0
  %2767 = vmatmul.mubr.f32.gmra.mrb[0].mxu0 %v2565
  %v2768 = vpop.f32.mrb[0].mxu0
  %v2769 = vadd.f32 0.0, %v2768
  %v2770 = vpop.f32.mrb[0].mxu0
  %2771 = vmatprep.mubr.f32.mxu0 0.0
  %2772 = vmatmul.mubr.f32.gmra.mrb[0].mxu0 %v2566
  %v2773 = vpop.f32.mrb[0].mxu0
  %v2774 = vadd.f32 0.0, %v2773
  %v2775 = vpop.f32.mrb[0].mxu0
  %2776 = vmatprep.mubr.f32.mxu0 0.0
  %2777 = vmatmul.mubr.f32.gmra.mrb[0].mxu0 %v2567
  %v2778 = vpop.f32.mrb[0].mxu0
  %v2779 = vadd.f32 0.0, %v2778
  %v2780 = vpop.f32.mrb[0].mxu0
  %2781 = vmatprep.mubr.f32.mxu0 0.0
  %2782 = vmatmul.mubr.f32.gmra.mrb[0].mxu0 %v2568
  %v2783 = vpop.f32.mrb[0].mxu0
  %v2784 = vadd.f32 0.0, %v2783
  %v2785 = vpop.f32.mrb[0].mxu0
  %2786 = vmatprep.mubr.f32.mxu0 0.0
  %2787 = vmatmul.mubr.f32.gmra.mrb[0].mxu0 %v2569
  %v2788 = vpop.f32.mrb[0].mxu0
  %v2789 = vadd.f32 0.0, %v2788
  %v2790 = vpop.f32.mrb[0].mxu0
  %2791 = vmatprep.mubr.f32.mxu0 0.0
  %2792 = vmatmul.mubr.f32.gmra.mrb[0].mxu0 %v2570
  %v2793 = vpop.f32.mrb[0].mxu0
  %v2794 = vadd.f32 0.0, %v2793
  %v2795 = vpop.f32.mrb[0].mxu0
  %2796 = vmatprep.mubr.f32.mxu0 0.0
  %2797 = vmatmul.mubr.f32.gmra.mrb[0].mxu0 %v2571
  %v2798 = vpop.f32.mrb[0].mxu0
  %v2799 = vadd.f32 0.0, %v2798
  %v2800 = vpop.f32.mrb[0].mxu0
  %2801 = vmatprep.mubr.f32.mxu0 0.0
  %2802 = vmatmul.mubr.f32.gmra.mrb[0].mxu0 %v2572
  %v2803 = vpop.f32.mrb[0].mxu0
  %v2804 = vadd.f32 0.0, %v2803
  %v2805 = vpop.f32.mrb[0].mxu0
  %2806 = vmatprep.mubr.f32.mxu0 0.0
  %2807 = vmatmul.mubr.f32.gmra.mrb[0].mxu0 %v2573
  %v2808 = vpop.f32.mrb[0].mxu0
  %v2809 = vadd.f32 0.0, %v2808
  %v2810 = vpop.f32.mrb[0].mxu0
  %2811 = vmatprep.mubr.f32.mxu0 0.0
  %2812 = vmatmul.mubr.f32.gmra.mrb[0].mxu0 %v2574
  %v2813 = vpop.f32.mrb[0].mxu0
  %v2814 = vadd.f32 0.0, %v2813
  %v2815 = vpop.f32.mrb[0].mxu0
  %2816 = vmatprep.mubr.f32.mxu0 0.0
  %2817 = vmatmul.mubr.f32.gmra.mrb[0].mxu0 %v2575
  %v2818 = vpop.f32.mrb[0].mxu0
  %v2819 = vadd.f32 0.0, %v2818
  %v2820 = vpop.f32.mrb[0].mxu0
  %2821 = vmatprep.mubr.f32.mxu0 0.0
  %2822 = vmatmul.mubr.f32.gmra.mrb[0].mxu0 %v2576
  %v2823 = vpop.f32.mrb[0].mxu0
  %v2824 = vadd.f32 0.0, %v2823
  %v2825 = vpop.f32.mrb[0].mxu0
  %2826 = vmatprep.mubr.f32.mxu0 0.0
  %2827 = vmatmul.mubr.f32.gmra.mrb[0].mxu0 %v2577
  %v2828 = vpop.f32.mrb[0].mxu0
  %v2829 = vadd.f32 0.0, %v2828
  %v2830 = vpop.f32.mrb[0].mxu0
  %2831 = vmatprep.mubr.f32.mxu0 0.0
  %2832 = vmatmul.mubr.f32.gmra.mrb[0].mxu0 %v2578
  %v2833 = vpop.f32.mrb[0].mxu0
  %v2834 = vadd.f32 0.0, %v2833
  %v2835 = vpop.f32.mrb[0].mxu0
  %2836 = vmatprep.mubr.f32.mxu0 0.0
  %2837 = vmatmul.mubr.f32.gmra.mrb[0].mxu0 %v2579
  %v2838 = vpop.f32.mrb[0].mxu0
  %v2839 = vadd.f32 0.0, %v2838
  %v2840 = vpop.f32.mrb[0].mxu0
  %2841 = vmatprep.mubr.f32.mxu0 0.0
  %2842 = vmatmul.mubr.f32.gmra.mrb[0].mxu0 %v2580
  %v2843 = vpop.f32.mrb[0].mxu0
  %v2844 = vadd.f32 0.0, %v2843
  %v2845 = vpop.f32.mrb[0].mxu0
  %2846 = vmatprep.mubr.f32.mxu0 0.0
  %2847 = vmatmul.mubr.f32.gmra.mrb[0].mxu0 %v2581
  %v2848 = vpop.f32.mrb[0].mxu0
  %v2849 = vadd.f32 0.0, %v2848
  %v2850 = vpop.f32.mrb[0].mxu0
  %2851 = vmatprep.mubr.f32.mxu0 0.0
  %2852 = vmatmul.mubr.f32.gmra.mrb[0].mxu0 %v2582
  %v2853 = vpop.f32.mrb[0].mxu0
  %v2854 = vadd.f32 0.0, %v2853
  %v2855 = vpop.f32.mrb[0].mxu0
  %2856 = vmatprep.mubr.f32.mxu0 0.0
  %2857 = vmatmul.mubr.f32.gmra.mrb[0].mxu0 %v2583
  %v2858 = vpop.f32.mrb[0].mxu0
  %v2859 = vadd.f32 0.0, %v2858
  %v2860 = vpop.f32.mrb[0].mxu0
  %2861 = vmatprep.mubr.f32.mxu0 0.0
  %2862 = vmatmul.mubr.f32.gmra.mrb[0].mxu0 %v2584
  %v2863 = vpop.f32.mrb[0].mxu0
  %v2864 = vadd.f32 0.0, %v2863
  %v2865 = vpop.f32.mrb[0].mxu0
  %2866 = vmatprep.mubr.f32.mxu0 0.0
  %2867 = vmatmul.mubr.f32.gmra.mrb[0].mxu0 %v2585
  %v2868 = vpop.f32.mrb[0].mxu0
  %v2869 = vadd.f32 0.0, %v2868
  %v2870 = vpop.f32.mrb[0].mxu0
  %2871 = vmatprep.mubr.f32.mxu0 0.0
  %2872 = vmatmul.mubr.f32.gmra.mrb[0].mxu0 %v2586
  %v2873 = vpop.f32.mrb[0].mxu0
  %v2874 = vadd.f32 0.0, %v2873
  %v2875 = vpop.f32.mrb[0].mxu0
  %2876 = vmatprep.mubr.f32.mxu0 0.0
  %2877 = vmatmul.mubr.f32.gmra.mrb[0].mxu0 %v2587
  %v2878 = vpop.f32.mrb[0].mxu0
  %v2879 = vadd.f32 0.0, %v2878
  %v2880 = vpop.f32.mrb[0].mxu0
  %2881 = vmatprep.mubr.f32.mxu0 0.0
  %2882 = vmatmul.mubr.f32.gmra.mrb[0].mxu0 %v2588
  %v2883 = vpop.f32.mrb[0].mxu0
  %v2884 = vadd.f32 0.0, %v2883
  %v2885 = vpop.f32.mrb[0].mxu0
  %2886 = vmatprep.mubr.f32.mxu0 0.0
  %2887 = vmatmul.mubr.f32.gmra.mrb[0].mxu0 %v2589
  %v2888 = vpop.f32.mrb[0].mxu0
  %v2889 = vadd.f32 0.0, %v2888
  %v2890 = vpop.f32.mrb[0].mxu0
  %2891 = vmatprep.mubr.f32.mxu0 0.0
  %2892 = vmatmul.mubr.f32.gmra.mrb[0].mxu0 %v2590
  %v2893 = vpop.f32.mrb[0].mxu0
  %v2894 = vadd.f32 0.0, %v2893
  %v2895 = vpop.f32.mrb[0].mxu0
  %2896 = vmatprep.mubr.f32.mxu0 0.0
  %2897 = vmatmul.mubr.f32.gmra.mrb[0].mxu0 %v2591
  %v2898 = vpop.f32.mrb[0].mxu0
  %v2899 = vadd.f32 0.0, %v2898
  %v2900 = vpop.f32.mrb[0].mxu0
  %2901 = vmatprep.mubr.f32.mxu0 0.0
  %2902 = vmatmul.mubr.f32.gmra.mrb[0].mxu0 %v2592
  %v2903 = vpop.f32.mrb[0].mxu0
  %v2904 = vadd.f32 0.0, %v2903
  %v2905 = vpop.f32.mrb[0].mxu0
  %2906 = vmatprep.mubr.f32.mxu0 0.0
  %2907 = vmatmul.mubr.f32.gmra.mrb[0].mxu0 %v2593
  %v2908 = vpop.f32.mrb[0].mxu0
  %v2909 = vadd.f32 0.0, %v2908
  %v2910 = vpop.f32.mrb[0].mxu0
  %2911 = vmatprep.mubr.f32.mxu0 0.0
  %2912 = vmatmul.mubr.f32.gmra.mrb[0].mxu0 %v2594
  %v2913 = vpop.f32.mrb[0].mxu0
  %v2914 = vadd.f32 0.0, %v2913
  %v2915 = vpop.f32.mrb[0].mxu0
  %2916 = vmatprep.mubr.f32.mxu0 0.0
  %2917 = vmatmul.mubr.f32.gmra.mrb[0].mxu0 %v2595
  %v2918 = vpop.f32.mrb[0].mxu0
  %v2919 = vadd.f32 0.0, %v2918
  %v2920 = vpop.f32.mrb[0].mxu0
  %2921 = vmatprep.mubr.f32.mxu0 0.0
  %2922 = vmatmul.mubr.f32.gmra.mrb[0].mxu0 %v2596
  %v2923 = vpop.f32.mrb[0].mxu0
  %v2924 = vadd.f32 0.0, %v2923
  %v2925 = vpop.f32.mrb[0].mxu0
  %2926 = vmatprep.mubr.f32.mxu0 0.0
  %2927 = vmatmul.mubr.f32.gmra.mrb[0].mxu0 %v2597
  %v2928 = vpop.f32.mrb[0].mxu0
  %v2929 = vadd.f32 0.0, %v2928
  %v2930 = vpop.f32.mrb[0].mxu0
  %2931 = vmatprep.mubr.f32.mxu0 0.0
  %2932 = vmatmul.mubr.f32.gmra.mrb[0].mxu0 %v2598
  %v2933 = vpop.f32.mrb[0].mxu0
  %v2934 = vadd.f32 0.0, %v2933
  %v2935 = vpop.f32.mrb[0].mxu0
  %2936 = vmatprep.mubr.f32.mxu0 0.0
  %2937 = vmatmul.mubr.f32.gmra.mrb[0].mxu0 %v2599
  %v2938 = vpop.f32.mrb[0].mxu0
  %v2939 = vadd.f32 0.0, %v2938
  %v2940 = vpop.f32.mrb[0].mxu0
  %2941 = vmatprep.mubr.f32.mxu0 0.0
  %2942 = vmatmul.mubr.f32.gmra.mrb[0].mxu0 %v2600
  %v2943 = vpop.f32.mrb[0].mxu0
  %v2944 = vadd.f32 0.0, %v2943
  %v2945 = vpop.f32.mrb[0].mxu0
  %2946 = vmatprep.mubr.f32.mxu0 0.0
  %2947 = vmatmul.mubr.f32.gmra.mrb[0].mxu0 %v2601
  %v2948 = vpop.f32.mrb[0].mxu0
  %v2949 = vadd.f32 0.0, %v2948
  %v2950 = vpop.f32.mrb[0].mxu0
  %2951 = vmatprep.mubr.f32.mxu0 0.0
  %2952 = vmatmul.mubr.f32.gmra.mrb[0].mxu0 %v2602
  %v2953 = vpop.f32.mrb[0].mxu0
  %v2954 = vadd.f32 0.0, %v2953
  %v2955 = vpop.f32.mrb[0].mxu0
  %2956 = vmatprep.mubr.f32.mxu0 0.0
  %2957 = vmatmul.mubr.f32.gmra.mrb[0].mxu0 %v2603
  %v2958 = vpop.f32.mrb[0].mxu0
  %v2959 = vadd.f32 0.0, %v2958
  %v2960 = vpop.f32.mrb[0].mxu0
  %2961 = vmatprep.mubr.f32.mxu0 0.0
  %2962 = vmatmul.mubr.f32.gmra.mrb[0].mxu0 %v2604
  %v2963 = vpop.f32.mrb[0].mxu0
  %v2964 = vadd.f32 0.0, %v2963
  %v2965 = vpop.f32.mrb[0].mxu0
  %2966 = vmatprep.mubr.f32.mxu0 0.0
  %2967 = vmatmul.mubr.f32.gmra.mrb[0].mxu0 %v2605
  %v2968 = vpop.f32.mrb[0].mxu0
  %v2969 = vadd.f32 0.0, %v2968
  %v2970 = vpop.f32.mrb[0].mxu0
  %2971 = vmatprep.mubr.f32.mxu0 0.0
  %2972 = vmatmul.mubr.f32.gmra.mrb[0].mxu0 %v2606
  %v2973 = vpop.f32.mrb[0].mxu0
  %v2974 = vadd.f32 0.0, %v2973
  %v2975 = vpop.f32.mrb[0].mxu0
  %2976 = vmatprep.mubr.f32.mxu0 0.0
  %2977 = vmatmul.mubr.f32.gmra.mrb[0].mxu0 %v2607
  %v2978 = vpop.f32.mrb[0].mxu0
  %v2979 = vadd.f32 0.0, %v2978
  %v2980 = vpop.f32.mrb[0].mxu0
  %2981 = vmatprep.mubr.f32.mxu0 0.0
  %2982 = vmatmul.mubr.f32.gmra.mrb[0].mxu0 %v2608
  %v2983 = vpop.f32.mrb[0].mxu0
  %v2984 = vadd.f32 0.0, %v2983
  %v2985 = vpop.f32.mrb[0].mxu0
  %2986 = vmatprep.mubr.f32.mxu0 0.0
  %2987 = vmatmul.mubr.f32.gmra.mrb[0].mxu0 %v2609
  %v2988 = vpop.f32.mrb[0].mxu0
  %v2989 = vadd.f32 0.0, %v2988
  %v2990 = vpop.f32.mrb[0].mxu0
  %2991 = vmatprep.mubr.f32.mxu0 0.0
  %2992 = vmatmul.mubr.f32.gmra.mrb[0].mxu0 %v2610
  %v2993 = vpop.f32.mrb[0].mxu0
  %v2994 = vadd.f32 0.0, %v2993
  %v2995 = vpop.f32.mrb[0].mxu0
  %2996 = vmatprep.mubr.f32.mxu0 0.0
  %2997 = vmatmul.mubr.f32.gmra.mrb[0].mxu0 %v2611
  %v2998 = vpop.f32.mrb[0].mxu0
  %v2999 = vadd.f32 0.0, %v2998
  %v3000 = vpop.f32.mrb[0].mxu0
  %3001 = vmatprep.mubr.f32.mxu0 0.0
  %3002 = vmatmul.mubr.f32.gmra.mrb[0].mxu0 %v2612
  %v3003 = vpop.f32.mrb[0].mxu0
  %v3004 = vadd.f32 0.0, %v3003
  %v3005 = vpop.f32.mrb[0].mxu0
  %3006 = vmatprep.mubr.f32.mxu0 0.0
  %3007 = vmatmul.mubr.f32.gmra.mrb[0].mxu0 %v2613
  %v3008 = vpop.f32.mrb[0].mxu0
  %v3009 = vadd.f32 0.0, %v3008
  %v3010 = vpop.f32.mrb[0].mxu0
  %3011 = vmatprep.mubr.f32.mxu0 0.0
  %3012 = vmatmul.mubr.f32.gmra.mrb[0].mxu0 %v2614
  %v3013 = vpop.f32.mrb[0].mxu0
  %v3014 = vadd.f32 0.0, %v3013
  %v3015 = vpop.f32.mrb[0].mxu0
  %3016 = vdwg.mxu0
  %v3017 = vadd.f32 %v2487, %v2699
  %v3018 = vadd.f32 %v2488, %v2704
  %v3019 = vadd.f32 %v2489, %v2709
  %v3020 = vadd.f32 %v2490, %v2714
  %v3021 = vadd.f32 %v2491, %v2719
  %v3022 = vadd.f32 %v2492, %v2724
  %v3023 = vadd.f32 %v2493, %v2729
  %v3024 = vadd.f32 %v2494, %v2734
  %v3025 = vadd.f32 %v2495, %v2739
  %v3026 = vadd.f32 %v2496, %v2744
  %v3027 = vadd.f32 %v2497, %v2749
  %v3028 = vadd.f32 %v2498, %v2754
  %v3029 = vadd.f32 %v2499, %v2759
  %v3030 = vadd.f32 %v2500, %v2764
  %v3031 = vadd.f32 %v2501, %v2769
  %v3032 = vadd.f32 %v2502, %v2774
  %v3033 = vadd.f32 %v2503, %v2779
  %v3034 = vadd.f32 %v2504, %v2784
  %v3035 = vadd.f32 %v2505, %v2789
  %v3036 = vadd.f32 %v2506, %v2794
  %v3037 = vadd.f32 %v2507, %v2799
  %v3038 = vadd.f32 %v2508, %v2804
  %v3039 = vadd.f32 %v2509, %v2809
  %v3040 = vadd.f32 %v2510, %v2814
  %v3041 = vadd.f32 %v2511, %v2819
  %v3042 = vadd.f32 %v2512, %v2824
  %v3043 = vadd.f32 %v2513, %v2829
  %v3044 = vadd.f32 %v2514, %v2834
  %v3045 = vadd.f32 %v2515, %v2839
  %v3046 = vadd.f32 %v2516, %v2844
  %v3047 = vadd.f32 %v2517, %v2849
  %v3048 = vadd.f32 %v2518, %v2854
  %v3049 = vadd.f32 %v2519, %v2859
  %v3050 = vadd.f32 %v2520, %v2864
  %v3051 = vadd.f32 %v2521, %v2869
  %v3052 = vadd.f32 %v2522, %v2874
  %v3053 = vadd.f32 %v2523, %v2879
  %v3054 = vadd.f32 %v2524, %v2884
  %v3055 = vadd.f32 %v2525, %v2889
  %v3056 = vadd.f32 %v2526, %v2894
  %v3057 = vadd.f32 %v2527, %v2899
  %v3058 = vadd.f32 %v2528, %v2904
  %v3059 = vadd.f32 %v2529, %v2909
  %v3060 = vadd.f32 %v2530, %v2914
  %v3061 = vadd.f32 %v2531, %v2919
  %v3062 = vadd.f32 %v2532, %v2924
  %v3063 = vadd.f32 %v2533, %v2929
  %v3064 = vadd.f32 %v2534, %v2934
  %v3065 = vadd.f32 %v2535, %v2939
  %v3066 = vadd.f32 %v2536, %v2944
  %v3067 = vadd.f32 %v2537, %v2949
  %v3068 = vadd.f32 %v2538, %v2954
  %v3069 = vadd.f32 %v2539, %v2959
  %v3070 = vadd.f32 %v2540, %v2964
  %v3071 = vadd.f32 %v2541, %v2969
  %v3072 = vadd.f32 %v2542, %v2974
  %v3073 = vadd.f32 %v2543, %v2979
  %v3074 = vadd.f32 %v2544, %v2984
  %v3075 = vadd.f32 %v2545, %v2989
  %v3076 = vadd.f32 %v2546, %v2994
  %v3077 = vadd.f32 %v2547, %v2999
  %v3078 = vadd.f32 %v2548, %v3004
  %v3079 = vadd.f32 %v2549, %v3009
  %v3080 = vadd.f32 %v2550, %v3014
  %s3081 = scalar_lea.vmem %s0, 48
  %v3082 = vld [vmem:[%s3081] sm:$0xff]
  %v3083 = vld [vmem:[%s3081 + $0x8] sm:$0xff]
  %v3084 = vld [vmem:[%s3081 + $0x18] sm:$0xff]
  %v3085 = vld [vmem:[%s3081 + $0x20] sm:$0xff]
  %v3086 = vld [vmem:[%s3081 + $0x30] sm:$0xff]
  %v3087 = vld [vmem:[%s3081 + $0x38] sm:$0xff]
  %v3088 = vld [vmem:[%s3081 + $0x48] sm:$0xff]
  %v3089 = vld [vmem:[%s3081 + $0x50] sm:$0xff]
  %v3090 = vld [vmem:[%s3081 + $0x60] sm:$0xff]
  %v3091 = vld [vmem:[%s3081 + $0x68] sm:$0xff]
  %v3092 = vld [vmem:[%s3081 + $0x78] sm:$0xff]
  %v3093 = vld [vmem:[%s3081 + $0x80] sm:$0xff]
  %v3094 = vld [vmem:[%s3081 + $0x90] sm:$0xff]
  %v3095 = vld [vmem:[%s3081 + $0x98] sm:$0xff]
  %v3096 = vld [vmem:[%s3081 + $0xa8] sm:$0xff]
  %v3097 = vld [vmem:[%s3081 + $0xb0] sm:$0xff]
  %v3098 = vld [vmem:[%s3081 + $0xc0] sm:$0xff]
  %v3099 = vld [vmem:[%s3081 + $0xc8] sm:$0xff]
  %v3100 = vld [vmem:[%s3081 + $0xd8] sm:$0xff]
  %v3101 = vld [vmem:[%s3081 + $0xe0] sm:$0xff]
  %v3102 = vld [vmem:[%s3081 + $0xf0] sm:$0xff]
  %v3103 = vld [vmem:[%s3081 + $0xf8] sm:$0xff]
  %v3104 = vld [vmem:[%s3081 + $0x108] sm:$0xff]
  %v3105 = vld [vmem:[%s3081 + $0x110] sm:$0xff]
  %v3106 = vld [vmem:[%s3081 + $0x120] sm:$0xff]
  %v3107 = vld [vmem:[%s3081 + $0x128] sm:$0xff]
  %v3108 = vld [vmem:[%s3081 + $0x138] sm:$0xff]
  %v3109 = vld [vmem:[%s3081 + $0x140] sm:$0xff]
  %v3110 = vld [vmem:[%s3081 + $0x150] sm:$0xff]
  %v3111 = vld [vmem:[%s3081 + $0x158] sm:$0xff]
  %v3112 = vld [vmem:[%s3081 + $0x168] sm:$0xff]
  %v3113 = vld [vmem:[%s3081 + $0x170] sm:$0xff]
  %v3114 = vld [vmem:[%s3081 + $0x1b0] sm:$0xff]
  %v3115 = vld [vmem:[%s3081 + $0x1b8] sm:$0xff]
  %v3116 = vld [vmem:[%s3081 + $0x1c8] sm:$0xff]
  %v3117 = vld [vmem:[%s3081 + $0x1d0] sm:$0xff]
  %v3118 = vld [vmem:[%s3081 + $0x1e0] sm:$0xff]
  %v3119 = vld [vmem:[%s3081 + $0x1e8] sm:$0xff]
  %v3120 = vld [vmem:[%s3081 + $0x1f8] sm:$0xff]
  %v3121 = vld [vmem:[%s3081 + $0x200] sm:$0xff]
  %v3122 = vld [vmem:[%s3081 + $0x210] sm:$0xff]
  %v3123 = vld [vmem:[%s3081 + $0x218] sm:$0xff]
  %v3124 = vld [vmem:[%s3081 + $0x228] sm:$0xff]
  %v3125 = vld [vmem:[%s3081 + $0x230] sm:$0xff]
  %v3126 = vld [vmem:[%s3081 + $0x240] sm:$0xff]
  %v3127 = vld [vmem:[%s3081 + $0x248] sm:$0xff]
  %v3128 = vld [vmem:[%s3081 + $0x258] sm:$0xff]
  %v3129 = vld [vmem:[%s3081 + $0x260] sm:$0xff]
  %v3130 = vld [vmem:[%s3081 + $0x270] sm:$0xff]
  %v3131 = vld [vmem:[%s3081 + $0x278] sm:$0xff]
  %v3132 = vld [vmem:[%s3081 + $0x288] sm:$0xff]
  %v3133 = vld [vmem:[%s3081 + $0x290] sm:$0xff]
  %v3134 = vld [vmem:[%s3081 + $0x2a0] sm:$0xff]
  %v3135 = vld [vmem:[%s3081 + $0x2a8] sm:$0xff]
  %v3136 = vld [vmem:[%s3081 + $0x2b8] sm:$0xff]
  %v3137 = vld [vmem:[%s3081 + $0x2c0] sm:$0xff]
  %v3138 = vld [vmem:[%s3081 + $0x2d0] sm:$0xff]
  %v3139 = vld [vmem:[%s3081 + $0x2d8] sm:$0xff]
  %v3140 = vld [vmem:[%s3081 + $0x2e8] sm:$0xff]
  %v3141 = vld [vmem:[%s3081 + $0x2f0] sm:$0xff]
  %v3142 = vld [vmem:[%s3081 + $0x300] sm:$0xff]
  %v3143 = vld [vmem:[%s3081 + $0x308] sm:$0xff]
  %v3144 = vld [vmem:[%s3081 + $0x318] sm:$0xff]
  %v3145 = vld [vmem:[%s3081 + $0x320] sm:$0xff]
  %s3146 = scalar_lea.vmem %s2, 768
  %v3147 = vld [vmem:[%s3146] sm:$0xff]
  %v3148 = vld [vmem:[%s3146 + $0x8] sm:$0xff]
  %v3149 = vld [vmem:[%s3146 + $0x10] sm:$0xff]
  %v3150 = vld [vmem:[%s3146 + $0x18] sm:$0xff]
  %v3151 = vld [vmem:[%s3146 + $0x20] sm:$0xff]
  %v3152 = vld [vmem:[%s3146 + $0x28] sm:$0xff]
  %v3153 = vld [vmem:[%s3146 + $0x30] sm:$0xff]
  %v3154 = vld [vmem:[%s3146 + $0x38] sm:$0xff]
  %v3155 = vld [vmem:[%s3146 + $0x40] sm:$0xff]
  %v3156 = vld [vmem:[%s3146 + $0x48] sm:$0xff]
  %v3157 = vld [vmem:[%s3146 + $0x50] sm:$0xff]
  %v3158 = vld [vmem:[%s3146 + $0x58] sm:$0xff]
  %v3159 = vld [vmem:[%s3146 + $0x60] sm:$0xff]
  %v3160 = vld [vmem:[%s3146 + $0x68] sm:$0xff]
  %v3161 = vld [vmem:[%s3146 + $0x70] sm:$0xff]
  %v3162 = vld [vmem:[%s3146 + $0x78] sm:$0xff]
  %3163 = vmatprep.subr.mxu0 0.0
  %3164 = vmatpush1.msra.mxu0 %v3147
  %3165 = vmatprep.subr.mxu0 0.0
  %3166 = vmatpush1.msra.mxu0 %v3148
  %3167 = vmatprep.subr.mxu0 0.0
  %3168 = vmatpush1.msra.mxu0 %v3149
  %3169 = vmatprep.subr.mxu0 0.0
  %3170 = vmatpush1.msra.mxu0 %v3150
  %3171 = vmatprep.subr.mxu0 0.0
  %3172 = vmatpush1.msra.mxu0 %v3151
  %3173 = vmatprep.subr.mxu0 0.0
  %3174 = vmatpush1.msra.mxu0 %v3152
  %3175 = vmatprep.subr.mxu0 0.0
  %3176 = vmatpush1.msra.mxu0 %v3153
  %3177 = vmatprep.subr.mxu0 0.0
  %3178 = vmatpush1.msra.mxu0 %v3154
  %3179 = vmatprep.subr.mxu0 0.0
  %3180 = vmatpush1.msra.mxu0 %v3155
  %3181 = vmatprep.subr.mxu0 0.0
  %3182 = vmatpush1.msra.mxu0 %v3156
  %3183 = vmatprep.subr.mxu0 0.0
  %3184 = vmatpush1.msra.mxu0 %v3157
  %3185 = vmatprep.subr.mxu0 0.0
  %3186 = vmatpush1.msra.mxu0 %v3158
  %3187 = vmatprep.subr.mxu0 0.0
  %3188 = vmatpush1.msra.mxu0 %v3159
  %3189 = vmatprep.subr.mxu0 0.0
  %3190 = vmatpush1.msra.mxu0 %v3160
  %3191 = vmatprep.subr.mxu0 0.0
  %3192 = vmatpush1.msra.mxu0 %v3161
  %3193 = vmatprep.subr.mxu0 0.0
  %3194 = vmatpush1.msra.mxu0 %v3162
  %3195 = vmatprep.subr.mxu0 0.0
  %3196 = vmatpush1.msra.mxu0 0.0
  %3197 = vmatprep.subr.mxu0 0.0
  %3198 = vmatpush1.msra.mxu0 0.0
  %3199 = vmatprep.subr.mxu0 0.0
  %3200 = vmatpush1.msra.mxu0 0.0
  %3201 = vmatprep.subr.mxu0 0.0
  %3202 = vmatpush1.msra.mxu0 0.0
  %3203 = vmatprep.subr.mxu0 0.0
  %3204 = vmatpush1.msra.mxu0 0.0
  %3205 = vmatprep.subr.mxu0 0.0
  %3206 = vmatpush1.msra.mxu0 0.0
  %3207 = vmatprep.subr.mxu0 0.0
  %3208 = vmatpush1.msra.mxu0 0.0
  %3209 = vmatprep.subr.mxu0 0.0
  %3210 = vmatpush1.msra.mxu0 0.0
  %3211 = vmatprep.subr.mxu0 0.0
  %3212 = vmatpush1.msra.mxu0 0.0
  %3213 = vmatprep.subr.mxu0 0.0
  %3214 = vmatpush1.msra.mxu0 0.0
  %3215 = vmatprep.subr.mxu0 0.0
  %3216 = vmatpush1.msra.mxu0 0.0
  %3217 = vmatprep.subr.mxu0 0.0
  %3218 = vmatpush1.msra.mxu0 0.0
  %3219 = vmatprep.subr.mxu0 0.0
  %3220 = vmatpush1.msra.mxu0 0.0
  %3221 = vmatprep.subr.mxu0 0.0
  %3222 = vmatpush1.msra.mxu0 0.0
  %3223 = vmatprep.subr.mxu0 0.0
  %3224 = vmatpush1.msra.mxu0 0.0
  %3225 = vmatprep.subr.mxu0 0.0
  %3226 = vmatpush1.msra.mxu0 0.0
  %3227 = vmatprep.mubr.f32.mxu0 0.0
  %3228 = vmatmul.mubr.f32.gmra.mrb[0].mxu0 %v3082
  %v3229 = vpop.f32.mrb[0].mxu0
  %v3230 = vadd.f32 0.0, %v3229
  %v3231 = vpop.f32.mrb[0].mxu0
  %3232 = vmatprep.mubr.f32.mxu0 0.0
  %3233 = vmatmul.mubr.f32.gmra.mrb[0].mxu0 %v3083
  %v3234 = vpop.f32.mrb[0].mxu0
  %v3235 = vadd.f32 0.0, %v3234
  %v3236 = vpop.f32.mrb[0].mxu0
  %3237 = vmatprep.mubr.f32.mxu0 0.0
  %3238 = vmatmul.mubr.f32.gmra.mrb[0].mxu0 %v3084
  %v3239 = vpop.f32.mrb[0].mxu0
  %v3240 = vadd.f32 0.0, %v3239
  %v3241 = vpop.f32.mrb[0].mxu0
  %3242 = vmatprep.mubr.f32.mxu0 0.0
  %3243 = vmatmul.mubr.f32.gmra.mrb[0].mxu0 %v3085
  %v3244 = vpop.f32.mrb[0].mxu0
  %v3245 = vadd.f32 0.0, %v3244
  %v3246 = vpop.f32.mrb[0].mxu0
  %3247 = vmatprep.mubr.f32.mxu0 0.0
  %3248 = vmatmul.mubr.f32.gmra.mrb[0].mxu0 %v3086
  %v3249 = vpop.f32.mrb[0].mxu0
  %v3250 = vadd.f32 0.0, %v3249
  %v3251 = vpop.f32.mrb[0].mxu0
  %3252 = vmatprep.mubr.f32.mxu0 0.0
  %3253 = vmatmul.mubr.f32.gmra.mrb[0].mxu0 %v3087
  %v3254 = vpop.f32.mrb[0].mxu0
  %v3255 = vadd.f32 0.0, %v3254
  %v3256 = vpop.f32.mrb[0].mxu0
  %3257 = vmatprep.mubr.f32.mxu0 0.0
  %3258 = vmatmul.mubr.f32.gmra.mrb[0].mxu0 %v3088
  %v3259 = vpop.f32.mrb[0].mxu0
  %v3260 = vadd.f32 0.0, %v3259
  %v3261 = vpop.f32.mrb[0].mxu0
  %3262 = vmatprep.mubr.f32.mxu0 0.0
  %3263 = vmatmul.mubr.f32.gmra.mrb[0].mxu0 %v3089
  %v3264 = vpop.f32.mrb[0].mxu0
  %v3265 = vadd.f32 0.0, %v3264
  %v3266 = vpop.f32.mrb[0].mxu0
  %3267 = vmatprep.mubr.f32.mxu0 0.0
  %3268 = vmatmul.mubr.f32.gmra.mrb[0].mxu0 %v3090
  %v3269 = vpop.f32.mrb[0].mxu0
  %v3270 = vadd.f32 0.0, %v3269
  %v3271 = vpop.f32.mrb[0].mxu0
  %3272 = vmatprep.mubr.f32.mxu0 0.0
  %3273 = vmatmul.mubr.f32.gmra.mrb[0].mxu0 %v3091
  %v3274 = vpop.f32.mrb[0].mxu0
  %v3275 = vadd.f32 0.0, %v3274
  %v3276 = vpop.f32.mrb[0].mxu0
  %3277 = vmatprep.mubr.f32.mxu0 0.0
  %3278 = vmatmul.mubr.f32.gmra.mrb[0].mxu0 %v3092
  %v3279 = vpop.f32.mrb[0].mxu0
  %v3280 = vadd.f32 0.0, %v3279
  %v3281 = vpop.f32.mrb[0].mxu0
  %3282 = vmatprep.mubr.f32.mxu0 0.0
  %3283 = vmatmul.mubr.f32.gmra.mrb[0].mxu0 %v3093
  %v3284 = vpop.f32.mrb[0].mxu0
  %v3285 = vadd.f32 0.0, %v3284
  %v3286 = vpop.f32.mrb[0].mxu0
  %3287 = vmatprep.mubr.f32.mxu0 0.0
  %3288 = vmatmul.mubr.f32.gmra.mrb[0].mxu0 %v3094
  %v3289 = vpop.f32.mrb[0].mxu0
  %v3290 = vadd.f32 0.0, %v3289
  %v3291 = vpop.f32.mrb[0].mxu0
  %3292 = vmatprep.mubr.f32.mxu0 0.0
  %3293 = vmatmul.mubr.f32.gmra.mrb[0].mxu0 %v3095
  %v3294 = vpop.f32.mrb[0].mxu0
  %v3295 = vadd.f32 0.0, %v3294
  %v3296 = vpop.f32.mrb[0].mxu0
  %3297 = vmatprep.mubr.f32.mxu0 0.0
  %3298 = vmatmul.mubr.f32.gmra.mrb[0].mxu0 %v3096
  %v3299 = vpop.f32.mrb[0].mxu0
  %v3300 = vadd.f32 0.0, %v3299
  %v3301 = vpop.f32.mrb[0].mxu0
  %3302 = vmatprep.mubr.f32.mxu0 0.0
  %3303 = vmatmul.mubr.f32.gmra.mrb[0].mxu0 %v3097
  %v3304 = vpop.f32.mrb[0].mxu0
  %v3305 = vadd.f32 0.0, %v3304
  %v3306 = vpop.f32.mrb[0].mxu0
  %3307 = vmatprep.mubr.f32.mxu0 0.0
  %3308 = vmatmul.mubr.f32.gmra.mrb[0].mxu0 %v3098
  %v3309 = vpop.f32.mrb[0].mxu0
  %v3310 = vadd.f32 0.0, %v3309
  %v3311 = vpop.f32.mrb[0].mxu0
  %3312 = vmatprep.mubr.f32.mxu0 0.0
  %3313 = vmatmul.mubr.f32.gmra.mrb[0].mxu0 %v3099
  %v3314 = vpop.f32.mrb[0].mxu0
  %v3315 = vadd.f32 0.0, %v3314
  %v3316 = vpop.f32.mrb[0].mxu0
  %3317 = vmatprep.mubr.f32.mxu0 0.0
  %3318 = vmatmul.mubr.f32.gmra.mrb[0].mxu0 %v3100
  %v3319 = vpop.f32.mrb[0].mxu0
  %v3320 = vadd.f32 0.0, %v3319
  %v3321 = vpop.f32.mrb[0].mxu0
  %3322 = vmatprep.mubr.f32.mxu0 0.0
  %3323 = vmatmul.mubr.f32.gmra.mrb[0].mxu0 %v3101
  %v3324 = vpop.f32.mrb[0].mxu0
  %v3325 = vadd.f32 0.0, %v3324
  %v3326 = vpop.f32.mrb[0].mxu0
  %3327 = vmatprep.mubr.f32.mxu0 0.0
  %3328 = vmatmul.mubr.f32.gmra.mrb[0].mxu0 %v3102
  %v3329 = vpop.f32.mrb[0].mxu0
  %v3330 = vadd.f32 0.0, %v3329
  %v3331 = vpop.f32.mrb[0].mxu0
  %3332 = vmatprep.mubr.f32.mxu0 0.0
  %3333 = vmatmul.mubr.f32.gmra.mrb[0].mxu0 %v3103
  %v3334 = vpop.f32.mrb[0].mxu0
  %v3335 = vadd.f32 0.0, %v3334
  %v3336 = vpop.f32.mrb[0].mxu0
  %3337 = vmatprep.mubr.f32.mxu0 0.0
  %3338 = vmatmul.mubr.f32.gmra.mrb[0].mxu0 %v3104
  %v3339 = vpop.f32.mrb[0].mxu0
  %v3340 = vadd.f32 0.0, %v3339
  %v3341 = vpop.f32.mrb[0].mxu0
  %3342 = vmatprep.mubr.f32.mxu0 0.0
  %3343 = vmatmul.mubr.f32.gmra.mrb[0].mxu0 %v3105
  %v3344 = vpop.f32.mrb[0].mxu0
  %v3345 = vadd.f32 0.0, %v3344
  %v3346 = vpop.f32.mrb[0].mxu0
  %3347 = vmatprep.mubr.f32.mxu0 0.0
  %3348 = vmatmul.mubr.f32.gmra.mrb[0].mxu0 %v3106
  %v3349 = vpop.f32.mrb[0].mxu0
  %v3350 = vadd.f32 0.0, %v3349
  %v3351 = vpop.f32.mrb[0].mxu0
  %3352 = vmatprep.mubr.f32.mxu0 0.0
  %3353 = vmatmul.mubr.f32.gmra.mrb[0].mxu0 %v3107
  %v3354 = vpop.f32.mrb[0].mxu0
  %v3355 = vadd.f32 0.0, %v3354
  %v3356 = vpop.f32.mrb[0].mxu0
  %3357 = vmatprep.mubr.f32.mxu0 0.0
  %3358 = vmatmul.mubr.f32.gmra.mrb[0].mxu0 %v3108
  %v3359 = vpop.f32.mrb[0].mxu0
  %v3360 = vadd.f32 0.0, %v3359
  %v3361 = vpop.f32.mrb[0].mxu0
  %3362 = vmatprep.mubr.f32.mxu0 0.0
  %3363 = vmatmul.mubr.f32.gmra.mrb[0].mxu0 %v3109
  %v3364 = vpop.f32.mrb[0].mxu0
  %v3365 = vadd.f32 0.0, %v3364
  %v3366 = vpop.f32.mrb[0].mxu0
  %3367 = vmatprep.mubr.f32.mxu0 0.0
  %3368 = vmatmul.mubr.f32.gmra.mrb[0].mxu0 %v3110
  %v3369 = vpop.f32.mrb[0].mxu0
  %v3370 = vadd.f32 0.0, %v3369
  %v3371 = vpop.f32.mrb[0].mxu0
  %3372 = vmatprep.mubr.f32.mxu0 0.0
  %3373 = vmatmul.mubr.f32.gmra.mrb[0].mxu0 %v3111
  %v3374 = vpop.f32.mrb[0].mxu0
  %v3375 = vadd.f32 0.0, %v3374
  %v3376 = vpop.f32.mrb[0].mxu0
  %3377 = vmatprep.mubr.f32.mxu0 0.0
  %3378 = vmatmul.mubr.f32.gmra.mrb[0].mxu0 %v3112
  %v3379 = vpop.f32.mrb[0].mxu0
  %v3380 = vadd.f32 0.0, %v3379
  %v3381 = vpop.f32.mrb[0].mxu0
  %3382 = vmatprep.mubr.f32.mxu0 0.0
  %3383 = vmatmul.mubr.f32.gmra.mrb[0].mxu0 %v3113
  %v3384 = vpop.f32.mrb[0].mxu0
  %v3385 = vadd.f32 0.0, %v3384
  %v3386 = vpop.f32.mrb[0].mxu0
  %3387 = vmatprep.mubr.f32.mxu0 0.0
  %3388 = vmatmul.mubr.f32.gmra.mrb[0].mxu0 %v3114
  %v3389 = vpop.f32.mrb[0].mxu0
  %v3390 = vadd.f32 0.0, %v3389
  %v3391 = vpop.f32.mrb[0].mxu0
  %3392 = vmatprep.mubr.f32.mxu0 0.0
  %3393 = vmatmul.mubr.f32.gmra.mrb[0].mxu0 %v3115
  %v3394 = vpop.f32.mrb[0].mxu0
  %v3395 = vadd.f32 0.0, %v3394
  %v3396 = vpop.f32.mrb[0].mxu0
  %3397 = vmatprep.mubr.f32.mxu0 0.0
  %3398 = vmatmul.mubr.f32.gmra.mrb[0].mxu0 %v3116
  %v3399 = vpop.f32.mrb[0].mxu0
  %v3400 = vadd.f32 0.0, %v3399
  %v3401 = vpop.f32.mrb[0].mxu0
  %3402 = vmatprep.mubr.f32.mxu0 0.0
  %3403 = vmatmul.mubr.f32.gmra.mrb[0].mxu0 %v3117
  %v3404 = vpop.f32.mrb[0].mxu0
  %v3405 = vadd.f32 0.0, %v3404
  %v3406 = vpop.f32.mrb[0].mxu0
  %3407 = vmatprep.mubr.f32.mxu0 0.0
  %3408 = vmatmul.mubr.f32.gmra.mrb[0].mxu0 %v3118
  %v3409 = vpop.f32.mrb[0].mxu0
  %v3410 = vadd.f32 0.0, %v3409
  %v3411 = vpop.f32.mrb[0].mxu0
  %3412 = vmatprep.mubr.f32.mxu0 0.0
  %3413 = vmatmul.mubr.f32.gmra.mrb[0].mxu0 %v3119
  %v3414 = vpop.f32.mrb[0].mxu0
  %v3415 = vadd.f32 0.0, %v3414
  %v3416 = vpop.f32.mrb[0].mxu0
  %3417 = vmatprep.mubr.f32.mxu0 0.0
  %3418 = vmatmul.mubr.f32.gmra.mrb[0].mxu0 %v3120
  %v3419 = vpop.f32.mrb[0].mxu0
  %v3420 = vadd.f32 0.0, %v3419
  %v3421 = vpop.f32.mrb[0].mxu0
  %3422 = vmatprep.mubr.f32.mxu0 0.0
  %3423 = vmatmul.mubr.f32.gmra.mrb[0].mxu0 %v3121
  %v3424 = vpop.f32.mrb[0].mxu0
  %v3425 = vadd.f32 0.0, %v3424
  %v3426 = vpop.f32.mrb[0].mxu0
  %3427 = vmatprep.mubr.f32.mxu0 0.0
  %3428 = vmatmul.mubr.f32.gmra.mrb[0].mxu0 %v3122
  %v3429 = vpop.f32.mrb[0].mxu0
  %v3430 = vadd.f32 0.0, %v3429
  %v3431 = vpop.f32.mrb[0].mxu0
  %3432 = vmatprep.mubr.f32.mxu0 0.0
  %3433 = vmatmul.mubr.f32.gmra.mrb[0].mxu0 %v3123
  %v3434 = vpop.f32.mrb[0].mxu0
  %v3435 = vadd.f32 0.0, %v3434
  %v3436 = vpop.f32.mrb[0].mxu0
  %3437 = vmatprep.mubr.f32.mxu0 0.0
  %3438 = vmatmul.mubr.f32.gmra.mrb[0].mxu0 %v3124
  %v3439 = vpop.f32.mrb[0].mxu0
  %v3440 = vadd.f32 0.0, %v3439
  %v3441 = vpop.f32.mrb[0].mxu0
  %3442 = vmatprep.mubr.f32.mxu0 0.0
  %3443 = vmatmul.mubr.f32.gmra.mrb[0].mxu0 %v3125
  %v3444 = vpop.f32.mrb[0].mxu0
  %v3445 = vadd.f32 0.0, %v3444
  %v3446 = vpop.f32.mrb[0].mxu0
  %3447 = vmatprep.mubr.f32.mxu0 0.0
  %3448 = vmatmul.mubr.f32.gmra.mrb[0].mxu0 %v3126
  %v3449 = vpop.f32.mrb[0].mxu0
  %v3450 = vadd.f32 0.0, %v3449
  %v3451 = vpop.f32.mrb[0].mxu0
  %3452 = vmatprep.mubr.f32.mxu0 0.0
  %3453 = vmatmul.mubr.f32.gmra.mrb[0].mxu0 %v3127
  %v3454 = vpop.f32.mrb[0].mxu0
  %v3455 = vadd.f32 0.0, %v3454
  %v3456 = vpop.f32.mrb[0].mxu0
  %3457 = vmatprep.mubr.f32.mxu0 0.0
  %3458 = vmatmul.mubr.f32.gmra.mrb[0].mxu0 %v3128
  %v3459 = vpop.f32.mrb[0].mxu0
  %v3460 = vadd.f32 0.0, %v3459
  %v3461 = vpop.f32.mrb[0].mxu0
  %3462 = vmatprep.mubr.f32.mxu0 0.0
  %3463 = vmatmul.mubr.f32.gmra.mrb[0].mxu0 %v3129
  %v3464 = vpop.f32.mrb[0].mxu0
  %v3465 = vadd.f32 0.0, %v3464
  %v3466 = vpop.f32.mrb[0].mxu0
  %3467 = vmatprep.mubr.f32.mxu0 0.0
  %3468 = vmatmul.mubr.f32.gmra.mrb[0].mxu0 %v3130
  %v3469 = vpop.f32.mrb[0].mxu0
  %v3470 = vadd.f32 0.0, %v3469
  %v3471 = vpop.f32.mrb[0].mxu0
  %3472 = vmatprep.mubr.f32.mxu0 0.0
  %3473 = vmatmul.mubr.f32.gmra.mrb[0].mxu0 %v3131
  %v3474 = vpop.f32.mrb[0].mxu0
  %v3475 = vadd.f32 0.0, %v3474
  %v3476 = vpop.f32.mrb[0].mxu0
  %3477 = vmatprep.mubr.f32.mxu0 0.0
  %3478 = vmatmul.mubr.f32.gmra.mrb[0].mxu0 %v3132
  %v3479 = vpop.f32.mrb[0].mxu0
  %v3480 = vadd.f32 0.0, %v3479
  %v3481 = vpop.f32.mrb[0].mxu0
  %3482 = vmatprep.mubr.f32.mxu0 0.0
  %3483 = vmatmul.mubr.f32.gmra.mrb[0].mxu0 %v3133
  %v3484 = vpop.f32.mrb[0].mxu0
  %v3485 = vadd.f32 0.0, %v3484
  %v3486 = vpop.f32.mrb[0].mxu0
  %3487 = vmatprep.mubr.f32.mxu0 0.0
  %3488 = vmatmul.mubr.f32.gmra.mrb[0].mxu0 %v3134
  %v3489 = vpop.f32.mrb[0].mxu0
  %v3490 = vadd.f32 0.0, %v3489
  %v3491 = vpop.f32.mrb[0].mxu0
  %3492 = vmatprep.mubr.f32.mxu0 0.0
  %3493 = vmatmul.mubr.f32.gmra.mrb[0].mxu0 %v3135
  %v3494 = vpop.f32.mrb[0].mxu0
  %v3495 = vadd.f32 0.0, %v3494
  %v3496 = vpop.f32.mrb[0].mxu0
  %3497 = vmatprep.mubr.f32.mxu0 0.0
  %3498 = vmatmul.mubr.f32.gmra.mrb[0].mxu0 %v3136
  %v3499 = vpop.f32.mrb[0].mxu0
  %v3500 = vadd.f32 0.0, %v3499
  %v3501 = vpop.f32.mrb[0].mxu0
  %3502 = vmatprep.mubr.f32.mxu0 0.0
  %3503 = vmatmul.mubr.f32.gmra.mrb[0].mxu0 %v3137
  %v3504 = vpop.f32.mrb[0].mxu0
  %v3505 = vadd.f32 0.0, %v3504
  %v3506 = vpop.f32.mrb[0].mxu0
  %3507 = vmatprep.mubr.f32.mxu0 0.0
  %3508 = vmatmul.mubr.f32.gmra.mrb[0].mxu0 %v3138
  %v3509 = vpop.f32.mrb[0].mxu0
  %v3510 = vadd.f32 0.0, %v3509
  %v3511 = vpop.f32.mrb[0].mxu0
  %3512 = vmatprep.mubr.f32.mxu0 0.0
  %3513 = vmatmul.mubr.f32.gmra.mrb[0].mxu0 %v3139
  %v3514 = vpop.f32.mrb[0].mxu0
  %v3515 = vadd.f32 0.0, %v3514
  %v3516 = vpop.f32.mrb[0].mxu0
  %3517 = vmatprep.mubr.f32.mxu0 0.0
  %3518 = vmatmul.mubr.f32.gmra.mrb[0].mxu0 %v3140
  %v3519 = vpop.f32.mrb[0].mxu0
  %v3520 = vadd.f32 0.0, %v3519
  %v3521 = vpop.f32.mrb[0].mxu0
  %3522 = vmatprep.mubr.f32.mxu0 0.0
  %3523 = vmatmul.mubr.f32.gmra.mrb[0].mxu0 %v3141
  %v3524 = vpop.f32.mrb[0].mxu0
  %v3525 = vadd.f32 0.0, %v3524
  %v3526 = vpop.f32.mrb[0].mxu0
  %3527 = vmatprep.mubr.f32.mxu0 0.0
  %3528 = vmatmul.mubr.f32.gmra.mrb[0].mxu0 %v3142
  %v3529 = vpop.f32.mrb[0].mxu0
  %v3530 = vadd.f32 0.0, %v3529
  %v3531 = vpop.f32.mrb[0].mxu0
  %3532 = vmatprep.mubr.f32.mxu0 0.0
  %3533 = vmatmul.mubr.f32.gmra.mrb[0].mxu0 %v3143
  %v3534 = vpop.f32.mrb[0].mxu0
  %v3535 = vadd.f32 0.0, %v3534
  %v3536 = vpop.f32.mrb[0].mxu0
  %3537 = vmatprep.mubr.f32.mxu0 0.0
  %3538 = vmatmul.mubr.f32.gmra.mrb[0].mxu0 %v3144
  %v3539 = vpop.f32.mrb[0].mxu0
  %v3540 = vadd.f32 0.0, %v3539
  %v3541 = vpop.f32.mrb[0].mxu0
  %3542 = vmatprep.mubr.f32.mxu0 0.0
  %3543 = vmatmul.mubr.f32.gmra.mrb[0].mxu0 %v3145
  %v3544 = vpop.f32.mrb[0].mxu0
  %v3545 = vadd.f32 0.0, %v3544
  %v3546 = vpop.f32.mrb[0].mxu0
  %3547 = vdwg.mxu0
  %v3548 = vadd.f32 %v3017, %v3230
  %v3549 = vadd.f32 %v3018, %v3235
  %v3550 = vadd.f32 %v3019, %v3240
  %v3551 = vadd.f32 %v3020, %v3245
  %v3552 = vadd.f32 %v3021, %v3250
  %v3553 = vadd.f32 %v3022, %v3255
  %v3554 = vadd.f32 %v3023, %v3260
  %v3555 = vadd.f32 %v3024, %v3265
  %v3556 = vadd.f32 %v3025, %v3270
  %v3557 = vadd.f32 %v3026, %v3275
  %v3558 = vadd.f32 %v3027, %v3280
  %v3559 = vadd.f32 %v3028, %v3285
  %v3560 = vadd.f32 %v3029, %v3290
  %v3561 = vadd.f32 %v3030, %v3295
  %v3562 = vadd.f32 %v3031, %v3300
  %v3563 = vadd.f32 %v3032, %v3305
  %v3564 = vadd.f32 %v3033, %v3310
  %v3565 = vadd.f32 %v3034, %v3315
  %v3566 = vadd.f32 %v3035, %v3320
  %v3567 = vadd.f32 %v3036, %v3325
  %v3568 = vadd.f32 %v3037, %v3330
  %v3569 = vadd.f32 %v3038, %v3335
  %v3570 = vadd.f32 %v3039, %v3340
  %v3571 = vadd.f32 %v3040, %v3345
  %v3572 = vadd.f32 %v3041, %v3350
  %v3573 = vadd.f32 %v3042, %v3355
  %v3574 = vadd.f32 %v3043, %v3360
  %v3575 = vadd.f32 %v3044, %v3365
  %v3576 = vadd.f32 %v3045, %v3370
  %v3577 = vadd.f32 %v3046, %v3375
  %v3578 = vadd.f32 %v3047, %v3380
  %v3579 = vadd.f32 %v3048, %v3385
  %v3580 = vadd.f32 %v3049, %v3390
  %v3581 = vadd.f32 %v3050, %v3395
  %v3582 = vadd.f32 %v3051, %v3400
  %v3583 = vadd.f32 %v3052, %v3405
  %v3584 = vadd.f32 %v3053, %v3410
  %v3585 = vadd.f32 %v3054, %v3415
  %v3586 = vadd.f32 %v3055, %v3420
  %v3587 = vadd.f32 %v3056, %v3425
  %v3588 = vadd.f32 %v3057, %v3430
  %v3589 = vadd.f32 %v3058, %v3435
  %v3590 = vadd.f32 %v3059, %v3440
  %v3591 = vadd.f32 %v3060, %v3445
  %v3592 = vadd.f32 %v3061, %v3450
  %v3593 = vadd.f32 %v3062, %v3455
  %v3594 = vadd.f32 %v3063, %v3460
  %v3595 = vadd.f32 %v3064, %v3465
  %v3596 = vadd.f32 %v3065, %v3470
  %v3597 = vadd.f32 %v3066, %v3475
  %v3598 = vadd.f32 %v3067, %v3480
  %v3599 = vadd.f32 %v3068, %v3485
  %v3600 = vadd.f32 %v3069, %v3490
  %v3601 = vadd.f32 %v3070, %v3495
  %v3602 = vadd.f32 %v3071, %v3500
  %v3603 = vadd.f32 %v3072, %v3505
  %v3604 = vadd.f32 %v3073, %v3510
  %v3605 = vadd.f32 %v3074, %v3515
  %v3606 = vadd.f32 %v3075, %v3520
  %v3607 = vadd.f32 %v3076, %v3525
  %v3608 = vadd.f32 %v3077, %v3530
  %v3609 = vadd.f32 %v3078, %v3535
  %v3610 = vadd.f32 %v3079, %v3540
  %v3611 = vadd.f32 %v3080, %v3545
  %v3612 = vld [vmem:[%s3081 + $0x1] sm:$0xff]
  %v3613 = vld [vmem:[%s3081 + $0x9] sm:$0xff]
  %v3614 = vld [vmem:[%s3081 + $0x19] sm:$0xff]
  %v3615 = vld [vmem:[%s3081 + $0x21] sm:$0xff]
  %v3616 = vld [vmem:[%s3081 + $0x31] sm:$0xff]
  %v3617 = vld [vmem:[%s3081 + $0x39] sm:$0xff]
  %v3618 = vld [vmem:[%s3081 + $0x49] sm:$0xff]
  %v3619 = vld [vmem:[%s3081 + $0x51] sm:$0xff]
  %v3620 = vld [vmem:[%s3081 + $0x61] sm:$0xff]
  %v3621 = vld [vmem:[%s3081 + $0x69] sm:$0xff]
  %v3622 = vld [vmem:[%s3081 + $0x79] sm:$0xff]
  %v3623 = vld [vmem:[%s3081 + $0x81] sm:$0xff]
  %v3624 = vld [vmem:[%s3081 + $0x91] sm:$0xff]
  %v3625 = vld [vmem:[%s3081 + $0x99] sm:$0xff]
  %v3626 = vld [vmem:[%s3081 + $0xa9] sm:$0xff]
  %v3627 = vld [vmem:[%s3081 + $0xb1] sm:$0xff]
  %v3628 = vld [vmem:[%s3081 + $0xc1] sm:$0xff]
  %v3629 = vld [vmem:[%s3081 + $0xc9] sm:$0xff]
  %v3630 = vld [vmem:[%s3081 + $0xd9] sm:$0xff]
  %v3631 = vld [vmem:[%s3081 + $0xe1] sm:$0xff]
  %v3632 = vld [vmem:[%s3081 + $0xf1] sm:$0xff]
  %v3633 = vld [vmem:[%s3081 + $0xf9] sm:$0xff]
  %v3634 = vld [vmem:[%s3081 + $0x109] sm:$0xff]
  %v3635 = vld [vmem:[%s3081 + $0x111] sm:$0xff]
  %v3636 = vld [vmem:[%s3081 + $0x121] sm:$0xff]
  %v3637 = vld [vmem:[%s3081 + $0x129] sm:$0xff]
  %v3638 = vld [vmem:[%s3081 + $0x139] sm:$0xff]
  %v3639 = vld [vmem:[%s3081 + $0x141] sm:$0xff]
  %v3640 = vld [vmem:[%s3081 + $0x151] sm:$0xff]
  %v3641 = vld [vmem:[%s3081 + $0x159] sm:$0xff]
  %v3642 = vld [vmem:[%s3081 + $0x169] sm:$0xff]
  %v3643 = vld [vmem:[%s3081 + $0x171] sm:$0xff]
  %v3644 = vld [vmem:[%s3081 + $0x1b1] sm:$0xff]
  %v3645 = vld [vmem:[%s3081 + $0x1b9] sm:$0xff]
  %v3646 = vld [vmem:[%s3081 + $0x1c9] sm:$0xff]
  %v3647 = vld [vmem:[%s3081 + $0x1d1] sm:$0xff]
  %v3648 = vld [vmem:[%s3081 + $0x1e1] sm:$0xff]
  %v3649 = vld [vmem:[%s3081 + $0x1e9] sm:$0xff]
  %v3650 = vld [vmem:[%s3081 + $0x1f9] sm:$0xff]
  %v3651 = vld [vmem:[%s3081 + $0x201] sm:$0xff]
  %v3652 = vld [vmem:[%s3081 + $0x211] sm:$0xff]
  %v3653 = vld [vmem:[%s3081 + $0x219] sm:$0xff]
  %v3654 = vld [vmem:[%s3081 + $0x229] sm:$0xff]
  %v3655 = vld [vmem:[%s3081 + $0x231] sm:$0xff]
  %v3656 = vld [vmem:[%s3081 + $0x241] sm:$0xff]
  %v3657 = vld [vmem:[%s3081 + $0x249] sm:$0xff]
  %v3658 = vld [vmem:[%s3081 + $0x259] sm:$0xff]
  %v3659 = vld [vmem:[%s3081 + $0x261] sm:$0xff]
  %v3660 = vld [vmem:[%s3081 + $0x271] sm:$0xff]
  %v3661 = vld [vmem:[%s3081 + $0x279] sm:$0xff]
  %v3662 = vld [vmem:[%s3081 + $0x289] sm:$0xff]
  %v3663 = vld [vmem:[%s3081 + $0x291] sm:$0xff]
  %v3664 = vld [vmem:[%s3081 + $0x2a1] sm:$0xff]
  %v3665 = vld [vmem:[%s3081 + $0x2a9] sm:$0xff]
  %v3666 = vld [vmem:[%s3081 + $0x2b9] sm:$0xff]
  %v3667 = vld [vmem:[%s3081 + $0x2c1] sm:$0xff]
  %v3668 = vld [vmem:[%s3081 + $0x2d1] sm:$0xff]
  %v3669 = vld [vmem:[%s3081 + $0x2d9] sm:$0xff]
  %v3670 = vld [vmem:[%s3081 + $0x2e9] sm:$0xff]
  %v3671 = vld [vmem:[%s3081 + $0x2f1] sm:$0xff]
  %v3672 = vld [vmem:[%s3081 + $0x301] sm:$0xff]
  %v3673 = vld [vmem:[%s3081 + $0x309] sm:$0xff]
  %v3674 = vld [vmem:[%s3081 + $0x319] sm:$0xff]
  %v3675 = vld [vmem:[%s3081 + $0x321] sm:$0xff]
  %s3676 = scalar_lea.vmem %s2, 896
  %v3677 = vld [vmem:[%s3676] sm:$0xff]
  %v3678 = vld [vmem:[%s3676 + $0x8] sm:$0xff]
  %v3679 = vld [vmem:[%s3676 + $0x10] sm:$0xff]
  %v3680 = vld [vmem:[%s3676 + $0x18] sm:$0xff]
  %v3681 = vld [vmem:[%s3676 + $0x20] sm:$0xff]
  %v3682 = vld [vmem:[%s3676 + $0x28] sm:$0xff]
  %v3683 = vld [vmem:[%s3676 + $0x30] sm:$0xff]
  %v3684 = vld [vmem:[%s3676 + $0x38] sm:$0xff]
  %v3685 = vld [vmem:[%s3676 + $0x40] sm:$0xff]
  %v3686 = vld [vmem:[%s3676 + $0x48] sm:$0xff]
  %v3687 = vld [vmem:[%s3676 + $0x50] sm:$0xff]
  %v3688 = vld [vmem:[%s3676 + $0x58] sm:$0xff]
  %v3689 = vld [vmem:[%s3676 + $0x60] sm:$0xff]
  %v3690 = vld [vmem:[%s3676 + $0x68] sm:$0xff]
  %v3691 = vld [vmem:[%s3676 + $0x70] sm:$0xff]
  %v3692 = vld [vmem:[%s3676 + $0x78] sm:$0xff]
  %3693 = vmatprep.subr.mxu0 0.0
  %3694 = vmatpush1.msra.mxu0 %v3677
  %3695 = vmatprep.subr.mxu0 0.0
  %3696 = vmatpush1.msra.mxu0 %v3678
  %3697 = vmatprep.subr.mxu0 0.0
  %3698 = vmatpush1.msra.mxu0 %v3679
  %3699 = vmatprep.subr.mxu0 0.0
  %3700 = vmatpush1.msra.mxu0 %v3680
  %3701 = vmatprep.subr.mxu0 0.0
  %3702 = vmatpush1.msra.mxu0 %v3681
  %3703 = vmatprep.subr.mxu0 0.0
  %3704 = vmatpush1.msra.mxu0 %v3682
  %3705 = vmatprep.subr.mxu0 0.0
  %3706 = vmatpush1.msra.mxu0 %v3683
  %3707 = vmatprep.subr.mxu0 0.0
  %3708 = vmatpush1.msra.mxu0 %v3684
  %3709 = vmatprep.subr.mxu0 0.0
  %3710 = vmatpush1.msra.mxu0 %v3685
  %3711 = vmatprep.subr.mxu0 0.0
  %3712 = vmatpush1.msra.mxu0 %v3686
  %3713 = vmatprep.subr.mxu0 0.0
  %3714 = vmatpush1.msra.mxu0 %v3687
  %3715 = vmatprep.subr.mxu0 0.0
  %3716 = vmatpush1.msra.mxu0 %v3688
  %3717 = vmatprep.subr.mxu0 0.0
  %3718 = vmatpush1.msra.mxu0 %v3689
  %3719 = vmatprep.subr.mxu0 0.0
  %3720 = vmatpush1.msra.mxu0 %v3690
  %3721 = vmatprep.subr.mxu0 0.0
  %3722 = vmatpush1.msra.mxu0 %v3691
  %3723 = vmatprep.subr.mxu0 0.0
  %3724 = vmatpush1.msra.mxu0 %v3692
  %3725 = vmatprep.subr.mxu0 0.0
  %3726 = vmatpush1.msra.mxu0 0.0
  %3727 = vmatprep.subr.mxu0 0.0
  %3728 = vmatpush1.msra.mxu0 0.0
  %3729 = vmatprep.subr.mxu0 0.0
  %3730 = vmatpush1.msra.mxu0 0.0
  %3731 = vmatprep.subr.mxu0 0.0
  %3732 = vmatpush1.msra.mxu0 0.0
  %3733 = vmatprep.subr.mxu0 0.0
  %3734 = vmatpush1.msra.mxu0 0.0
  %3735 = vmatprep.subr.mxu0 0.0
  %3736 = vmatpush1.msra.mxu0 0.0
  %3737 = vmatprep.subr.mxu0 0.0
  %3738 = vmatpush1.msra.mxu0 0.0
  %3739 = vmatprep.subr.mxu0 0.0
  %3740 = vmatpush1.msra.mxu0 0.0
  %3741 = vmatprep.subr.mxu0 0.0
  %3742 = vmatpush1.msra.mxu0 0.0
  %3743 = vmatprep.subr.mxu0 0.0
  %3744 = vmatpush1.msra.mxu0 0.0
  %3745 = vmatprep.subr.mxu0 0.0
  %3746 = vmatpush1.msra.mxu0 0.0
  %3747 = vmatprep.subr.mxu0 0.0
  %3748 = vmatpush1.msra.mxu0 0.0
  %3749 = vmatprep.subr.mxu0 0.0
  %3750 = vmatpush1.msra.mxu0 0.0
  %3751 = vmatprep.subr.mxu0 0.0
  %3752 = vmatpush1.msra.mxu0 0.0
  %3753 = vmatprep.subr.mxu0 0.0
  %3754 = vmatpush1.msra.mxu0 0.0
  %3755 = vmatprep.subr.mxu0 0.0
  %3756 = vmatpush1.msra.mxu0 0.0
  %3757 = vmatprep.mubr.f32.mxu0 0.0
  %3758 = vmatmul.mubr.f32.gmra.mrb[0].mxu0 %v3612
  %v3759 = vpop.f32.mrb[0].mxu0
  %v3760 = vadd.f32 0.0, %v3759
  %v3761 = vpop.f32.mrb[0].mxu0
  %3762 = vmatprep.mubr.f32.mxu0 0.0
  %3763 = vmatmul.mubr.f32.gmra.mrb[0].mxu0 %v3613
  %v3764 = vpop.f32.mrb[0].mxu0
  %v3765 = vadd.f32 0.0, %v3764
  %v3766 = vpop.f32.mrb[0].mxu0
  %3767 = vmatprep.mubr.f32.mxu0 0.0
  %3768 = vmatmul.mubr.f32.gmra.mrb[0].mxu0 %v3614
  %v3769 = vpop.f32.mrb[0].mxu0
  %v3770 = vadd.f32 0.0, %v3769
  %v3771 = vpop.f32.mrb[0].mxu0
  %3772 = vmatprep.mubr.f32.mxu0 0.0
  %3773 = vmatmul.mubr.f32.gmra.mrb[0].mxu0 %v3615
  %v3774 = vpop.f32.mrb[0].mxu0
  %v3775 = vadd.f32 0.0, %v3774
  %v3776 = vpop.f32.mrb[0].mxu0
  %3777 = vmatprep.mubr.f32.mxu0 0.0
  %3778 = vmatmul.mubr.f32.gmra.mrb[0].mxu0 %v3616
  %v3779 = vpop.f32.mrb[0].mxu0
  %v3780 = vadd.f32 0.0, %v3779
  %v3781 = vpop.f32.mrb[0].mxu0
  %3782 = vmatprep.mubr.f32.mxu0 0.0
  %3783 = vmatmul.mubr.f32.gmra.mrb[0].mxu0 %v3617
  %v3784 = vpop.f32.mrb[0].mxu0
  %v3785 = vadd.f32 0.0, %v3784
  %v3786 = vpop.f32.mrb[0].mxu0
  %3787 = vmatprep.mubr.f32.mxu0 0.0
  %3788 = vmatmul.mubr.f32.gmra.mrb[0].mxu0 %v3618
  %v3789 = vpop.f32.mrb[0].mxu0
  %v3790 = vadd.f32 0.0, %v3789
  %v3791 = vpop.f32.mrb[0].mxu0
  %3792 = vmatprep.mubr.f32.mxu0 0.0
  %3793 = vmatmul.mubr.f32.gmra.mrb[0].mxu0 %v3619
  %v3794 = vpop.f32.mrb[0].mxu0
  %v3795 = vadd.f32 0.0, %v3794
  %v3796 = vpop.f32.mrb[0].mxu0
  %3797 = vmatprep.mubr.f32.mxu0 0.0
  %3798 = vmatmul.mubr.f32.gmra.mrb[0].mxu0 %v3620
  %v3799 = vpop.f32.mrb[0].mxu0
  %v3800 = vadd.f32 0.0, %v3799
  %v3801 = vpop.f32.mrb[0].mxu0
  %3802 = vmatprep.mubr.f32.mxu0 0.0
  %3803 = vmatmul.mubr.f32.gmra.mrb[0].mxu0 %v3621
  %v3804 = vpop.f32.mrb[0].mxu0
  %v3805 = vadd.f32 0.0, %v3804
  %v3806 = vpop.f32.mrb[0].mxu0
  %3807 = vmatprep.mubr.f32.mxu0 0.0
  %3808 = vmatmul.mubr.f32.gmra.mrb[0].mxu0 %v3622
  %v3809 = vpop.f32.mrb[0].mxu0
  %v3810 = vadd.f32 0.0, %v3809
  %v3811 = vpop.f32.mrb[0].mxu0
  %3812 = vmatprep.mubr.f32.mxu0 0.0
  %3813 = vmatmul.mubr.f32.gmra.mrb[0].mxu0 %v3623
  %v3814 = vpop.f32.mrb[0].mxu0
  %v3815 = vadd.f32 0.0, %v3814
  %v3816 = vpop.f32.mrb[0].mxu0
  %3817 = vmatprep.mubr.f32.mxu0 0.0
  %3818 = vmatmul.mubr.f32.gmra.mrb[0].mxu0 %v3624
  %v3819 = vpop.f32.mrb[0].mxu0
  %v3820 = vadd.f32 0.0, %v3819
  %v3821 = vpop.f32.mrb[0].mxu0
  %3822 = vmatprep.mubr.f32.mxu0 0.0
  %3823 = vmatmul.mubr.f32.gmra.mrb[0].mxu0 %v3625
  %v3824 = vpop.f32.mrb[0].mxu0
  %v3825 = vadd.f32 0.0, %v3824
  %v3826 = vpop.f32.mrb[0].mxu0
  %3827 = vmatprep.mubr.f32.mxu0 0.0
  %3828 = vmatmul.mubr.f32.gmra.mrb[0].mxu0 %v3626
  %v3829 = vpop.f32.mrb[0].mxu0
  %v3830 = vadd.f32 0.0, %v3829
  %v3831 = vpop.f32.mrb[0].mxu0
  %3832 = vmatprep.mubr.f32.mxu0 0.0
  %3833 = vmatmul.mubr.f32.gmra.mrb[0].mxu0 %v3627
  %v3834 = vpop.f32.mrb[0].mxu0
  %v3835 = vadd.f32 0.0, %v3834
  %v3836 = vpop.f32.mrb[0].mxu0
  %3837 = vmatprep.mubr.f32.mxu0 0.0
  %3838 = vmatmul.mubr.f32.gmra.mrb[0].mxu0 %v3628
  %v3839 = vpop.f32.mrb[0].mxu0
  %v3840 = vadd.f32 0.0, %v3839
  %v3841 = vpop.f32.mrb[0].mxu0
  %3842 = vmatprep.mubr.f32.mxu0 0.0
  %3843 = vmatmul.mubr.f32.gmra.mrb[0].mxu0 %v3629
  %v3844 = vpop.f32.mrb[0].mxu0
  %v3845 = vadd.f32 0.0, %v3844
  %v3846 = vpop.f32.mrb[0].mxu0
  %3847 = vmatprep.mubr.f32.mxu0 0.0
  %3848 = vmatmul.mubr.f32.gmra.mrb[0].mxu0 %v3630
  %v3849 = vpop.f32.mrb[0].mxu0
  %v3850 = vadd.f32 0.0, %v3849
  %v3851 = vpop.f32.mrb[0].mxu0
  %3852 = vmatprep.mubr.f32.mxu0 0.0
  %3853 = vmatmul.mubr.f32.gmra.mrb[0].mxu0 %v3631
  %v3854 = vpop.f32.mrb[0].mxu0
  %v3855 = vadd.f32 0.0, %v3854
  %v3856 = vpop.f32.mrb[0].mxu0
  %3857 = vmatprep.mubr.f32.mxu0 0.0
  %3858 = vmatmul.mubr.f32.gmra.mrb[0].mxu0 %v3632
  %v3859 = vpop.f32.mrb[0].mxu0
  %v3860 = vadd.f32 0.0, %v3859
  %v3861 = vpop.f32.mrb[0].mxu0
  %3862 = vmatprep.mubr.f32.mxu0 0.0
  %3863 = vmatmul.mubr.f32.gmra.mrb[0].mxu0 %v3633
  %v3864 = vpop.f32.mrb[0].mxu0
  %v3865 = vadd.f32 0.0, %v3864
  %v3866 = vpop.f32.mrb[0].mxu0
  %3867 = vmatprep.mubr.f32.mxu0 0.0
  %3868 = vmatmul.mubr.f32.gmra.mrb[0].mxu0 %v3634
  %v3869 = vpop.f32.mrb[0].mxu0
  %v3870 = vadd.f32 0.0, %v3869
  %v3871 = vpop.f32.mrb[0].mxu0
  %3872 = vmatprep.mubr.f32.mxu0 0.0
  %3873 = vmatmul.mubr.f32.gmra.mrb[0].mxu0 %v3635
  %v3874 = vpop.f32.mrb[0].mxu0
  %v3875 = vadd.f32 0.0, %v3874
  %v3876 = vpop.f32.mrb[0].mxu0
  %3877 = vmatprep.mubr.f32.mxu0 0.0
  %3878 = vmatmul.mubr.f32.gmra.mrb[0].mxu0 %v3636
  %v3879 = vpop.f32.mrb[0].mxu0
  %v3880 = vadd.f32 0.0, %v3879
  %v3881 = vpop.f32.mrb[0].mxu0
  %3882 = vmatprep.mubr.f32.mxu0 0.0
  %3883 = vmatmul.mubr.f32.gmra.mrb[0].mxu0 %v3637
  %v3884 = vpop.f32.mrb[0].mxu0
  %v3885 = vadd.f32 0.0, %v3884
  %v3886 = vpop.f32.mrb[0].mxu0
  %3887 = vmatprep.mubr.f32.mxu0 0.0
  %3888 = vmatmul.mubr.f32.gmra.mrb[0].mxu0 %v3638
  %v3889 = vpop.f32.mrb[0].mxu0
  %v3890 = vadd.f32 0.0, %v3889
  %v3891 = vpop.f32.mrb[0].mxu0
  %3892 = vmatprep.mubr.f32.mxu0 0.0
  %3893 = vmatmul.mubr.f32.gmra.mrb[0].mxu0 %v3639
  %v3894 = vpop.f32.mrb[0].mxu0
  %v3895 = vadd.f32 0.0, %v3894
  %v3896 = vpop.f32.mrb[0].mxu0
  %3897 = vmatprep.mubr.f32.mxu0 0.0
  %3898 = vmatmul.mubr.f32.gmra.mrb[0].mxu0 %v3640
  %v3899 = vpop.f32.mrb[0].mxu0
  %v3900 = vadd.f32 0.0, %v3899
  %v3901 = vpop.f32.mrb[0].mxu0
  %3902 = vmatprep.mubr.f32.mxu0 0.0
  %3903 = vmatmul.mubr.f32.gmra.mrb[0].mxu0 %v3641
  %v3904 = vpop.f32.mrb[0].mxu0
  %v3905 = vadd.f32 0.0, %v3904
  %v3906 = vpop.f32.mrb[0].mxu0
  %3907 = vmatprep.mubr.f32.mxu0 0.0
  %3908 = vmatmul.mubr.f32.gmra.mrb[0].mxu0 %v3642
  %v3909 = vpop.f32.mrb[0].mxu0
  %v3910 = vadd.f32 0.0, %v3909
  %v3911 = vpop.f32.mrb[0].mxu0
  %3912 = vmatprep.mubr.f32.mxu0 0.0
  %3913 = vmatmul.mubr.f32.gmra.mrb[0].mxu0 %v3643
  %v3914 = vpop.f32.mrb[0].mxu0
  %v3915 = vadd.f32 0.0, %v3914
  %v3916 = vpop.f32.mrb[0].mxu0
  %3917 = vmatprep.mubr.f32.mxu0 0.0
  %3918 = vmatmul.mubr.f32.gmra.mrb[0].mxu0 %v3644
  %v3919 = vpop.f32.mrb[0].mxu0
  %v3920 = vadd.f32 0.0, %v3919
  %v3921 = vpop.f32.mrb[0].mxu0
  %3922 = vmatprep.mubr.f32.mxu0 0.0
  %3923 = vmatmul.mubr.f32.gmra.mrb[0].mxu0 %v3645
  %v3924 = vpop.f32.mrb[0].mxu0
  %v3925 = vadd.f32 0.0, %v3924
  %v3926 = vpop.f32.mrb[0].mxu0
  %3927 = vmatprep.mubr.f32.mxu0 0.0
  %3928 = vmatmul.mubr.f32.gmra.mrb[0].mxu0 %v3646
  %v3929 = vpop.f32.mrb[0].mxu0
  %v3930 = vadd.f32 0.0, %v3929
  %v3931 = vpop.f32.mrb[0].mxu0
  %3932 = vmatprep.mubr.f32.mxu0 0.0
  %3933 = vmatmul.mubr.f32.gmra.mrb[0].mxu0 %v3647
  %v3934 = vpop.f32.mrb[0].mxu0
  %v3935 = vadd.f32 0.0, %v3934
  %v3936 = vpop.f32.mrb[0].mxu0
  %3937 = vmatprep.mubr.f32.mxu0 0.0
  %3938 = vmatmul.mubr.f32.gmra.mrb[0].mxu0 %v3648
  %v3939 = vpop.f32.mrb[0].mxu0
  %v3940 = vadd.f32 0.0, %v3939
  %v3941 = vpop.f32.mrb[0].mxu0
  %3942 = vmatprep.mubr.f32.mxu0 0.0
  %3943 = vmatmul.mubr.f32.gmra.mrb[0].mxu0 %v3649
  %v3944 = vpop.f32.mrb[0].mxu0
  %v3945 = vadd.f32 0.0, %v3944
  %v3946 = vpop.f32.mrb[0].mxu0
  %3947 = vmatprep.mubr.f32.mxu0 0.0
  %3948 = vmatmul.mubr.f32.gmra.mrb[0].mxu0 %v3650
  %v3949 = vpop.f32.mrb[0].mxu0
  %v3950 = vadd.f32 0.0, %v3949
  %v3951 = vpop.f32.mrb[0].mxu0
  %3952 = vmatprep.mubr.f32.mxu0 0.0
  %3953 = vmatmul.mubr.f32.gmra.mrb[0].mxu0 %v3651
  %v3954 = vpop.f32.mrb[0].mxu0
  %v3955 = vadd.f32 0.0, %v3954
  %v3956 = vpop.f32.mrb[0].mxu0
  %3957 = vmatprep.mubr.f32.mxu0 0.0
  %3958 = vmatmul.mubr.f32.gmra.mrb[0].mxu0 %v3652
  %v3959 = vpop.f32.mrb[0].mxu0
  %v3960 = vadd.f32 0.0, %v3959
  %v3961 = vpop.f32.mrb[0].mxu0
  %3962 = vmatprep.mubr.f32.mxu0 0.0
  %3963 = vmatmul.mubr.f32.gmra.mrb[0].mxu0 %v3653
  %v3964 = vpop.f32.mrb[0].mxu0
  %v3965 = vadd.f32 0.0, %v3964
  %v3966 = vpop.f32.mrb[0].mxu0
  %3967 = vmatprep.mubr.f32.mxu0 0.0
  %3968 = vmatmul.mubr.f32.gmra.mrb[0].mxu0 %v3654
  %v3969 = vpop.f32.mrb[0].mxu0
  %v3970 = vadd.f32 0.0, %v3969
  %v3971 = vpop.f32.mrb[0].mxu0
  %3972 = vmatprep.mubr.f32.mxu0 0.0
  %3973 = vmatmul.mubr.f32.gmra.mrb[0].mxu0 %v3655
  %v3974 = vpop.f32.mrb[0].mxu0
  %v3975 = vadd.f32 0.0, %v3974
  %v3976 = vpop.f32.mrb[0].mxu0
  %3977 = vmatprep.mubr.f32.mxu0 0.0
  %3978 = vmatmul.mubr.f32.gmra.mrb[0].mxu0 %v3656
  %v3979 = vpop.f32.mrb[0].mxu0
  %v3980 = vadd.f32 0.0, %v3979
  %v3981 = vpop.f32.mrb[0].mxu0
  %3982 = vmatprep.mubr.f32.mxu0 0.0
  %3983 = vmatmul.mubr.f32.gmra.mrb[0].mxu0 %v3657
  %v3984 = vpop.f32.mrb[0].mxu0
  %v3985 = vadd.f32 0.0, %v3984
  %v3986 = vpop.f32.mrb[0].mxu0
  %3987 = vmatprep.mubr.f32.mxu0 0.0
  %3988 = vmatmul.mubr.f32.gmra.mrb[0].mxu0 %v3658
  %v3989 = vpop.f32.mrb[0].mxu0
  %v3990 = vadd.f32 0.0, %v3989
  %v3991 = vpop.f32.mrb[0].mxu0
  %3992 = vmatprep.mubr.f32.mxu0 0.0
  %3993 = vmatmul.mubr.f32.gmra.mrb[0].mxu0 %v3659
  %v3994 = vpop.f32.mrb[0].mxu0
  %v3995 = vadd.f32 0.0, %v3994
  %v3996 = vpop.f32.mrb[0].mxu0
  %3997 = vmatprep.mubr.f32.mxu0 0.0
  %3998 = vmatmul.mubr.f32.gmra.mrb[0].mxu0 %v3660
  %v3999 = vpop.f32.mrb[0].mxu0
  %v4000 = vadd.f32 0.0, %v3999
  %v4001 = vpop.f32.mrb[0].mxu0
  %4002 = vmatprep.mubr.f32.mxu0 0.0
  %4003 = vmatmul.mubr.f32.gmra.mrb[0].mxu0 %v3661
  %v4004 = vpop.f32.mrb[0].mxu0
  %v4005 = vadd.f32 0.0, %v4004
  %v4006 = vpop.f32.mrb[0].mxu0
  %4007 = vmatprep.mubr.f32.mxu0 0.0
  %4008 = vmatmul.mubr.f32.gmra.mrb[0].mxu0 %v3662
  %v4009 = vpop.f32.mrb[0].mxu0
  %v4010 = vadd.f32 0.0, %v4009
  %v4011 = vpop.f32.mrb[0].mxu0
  %4012 = vmatprep.mubr.f32.mxu0 0.0
  %4013 = vmatmul.mubr.f32.gmra.mrb[0].mxu0 %v3663
  %v4014 = vpop.f32.mrb[0].mxu0
  %v4015 = vadd.f32 0.0, %v4014
  %v4016 = vpop.f32.mrb[0].mxu0
  %4017 = vmatprep.mubr.f32.mxu0 0.0
  %4018 = vmatmul.mubr.f32.gmra.mrb[0].mxu0 %v3664
  %v4019 = vpop.f32.mrb[0].mxu0
  %v4020 = vadd.f32 0.0, %v4019
  %v4021 = vpop.f32.mrb[0].mxu0
  %4022 = vmatprep.mubr.f32.mxu0 0.0
  %4023 = vmatmul.mubr.f32.gmra.mrb[0].mxu0 %v3665
  %v4024 = vpop.f32.mrb[0].mxu0
  %v4025 = vadd.f32 0.0, %v4024
  %v4026 = vpop.f32.mrb[0].mxu0
  %4027 = vmatprep.mubr.f32.mxu0 0.0
  %4028 = vmatmul.mubr.f32.gmra.mrb[0].mxu0 %v3666
  %v4029 = vpop.f32.mrb[0].mxu0
  %v4030 = vadd.f32 0.0, %v4029
  %v4031 = vpop.f32.mrb[0].mxu0
  %4032 = vmatprep.mubr.f32.mxu0 0.0
  %4033 = vmatmul.mubr.f32.gmra.mrb[0].mxu0 %v3667
  %v4034 = vpop.f32.mrb[0].mxu0
  %v4035 = vadd.f32 0.0, %v4034
  %v4036 = vpop.f32.mrb[0].mxu0
  %4037 = vmatprep.mubr.f32.mxu0 0.0
  %4038 = vmatmul.mubr.f32.gmra.mrb[0].mxu0 %v3668
  %v4039 = vpop.f32.mrb[0].mxu0
  %v4040 = vadd.f32 0.0, %v4039
  %v4041 = vpop.f32.mrb[0].mxu0
  %4042 = vmatprep.mubr.f32.mxu0 0.0
  %4043 = vmatmul.mubr.f32.gmra.mrb[0].mxu0 %v3669
  %v4044 = vpop.f32.mrb[0].mxu0
  %v4045 = vadd.f32 0.0, %v4044
  %v4046 = vpop.f32.mrb[0].mxu0
  %4047 = vmatprep.mubr.f32.mxu0 0.0
  %4048 = vmatmul.mubr.f32.gmra.mrb[0].mxu0 %v3670
  %v4049 = vpop.f32.mrb[0].mxu0
  %v4050 = vadd.f32 0.0, %v4049
  %v4051 = vpop.f32.mrb[0].mxu0
  %4052 = vmatprep.mubr.f32.mxu0 0.0
  %4053 = vmatmul.mubr.f32.gmra.mrb[0].mxu0 %v3671
  %v4054 = vpop.f32.mrb[0].mxu0
  %v4055 = vadd.f32 0.0, %v4054
  %v4056 = vpop.f32.mrb[0].mxu0
  %4057 = vmatprep.mubr.f32.mxu0 0.0
  %4058 = vmatmul.mubr.f32.gmra.mrb[0].mxu0 %v3672
  %v4059 = vpop.f32.mrb[0].mxu0
  %v4060 = vadd.f32 0.0, %v4059
  %v4061 = vpop.f32.mrb[0].mxu0
  %4062 = vmatprep.mubr.f32.mxu0 0.0
  %4063 = vmatmul.mubr.f32.gmra.mrb[0].mxu0 %v3673
  %v4064 = vpop.f32.mrb[0].mxu0
  %v4065 = vadd.f32 0.0, %v4064
  %v4066 = vpop.f32.mrb[0].mxu0
  %4067 = vmatprep.mubr.f32.mxu0 0.0
  %4068 = vmatmul.mubr.f32.gmra.mrb[0].mxu0 %v3674
  %v4069 = vpop.f32.mrb[0].mxu0
  %v4070 = vadd.f32 0.0, %v4069
  %v4071 = vpop.f32.mrb[0].mxu0
  %4072 = vmatprep.mubr.f32.mxu0 0.0
  %4073 = vmatmul.mubr.f32.gmra.mrb[0].mxu0 %v3675
  %v4074 = vpop.f32.mrb[0].mxu0
  %v4075 = vadd.f32 0.0, %v4074
  %v4076 = vpop.f32.mrb[0].mxu0
  %4077 = vdwg.mxu0
  %v4078 = vadd.f32 %v3548, %v3760
  %v4079 = vadd.f32 %v3549, %v3765
  %v4080 = vadd.f32 %v3550, %v3770
  %v4081 = vadd.f32 %v3551, %v3775
  %v4082 = vadd.f32 %v3552, %v3780
  %v4083 = vadd.f32 %v3553, %v3785
  %v4084 = vadd.f32 %v3554, %v3790
  %v4085 = vadd.f32 %v3555, %v3795
  %v4086 = vadd.f32 %v3556, %v3800
  %v4087 = vadd.f32 %v3557, %v3805
  %v4088 = vadd.f32 %v3558, %v3810
  %v4089 = vadd.f32 %v3559, %v3815
  %v4090 = vadd.f32 %v3560, %v3820
  %v4091 = vadd.f32 %v3561, %v3825
  %v4092 = vadd.f32 %v3562, %v3830
  %v4093 = vadd.f32 %v3563, %v3835
  %v4094 = vadd.f32 %v3564, %v3840
  %v4095 = vadd.f32 %v3565, %v3845
  %v4096 = vadd.f32 %v3566, %v3850
  %v4097 = vadd.f32 %v3567, %v3855
  %v4098 = vadd.f32 %v3568, %v3860
  %v4099 = vadd.f32 %v3569, %v3865
  %v4100 = vadd.f32 %v3570, %v3870
  %v4101 = vadd.f32 %v3571, %v3875
  %v4102 = vadd.f32 %v3572, %v3880
  %v4103 = vadd.f32 %v3573, %v3885
  %v4104 = vadd.f32 %v3574, %v3890
  %v4105 = vadd.f32 %v3575, %v3895
  %v4106 = vadd.f32 %v3576, %v3900
  %v4107 = vadd.f32 %v3577, %v3905
  %v4108 = vadd.f32 %v3578, %v3910
  %v4109 = vadd.f32 %v3579, %v3915
  %v4110 = vadd.f32 %v3580, %v3920
  %v4111 = vadd.f32 %v3581, %v3925
  %v4112 = vadd.f32 %v3582, %v3930
  %v4113 = vadd.f32 %v3583, %v3935
  %v4114 = vadd.f32 %v3584, %v3940
  %v4115 = vadd.f32 %v3585, %v3945
  %v4116 = vadd.f32 %v3586, %v3950
  %v4117 = vadd.f32 %v3587, %v3955
  %v4118 = vadd.f32 %v3588, %v3960
  %v4119 = vadd.f32 %v3589, %v3965
  %v4120 = vadd.f32 %v3590, %v3970
  %v4121 = vadd.f32 %v3591, %v3975
  %v4122 = vadd.f32 %v3592, %v3980
  %v4123 = vadd.f32 %v3593, %v3985
  %v4124 = vadd.f32 %v3594, %v3990
  %v4125 = vadd.f32 %v3595, %v3995
  %v4126 = vadd.f32 %v3596, %v4000
  %v4127 = vadd.f32 %v3597, %v4005
  %v4128 = vadd.f32 %v3598, %v4010
  %v4129 = vadd.f32 %v3599, %v4015
  %v4130 = vadd.f32 %v3600, %v4020
  %v4131 = vadd.f32 %v3601, %v4025
  %v4132 = vadd.f32 %v3602, %v4030
  %v4133 = vadd.f32 %v3603, %v4035
  %v4134 = vadd.f32 %v3604, %v4040
  %v4135 = vadd.f32 %v3605, %v4045
  %v4136 = vadd.f32 %v3606, %v4050
  %v4137 = vadd.f32 %v3607, %v4055
  %v4138 = vadd.f32 %v3608, %v4060
  %v4139 = vadd.f32 %v3609, %v4065
  %v4140 = vadd.f32 %v3610, %v4070
  %v4141 = vadd.f32 %v3611, %v4075
  %v4142 = vld [vmem:[%s3081 + $0x2] sm:$0xff]
  %v4143 = vld [vmem:[%s3081 + $0xa] sm:$0xff]
  %v4144 = vld [vmem:[%s3081 + $0x1a] sm:$0xff]
  %v4145 = vld [vmem:[%s3081 + $0x22] sm:$0xff]
  %v4146 = vld [vmem:[%s3081 + $0x32] sm:$0xff]
  %v4147 = vld [vmem:[%s3081 + $0x3a] sm:$0xff]
  %v4148 = vld [vmem:[%s3081 + $0x4a] sm:$0xff]
  %v4149 = vld [vmem:[%s3081 + $0x52] sm:$0xff]
  %v4150 = vld [vmem:[%s3081 + $0x62] sm:$0xff]
  %v4151 = vld [vmem:[%s3081 + $0x6a] sm:$0xff]
  %v4152 = vld [vmem:[%s3081 + $0x7a] sm:$0xff]
  %v4153 = vld [vmem:[%s3081 + $0x82] sm:$0xff]
  %v4154 = vld [vmem:[%s3081 + $0x92] sm:$0xff]
  %v4155 = vld [vmem:[%s3081 + $0x9a] sm:$0xff]
  %v4156 = vld [vmem:[%s3081 + $0xaa] sm:$0xff]
  %v4157 = vld [vmem:[%s3081 + $0xb2] sm:$0xff]
  %v4158 = vld [vmem:[%s3081 + $0xc2] sm:$0xff]
  %v4159 = vld [vmem:[%s3081 + $0xca] sm:$0xff]
  %v4160 = vld [vmem:[%s3081 + $0xda] sm:$0xff]
  %v4161 = vld [vmem:[%s3081 + $0xe2] sm:$0xff]
  %v4162 = vld [vmem:[%s3081 + $0xf2] sm:$0xff]
  %v4163 = vld [vmem:[%s3081 + $0xfa] sm:$0xff]
  %v4164 = vld [vmem:[%s3081 + $0x10a] sm:$0xff]
  %v4165 = vld [vmem:[%s3081 + $0x112] sm:$0xff]
  %v4166 = vld [vmem:[%s3081 + $0x122] sm:$0xff]
  %v4167 = vld [vmem:[%s3081 + $0x12a] sm:$0xff]
  %v4168 = vld [vmem:[%s3081 + $0x13a] sm:$0xff]
  %v4169 = vld [vmem:[%s3081 + $0x142] sm:$0xff]
  %v4170 = vld [vmem:[%s3081 + $0x152] sm:$0xff]
  %v4171 = vld [vmem:[%s3081 + $0x15a] sm:$0xff]
  %v4172 = vld [vmem:[%s3081 + $0x16a] sm:$0xff]
  %v4173 = vld [vmem:[%s3081 + $0x172] sm:$0xff]
  %v4174 = vld [vmem:[%s3081 + $0x1b2] sm:$0xff]
  %v4175 = vld [vmem:[%s3081 + $0x1ba] sm:$0xff]
  %v4176 = vld [vmem:[%s3081 + $0x1ca] sm:$0xff]
  %v4177 = vld [vmem:[%s3081 + $0x1d2] sm:$0xff]
  %v4178 = vld [vmem:[%s3081 + $0x1e2] sm:$0xff]
  %v4179 = vld [vmem:[%s3081 + $0x1ea] sm:$0xff]
  %v4180 = vld [vmem:[%s3081 + $0x1fa] sm:$0xff]
  %v4181 = vld [vmem:[%s3081 + $0x202] sm:$0xff]
  %v4182 = vld [vmem:[%s3081 + $0x212] sm:$0xff]
  %v4183 = vld [vmem:[%s3081 + $0x21a] sm:$0xff]
  %v4184 = vld [vmem:[%s3081 + $0x22a] sm:$0xff]
  %v4185 = vld [vmem:[%s3081 + $0x232] sm:$0xff]
  %v4186 = vld [vmem:[%s3081 + $0x242] sm:$0xff]
  %v4187 = vld [vmem:[%s3081 + $0x24a] sm:$0xff]
  %v4188 = vld [vmem:[%s3081 + $0x25a] sm:$0xff]
  %v4189 = vld [vmem:[%s3081 + $0x262] sm:$0xff]
  %v4190 = vld [vmem:[%s3081 + $0x272] sm:$0xff]
  %v4191 = vld [vmem:[%s3081 + $0x27a] sm:$0xff]
  %v4192 = vld [vmem:[%s3081 + $0x28a] sm:$0xff]
  %v4193 = vld [vmem:[%s3081 + $0x292] sm:$0xff]
  %v4194 = vld [vmem:[%s3081 + $0x2a2] sm:$0xff]
  %v4195 = vld [vmem:[%s3081 + $0x2aa] sm:$0xff]
  %v4196 = vld [vmem:[%s3081 + $0x2ba] sm:$0xff]
  %v4197 = vld [vmem:[%s3081 + $0x2c2] sm:$0xff]
  %v4198 = vld [vmem:[%s3081 + $0x2d2] sm:$0xff]
  %v4199 = vld [vmem:[%s3081 + $0x2da] sm:$0xff]
  %v4200 = vld [vmem:[%s3081 + $0x2ea] sm:$0xff]
  %v4201 = vld [vmem:[%s3081 + $0x2f2] sm:$0xff]
  %v4202 = vld [vmem:[%s3081 + $0x302] sm:$0xff]
  %v4203 = vld [vmem:[%s3081 + $0x30a] sm:$0xff]
  %v4204 = vld [vmem:[%s3081 + $0x31a] sm:$0xff]
  %v4205 = vld [vmem:[%s3081 + $0x322] sm:$0xff]
  %s4206 = scalar_lea.vmem %s2, 1024
  %v4207 = vld [vmem:[%s4206] sm:$0xff]
  %v4208 = vld [vmem:[%s4206 + $0x8] sm:$0xff]
  %v4209 = vld [vmem:[%s4206 + $0x10] sm:$0xff]
  %v4210 = vld [vmem:[%s4206 + $0x18] sm:$0xff]
  %v4211 = vld [vmem:[%s4206 + $0x20] sm:$0xff]
  %v4212 = vld [vmem:[%s4206 + $0x28] sm:$0xff]
  %v4213 = vld [vmem:[%s4206 + $0x30] sm:$0xff]
  %v4214 = vld [vmem:[%s4206 + $0x38] sm:$0xff]
  %v4215 = vld [vmem:[%s4206 + $0x40] sm:$0xff]
  %v4216 = vld [vmem:[%s4206 + $0x48] sm:$0xff]
  %v4217 = vld [vmem:[%s4206 + $0x50] sm:$0xff]
  %v4218 = vld [vmem:[%s4206 + $0x58] sm:$0xff]
  %v4219 = vld [vmem:[%s4206 + $0x60] sm:$0xff]
  %v4220 = vld [vmem:[%s4206 + $0x68] sm:$0xff]
  %v4221 = vld [vmem:[%s4206 + $0x70] sm:$0xff]
  %v4222 = vld [vmem:[%s4206 + $0x78] sm:$0xff]
  %4223 = vmatprep.subr.mxu0 0.0
  %4224 = vmatpush1.msra.mxu0 %v4207
  %4225 = vmatprep.subr.mxu0 0.0
  %4226 = vmatpush1.msra.mxu0 %v4208
  %4227 = vmatprep.subr.mxu0 0.0
  %4228 = vmatpush1.msra.mxu0 %v4209
  %4229 = vmatprep.subr.mxu0 0.0
  %4230 = vmatpush1.msra.mxu0 %v4210
  %4231 = vmatprep.subr.mxu0 0.0
  %4232 = vmatpush1.msra.mxu0 %v4211
  %4233 = vmatprep.subr.mxu0 0.0
  %4234 = vmatpush1.msra.mxu0 %v4212
  %4235 = vmatprep.subr.mxu0 0.0
  %4236 = vmatpush1.msra.mxu0 %v4213
  %4237 = vmatprep.subr.mxu0 0.0
  %4238 = vmatpush1.msra.mxu0 %v4214
  %4239 = vmatprep.subr.mxu0 0.0
  %4240 = vmatpush1.msra.mxu0 %v4215
  %4241 = vmatprep.subr.mxu0 0.0
  %4242 = vmatpush1.msra.mxu0 %v4216
  %4243 = vmatprep.subr.mxu0 0.0
  %4244 = vmatpush1.msra.mxu0 %v4217
  %4245 = vmatprep.subr.mxu0 0.0
  %4246 = vmatpush1.msra.mxu0 %v4218
  %4247 = vmatprep.subr.mxu0 0.0
  %4248 = vmatpush1.msra.mxu0 %v4219
  %4249 = vmatprep.subr.mxu0 0.0
  %4250 = vmatpush1.msra.mxu0 %v4220
  %4251 = vmatprep.subr.mxu0 0.0
  %4252 = vmatpush1.msra.mxu0 %v4221
  %4253 = vmatprep.subr.mxu0 0.0
  %4254 = vmatpush1.msra.mxu0 %v4222
  %4255 = vmatprep.subr.mxu0 0.0
  %4256 = vmatpush1.msra.mxu0 0.0
  %4257 = vmatprep.subr.mxu0 0.0
  %4258 = vmatpush1.msra.mxu0 0.0
  %4259 = vmatprep.subr.mxu0 0.0
  %4260 = vmatpush1.msra.mxu0 0.0
  %4261 = vmatprep.subr.mxu0 0.0
  %4262 = vmatpush1.msra.mxu0 0.0
  %4263 = vmatprep.subr.mxu0 0.0
  %4264 = vmatpush1.msra.mxu0 0.0
  %4265 = vmatprep.subr.mxu0 0.0
  %4266 = vmatpush1.msra.mxu0 0.0
  %4267 = vmatprep.subr.mxu0 0.0
  %4268 = vmatpush1.msra.mxu0 0.0
  %4269 = vmatprep.subr.mxu0 0.0
  %4270 = vmatpush1.msra.mxu0 0.0
  %4271 = vmatprep.subr.mxu0 0.0
  %4272 = vmatpush1.msra.mxu0 0.0
  %4273 = vmatprep.subr.mxu0 0.0
  %4274 = vmatpush1.msra.mxu0 0.0
  %4275 = vmatprep.subr.mxu0 0.0
  %4276 = vmatpush1.msra.mxu0 0.0
  %4277 = vmatprep.subr.mxu0 0.0
  %4278 = vmatpush1.msra.mxu0 0.0
  %4279 = vmatprep.subr.mxu0 0.0
  %4280 = vmatpush1.msra.mxu0 0.0
  %4281 = vmatprep.subr.mxu0 0.0
  %4282 = vmatpush1.msra.mxu0 0.0
  %4283 = vmatprep.subr.mxu0 0.0
  %4284 = vmatpush1.msra.mxu0 0.0
  %4285 = vmatprep.subr.mxu0 0.0
  %4286 = vmatpush1.msra.mxu0 0.0
  %4287 = vmatprep.mubr.f32.mxu0 0.0
  %4288 = vmatmul.mubr.f32.gmra.mrb[0].mxu0 %v4142
  %v4289 = vpop.f32.mrb[0].mxu0
  %v4290 = vadd.f32 0.0, %v4289
  %v4291 = vpop.f32.mrb[0].mxu0
  %4292 = vmatprep.mubr.f32.mxu0 0.0
  %4293 = vmatmul.mubr.f32.gmra.mrb[0].mxu0 %v4143
  %v4294 = vpop.f32.mrb[0].mxu0
  %v4295 = vadd.f32 0.0, %v4294
  %v4296 = vpop.f32.mrb[0].mxu0
  %4297 = vmatprep.mubr.f32.mxu0 0.0
  %4298 = vmatmul.mubr.f32.gmra.mrb[0].mxu0 %v4144
  %v4299 = vpop.f32.mrb[0].mxu0
  %v4300 = vadd.f32 0.0, %v4299
  %v4301 = vpop.f32.mrb[0].mxu0
  %4302 = vmatprep.mubr.f32.mxu0 0.0
  %4303 = vmatmul.mubr.f32.gmra.mrb[0].mxu0 %v4145
  %v4304 = vpop.f32.mrb[0].mxu0
  %v4305 = vadd.f32 0.0, %v4304
  %v4306 = vpop.f32.mrb[0].mxu0
  %4307 = vmatprep.mubr.f32.mxu0 0.0
  %4308 = vmatmul.mubr.f32.gmra.mrb[0].mxu0 %v4146
  %v4309 = vpop.f32.mrb[0].mxu0
  %v4310 = vadd.f32 0.0, %v4309
  %v4311 = vpop.f32.mrb[0].mxu0
  %4312 = vmatprep.mubr.f32.mxu0 0.0
  %4313 = vmatmul.mubr.f32.gmra.mrb[0].mxu0 %v4147
  %v4314 = vpop.f32.mrb[0].mxu0
  %v4315 = vadd.f32 0.0, %v4314
  %v4316 = vpop.f32.mrb[0].mxu0
  %4317 = vmatprep.mubr.f32.mxu0 0.0
  %4318 = vmatmul.mubr.f32.gmra.mrb[0].mxu0 %v4148
  %v4319 = vpop.f32.mrb[0].mxu0
  %v4320 = vadd.f32 0.0, %v4319
  %v4321 = vpop.f32.mrb[0].mxu0
  %4322 = vmatprep.mubr.f32.mxu0 0.0
  %4323 = vmatmul.mubr.f32.gmra.mrb[0].mxu0 %v4149
  %v4324 = vpop.f32.mrb[0].mxu0
  %v4325 = vadd.f32 0.0, %v4324
  %v4326 = vpop.f32.mrb[0].mxu0
  %4327 = vmatprep.mubr.f32.mxu0 0.0
  %4328 = vmatmul.mubr.f32.gmra.mrb[0].mxu0 %v4150
  %v4329 = vpop.f32.mrb[0].mxu0
  %v4330 = vadd.f32 0.0, %v4329
  %v4331 = vpop.f32.mrb[0].mxu0
  %4332 = vmatprep.mubr.f32.mxu0 0.0
  %4333 = vmatmul.mubr.f32.gmra.mrb[0].mxu0 %v4151
  %v4334 = vpop.f32.mrb[0].mxu0
  %v4335 = vadd.f32 0.0, %v4334
  %v4336 = vpop.f32.mrb[0].mxu0
  %4337 = vmatprep.mubr.f32.mxu0 0.0
  %4338 = vmatmul.mubr.f32.gmra.mrb[0].mxu0 %v4152
  %v4339 = vpop.f32.mrb[0].mxu0
  %v4340 = vadd.f32 0.0, %v4339
  %v4341 = vpop.f32.mrb[0].mxu0
  %4342 = vmatprep.mubr.f32.mxu0 0.0
  %4343 = vmatmul.mubr.f32.gmra.mrb[0].mxu0 %v4153
  %v4344 = vpop.f32.mrb[0].mxu0
  %v4345 = vadd.f32 0.0, %v4344
  %v4346 = vpop.f32.mrb[0].mxu0
  %4347 = vmatprep.mubr.f32.mxu0 0.0
  %4348 = vmatmul.mubr.f32.gmra.mrb[0].mxu0 %v4154
  %v4349 = vpop.f32.mrb[0].mxu0
  %v4350 = vadd.f32 0.0, %v4349
  %v4351 = vpop.f32.mrb[0].mxu0
  %4352 = vmatprep.mubr.f32.mxu0 0.0
  %4353 = vmatmul.mubr.f32.gmra.mrb[0].mxu0 %v4155
  %v4354 = vpop.f32.mrb[0].mxu0
  %v4355 = vadd.f32 0.0, %v4354
  %v4356 = vpop.f32.mrb[0].mxu0
  %4357 = vmatprep.mubr.f32.mxu0 0.0
  %4358 = vmatmul.mubr.f32.gmra.mrb[0].mxu0 %v4156
  %v4359 = vpop.f32.mrb[0].mxu0
  %v4360 = vadd.f32 0.0, %v4359
  %v4361 = vpop.f32.mrb[0].mxu0
  %4362 = vmatprep.mubr.f32.mxu0 0.0
  %4363 = vmatmul.mubr.f32.gmra.mrb[0].mxu0 %v4157
  %v4364 = vpop.f32.mrb[0].mxu0
  %v4365 = vadd.f32 0.0, %v4364
  %v4366 = vpop.f32.mrb[0].mxu0
  %4367 = vmatprep.mubr.f32.mxu0 0.0
  %4368 = vmatmul.mubr.f32.gmra.mrb[0].mxu0 %v4158
  %v4369 = vpop.f32.mrb[0].mxu0
  %v4370 = vadd.f32 0.0, %v4369
  %v4371 = vpop.f32.mrb[0].mxu0
  %4372 = vmatprep.mubr.f32.mxu0 0.0
  %4373 = vmatmul.mubr.f32.gmra.mrb[0].mxu0 %v4159
  %v4374 = vpop.f32.mrb[0].mxu0
  %v4375 = vadd.f32 0.0, %v4374
  %v4376 = vpop.f32.mrb[0].mxu0
  %4377 = vmatprep.mubr.f32.mxu0 0.0
  %4378 = vmatmul.mubr.f32.gmra.mrb[0].mxu0 %v4160
  %v4379 = vpop.f32.mrb[0].mxu0
  %v4380 = vadd.f32 0.0, %v4379
  %v4381 = vpop.f32.mrb[0].mxu0
  %4382 = vmatprep.mubr.f32.mxu0 0.0
  %4383 = vmatmul.mubr.f32.gmra.mrb[0].mxu0 %v4161
  %v4384 = vpop.f32.mrb[0].mxu0
  %v4385 = vadd.f32 0.0, %v4384
  %v4386 = vpop.f32.mrb[0].mxu0
  %4387 = vmatprep.mubr.f32.mxu0 0.0
  %4388 = vmatmul.mubr.f32.gmra.mrb[0].mxu0 %v4162
  %v4389 = vpop.f32.mrb[0].mxu0
  %v4390 = vadd.f32 0.0, %v4389
  %v4391 = vpop.f32.mrb[0].mxu0
  %4392 = vmatprep.mubr.f32.mxu0 0.0
  %4393 = vmatmul.mubr.f32.gmra.mrb[0].mxu0 %v4163
  %v4394 = vpop.f32.mrb[0].mxu0
  %v4395 = vadd.f32 0.0, %v4394
  %v4396 = vpop.f32.mrb[0].mxu0
  %4397 = vmatprep.mubr.f32.mxu0 0.0
  %4398 = vmatmul.mubr.f32.gmra.mrb[0].mxu0 %v4164
  %v4399 = vpop.f32.mrb[0].mxu0
  %v4400 = vadd.f32 0.0, %v4399
  %v4401 = vpop.f32.mrb[0].mxu0
  %4402 = vmatprep.mubr.f32.mxu0 0.0
  %4403 = vmatmul.mubr.f32.gmra.mrb[0].mxu0 %v4165
  %v4404 = vpop.f32.mrb[0].mxu0
  %v4405 = vadd.f32 0.0, %v4404
  %v4406 = vpop.f32.mrb[0].mxu0
  %4407 = vmatprep.mubr.f32.mxu0 0.0
  %4408 = vmatmul.mubr.f32.gmra.mrb[0].mxu0 %v4166
  %v4409 = vpop.f32.mrb[0].mxu0
  %v4410 = vadd.f32 0.0, %v4409
  %v4411 = vpop.f32.mrb[0].mxu0
  %4412 = vmatprep.mubr.f32.mxu0 0.0
  %4413 = vmatmul.mubr.f32.gmra.mrb[0].mxu0 %v4167
  %v4414 = vpop.f32.mrb[0].mxu0
  %v4415 = vadd.f32 0.0, %v4414
  %v4416 = vpop.f32.mrb[0].mxu0
  %4417 = vmatprep.mubr.f32.mxu0 0.0
  %4418 = vmatmul.mubr.f32.gmra.mrb[0].mxu0 %v4168
  %v4419 = vpop.f32.mrb[0].mxu0
  %v4420 = vadd.f32 0.0, %v4419
  %v4421 = vpop.f32.mrb[0].mxu0
  %4422 = vmatprep.mubr.f32.mxu0 0.0
  %4423 = vmatmul.mubr.f32.gmra.mrb[0].mxu0 %v4169
  %v4424 = vpop.f32.mrb[0].mxu0
  %v4425 = vadd.f32 0.0, %v4424
  %v4426 = vpop.f32.mrb[0].mxu0
  %4427 = vmatprep.mubr.f32.mxu0 0.0
  %4428 = vmatmul.mubr.f32.gmra.mrb[0].mxu0 %v4170
  %v4429 = vpop.f32.mrb[0].mxu0
  %v4430 = vadd.f32 0.0, %v4429
  %v4431 = vpop.f32.mrb[0].mxu0
  %4432 = vmatprep.mubr.f32.mxu0 0.0
  %4433 = vmatmul.mubr.f32.gmra.mrb[0].mxu0 %v4171
  %v4434 = vpop.f32.mrb[0].mxu0
  %v4435 = vadd.f32 0.0, %v4434
  %v4436 = vpop.f32.mrb[0].mxu0
  %4437 = vmatprep.mubr.f32.mxu0 0.0
  %4438 = vmatmul.mubr.f32.gmra.mrb[0].mxu0 %v4172
  %v4439 = vpop.f32.mrb[0].mxu0
  %v4440 = vadd.f32 0.0, %v4439
  %v4441 = vpop.f32.mrb[0].mxu0
  %4442 = vmatprep.mubr.f32.mxu0 0.0
  %4443 = vmatmul.mubr.f32.gmra.mrb[0].mxu0 %v4173
  %v4444 = vpop.f32.mrb[0].mxu0
  %v4445 = vadd.f32 0.0, %v4444
  %v4446 = vpop.f32.mrb[0].mxu0
  %4447 = vmatprep.mubr.f32.mxu0 0.0
  %4448 = vmatmul.mubr.f32.gmra.mrb[0].mxu0 %v4174
  %v4449 = vpop.f32.mrb[0].mxu0
  %v4450 = vadd.f32 0.0, %v4449
  %v4451 = vpop.f32.mrb[0].mxu0
  %4452 = vmatprep.mubr.f32.mxu0 0.0
  %4453 = vmatmul.mubr.f32.gmra.mrb[0].mxu0 %v4175
  %v4454 = vpop.f32.mrb[0].mxu0
  %v4455 = vadd.f32 0.0, %v4454
  %v4456 = vpop.f32.mrb[0].mxu0
  %4457 = vmatprep.mubr.f32.mxu0 0.0
  %4458 = vmatmul.mubr.f32.gmra.mrb[0].mxu0 %v4176
  %v4459 = vpop.f32.mrb[0].mxu0
  %v4460 = vadd.f32 0.0, %v4459
  %v4461 = vpop.f32.mrb[0].mxu0
  %4462 = vmatprep.mubr.f32.mxu0 0.0
  %4463 = vmatmul.mubr.f32.gmra.mrb[0].mxu0 %v4177
  %v4464 = vpop.f32.mrb[0].mxu0
  %v4465 = vadd.f32 0.0, %v4464
  %v4466 = vpop.f32.mrb[0].mxu0
  %4467 = vmatprep.mubr.f32.mxu0 0.0
  %4468 = vmatmul.mubr.f32.gmra.mrb[0].mxu0 %v4178
  %v4469 = vpop.f32.mrb[0].mxu0
  %v4470 = vadd.f32 0.0, %v4469
  %v4471 = vpop.f32.mrb[0].mxu0
  %4472 = vmatprep.mubr.f32.mxu0 0.0
  %4473 = vmatmul.mubr.f32.gmra.mrb[0].mxu0 %v4179
  %v4474 = vpop.f32.mrb[0].mxu0
  %v4475 = vadd.f32 0.0, %v4474
  %v4476 = vpop.f32.mrb[0].mxu0
  %4477 = vmatprep.mubr.f32.mxu0 0.0
  %4478 = vmatmul.mubr.f32.gmra.mrb[0].mxu0 %v4180
  %v4479 = vpop.f32.mrb[0].mxu0
  %v4480 = vadd.f32 0.0, %v4479
  %v4481 = vpop.f32.mrb[0].mxu0
  %4482 = vmatprep.mubr.f32.mxu0 0.0
  %4483 = vmatmul.mubr.f32.gmra.mrb[0].mxu0 %v4181
  %v4484 = vpop.f32.mrb[0].mxu0
  %v4485 = vadd.f32 0.0, %v4484
  %v4486 = vpop.f32.mrb[0].mxu0
  %4487 = vmatprep.mubr.f32.mxu0 0.0
  %4488 = vmatmul.mubr.f32.gmra.mrb[0].mxu0 %v4182
  %v4489 = vpop.f32.mrb[0].mxu0
  %v4490 = vadd.f32 0.0, %v4489
  %v4491 = vpop.f32.mrb[0].mxu0
  %4492 = vmatprep.mubr.f32.mxu0 0.0
  %4493 = vmatmul.mubr.f32.gmra.mrb[0].mxu0 %v4183
  %v4494 = vpop.f32.mrb[0].mxu0
  %v4495 = vadd.f32 0.0, %v4494
  %v4496 = vpop.f32.mrb[0].mxu0
  %4497 = vmatprep.mubr.f32.mxu0 0.0
  %4498 = vmatmul.mubr.f32.gmra.mrb[0].mxu0 %v4184
  %v4499 = vpop.f32.mrb[0].mxu0
  %v4500 = vadd.f32 0.0, %v4499
  %v4501 = vpop.f32.mrb[0].mxu0
  %4502 = vmatprep.mubr.f32.mxu0 0.0
  %4503 = vmatmul.mubr.f32.gmra.mrb[0].mxu0 %v4185
  %v4504 = vpop.f32.mrb[0].mxu0
  %v4505 = vadd.f32 0.0, %v4504
  %v4506 = vpop.f32.mrb[0].mxu0
  %4507 = vmatprep.mubr.f32.mxu0 0.0
  %4508 = vmatmul.mubr.f32.gmra.mrb[0].mxu0 %v4186
  %v4509 = vpop.f32.mrb[0].mxu0
  %v4510 = vadd.f32 0.0, %v4509
  %v4511 = vpop.f32.mrb[0].mxu0
  %4512 = vmatprep.mubr.f32.mxu0 0.0
  %4513 = vmatmul.mubr.f32.gmra.mrb[0].mxu0 %v4187
  %v4514 = vpop.f32.mrb[0].mxu0
  %v4515 = vadd.f32 0.0, %v4514
  %v4516 = vpop.f32.mrb[0].mxu0
  %4517 = vmatprep.mubr.f32.mxu0 0.0
  %4518 = vmatmul.mubr.f32.gmra.mrb[0].mxu0 %v4188
  %v4519 = vpop.f32.mrb[0].mxu0
  %v4520 = vadd.f32 0.0, %v4519
  %v4521 = vpop.f32.mrb[0].mxu0
  %4522 = vmatprep.mubr.f32.mxu0 0.0
  %4523 = vmatmul.mubr.f32.gmra.mrb[0].mxu0 %v4189
  %v4524 = vpop.f32.mrb[0].mxu0
  %v4525 = vadd.f32 0.0, %v4524
  %v4526 = vpop.f32.mrb[0].mxu0
  %4527 = vmatprep.mubr.f32.mxu0 0.0
  %4528 = vmatmul.mubr.f32.gmra.mrb[0].mxu0 %v4190
  %v4529 = vpop.f32.mrb[0].mxu0
  %v4530 = vadd.f32 0.0, %v4529
  %v4531 = vpop.f32.mrb[0].mxu0
  %4532 = vmatprep.mubr.f32.mxu0 0.0
  %4533 = vmatmul.mubr.f32.gmra.mrb[0].mxu0 %v4191
  %v4534 = vpop.f32.mrb[0].mxu0
  %v4535 = vadd.f32 0.0, %v4534
  %v4536 = vpop.f32.mrb[0].mxu0
  %4537 = vmatprep.mubr.f32.mxu0 0.0
  %4538 = vmatmul.mubr.f32.gmra.mrb[0].mxu0 %v4192
  %v4539 = vpop.f32.mrb[0].mxu0
  %v4540 = vadd.f32 0.0, %v4539
  %v4541 = vpop.f32.mrb[0].mxu0
  %4542 = vmatprep.mubr.f32.mxu0 0.0
  %4543 = vmatmul.mubr.f32.gmra.mrb[0].mxu0 %v4193
  %v4544 = vpop.f32.mrb[0].mxu0
  %v4545 = vadd.f32 0.0, %v4544
  %v4546 = vpop.f32.mrb[0].mxu0
  %4547 = vmatprep.mubr.f32.mxu0 0.0
  %4548 = vmatmul.mubr.f32.gmra.mrb[0].mxu0 %v4194
  %v4549 = vpop.f32.mrb[0].mxu0
  %v4550 = vadd.f32 0.0, %v4549
  %v4551 = vpop.f32.mrb[0].mxu0
  %4552 = vmatprep.mubr.f32.mxu0 0.0
  %4553 = vmatmul.mubr.f32.gmra.mrb[0].mxu0 %v4195
  %v4554 = vpop.f32.mrb[0].mxu0
  %v4555 = vadd.f32 0.0, %v4554
  %v4556 = vpop.f32.mrb[0].mxu0
  %4557 = vmatprep.mubr.f32.mxu0 0.0
  %4558 = vmatmul.mubr.f32.gmra.mrb[0].mxu0 %v4196
  %v4559 = vpop.f32.mrb[0].mxu0
  %v4560 = vadd.f32 0.0, %v4559
  %v4561 = vpop.f32.mrb[0].mxu0
  %4562 = vmatprep.mubr.f32.mxu0 0.0
  %4563 = vmatmul.mubr.f32.gmra.mrb[0].mxu0 %v4197
  %v4564 = vpop.f32.mrb[0].mxu0
  %v4565 = vadd.f32 0.0, %v4564
  %v4566 = vpop.f32.mrb[0].mxu0
  %4567 = vmatprep.mubr.f32.mxu0 0.0
  %4568 = vmatmul.mubr.f32.gmra.mrb[0].mxu0 %v4198
  %v4569 = vpop.f32.mrb[0].mxu0
  %v4570 = vadd.f32 0.0, %v4569
  %v4571 = vpop.f32.mrb[0].mxu0
  %4572 = vmatprep.mubr.f32.mxu0 0.0
  %4573 = vmatmul.mubr.f32.gmra.mrb[0].mxu0 %v4199
  %v4574 = vpop.f32.mrb[0].mxu0
  %v4575 = vadd.f32 0.0, %v4574
  %v4576 = vpop.f32.mrb[0].mxu0
  %4577 = vmatprep.mubr.f32.mxu0 0.0
  %4578 = vmatmul.mubr.f32.gmra.mrb[0].mxu0 %v4200
  %v4579 = vpop.f32.mrb[0].mxu0
  %v4580 = vadd.f32 0.0, %v4579
  %v4581 = vpop.f32.mrb[0].mxu0
  %4582 = vmatprep.mubr.f32.mxu0 0.0
  %4583 = vmatmul.mubr.f32.gmra.mrb[0].mxu0 %v4201
  %v4584 = vpop.f32.mrb[0].mxu0
  %v4585 = vadd.f32 0.0, %v4584
  %v4586 = vpop.f32.mrb[0].mxu0
  %4587 = vmatprep.mubr.f32.mxu0 0.0
  %4588 = vmatmul.mubr.f32.gmra.mrb[0].mxu0 %v4202
  %v4589 = vpop.f32.mrb[0].mxu0
  %v4590 = vadd.f32 0.0, %v4589
  %v4591 = vpop.f32.mrb[0].mxu0
  %4592 = vmatprep.mubr.f32.mxu0 0.0
  %4593 = vmatmul.mubr.f32.gmra.mrb[0].mxu0 %v4203
  %v4594 = vpop.f32.mrb[0].mxu0
  %v4595 = vadd.f32 0.0, %v4594
  %v4596 = vpop.f32.mrb[0].mxu0
  %4597 = vmatprep.mubr.f32.mxu0 0.0
  %4598 = vmatmul.mubr.f32.gmra.mrb[0].mxu0 %v4204
  %v4599 = vpop.f32.mrb[0].mxu0
  %v4600 = vadd.f32 0.0, %v4599
  %v4601 = vpop.f32.mrb[0].mxu0
  %4602 = vmatprep.mubr.f32.mxu0 0.0
  %4603 = vmatmul.mubr.f32.gmra.mrb[0].mxu0 %v4205
  %v4604 = vpop.f32.mrb[0].mxu0
  %v4605 = vadd.f32 0.0, %v4604
  %v4606 = vpop.f32.mrb[0].mxu0
  %4607 = vdwg.mxu0
  %v4608 = vadd.f32 %v4078, %v4290
  %v4609 = vadd.f32 %v4079, %v4295
  %v4610 = vadd.f32 %v4080, %v4300
  %v4611 = vadd.f32 %v4081, %v4305
  %v4612 = vadd.f32 %v4082, %v4310
  %v4613 = vadd.f32 %v4083, %v4315
  %v4614 = vadd.f32 %v4084, %v4320
  %v4615 = vadd.f32 %v4085, %v4325
  %v4616 = vadd.f32 %v4086, %v4330
  %v4617 = vadd.f32 %v4087, %v4335
  %v4618 = vadd.f32 %v4088, %v4340
  %v4619 = vadd.f32 %v4089, %v4345
  %v4620 = vadd.f32 %v4090, %v4350
  %v4621 = vadd.f32 %v4091, %v4355
  %v4622 = vadd.f32 %v4092, %v4360
  %v4623 = vadd.f32 %v4093, %v4365
  %v4624 = vadd.f32 %v4094, %v4370
  %v4625 = vadd.f32 %v4095, %v4375
  %v4626 = vadd.f32 %v4096, %v4380
  %v4627 = vadd.f32 %v4097, %v4385
  %v4628 = vadd.f32 %v4098, %v4390
  %v4629 = vadd.f32 %v4099, %v4395
  %v4630 = vadd.f32 %v4100, %v4400
  %v4631 = vadd.f32 %v4101, %v4405
  %v4632 = vadd.f32 %v4102, %v4410
  %v4633 = vadd.f32 %v4103, %v4415
  %v4634 = vadd.f32 %v4104, %v4420
  %v4635 = vadd.f32 %v4105, %v4425
  %v4636 = vadd.f32 %v4106, %v4430
  %v4637 = vadd.f32 %v4107, %v4435
  %v4638 = vadd.f32 %v4108, %v4440
  %v4639 = vadd.f32 %v4109, %v4445
  %v4640 = vadd.f32 %v4110, %v4450
  %v4641 = vadd.f32 %v4111, %v4455
  %v4642 = vadd.f32 %v4112, %v4460
  %v4643 = vadd.f32 %v4113, %v4465
  %v4644 = vadd.f32 %v4114, %v4470
  %v4645 = vadd.f32 %v4115, %v4475
  %v4646 = vadd.f32 %v4116, %v4480
  %v4647 = vadd.f32 %v4117, %v4485
  %v4648 = vadd.f32 %v4118, %v4490
  %v4649 = vadd.f32 %v4119, %v4495
  %v4650 = vadd.f32 %v4120, %v4500
  %v4651 = vadd.f32 %v4121, %v4505
  %v4652 = vadd.f32 %v4122, %v4510
  %v4653 = vadd.f32 %v4123, %v4515
  %v4654 = vadd.f32 %v4124, %v4520
  %v4655 = vadd.f32 %v4125, %v4525
  %v4656 = vadd.f32 %v4126, %v4530
  %v4657 = vadd.f32 %v4127, %v4535
  %v4658 = vadd.f32 %v4128, %v4540
  %v4659 = vadd.f32 %v4129, %v4545
  %v4660 = vadd.f32 %v4130, %v4550
  %v4661 = vadd.f32 %v4131, %v4555
  %v4662 = vadd.f32 %v4132, %v4560
  %v4663 = vadd.f32 %v4133, %v4565
  %v4664 = vadd.f32 %v4134, %v4570
  %v4665 = vadd.f32 %v4135, %v4575
  %v4666 = vadd.f32 %v4136, %v4580
  %v4667 = vadd.f32 %v4137, %v4585
  %v4668 = vadd.f32 %v4138, %v4590
  %v4669 = vadd.f32 %v4139, %v4595
  %v4670 = vadd.f32 %v4140, %v4600
  %v4671 = vadd.f32 %v4141, %v4605
  %v4672 = vadd.f32 %v4608, %v4609
  %v4673 = vadd.f32 %v4672, %v4610
  %v4674 = vadd.f32 %v4673, %v4611
  %v4675 = vadd.f32 %v4674, %v4612
  %v4676 = vadd.f32 %v4675, %v4613
  %v4677 = vadd.f32 %v4676, %v4614
  %v4678 = vadd.f32 %v4677, %v4615
  %v4679 = vadd.f32 %v4678, %v4616
  %v4680 = vadd.f32 %v4679, %v4617
  %v4681 = vadd.f32 %v4680, %v4618
  %v4682 = vadd.f32 %v4681, %v4619
  %v4683 = vadd.f32 %v4682, %v4620
  %v4684 = vadd.f32 %v4683, %v4621
  %v4685 = vadd.f32 %v4684, %v4622
  %v4686 = vadd.f32 %v4685, %v4623
  %v4687 = vadd.f32 %v4686, %v4624
  %v4688 = vadd.f32 %v4687, %v4625
  %v4689 = vadd.f32 %v4688, %v4626
  %v4690 = vadd.f32 %v4689, %v4627
  %v4691 = vadd.f32 %v4690, %v4628
  %v4692 = vadd.f32 %v4691, %v4629
  %v4693 = vadd.f32 %v4692, %v4630
  %v4694 = vadd.f32 %v4693, %v4631
  %v4695 = vadd.f32 %v4694, %v4632
  %v4696 = vadd.f32 %v4695, %v4633
  %v4697 = vadd.f32 %v4696, %v4634
  %v4698 = vadd.f32 %v4697, %v4635
  %v4699 = vadd.f32 %v4698, %v4636
  %v4700 = vadd.f32 %v4699, %v4637
  %v4701 = vadd.f32 %v4700, %v4638
  %v4702 = vadd.f32 %v4701, %v4639
  %v4703 = vadd.f32 %v4702, %v4640
  %v4704 = vadd.f32 %v4703, %v4641
  %v4705 = vadd.f32 %v4704, %v4642
  %v4706 = vadd.f32 %v4705, %v4643
  %v4707 = vadd.f32 %v4706, %v4644
  %v4708 = vadd.f32 %v4707, %v4645
  %v4709 = vadd.f32 %v4708, %v4646
  %v4710 = vadd.f32 %v4709, %v4647
  %v4711 = vadd.f32 %v4710, %v4648
  %v4712 = vadd.f32 %v4711, %v4649
  %v4713 = vadd.f32 %v4712, %v4650
  %v4714 = vadd.f32 %v4713, %v4651
  %v4715 = vadd.f32 %v4714, %v4652
  %v4716 = vadd.f32 %v4715, %v4653
  %v4717 = vadd.f32 %v4716, %v4654
  %v4718 = vadd.f32 %v4717, %v4655
  %v4719 = vadd.f32 %v4718, %v4656
  %v4720 = vadd.f32 %v4719, %v4657
  %v4721 = vadd.f32 %v4720, %v4658
  %v4722 = vadd.f32 %v4721, %v4659
  %v4723 = vadd.f32 %v4722, %v4660
  %v4724 = vadd.f32 %v4723, %v4661
  %v4725 = vadd.f32 %v4724, %v4662
  %v4726 = vadd.f32 %v4725, %v4663
  %v4727 = vadd.f32 %v4726, %v4664
  %v4728 = vadd.f32 %v4727, %v4665
  %v4729 = vadd.f32 %v4728, %v4666
  %v4730 = vadd.f32 %v4729, %v4667
  %v4731 = vadd.f32 %v4730, %v4668
  %v4732 = vadd.f32 %v4731, %v4669
  %v4733 = vadd.f32 %v4732, %v4670
  %v4734 = vadd.f32 %v4733, %v4671
  %v4735 = vrot.slane %v4734, 4
  %v4736 = vadd.f32 %v4734, %v4735
  %v4737 = vrot.slane %v4736, 2
  %v4738 = vadd.f32 %v4736, %v4737
  %v4739 = vrot.slane %v4738, 1
  %v4740 = vadd.f32 %v4738, %v4739
  %v4741 = vmul.f32 %v4608, %v4608
  %v4742 = vmul.f32 %v4609, %v4609
  %v4743 = vmul.f32 %v4610, %v4610
  %v4744 = vmul.f32 %v4611, %v4611
  %v4745 = vmul.f32 %v4612, %v4612
  %v4746 = vmul.f32 %v4613, %v4613
  %v4747 = vmul.f32 %v4614, %v4614
  %v4748 = vmul.f32 %v4615, %v4615
  %v4749 = vmul.f32 %v4616, %v4616
  %v4750 = vmul.f32 %v4617, %v4617
  %v4751 = vmul.f32 %v4618, %v4618
  %v4752 = vmul.f32 %v4619, %v4619
  %v4753 = vmul.f32 %v4620, %v4620
  %v4754 = vmul.f32 %v4621, %v4621
  %v4755 = vmul.f32 %v4622, %v4622
  %v4756 = vmul.f32 %v4623, %v4623
  %v4757 = vmul.f32 %v4624, %v4624
  %v4758 = vmul.f32 %v4625, %v4625
  %v4759 = vmul.f32 %v4626, %v4626
  %v4760 = vmul.f32 %v4627, %v4627
  %v4761 = vmul.f32 %v4628, %v4628
  %v4762 = vmul.f32 %v4629, %v4629
  %v4763 = vmul.f32 %v4630, %v4630
  %v4764 = vmul.f32 %v4631, %v4631
  %v4765 = vmul.f32 %v4632, %v4632
  %v4766 = vmul.f32 %v4633, %v4633
  %v4767 = vmul.f32 %v4634, %v4634
  %v4768 = vmul.f32 %v4635, %v4635
  %v4769 = vmul.f32 %v4636, %v4636
  %v4770 = vmul.f32 %v4637, %v4637
  %v4771 = vmul.f32 %v4638, %v4638
  %v4772 = vmul.f32 %v4639, %v4639
  %v4773 = vmul.f32 %v4640, %v4640
  %v4774 = vmul.f32 %v4641, %v4641
  %v4775 = vmul.f32 %v4642, %v4642
  %v4776 = vmul.f32 %v4643, %v4643
  %v4777 = vmul.f32 %v4644, %v4644
  %v4778 = vmul.f32 %v4645, %v4645
  %v4779 = vmul.f32 %v4646, %v4646
  %v4780 = vmul.f32 %v4647, %v4647
  %v4781 = vmul.f32 %v4648, %v4648
  %v4782 = vmul.f32 %v4649, %v4649
  %v4783 = vmul.f32 %v4650, %v4650
  %v4784 = vmul.f32 %v4651, %v4651
  %v4785 = vmul.f32 %v4652, %v4652
  %v4786 = vmul.f32 %v4653, %v4653
  %v4787 = vmul.f32 %v4654, %v4654
  %v4788 = vmul.f32 %v4655, %v4655
  %v4789 = vmul.f32 %v4656, %v4656
  %v4790 = vmul.f32 %v4657, %v4657
  %v4791 = vmul.f32 %v4658, %v4658
  %v4792 = vmul.f32 %v4659, %v4659
  %v4793 = vmul.f32 %v4660, %v4660
  %v4794 = vmul.f32 %v4661, %v4661
  %v4795 = vmul.f32 %v4662, %v4662
  %v4796 = vmul.f32 %v4663, %v4663
  %v4797 = vmul.f32 %v4664, %v4664
  %v4798 = vmul.f32 %v4665, %v4665
  %v4799 = vmul.f32 %v4666, %v4666
  %v4800 = vmul.f32 %v4667, %v4667
  %v4801 = vmul.f32 %v4668, %v4668
  %v4802 = vmul.f32 %v4669, %v4669
  %v4803 = vmul.f32 %v4670, %v4670
  %v4804 = vmul.f32 %v4671, %v4671
  %v4805 = vadd.f32 %v4741, %v4742
  %v4806 = vadd.f32 %v4805, %v4743
  %v4807 = vadd.f32 %v4806, %v4744
  %v4808 = vadd.f32 %v4807, %v4745
  %v4809 = vadd.f32 %v4808, %v4746
  %v4810 = vadd.f32 %v4809, %v4747
  %v4811 = vadd.f32 %v4810, %v4748
  %v4812 = vadd.f32 %v4811, %v4749
  %v4813 = vadd.f32 %v4812, %v4750
  %v4814 = vadd.f32 %v4813, %v4751
  %v4815 = vadd.f32 %v4814, %v4752
  %v4816 = vadd.f32 %v4815, %v4753
  %v4817 = vadd.f32 %v4816, %v4754
  %v4818 = vadd.f32 %v4817, %v4755
  %v4819 = vadd.f32 %v4818, %v4756
  %v4820 = vadd.f32 %v4819, %v4757
  %v4821 = vadd.f32 %v4820, %v4758
  %v4822 = vadd.f32 %v4821, %v4759
  %v4823 = vadd.f32 %v4822, %v4760
  %v4824 = vadd.f32 %v4823, %v4761
  %v4825 = vadd.f32 %v4824, %v4762
  %v4826 = vadd.f32 %v4825, %v4763
  %v4827 = vadd.f32 %v4826, %v4764
  %v4828 = vadd.f32 %v4827, %v4765
  %v4829 = vadd.f32 %v4828, %v4766
  %v4830 = vadd.f32 %v4829, %v4767
  %v4831 = vadd.f32 %v4830, %v4768
  %v4832 = vadd.f32 %v4831, %v4769
  %v4833 = vadd.f32 %v4832, %v4770
  %v4834 = vadd.f32 %v4833, %v4771
  %v4835 = vadd.f32 %v4834, %v4772
  %v4836 = vadd.f32 %v4835, %v4773
  %v4837 = vadd.f32 %v4836, %v4774
  %v4838 = vadd.f32 %v4837, %v4775
  %v4839 = vadd.f32 %v4838, %v4776
  %v4840 = vadd.f32 %v4839, %v4777
  %v4841 = vadd.f32 %v4840, %v4778
  %v4842 = vadd.f32 %v4841, %v4779
  %v4843 = vadd.f32 %v4842, %v4780
  %v4844 = vadd.f32 %v4843, %v4781
  %v4845 = vadd.f32 %v4844, %v4782
  %v4846 = vadd.f32 %v4845, %v4783
  %v4847 = vadd.f32 %v4846, %v4784
  %v4848 = vadd.f32 %v4847, %v4785
  %v4849 = vadd.f32 %v4848, %v4786
  %v4850 = vadd.f32 %v4849, %v4787
  %v4851 = vadd.f32 %v4850, %v4788
  %v4852 = vadd.f32 %v4851, %v4789
  %v4853 = vadd.f32 %v4852, %v4790
  %v4854 = vadd.f32 %v4853, %v4791
  %v4855 = vadd.f32 %v4854, %v4792
  %v4856 = vadd.f32 %v4855, %v4793
  %v4857 = vadd.f32 %v4856, %v4794
  %v4858 = vadd.f32 %v4857, %v4795
  %v4859 = vadd.f32 %v4858, %v4796
  %v4860 = vadd.f32 %v4859, %v4797
  %v4861 = vadd.f32 %v4860, %v4798
  %v4862 = vadd.f32 %v4861, %v4799
  %v4863 = vadd.f32 %v4862, %v4800
  %v4864 = vadd.f32 %v4863, %v4801
  %v4865 = vadd.f32 %v4864, %v4802
  %v4866 = vadd.f32 %v4865, %v4803
  %v4867 = vadd.f32 %v4866, %v4804
  %v4868 = vrot.slane %v4867, 4
  %v4869 = vadd.f32 %v4867, %v4868
  %v4870 = vrot.slane %v4869, 2
  %v4871 = vadd.f32 %v4869, %v4870
  %v4872 = vrot.slane %v4871, 1
  %v4873 = vadd.f32 %v4871, %v4872
  %v4874 = vmul.f32 %v4740, 0.001953125
  %v4875 = vmul.f32 %v4873, 0.001953125
  %v4876 = vmul.f32 %v4874, %v4874
  %v4877 = vsub.f32 %v4875, %v4876
  %v4878 = vmax.f32 %v4877, 0.0
  %v4879 = vld [vmem:[%s4] sm:$0x1]
  %v4880 = vadd.f32 %v4878, 1e-05
  %v4881 = vrsqrt.pop %v4880
  %v4882 = vmul.f32 %v4879, %v4881
  %v4883 = vld [vmem:[%s5] sm:$0x1]
  %v4884 = vmul.f32 %v4874, %v4882
  %v4885 = vsub.f32 %v4883, %v4884
  %v4887 = vlaneseq
  %v4888 = vshrl.u32 %v4887, 7
  %v4889 = vsub.s32 0, %v4888
  %v4890 = vrot.slane %v4882, %v4889
  %v4892 = vmul.f32 %v4608, %v4890
  %v4893 = vmul.f32 %v4609, %v4890
  %v4894 = vmul.f32 %v4610, %v4890
  %v4895 = vmul.f32 %v4611, %v4890
  %v4896 = vmul.f32 %v4612, %v4890
  %v4897 = vmul.f32 %v4613, %v4890
  %v4898 = vmul.f32 %v4614, %v4890
  %v4899 = vmul.f32 %v4615, %v4890
  %v4900 = vmul.f32 %v4616, %v4890
  %v4901 = vmul.f32 %v4617, %v4890
  %v4902 = vmul.f32 %v4618, %v4890
  %v4903 = vmul.f32 %v4619, %v4890
  %v4904 = vmul.f32 %v4620, %v4890
  %v4905 = vmul.f32 %v4621, %v4890
  %v4906 = vmul.f32 %v4622, %v4890
  %v4907 = vmul.f32 %v4623, %v4890
  %v4908 = vmul.f32 %v4624, %v4890
  %v4909 = vmul.f32 %v4625, %v4890
  %v4910 = vmul.f32 %v4626, %v4890
  %v4911 = vmul.f32 %v4627, %v4890
  %v4912 = vmul.f32 %v4628, %v4890
  %v4913 = vmul.f32 %v4629, %v4890
  %v4914 = vmul.f32 %v4630, %v4890
  %v4915 = vmul.f32 %v4631, %v4890
  %v4916 = vmul.f32 %v4632, %v4890
  %v4917 = vmul.f32 %v4633, %v4890
  %v4918 = vmul.f32 %v4634, %v4890
  %v4919 = vmul.f32 %v4635, %v4890
  %v4920 = vmul.f32 %v4636, %v4890
  %v4921 = vmul.f32 %v4637, %v4890
  %v4922 = vmul.f32 %v4638, %v4890
  %v4923 = vmul.f32 %v4639, %v4890
  %v4924 = vmul.f32 %v4640, %v4890
  %v4925 = vmul.f32 %v4641, %v4890
  %v4926 = vmul.f32 %v4642, %v4890
  %v4927 = vmul.f32 %v4643, %v4890
  %v4928 = vmul.f32 %v4644, %v4890
  %v4929 = vmul.f32 %v4645, %v4890
  %v4930 = vmul.f32 %v4646, %v4890
  %v4931 = vmul.f32 %v4647, %v4890
  %v4932 = vmul.f32 %v4648, %v4890
  %v4933 = vmul.f32 %v4649, %v4890
  %v4934 = vmul.f32 %v4650, %v4890
  %v4935 = vmul.f32 %v4651, %v4890
  %v4936 = vmul.f32 %v4652, %v4890
  %v4937 = vmul.f32 %v4653, %v4890
  %v4938 = vmul.f32 %v4654, %v4890
  %v4939 = vmul.f32 %v4655, %v4890
  %v4940 = vmul.f32 %v4656, %v4890
  %v4941 = vmul.f32 %v4657, %v4890
  %v4942 = vmul.f32 %v4658, %v4890
  %v4943 = vmul.f32 %v4659, %v4890
  %v4944 = vmul.f32 %v4660, %v4890
  %v4945 = vmul.f32 %v4661, %v4890
  %v4946 = vmul.f32 %v4662, %v4890
  %v4947 = vmul.f32 %v4663, %v4890
  %v4948 = vmul.f32 %v4664, %v4890
  %v4949 = vmul.f32 %v4665, %v4890
  %v4950 = vmul.f32 %v4666, %v4890
  %v4951 = vmul.f32 %v4667, %v4890
  %v4952 = vmul.f32 %v4668, %v4890
  %v4953 = vmul.f32 %v4669, %v4890
  %v4954 = vmul.f32 %v4670, %v4890
  %v4955 = vmul.f32 %v4671, %v4890
  %v4957 = vlaneseq
  %v4958 = vshrl.u32 %v4957, 7
  %v4959 = vsub.s32 0, %v4958
  %v4960 = vrot.slane %v4885, %v4959
  %v4962 = vadd.f32 %v4892, %v4960
  %v4963 = vadd.f32 %v4893, %v4960
  %v4964 = vadd.f32 %v4894, %v4960
  %v4965 = vadd.f32 %v4895, %v4960
  %v4966 = vadd.f32 %v4896, %v4960
  %v4967 = vadd.f32 %v4897, %v4960
  %v4968 = vadd.f32 %v4898, %v4960
  %v4969 = vadd.f32 %v4899, %v4960
  %v4970 = vadd.f32 %v4900, %v4960
  %v4971 = vadd.f32 %v4901, %v4960
  %v4972 = vadd.f32 %v4902, %v4960
  %v4973 = vadd.f32 %v4903, %v4960
  %v4974 = vadd.f32 %v4904, %v4960
  %v4975 = vadd.f32 %v4905, %v4960
  %v4976 = vadd.f32 %v4906, %v4960
  %v4977 = vadd.f32 %v4907, %v4960
  %v4978 = vadd.f32 %v4908, %v4960
  %v4979 = vadd.f32 %v4909, %v4960
  %v4980 = vadd.f32 %v4910, %v4960
  %v4981 = vadd.f32 %v4911, %v4960
  %v4982 = vadd.f32 %v4912, %v4960
  %v4983 = vadd.f32 %v4913, %v4960
  %v4984 = vadd.f32 %v4914, %v4960
  %v4985 = vadd.f32 %v4915, %v4960
  %v4986 = vadd.f32 %v4916, %v4960
  %v4987 = vadd.f32 %v4917, %v4960
  %v4988 = vadd.f32 %v4918, %v4960
  %v4989 = vadd.f32 %v4919, %v4960
  %v4990 = vadd.f32 %v4920, %v4960
  %v4991 = vadd.f32 %v4921, %v4960
  %v4992 = vadd.f32 %v4922, %v4960
  %v4993 = vadd.f32 %v4923, %v4960
  %v4994 = vadd.f32 %v4924, %v4960
  %v4995 = vadd.f32 %v4925, %v4960
  %v4996 = vadd.f32 %v4926, %v4960
  %v4997 = vadd.f32 %v4927, %v4960
  %v4998 = vadd.f32 %v4928, %v4960
  %v4999 = vadd.f32 %v4929, %v4960
  %v5000 = vadd.f32 %v4930, %v4960
  %v5001 = vadd.f32 %v4931, %v4960
  %v5002 = vadd.f32 %v4932, %v4960
  %v5003 = vadd.f32 %v4933, %v4960
  %v5004 = vadd.f32 %v4934, %v4960
  %v5005 = vadd.f32 %v4935, %v4960
  %v5006 = vadd.f32 %v4936, %v4960
  %v5007 = vadd.f32 %v4937, %v4960
  %v5008 = vadd.f32 %v4938, %v4960
  %v5009 = vadd.f32 %v4939, %v4960
  %v5010 = vadd.f32 %v4940, %v4960
  %v5011 = vadd.f32 %v4941, %v4960
  %v5012 = vadd.f32 %v4942, %v4960
  %v5013 = vadd.f32 %v4943, %v4960
  %v5014 = vadd.f32 %v4944, %v4960
  %v5015 = vadd.f32 %v4945, %v4960
  %v5016 = vadd.f32 %v4946, %v4960
  %v5017 = vadd.f32 %v4947, %v4960
  %v5018 = vadd.f32 %v4948, %v4960
  %v5019 = vadd.f32 %v4949, %v4960
  %v5020 = vadd.f32 %v4950, %v4960
  %v5021 = vadd.f32 %v4951, %v4960
  %v5022 = vadd.f32 %v4952, %v4960
  %v5023 = vadd.f32 %v4953, %v4960
  %v5024 = vadd.f32 %v4954, %v4960
  %v5025 = vadd.f32 %v4955, %v4960
  %v5026 = vmax.f32 %v4962, 0.0
  %v5027 = vmax.f32 %v4963, 0.0
  %v5028 = vmax.f32 %v4964, 0.0
  %v5029 = vmax.f32 %v4965, 0.0
  %v5030 = vmax.f32 %v4966, 0.0
  %v5031 = vmax.f32 %v4967, 0.0
  %v5032 = vmax.f32 %v4968, 0.0
  %v5033 = vmax.f32 %v4969, 0.0
  %v5034 = vmax.f32 %v4970, 0.0
  %v5035 = vmax.f32 %v4971, 0.0
  %v5036 = vmax.f32 %v4972, 0.0
  %v5037 = vmax.f32 %v4973, 0.0
  %v5038 = vmax.f32 %v4974, 0.0
  %v5039 = vmax.f32 %v4975, 0.0
  %v5040 = vmax.f32 %v4976, 0.0
  %v5041 = vmax.f32 %v4977, 0.0
  %v5042 = vmax.f32 %v4978, 0.0
  %v5043 = vmax.f32 %v4979, 0.0
  %v5044 = vmax.f32 %v4980, 0.0
  %v5045 = vmax.f32 %v4981, 0.0
  %v5046 = vmax.f32 %v4982, 0.0
  %v5047 = vmax.f32 %v4983, 0.0
  %v5048 = vmax.f32 %v4984, 0.0
  %v5049 = vmax.f32 %v4985, 0.0
  %v5050 = vmax.f32 %v4986, 0.0
  %v5051 = vmax.f32 %v4987, 0.0
  %v5052 = vmax.f32 %v4988, 0.0
  %v5053 = vmax.f32 %v4989, 0.0
  %v5054 = vmax.f32 %v4990, 0.0
  %v5055 = vmax.f32 %v4991, 0.0
  %v5056 = vmax.f32 %v4992, 0.0
  %v5057 = vmax.f32 %v4993, 0.0
  %v5058 = vmax.f32 %v4994, 0.0
  %v5059 = vmax.f32 %v4995, 0.0
  %v5060 = vmax.f32 %v4996, 0.0
  %v5061 = vmax.f32 %v4997, 0.0
  %v5062 = vmax.f32 %v4998, 0.0
  %v5063 = vmax.f32 %v4999, 0.0
  %v5064 = vmax.f32 %v5000, 0.0
  %v5065 = vmax.f32 %v5001, 0.0
  %v5066 = vmax.f32 %v5002, 0.0
  %v5067 = vmax.f32 %v5003, 0.0
  %v5068 = vmax.f32 %v5004, 0.0
  %v5069 = vmax.f32 %v5005, 0.0
  %v5070 = vmax.f32 %v5006, 0.0
  %v5071 = vmax.f32 %v5007, 0.0
  %v5072 = vmax.f32 %v5008, 0.0
  %v5073 = vmax.f32 %v5009, 0.0
  %v5074 = vmax.f32 %v5010, 0.0
  %v5075 = vmax.f32 %v5011, 0.0
  %v5076 = vmax.f32 %v5012, 0.0
  %v5077 = vmax.f32 %v5013, 0.0
  %v5078 = vmax.f32 %v5014, 0.0
  %v5079 = vmax.f32 %v5015, 0.0
  %v5080 = vmax.f32 %v5016, 0.0
  %v5081 = vmax.f32 %v5017, 0.0
  %v5082 = vmax.f32 %v5018, 0.0
  %v5083 = vmax.f32 %v5019, 0.0
  %v5084 = vmax.f32 %v5020, 0.0
  %v5085 = vmax.f32 %v5021, 0.0
  %v5086 = vmax.f32 %v5022, 0.0
  %v5087 = vmax.f32 %v5023, 0.0
  %v5088 = vmax.f32 %v5024, 0.0
  %v5089 = vmax.f32 %v5025, 0.0
  %5090 = vst [vmem:[#allocation2] sm:$0xff] 0.0
  %5091 = vst [vmem:[#allocation2 + $0x8] sm:$0xff] 0.0
  %5092 = vst [vmem:[#allocation2 + $0x10] sm:$0x3] 0.0
  %5093 = vst [vmem:[#allocation2 + $0x1b0] sm:$0xff] 0.0
  %5094 = vst [vmem:[#allocation2 + $0x1b8] sm:$0xff] 0.0
  %5095 = vst [vmem:[#allocation2 + $0x1c0] sm:$0x3] 0.0
  %s5096 = scalar_lea.vmem [#allocation2], 408
  %5097 = vst [vmem:[%s5096] sm:$0xff] 0.0
  %5098 = vst [vmem:[%s5096 + $0x8] sm:$0xff] 0.0
  %5099 = vst [vmem:[%s5096 + $0x10] sm:$0x3] 0.0
  %5100 = vst [vmem:[%s5096 + $0x1b0] sm:$0xff] 0.0
  %5101 = vst [vmem:[%s5096 + $0x1b8] sm:$0xff] 0.0
  %5102 = vst [vmem:[%s5096 + $0x1c0] sm:$0x3] 0.0
  %5103 = vst [vmem:[#allocation2] sm:$0x1] 0.0
  %5104 = vst [vmem:[#allocation2 + $0x18] sm:$0x1] 0.0
  %5105 = vst [vmem:[#allocation2 + $0x30] sm:$0x1] 0.0
  %5106 = vst [vmem:[#allocation2 + $0x48] sm:$0x1] 0.0
  %5107 = vst [vmem:[#allocation2 + $0x60] sm:$0x1] 0.0
  %5108 = vst [vmem:[#allocation2 + $0x78] sm:$0x1] 0.0
  %5109 = vst [vmem:[#allocation2 + $0x90] sm:$0x1] 0.0
  %5110 = vst [vmem:[#allocation2 + $0xa8] sm:$0x1] 0.0
  %5111 = vst [vmem:[#allocation2 + $0xc0] sm:$0x1] 0.0
  %5112 = vst [vmem:[#allocation2 + $0xd8] sm:$0x1] 0.0
  %5113 = vst [vmem:[#allocation2 + $0xf0] sm:$0x1] 0.0
  %5114 = vst [vmem:[#allocation2 + $0x108] sm:$0x1] 0.0
  %5115 = vst [vmem:[#allocation2 + $0x120] sm:$0x1] 0.0
  %5116 = vst [vmem:[#allocation2 + $0x138] sm:$0x1] 0.0
  %5117 = vst [vmem:[#allocation2 + $0x150] sm:$0x1] 0.0
  %5118 = vst [vmem:[#allocation2 + $0x168] sm:$0x1] 0.0
  %5119 = vst [vmem:[#allocation2 + $0x180] sm:$0x1] 0.0
  %5120 = vst [vmem:[#allocation2 + $0x198] sm:$0x1] 0.0
  %5121 = vst [vmem:[#allocation2 + $0x1b0] sm:$0x1] 0.0
  %5122 = vst [vmem:[#allocation2 + $0x1c8] sm:$0x1] 0.0
  %5123 = vst [vmem:[#allocation2 + $0x1e0] sm:$0x1] 0.0
  %5124 = vst [vmem:[#allocation2 + $0x1f8] sm:$0x1] 0.0
  %5125 = vst [vmem:[#allocation2 + $0x210] sm:$0x1] 0.0
  %5126 = vst [vmem:[#allocation2 + $0x228] sm:$0x1] 0.0
  %5127 = vst [vmem:[#allocation2 + $0x240] sm:$0x1] 0.0
  %5128 = vst [vmem:[#allocation2 + $0x258] sm:$0x1] 0.0
  %5129 = vst [vmem:[#allocation2 + $0x270] sm:$0x1] 0.0
  %5130 = vst [vmem:[#allocation2 + $0x288] sm:$0x1] 0.0
  %5131 = vst [vmem:[#allocation2 + $0x2a0] sm:$0x1] 0.0
  %5132 = vst [vmem:[#allocation2 + $0x2b8] sm:$0x1] 0.0
  %5133 = vst [vmem:[#allocation2 + $0x2d0] sm:$0x1] 0.0
  %5134 = vst [vmem:[#allocation2 + $0x2e8] sm:$0x1] 0.0
  %5135 = vst [vmem:[#allocation2 + $0x300] sm:$0x1] 0.0
  %5136 = vst [vmem:[#allocation2 + $0x318] sm:$0x1] 0.0
  %5137 = vst [vmem:[#allocation2 + $0x330] sm:$0x1] 0.0
  %5138 = vst [vmem:[#allocation2 + $0x348] sm:$0x1] 0.0
  %5139 = vst [vmem:[#allocation2 + $0x11] sm:$0x1] 0.0
  %5140 = vst [vmem:[#allocation2 + $0x29] sm:$0x1] 0.0
  %5141 = vst [vmem:[#allocation2 + $0x41] sm:$0x1] 0.0
  %5142 = vst [vmem:[#allocation2 + $0x59] sm:$0x1] 0.0
  %5143 = vst [vmem:[#allocation2 + $0x71] sm:$0x1] 0.0
  %5144 = vst [vmem:[#allocation2 + $0x89] sm:$0x1] 0.0
  %5145 = vst [vmem:[#allocation2 + $0xa1] sm:$0x1] 0.0
  %5146 = vst [vmem:[#allocation2 + $0xb9] sm:$0x1] 0.0
  %5147 = vst [vmem:[#allocation2 + $0xd1] sm:$0x1] 0.0
  %5148 = vst [vmem:[#allocation2 + $0xe9] sm:$0x1] 0.0
  %5149 = vst [vmem:[#allocation2 + $0x101] sm:$0x1] 0.0
  %5150 = vst [vmem:[#allocation2 + $0x119] sm:$0x1] 0.0
  %5151 = vst [vmem:[#allocation2 + $0x131] sm:$0x1] 0.0
  %5152 = vst [vmem:[#allocation2 + $0x149] sm:$0x1] 0.0
  %5153 = vst [vmem:[#allocation2 + $0x161] sm:$0x1] 0.0
  %5154 = vst [vmem:[#allocation2 + $0x179] sm:$0x1] 0.0
  %5155 = vst [vmem:[#allocation2 + $0x191] sm:$0x1] 0.0
  %5156 = vst [vmem:[#allocation2 + $0x1a9] sm:$0x1] 0.0
  %5157 = vst [vmem:[#allocation2 + $0x1c1] sm:$0x1] 0.0
  %5158 = vst [vmem:[#allocation2 + $0x1d9] sm:$0x1] 0.0
  %5159 = vst [vmem:[#allocation2 + $0x1f1] sm:$0x1] 0.0
  %5160 = vst [vmem:[#allocation2 + $0x209] sm:$0x1] 0.0
  %5161 = vst [vmem:[#allocation2 + $0x221] sm:$0x1] 0.0
  %5162 = vst [vmem:[#allocation2 + $0x239] sm:$0x1] 0.0
  %5163 = vst [vmem:[#allocation2 + $0x251] sm:$0x1] 0.0
  %5164 = vst [vmem:[#allocation2 + $0x269] sm:$0x1] 0.0
  %5165 = vst [vmem:[#allocation2 + $0x281] sm:$0x1] 0.0
  %5166 = vst [vmem:[#allocation2 + $0x299] sm:$0x1] 0.0
  %5167 = vst [vmem:[#allocation2 + $0x2b1] sm:$0x1] 0.0
  %5168 = vst [vmem:[#allocation2 + $0x2c9] sm:$0x1] 0.0
  %5169 = vst [vmem:[#allocation2 + $0x2e1] sm:$0x1] 0.0
  %5170 = vst [vmem:[#allocation2 + $0x2f9] sm:$0x1] 0.0
  %5171 = vst [vmem:[#allocation2 + $0x311] sm:$0x1] 0.0
  %5172 = vst [vmem:[#allocation2 + $0x329] sm:$0x1] 0.0
  %5173 = vst [vmem:[#allocation2 + $0x341] sm:$0x1] 0.0
  %5174 = vst [vmem:[#allocation2 + $0x359] sm:$0x1] 0.0
  %s5175 = scalar_lea.vmem [#allocation2], 24
  %5176 = vst [vmem:[%s5175 + $0x1] sm:$0xff] %v5026
  %5177 = vst [vmem:[%s5175 + $0x9] sm:$0xff] %v5027
  %5178 = vst [vmem:[%s5175 + $0x19] sm:$0xff] %v5028
  %5179 = vst [vmem:[%s5175 + $0x21] sm:$0xff] %v5029
  %5180 = vst [vmem:[%s5175 + $0x31] sm:$0xff] %v5030
  %5181 = vst [vmem:[%s5175 + $0x39] sm:$0xff] %v5031
  %5182 = vst [vmem:[%s5175 + $0x49] sm:$0xff] %v5032
  %5183 = vst [vmem:[%s5175 + $0x51] sm:$0xff] %v5033
  %5184 = vst [vmem:[%s5175 + $0x61] sm:$0xff] %v5034
  %5185 = vst [vmem:[%s5175 + $0x69] sm:$0xff] %v5035
  %5186 = vst [vmem:[%s5175 + $0x79] sm:$0xff] %v5036
  %5187 = vst [vmem:[%s5175 + $0x81] sm:$0xff] %v5037
  %5188 = vst [vmem:[%s5175 + $0x91] sm:$0xff] %v5038
  %5189 = vst [vmem:[%s5175 + $0x99] sm:$0xff] %v5039
  %5190 = vst [vmem:[%s5175 + $0xa9] sm:$0xff] %v5040
  %5191 = vst [vmem:[%s5175 + $0xb1] sm:$0xff] %v5041
  %5192 = vst [vmem:[%s5175 + $0xc1] sm:$0xff] %v5042
  %5193 = vst [vmem:[%s5175 + $0xc9] sm:$0xff] %v5043
  %5194 = vst [vmem:[%s5175 + $0xd9] sm:$0xff] %v5044
  %5195 = vst [vmem:[%s5175 + $0xe1] sm:$0xff] %v5045
  %5196 = vst [vmem:[%s5175 + $0xf1] sm:$0xff] %v5046
  %5197 = vst [vmem:[%s5175 + $0xf9] sm:$0xff] %v5047
  %5198 = vst [vmem:[%s5175 + $0x109] sm:$0xff] %v5048
  %5199 = vst [vmem:[%s5175 + $0x111] sm:$0xff] %v5049
  %5200 = vst [vmem:[%s5175 + $0x121] sm:$0xff] %v5050
  %5201 = vst [vmem:[%s5175 + $0x129] sm:$0xff] %v5051
  %5202 = vst [vmem:[%s5175 + $0x139] sm:$0xff] %v5052
  %5203 = vst [vmem:[%s5175 + $0x141] sm:$0xff] %v5053
  %5204 = vst [vmem:[%s5175 + $0x151] sm:$0xff] %v5054
  %5205 = vst [vmem:[%s5175 + $0x159] sm:$0xff] %v5055
  %5206 = vst [vmem:[%s5175 + $0x169] sm:$0xff] %v5056
  %5207 = vst [vmem:[%s5175 + $0x171] sm:$0xff] %v5057
  %5208 = vst [vmem:[%s5175 + $0x1b1] sm:$0xff] %v5058
  %5209 = vst [vmem:[%s5175 + $0x1b9] sm:$0xff] %v5059
  %5210 = vst [vmem:[%s5175 + $0x1c9] sm:$0xff] %v5060
  %5211 = vst [vmem:[%s5175 + $0x1d1] sm:$0xff] %v5061
  %5212 = vst [vmem:[%s5175 + $0x1e1] sm:$0xff] %v5062
  %5213 = vst [vmem:[%s5175 + $0x1e9] sm:$0xff] %v5063
  %5214 = vst [vmem:[%s5175 + $0x1f9] sm:$0xff] %v5064
  %5215 = vst [vmem:[%s5175 + $0x201] sm:$0xff] %v5065
  %5216 = vst [vmem:[%s5175 + $0x211] sm:$0xff] %v5066
  %5217 = vst [vmem:[%s5175 + $0x219] sm:$0xff] %v5067
  %5218 = vst [vmem:[%s5175 + $0x229] sm:$0xff] %v5068
  %5219 = vst [vmem:[%s5175 + $0x231] sm:$0xff] %v5069
  %5220 = vst [vmem:[%s5175 + $0x241] sm:$0xff] %v5070
  %5221 = vst [vmem:[%s5175 + $0x249] sm:$0xff] %v5071
  %5222 = vst [vmem:[%s5175 + $0x259] sm:$0xff] %v5072
  %5223 = vst [vmem:[%s5175 + $0x261] sm:$0xff] %v5073
  %5224 = vst [vmem:[%s5175 + $0x271] sm:$0xff] %v5074
  %5225 = vst [vmem:[%s5175 + $0x279] sm:$0xff] %v5075
  %5226 = vst [vmem:[%s5175 + $0x289] sm:$0xff] %v5076
  %5227 = vst [vmem:[%s5175 + $0x291] sm:$0xff] %v5077
  %5228 = vst [vmem:[%s5175 + $0x2a1] sm:$0xff] %v5078
  %5229 = vst [vmem:[%s5175 + $0x2a9] sm:$0xff] %v5079
  %5230 = vst [vmem:[%s5175 + $0x2b9] sm:$0xff] %v5080
  %5231 = vst [vmem:[%s5175 + $0x2c1] sm:$0xff] %v5081
  %5232 = vst [vmem:[%s5175 + $0x2d1] sm:$0xff] %v5082
  %5233 = vst [vmem:[%s5175 + $0x2d9] sm:$0xff] %v5083
  %5234 = vst [vmem:[%s5175 + $0x2e9] sm:$0xff] %v5084
  %5235 = vst [vmem:[%s5175 + $0x2f1] sm:$0xff] %v5085
  %5236 = vst [vmem:[%s5175 + $0x301] sm:$0xff] %v5086
  %5237 = vst [vmem:[%s5175 + $0x309] sm:$0xff] %v5087
  %5238 = vst [vmem:[%s5175 + $0x319] sm:$0xff] %v5088
  %5239 = vst [vmem:[%s5175 + $0x321] sm:$0xff] %v5089
  %v5240 = vld [vmem:[#allocation2] sm:$0xff]
  %v5241 = vld [vmem:[#allocation2 + $0x8] sm:$0xff]
  %v5242 = vld [vmem:[#allocation2 + $0x18] sm:$0xff]
  %v5243 = vld [vmem:[#allocation2 + $0x20] sm:$0xff]
  %v5244 = vld [vmem:[#allocation2 + $0x30] sm:$0xff]
  %v5245 = vld [vmem:[#allocation2 + $0x38] sm:$0xff]
  %v5246 = vld [vmem:[#allocation2 + $0x48] sm:$0xff]
  %v5247 = vld [vmem:[#allocation2 + $0x50] sm:$0xff]
  %v5248 = vld [vmem:[#allocation2 + $0x60] sm:$0xff]
  %v5249 = vld [vmem:[#allocation2 + $0x68] sm:$0xff]
  %v5250 = vld [vmem:[#allocation2 + $0x78] sm:$0xff]
  %v5251 = vld [vmem:[#allocation2 + $0x80] sm:$0xff]
  %v5252 = vld [vmem:[#allocation2 + $0x90] sm:$0xff]
  %v5253 = vld [vmem:[#allocation2 + $0x98] sm:$0xff]
  %v5254 = vld [vmem:[#allocation2 + $0xa8] sm:$0xff]
  %v5255 = vld [vmem:[#allocation2 + $0xb0] sm:$0xff]
  %v5256 = vld [vmem:[#allocation2 + $0xc0] sm:$0xff]
  %v5257 = vld [vmem:[#allocation2 + $0xc8] sm:$0xff]
  %v5258 = vld [vmem:[#allocation2 + $0xd8] sm:$0xff]
  %v5259 = vld [vmem:[#allocation2 + $0xe0] sm:$0xff]
  %v5260 = vld [vmem:[#allocation2 + $0xf0] sm:$0xff]
  %v5261 = vld [vmem:[#allocation2 + $0xf8] sm:$0xff]
  %v5262 = vld [vmem:[#allocation2 + $0x108] sm:$0xff]
  %v5263 = vld [vmem:[#allocation2 + $0x110] sm:$0xff]
  %v5264 = vld [vmem:[#allocation2 + $0x120] sm:$0xff]
  %v5265 = vld [vmem:[#allocation2 + $0x128] sm:$0xff]
  %v5266 = vld [vmem:[#allocation2 + $0x138] sm:$0xff]
  %v5267 = vld [vmem:[#allocation2 + $0x140] sm:$0xff]
  %v5268 = vld [vmem:[#allocation2 + $0x150] sm:$0xff]
  %v5269 = vld [vmem:[#allocation2 + $0x158] sm:$0xff]
  %v5270 = vld [vmem:[#allocation2 + $0x168] sm:$0xff]
  %v5271 = vld [vmem:[#allocation2 + $0x170] sm:$0xff]
  %v5272 = vld [vmem:[#allocation2 + $0x1b0] sm:$0xff]
  %v5273 = vld [vmem:[#allocation2 + $0x1b8] sm:$0xff]
  %v5274 = vld [vmem:[#allocation2 + $0x1c8] sm:$0xff]
  %v5275 = vld [vmem:[#allocation2 + $0x1d0] sm:$0xff]
  %v5276 = vld [vmem:[#allocation2 + $0x1e0] sm:$0xff]
  %v5277 = vld [vmem:[#allocation2 + $0x1e8] sm:$0xff]
  %v5278 = vld [vmem:[#allocation2 + $0x1f8] sm:$0xff]
  %v5279 = vld [vmem:[#allocation2 + $0x200] sm:$0xff]
  %v5280 = vld [vmem:[#allocation2 + $0x210] sm:$0xff]
  %v5281 = vld [vmem:[#allocation2 + $0x218] sm:$0xff]
  %v5282 = vld [vmem:[#allocation2 + $0x228] sm:$0xff]
  %v5283 = vld [vmem:[#allocation2 + $0x230] sm:$0xff]
  %v5284 = vld [vmem:[#allocation2 + $0x240] sm:$0xff]
  %v5285 = vld [vmem:[#allocation2 + $0x248] sm:$0xff]
  %v5286 = vld [vmem:[#allocation2 + $0x258] sm:$0xff]
  %v5287 = vld [vmem:[#allocation2 + $0x260] sm:$0xff]
  %v5288 = vld [vmem:[#allocation2 + $0x270] sm:$0xff]
  %v5289 = vld [vmem:[#allocation2 + $0x278] sm:$0xff]
  %v5290 = vld [vmem:[#allocation2 + $0x288] sm:$0xff]
  %v5291 = vld [vmem:[#allocation2 + $0x290] sm:$0xff]
  %v5292 = vld [vmem:[#allocation2 + $0x2a0] sm:$0xff]
  %v5293 = vld [vmem:[#allocation2 + $0x2a8] sm:$0xff]
  %v5294 = vld [vmem:[#allocation2 + $0x2b8] sm:$0xff]
  %v5295 = vld [vmem:[#allocation2 + $0x2c0] sm:$0xff]
  %v5296 = vld [vmem:[#allocation2 + $0x2d0] sm:$0xff]
  %v5297 = vld [vmem:[#allocation2 + $0x2d8] sm:$0xff]
  %v5298 = vld [vmem:[#allocation2 + $0x2e8] sm:$0xff]
  %v5299 = vld [vmem:[#allocation2 + $0x2f0] sm:$0xff]
  %v5300 = vld [vmem:[#allocation2 + $0x300] sm:$0xff]
  %v5301 = vld [vmem:[#allocation2 + $0x308] sm:$0xff]
  %v5302 = vld [vmem:[#allocation2 + $0x318] sm:$0xff]
  %v5303 = vld [vmem:[#allocation2 + $0x320] sm:$0xff]
  %v5304 = vld [vmem:[%s3] sm:$0xff]
  %v5305 = vld [vmem:[%s3 + $0x8] sm:$0xff]
  %v5306 = vld [vmem:[%s3 + $0x10] sm:$0xff]
  %v5307 = vld [vmem:[%s3 + $0x18] sm:$0xff]
  %v5308 = vld [vmem:[%s3 + $0x20] sm:$0xff]
  %v5309 = vld [vmem:[%s3 + $0x28] sm:$0xff]
  %v5310 = vld [vmem:[%s3 + $0x30] sm:$0xff]
  %v5311 = vld [vmem:[%s3 + $0x38] sm:$0xff]
  %v5312 = vld [vmem:[%s3 + $0x40] sm:$0xff]
  %v5313 = vld [vmem:[%s3 + $0x48] sm:$0xff]
  %v5314 = vld [vmem:[%s3 + $0x50] sm:$0xff]
  %v5315 = vld [vmem:[%s3 + $0x58] sm:$0xff]
  %v5316 = vld [vmem:[%s3 + $0x60] sm:$0xff]
  %v5317 = vld [vmem:[%s3 + $0x68] sm:$0xff]
  %v5318 = vld [vmem:[%s3 + $0x70] sm:$0xff]
  %v5319 = vld [vmem:[%s3 + $0x78] sm:$0xff]
  %v5320 = vld [vmem:[#allocation2 + $0x1] sm:$0xff]
  %v5321 = vld [vmem:[#allocation2 + $0x9] sm:$0xff]
  %v5322 = vld [vmem:[#allocation2 + $0x19] sm:$0xff]
  %v5323 = vld [vmem:[#allocation2 + $0x21] sm:$0xff]
  %v5324 = vld [vmem:[#allocation2 + $0x31] sm:$0xff]
  %v5325 = vld [vmem:[#allocation2 + $0x39] sm:$0xff]
  %v5326 = vld [vmem:[#allocation2 + $0x49] sm:$0xff]
  %v5327 = vld [vmem:[#allocation2 + $0x51] sm:$0xff]
  %v5328 = vld [vmem:[#allocation2 + $0x61] sm:$0xff]
  %v5329 = vld [vmem:[#allocation2 + $0x69] sm:$0xff]
  %v5330 = vld [vmem:[#allocation2 + $0x79] sm:$0xff]
  %v5331 = vld [vmem:[#allocation2 + $0x81] sm:$0xff]
  %v5332 = vld [vmem:[#allocation2 + $0x91] sm:$0xff]
  %v5333 = vld [vmem:[#allocation2 + $0x99] sm:$0xff]
  %v5334 = vld [vmem:[#allocation2 + $0xa9] sm:$0xff]
  %v5335 = vld [vmem:[#allocation2 + $0xb1] sm:$0xff]
  %v5336 = vld [vmem:[#allocation2 + $0xc1] sm:$0xff]
  %v5337 = vld [vmem:[#allocation2 + $0xc9] sm:$0xff]
  %v5338 = vld [vmem:[#allocation2 + $0xd9] sm:$0xff]
  %v5339 = vld [vmem:[#allocation2 + $0xe1] sm:$0xff]
  %v5340 = vld [vmem:[#allocation2 + $0xf1] sm:$0xff]
  %v5341 = vld [vmem:[#allocation2 + $0xf9] sm:$0xff]
  %v5342 = vld [vmem:[#allocation2 + $0x109] sm:$0xff]
  %v5343 = vld [vmem:[#allocation2 + $0x111] sm:$0xff]
  %v5344 = vld [vmem:[#allocation2 + $0x121] sm:$0xff]
  %v5345 = vld [vmem:[#allocation2 + $0x129] sm:$0xff]
  %v5346 = vld [vmem:[#allocation2 + $0x139] sm:$0xff]
  %v5347 = vld [vmem:[#allocation2 + $0x141] sm:$0xff]
  %v5348 = vld [vmem:[#allocation2 + $0x151] sm:$0xff]
  %v5349 = vld [vmem:[#allocation2 + $0x159] sm:$0xff]
  %v5350 = vld [vmem:[#allocation2 + $0x169] sm:$0xff]
  %v5351 = vld [vmem:[#allocation2 + $0x171] sm:$0xff]
  %v5352 = vld [vmem:[#allocation2 + $0x1b1] sm:$0xff]
  %v5353 = vld [vmem:[#allocation2 + $0x1b9] sm:$0xff]
  %v5354 = vld [vmem:[#allocation2 + $0x1c9] sm:$0xff]
  %v5355 = vld [vmem:[#allocation2 + $0x1d1] sm:$0xff]
  %v5356 = vld [vmem:[#allocation2 + $0x1e1] sm:$0xff]
  %v5357 = vld [vmem:[#allocation2 + $0x1e9] sm:$0xff]
  %v5358 = vld [vmem:[#allocation2 + $0x1f9] sm:$0xff]
  %v5359 = vld [vmem:[#allocation2 + $0x201] sm:$0xff]
  %v5360 = vld [vmem:[#allocation2 + $0x211] sm:$0xff]
  %v5361 = vld [vmem:[#allocation2 + $0x219] sm:$0xff]
  %v5362 = vld [vmem:[#allocation2 + $0x229] sm:$0xff]
  %v5363 = vld [vmem:[#allocation2 + $0x231] sm:$0xff]
  %v5364 = vld [vmem:[#allocation2 + $0x241] sm:$0xff]
  %v5365 = vld [vmem:[#allocation2 + $0x249] sm:$0xff]
  %v5366 = vld [vmem:[#allocation2 + $0x259] sm:$0xff]
  %v5367 = vld [vmem:[#allocation2 + $0x261] sm:$0xff]
  %v5368 = vld [vmem:[#allocation2 + $0x271] sm:$0xff]
  %v5369 = vld [vmem:[#allocation2 + $0x279] sm:$0xff]
  %v5370 = vld [vmem:[#allocation2 + $0x289] sm:$0xff]
  %v5371 = vld [vmem:[#allocation2 + $0x291] sm:$0xff]
  %v5372 = vld [vmem:[#allocation2 + $0x2a1] sm:$0xff]
  %v5373 = vld [vmem:[#allocation2 + $0x2a9] sm:$0xff]
  %v5374 = vld [vmem:[#allocation2 + $0x2b9] sm:$0xff]
  %v5375 = vld [vmem:[#allocation2 + $0x2c1] sm:$0xff]
  %v5376 = vld [vmem:[#allocation2 + $0x2d1] sm:$0xff]
  %v5377 = vld [vmem:[#allocation2 + $0x2d9] sm:$0xff]
  %v5378 = vld [vmem:[#allocation2 + $0x2e9] sm:$0xff]
  %v5379 = vld [vmem:[#allocation2 + $0x2f1] sm:$0xff]
  %v5380 = vld [vmem:[#allocation2 + $0x301] sm:$0xff]
  %v5381 = vld [vmem:[#allocation2 + $0x309] sm:$0xff]
  %v5382 = vld [vmem:[#allocation2 + $0x319] sm:$0xff]
  %v5383 = vld [vmem:[#allocation2 + $0x321] sm:$0xff]
  %s5384 = scalar_lea.vmem %s3, 128
  %v5385 = vld [vmem:[%s5384] sm:$0xff]
  %v5386 = vld [vmem:[%s5384 + $0x8] sm:$0xff]
  %v5387 = vld [vmem:[%s5384 + $0x10] sm:$0xff]
  %v5388 = vld [vmem:[%s5384 + $0x18] sm:$0xff]
  %v5389 = vld [vmem:[%s5384 + $0x20] sm:$0xff]
  %v5390 = vld [vmem:[%s5384 + $0x28] sm:$0xff]
  %v5391 = vld [vmem:[%s5384 + $0x30] sm:$0xff]
  %v5392 = vld [vmem:[%s5384 + $0x38] sm:$0xff]
  %v5393 = vld [vmem:[%s5384 + $0x40] sm:$0xff]
  %v5394 = vld [vmem:[%s5384 + $0x48] sm:$0xff]
  %v5395 = vld [vmem:[%s5384 + $0x50] sm:$0xff]
  %v5396 = vld [vmem:[%s5384 + $0x58] sm:$0xff]
  %v5397 = vld [vmem:[%s5384 + $0x60] sm:$0xff]
  %v5398 = vld [vmem:[%s5384 + $0x68] sm:$0xff]
  %v5399 = vld [vmem:[%s5384 + $0x70] sm:$0xff]
  %v5400 = vld [vmem:[%s5384 + $0x78] sm:$0xff]
  %5401 = vmatprep.subr.mxu0 0.0
  %5402 = vmatpush1.msra.mxu0 %v5385
  %5403 = vmatprep.subr.mxu0 0.0
  %5404 = vmatpush1.msra.mxu0 %v5386
  %5405 = vmatprep.subr.mxu0 0.0
  %5406 = vmatpush1.msra.mxu0 %v5387
  %5407 = vmatprep.subr.mxu0 0.0
  %5408 = vmatpush1.msra.mxu0 %v5388
  %5409 = vmatprep.subr.mxu0 0.0
  %5410 = vmatpush1.msra.mxu0 %v5389
  %5411 = vmatprep.subr.mxu0 0.0
  %5412 = vmatpush1.msra.mxu0 %v5390
  %5413 = vmatprep.subr.mxu0 0.0
  %5414 = vmatpush1.msra.mxu0 %v5391
  %5415 = vmatprep.subr.mxu0 0.0
  %5416 = vmatpush1.msra.mxu0 %v5392
  %5417 = vmatprep.subr.mxu0 0.0
  %5418 = vmatpush1.msra.mxu0 %v5393
  %5419 = vmatprep.subr.mxu0 0.0
  %5420 = vmatpush1.msra.mxu0 %v5394
  %5421 = vmatprep.subr.mxu0 0.0
  %5422 = vmatpush1.msra.mxu0 %v5395
  %5423 = vmatprep.subr.mxu0 0.0
  %5424 = vmatpush1.msra.mxu0 %v5396
  %5425 = vmatprep.subr.mxu0 0.0
  %5426 = vmatpush1.msra.mxu0 %v5397
  %5427 = vmatprep.subr.mxu0 0.0
  %5428 = vmatpush1.msra.mxu0 %v5398
  %5429 = vmatprep.subr.mxu0 0.0
  %5430 = vmatpush1.msra.mxu0 %v5399
  %5431 = vmatprep.subr.mxu0 0.0
  %5432 = vmatpush1.msra.mxu0 %v5400
  %5433 = vmatprep.subr.mxu0 0.0
  %5434 = vmatpush1.msra.mxu0 0.0
  %5435 = vmatprep.subr.mxu0 0.0
  %5436 = vmatpush1.msra.mxu0 0.0
  %5437 = vmatprep.subr.mxu0 0.0
  %5438 = vmatpush1.msra.mxu0 0.0
  %5439 = vmatprep.subr.mxu0 0.0
  %5440 = vmatpush1.msra.mxu0 0.0
  %5441 = vmatprep.subr.mxu0 0.0
  %5442 = vmatpush1.msra.mxu0 0.0
  %5443 = vmatprep.subr.mxu0 0.0
  %5444 = vmatpush1.msra.mxu0 0.0
  %5445 = vmatprep.subr.mxu0 0.0
  %5446 = vmatpush1.msra.mxu0 0.0
  %5447 = vmatprep.subr.mxu0 0.0
  %5448 = vmatpush1.msra.mxu0 0.0
  %5449 = vmatprep.subr.mxu0 0.0
  %5450 = vmatpush1.msra.mxu0 0.0
  %5451 = vmatprep.subr.mxu0 0.0
  %5452 = vmatpush1.msra.mxu0 0.0
  %5453 = vmatprep.subr.mxu0 0.0
  %5454 = vmatpush1.msra.mxu0 0.0
  %5455 = vmatprep.subr.mxu0 0.0
  %5456 = vmatpush1.msra.mxu0 0.0
  %5457 = vmatprep.subr.mxu0 0.0
  %5458 = vmatpush1.msra.mxu0 0.0
  %5459 = vmatprep.subr.mxu0 0.0
  %5460 = vmatpush1.msra.mxu0 0.0
  %5461 = vmatprep.subr.mxu0 0.0
  %5462 = vmatpush1.msra.mxu0 0.0
  %5463 = vmatprep.subr.mxu0 0.0
  %5464 = vmatpush1.msra.mxu0 0.0
  %5465 = vmatprep.mubr.f32.mxu0 0.0
  %5466 = vmatmul.mubr.f32.gmra.mrb[0].mxu0 %v5320
  %v5467 = vpop.f32.mrb[0].mxu0
  %v5468 = vadd.f32 0.0, %v5467
  %v5469 = vpop.f32.mrb[0].mxu0
  %5470 = vmatprep.mubr.f32.mxu0 0.0
  %5471 = vmatmul.mubr.f32.gmra.mrb[0].mxu0 %v5321
  %v5472 = vpop.f32.mrb[0].mxu0
  %v5473 = vadd.f32 0.0, %v5472
  %v5474 = vpop.f32.mrb[0].mxu0
  %5475 = vmatprep.mubr.f32.mxu0 0.0
  %5476 = vmatmul.mubr.f32.gmra.mrb[0].mxu0 %v5322
  %v5477 = vpop.f32.mrb[0].mxu0
  %v5478 = vadd.f32 0.0, %v5477
  %v5479 = vpop.f32.mrb[0].mxu0
  %5480 = vmatprep.mubr.f32.mxu0 0.0
  %5481 = vmatmul.mubr.f32.gmra.mrb[0].mxu0 %v5323
  %v5482 = vpop.f32.mrb[0].mxu0
  %v5483 = vadd.f32 0.0, %v5482
  %v5484 = vpop.f32.mrb[0].mxu0
  %5485 = vmatprep.mubr.f32.mxu0 0.0
  %5486 = vmatmul.mubr.f32.gmra.mrb[0].mxu0 %v5324
  %v5487 = vpop.f32.mrb[0].mxu0
  %v5488 = vadd.f32 0.0, %v5487
  %v5489 = vpop.f32.mrb[0].mxu0
  %5490 = vmatprep.mubr.f32.mxu0 0.0
  %5491 = vmatmul.mubr.f32.gmra.mrb[0].mxu0 %v5325
  %v5492 = vpop.f32.mrb[0].mxu0
  %v5493 = vadd.f32 0.0, %v5492
  %v5494 = vpop.f32.mrb[0].mxu0
  %5495 = vmatprep.mubr.f32.mxu0 0.0
  %5496 = vmatmul.mubr.f32.gmra.mrb[0].mxu0 %v5326
  %v5497 = vpop.f32.mrb[0].mxu0
  %v5498 = vadd.f32 0.0, %v5497
  %v5499 = vpop.f32.mrb[0].mxu0
  %5500 = vmatprep.mubr.f32.mxu0 0.0
  %5501 = vmatmul.mubr.f32.gmra.mrb[0].mxu0 %v5327
  %v5502 = vpop.f32.mrb[0].mxu0
  %v5503 = vadd.f32 0.0, %v5502
  %v5504 = vpop.f32.mrb[0].mxu0
  %5505 = vmatprep.mubr.f32.mxu0 0.0
  %5506 = vmatmul.mubr.f32.gmra.mrb[0].mxu0 %v5328
  %v5507 = vpop.f32.mrb[0].mxu0
  %v5508 = vadd.f32 0.0, %v5507
  %v5509 = vpop.f32.mrb[0].mxu0
  %5510 = vmatprep.mubr.f32.mxu0 0.0
  %5511 = vmatmul.mubr.f32.gmra.mrb[0].mxu0 %v5329
  %v5512 = vpop.f32.mrb[0].mxu0
  %v5513 = vadd.f32 0.0, %v5512
  %v5514 = vpop.f32.mrb[0].mxu0
  %5515 = vmatprep.mubr.f32.mxu0 0.0
  %5516 = vmatmul.mubr.f32.gmra.mrb[0].mxu0 %v5330
  %v5517 = vpop.f32.mrb[0].mxu0
  %v5518 = vadd.f32 0.0, %v5517
  %v5519 = vpop.f32.mrb[0].mxu0
  %5520 = vmatprep.mubr.f32.mxu0 0.0
  %5521 = vmatmul.mubr.f32.gmra.mrb[0].mxu0 %v5331
  %v5522 = vpop.f32.mrb[0].mxu0
  %v5523 = vadd.f32 0.0, %v5522
  %v5524 = vpop.f32.mrb[0].mxu0
  %5525 = vmatprep.mubr.f32.mxu0 0.0
  %5526 = vmatmul.mubr.f32.gmra.mrb[0].mxu0 %v5332
  %v5527 = vpop.f32.mrb[0].mxu0
  %v5528 = vadd.f32 0.0, %v5527
  %v5529 = vpop.f32.mrb[0].mxu0
  %5530 = vmatprep.mubr.f32.mxu0 0.0
  %5531 = vmatmul.mubr.f32.gmra.mrb[0].mxu0 %v5333
  %v5532 = vpop.f32.mrb[0].mxu0
  %v5533 = vadd.f32 0.0, %v5532
  %v5534 = vpop.f32.mrb[0].mxu0
  %5535 = vmatprep.mubr.f32.mxu0 0.0
  %5536 = vmatmul.mubr.f32.gmra.mrb[0].mxu0 %v5334
  %v5537 = vpop.f32.mrb[0].mxu0
  %v5538 = vadd.f32 0.0, %v5537
  %v5539 = vpop.f32.mrb[0].mxu0
  %5540 = vmatprep.mubr.f32.mxu0 0.0
  %5541 = vmatmul.mubr.f32.gmra.mrb[0].mxu0 %v5335
  %v5542 = vpop.f32.mrb[0].mxu0
  %v5543 = vadd.f32 0.0, %v5542
  %v5544 = vpop.f32.mrb[0].mxu0
  %5545 = vmatprep.mubr.f32.mxu0 0.0
  %5546 = vmatmul.mubr.f32.gmra.mrb[0].mxu0 %v5336
  %v5547 = vpop.f32.mrb[0].mxu0
  %v5548 = vadd.f32 0.0, %v5547
  %v5549 = vpop.f32.mrb[0].mxu0
  %5550 = vmatprep.mubr.f32.mxu0 0.0
  %5551 = vmatmul.mubr.f32.gmra.mrb[0].mxu0 %v5337
  %v5552 = vpop.f32.mrb[0].mxu0
  %v5553 = vadd.f32 0.0, %v5552
  %v5554 = vpop.f32.mrb[0].mxu0
  %5555 = vmatprep.mubr.f32.mxu0 0.0
  %5556 = vmatmul.mubr.f32.gmra.mrb[0].mxu0 %v5338
  %v5557 = vpop.f32.mrb[0].mxu0
  %v5558 = vadd.f32 0.0, %v5557
  %v5559 = vpop.f32.mrb[0].mxu0
  %5560 = vmatprep.mubr.f32.mxu0 0.0
  %5561 = vmatmul.mubr.f32.gmra.mrb[0].mxu0 %v5339
  %v5562 = vpop.f32.mrb[0].mxu0
  %v5563 = vadd.f32 0.0, %v5562
  %v5564 = vpop.f32.mrb[0].mxu0
  %5565 = vmatprep.mubr.f32.mxu0 0.0
  %5566 = vmatmul.mubr.f32.gmra.mrb[0].mxu0 %v5340
  %v5567 = vpop.f32.mrb[0].mxu0
  %v5568 = vadd.f32 0.0, %v5567
  %v5569 = vpop.f32.mrb[0].mxu0
  %5570 = vmatprep.mubr.f32.mxu0 0.0
  %5571 = vmatmul.mubr.f32.gmra.mrb[0].mxu0 %v5341
  %v5572 = vpop.f32.mrb[0].mxu0
  %v5573 = vadd.f32 0.0, %v5572
  %v5574 = vpop.f32.mrb[0].mxu0
  %5575 = vmatprep.mubr.f32.mxu0 0.0
  %5576 = vmatmul.mubr.f32.gmra.mrb[0].mxu0 %v5342
  %v5577 = vpop.f32.mrb[0].mxu0
  %v5578 = vadd.f32 0.0, %v5577
  %v5579 = vpop.f32.mrb[0].mxu0
  %5580 = vmatprep.mubr.f32.mxu0 0.0
  %5581 = vmatmul.mubr.f32.gmra.mrb[0].mxu0 %v5343
  %v5582 = vpop.f32.mrb[0].mxu0
  %v5583 = vadd.f32 0.0, %v5582
  %v5584 = vpop.f32.mrb[0].mxu0
  %5585 = vmatprep.mubr.f32.mxu0 0.0
  %5586 = vmatmul.mubr.f32.gmra.mrb[0].mxu0 %v5344
  %v5587 = vpop.f32.mrb[0].mxu0
  %v5588 = vadd.f32 0.0, %v5587
  %v5589 = vpop.f32.mrb[0].mxu0
  %5590 = vmatprep.mubr.f32.mxu0 0.0
  %5591 = vmatmul.mubr.f32.gmra.mrb[0].mxu0 %v5345
  %v5592 = vpop.f32.mrb[0].mxu0
  %v5593 = vadd.f32 0.0, %v5592
  %v5594 = vpop.f32.mrb[0].mxu0
  %5595 = vmatprep.mubr.f32.mxu0 0.0
  %5596 = vmatmul.mubr.f32.gmra.mrb[0].mxu0 %v5346
  %v5597 = vpop.f32.mrb[0].mxu0
  %v5598 = vadd.f32 0.0, %v5597
  %v5599 = vpop.f32.mrb[0].mxu0
  %5600 = vmatprep.mubr.f32.mxu0 0.0
  %5601 = vmatmul.mubr.f32.gmra.mrb[0].mxu0 %v5347
  %v5602 = vpop.f32.mrb[0].mxu0
  %v5603 = vadd.f32 0.0, %v5602
  %v5604 = vpop.f32.mrb[0].mxu0
  %5605 = vmatprep.mubr.f32.mxu0 0.0
  %5606 = vmatmul.mubr.f32.gmra.mrb[0].mxu0 %v5348
  %v5607 = vpop.f32.mrb[0].mxu0
  %v5608 = vadd.f32 0.0, %v5607
  %v5609 = vpop.f32.mrb[0].mxu0
  %5610 = vmatprep.mubr.f32.mxu0 0.0
  %5611 = vmatmul.mubr.f32.gmra.mrb[0].mxu0 %v5349
  %v5612 = vpop.f32.mrb[0].mxu0
  %v5613 = vadd.f32 0.0, %v5612
  %v5614 = vpop.f32.mrb[0].mxu0
  %5615 = vmatprep.mubr.f32.mxu0 0.0
  %5616 = vmatmul.mubr.f32.gmra.mrb[0].mxu0 %v5350
  %v5617 = vpop.f32.mrb[0].mxu0
  %v5618 = vadd.f32 0.0, %v5617
  %v5619 = vpop.f32.mrb[0].mxu0
  %5620 = vmatprep.mubr.f32.mxu0 0.0
  %5621 = vmatmul.mubr.f32.gmra.mrb[0].mxu0 %v5351
  %v5622 = vpop.f32.mrb[0].mxu0
  %v5623 = vadd.f32 0.0, %v5622
  %v5624 = vpop.f32.mrb[0].mxu0
  %5625 = vmatprep.mubr.f32.mxu0 0.0
  %5626 = vmatmul.mubr.f32.gmra.mrb[0].mxu0 %v5352
  %v5627 = vpop.f32.mrb[0].mxu0
  %v5628 = vadd.f32 0.0, %v5627
  %v5629 = vpop.f32.mrb[0].mxu0
  %5630 = vmatprep.mubr.f32.mxu0 0.0
  %5631 = vmatmul.mubr.f32.gmra.mrb[0].mxu0 %v5353
  %v5632 = vpop.f32.mrb[0].mxu0
  %v5633 = vadd.f32 0.0, %v5632
  %v5634 = vpop.f32.mrb[0].mxu0
  %5635 = vmatprep.mubr.f32.mxu0 0.0
  %5636 = vmatmul.mubr.f32.gmra.mrb[0].mxu0 %v5354
  %v5637 = vpop.f32.mrb[0].mxu0
  %v5638 = vadd.f32 0.0, %v5637
  %v5639 = vpop.f32.mrb[0].mxu0
  %5640 = vmatprep.mubr.f32.mxu0 0.0
  %5641 = vmatmul.mubr.f32.gmra.mrb[0].mxu0 %v5355
  %v5642 = vpop.f32.mrb[0].mxu0
  %v5643 = vadd.f32 0.0, %v5642
  %v5644 = vpop.f32.mrb[0].mxu0
  %5645 = vmatprep.mubr.f32.mxu0 0.0
  %5646 = vmatmul.mubr.f32.gmra.mrb[0].mxu0 %v5356
  %v5647 = vpop.f32.mrb[0].mxu0
  %v5648 = vadd.f32 0.0, %v5647
  %v5649 = vpop.f32.mrb[0].mxu0
  %5650 = vmatprep.mubr.f32.mxu0 0.0
  %5651 = vmatmul.mubr.f32.gmra.mrb[0].mxu0 %v5357
  %v5652 = vpop.f32.mrb[0].mxu0
  %v5653 = vadd.f32 0.0, %v5652
  %v5654 = vpop.f32.mrb[0].mxu0
  %5655 = vmatprep.mubr.f32.mxu0 0.0
  %5656 = vmatmul.mubr.f32.gmra.mrb[0].mxu0 %v5358
  %v5657 = vpop.f32.mrb[0].mxu0
  %v5658 = vadd.f32 0.0, %v5657
  %v5659 = vpop.f32.mrb[0].mxu0
  %5660 = vmatprep.mubr.f32.mxu0 0.0
  %5661 = vmatmul.mubr.f32.gmra.mrb[0].mxu0 %v5359
  %v5662 = vpop.f32.mrb[0].mxu0
  %v5663 = vadd.f32 0.0, %v5662
  %v5664 = vpop.f32.mrb[0].mxu0
  %5665 = vmatprep.mubr.f32.mxu0 0.0
  %5666 = vmatmul.mubr.f32.gmra.mrb[0].mxu0 %v5360
  %v5667 = vpop.f32.mrb[0].mxu0
  %v5668 = vadd.f32 0.0, %v5667
  %v5669 = vpop.f32.mrb[0].mxu0
  %5670 = vmatprep.mubr.f32.mxu0 0.0
  %5671 = vmatmul.mubr.f32.gmra.mrb[0].mxu0 %v5361
  %v5672 = vpop.f32.mrb[0].mxu0
  %v5673 = vadd.f32 0.0, %v5672
  %v5674 = vpop.f32.mrb[0].mxu0
  %5675 = vmatprep.mubr.f32.mxu0 0.0
  %5676 = vmatmul.mubr.f32.gmra.mrb[0].mxu0 %v5362
  %v5677 = vpop.f32.mrb[0].mxu0
  %v5678 = vadd.f32 0.0, %v5677
  %v5679 = vpop.f32.mrb[0].mxu0
  %5680 = vmatprep.mubr.f32.mxu0 0.0
  %5681 = vmatmul.mubr.f32.gmra.mrb[0].mxu0 %v5363
  %v5682 = vpop.f32.mrb[0].mxu0
  %v5683 = vadd.f32 0.0, %v5682
  %v5684 = vpop.f32.mrb[0].mxu0
  %5685 = vmatprep.mubr.f32.mxu0 0.0
  %5686 = vmatmul.mubr.f32.gmra.mrb[0].mxu0 %v5364
  %v5687 = vpop.f32.mrb[0].mxu0
  %v5688 = vadd.f32 0.0, %v5687
  %v5689 = vpop.f32.mrb[0].mxu0
  %5690 = vmatprep.mubr.f32.mxu0 0.0
  %5691 = vmatmul.mubr.f32.gmra.mrb[0].mxu0 %v5365
  %v5692 = vpop.f32.mrb[0].mxu0
  %v5693 = vadd.f32 0.0, %v5692
  %v5694 = vpop.f32.mrb[0].mxu0
  %5695 = vmatprep.mubr.f32.mxu0 0.0
  %5696 = vmatmul.mubr.f32.gmra.mrb[0].mxu0 %v5366
  %v5697 = vpop.f32.mrb[0].mxu0
  %v5698 = vadd.f32 0.0, %v5697
  %v5699 = vpop.f32.mrb[0].mxu0
  %5700 = vmatprep.mubr.f32.mxu0 0.0
  %5701 = vmatmul.mubr.f32.gmra.mrb[0].mxu0 %v5367
  %v5702 = vpop.f32.mrb[0].mxu0
  %v5703 = vadd.f32 0.0, %v5702
  %v5704 = vpop.f32.mrb[0].mxu0
  %5705 = vmatprep.mubr.f32.mxu0 0.0
  %5706 = vmatmul.mubr.f32.gmra.mrb[0].mxu0 %v5368
  %v5707 = vpop.f32.mrb[0].mxu0
  %v5708 = vadd.f32 0.0, %v5707
  %v5709 = vpop.f32.mrb[0].mxu0
  %5710 = vmatprep.mubr.f32.mxu0 0.0
  %5711 = vmatmul.mubr.f32.gmra.mrb[0].mxu0 %v5369
  %v5712 = vpop.f32.mrb[0].mxu0
  %v5713 = vadd.f32 0.0, %v5712
  %v5714 = vpop.f32.mrb[0].mxu0
  %5715 = vmatprep.mubr.f32.mxu0 0.0
  %5716 = vmatmul.mubr.f32.gmra.mrb[0].mxu0 %v5370
  %v5717 = vpop.f32.mrb[0].mxu0
  %v5718 = vadd.f32 0.0, %v5717
  %v5719 = vpop.f32.mrb[0].mxu0
  %5720 = vmatprep.mubr.f32.mxu0 0.0
  %5721 = vmatmul.mubr.f32.gmra.mrb[0].mxu0 %v5371
  %v5722 = vpop.f32.mrb[0].mxu0
  %v5723 = vadd.f32 0.0, %v5722
  %v5724 = vpop.f32.mrb[0].mxu0
  %5725 = vmatprep.mubr.f32.mxu0 0.0
  %5726 = vmatmul.mubr.f32.gmra.mrb[0].mxu0 %v5372
  %v5727 = vpop.f32.mrb[0].mxu0
  %v5728 = vadd.f32 0.0, %v5727
  %v5729 = vpop.f32.mrb[0].mxu0
  %5730 = vmatprep.mubr.f32.mxu0 0.0
  %5731 = vmatmul.mubr.f32.gmra.mrb[0].mxu0 %v5373
  %v5732 = vpop.f32.mrb[0].mxu0
  %v5733 = vadd.f32 0.0, %v5732
  %v5734 = vpop.f32.mrb[0].mxu0
  %5735 = vmatprep.mubr.f32.mxu0 0.0
  %5736 = vmatmul.mubr.f32.gmra.mrb[0].mxu0 %v5374
  %v5737 = vpop.f32.mrb[0].mxu0
  %v5738 = vadd.f32 0.0, %v5737
  %v5739 = vpop.f32.mrb[0].mxu0
  %5740 = vmatprep.mubr.f32.mxu0 0.0
  %5741 = vmatmul.mubr.f32.gmra.mrb[0].mxu0 %v5375
  %v5742 = vpop.f32.mrb[0].mxu0
  %v5743 = vadd.f32 0.0, %v5742
  %v5744 = vpop.f32.mrb[0].mxu0
  %5745 = vmatprep.mubr.f32.mxu0 0.0
  %5746 = vmatmul.mubr.f32.gmra.mrb[0].mxu0 %v5376
  %v5747 = vpop.f32.mrb[0].mxu0
  %v5748 = vadd.f32 0.0, %v5747
  %v5749 = vpop.f32.mrb[0].mxu0
  %5750 = vmatprep.mubr.f32.mxu0 0.0
  %5751 = vmatmul.mubr.f32.gmra.mrb[0].mxu0 %v5377
  %v5752 = vpop.f32.mrb[0].mxu0
  %v5753 = vadd.f32 0.0, %v5752
  %v5754 = vpop.f32.mrb[0].mxu0
  %5755 = vmatprep.mubr.f32.mxu0 0.0
  %5756 = vmatmul.mubr.f32.gmra.mrb[0].mxu0 %v5378
  %v5757 = vpop.f32.mrb[0].mxu0
  %v5758 = vadd.f32 0.0, %v5757
  %v5759 = vpop.f32.mrb[0].mxu0
  %5760 = vmatprep.mubr.f32.mxu0 0.0
  %5761 = vmatmul.mubr.f32.gmra.mrb[0].mxu0 %v5379
  %v5762 = vpop.f32.mrb[0].mxu0
  %v5763 = vadd.f32 0.0, %v5762
  %v5764 = vpop.f32.mrb[0].mxu0
  %5765 = vmatprep.mubr.f32.mxu0 0.0
  %5766 = vmatmul.mubr.f32.gmra.mrb[0].mxu0 %v5380
  %v5767 = vpop.f32.mrb[0].mxu0
  %v5768 = vadd.f32 0.0, %v5767
  %v5769 = vpop.f32.mrb[0].mxu0
  %5770 = vmatprep.mubr.f32.mxu0 0.0
  %5771 = vmatmul.mubr.f32.gmra.mrb[0].mxu0 %v5381
  %v5772 = vpop.f32.mrb[0].mxu0
  %v5773 = vadd.f32 0.0, %v5772
  %v5774 = vpop.f32.mrb[0].mxu0
  %5775 = vmatprep.mubr.f32.mxu0 0.0
  %5776 = vmatmul.mubr.f32.gmra.mrb[0].mxu0 %v5382
  %v5777 = vpop.f32.mrb[0].mxu0
  %v5778 = vadd.f32 0.0, %v5777
  %v5779 = vpop.f32.mrb[0].mxu0
  %5780 = vmatprep.mubr.f32.mxu0 0.0
  %5781 = vmatmul.mubr.f32.gmra.mrb[0].mxu0 %v5383
  %v5782 = vpop.f32.mrb[0].mxu0
  %v5783 = vadd.f32 0.0, %v5782
  %v5784 = vpop.f32.mrb[0].mxu0
  %5785 = vdwg.mxu0
  %5786 = vmatprep.subr.mxu0 0.0
  %5787 = vmatpush1.msra.mxu0 %v5304
  %5788 = vmatprep.subr.mxu0 0.0
  %5789 = vmatpush1.msra.mxu0 %v5305
  %5790 = vmatprep.subr.mxu0 0.0
  %5791 = vmatpush1.msra.mxu0 %v5306
  %5792 = vmatprep.subr.mxu0 0.0
  %5793 = vmatpush1.msra.mxu0 %v5307
  %5794 = vmatprep.subr.mxu0 0.0
  %5795 = vmatpush1.msra.mxu0 %v5308
  %5796 = vmatprep.subr.mxu0 0.0
  %5797 = vmatpush1.msra.mxu0 %v5309
  %5798 = vmatprep.subr.mxu0 0.0
  %5799 = vmatpush1.msra.mxu0 %v5310
  %5800 = vmatprep.subr.mxu0 0.0
  %5801 = vmatpush1.msra.mxu0 %v5311
  %5802 = vmatprep.subr.mxu0 0.0
  %5803 = vmatpush1.msra.mxu0 %v5312
  %5804 = vmatprep.subr.mxu0 0.0
  %5805 = vmatpush1.msra.mxu0 %v5313
  %5806 = vmatprep.subr.mxu0 0.0
  %5807 = vmatpush1.msra.mxu0 %v5314
  %5808 = vmatprep.subr.mxu0 0.0
  %5809 = vmatpush1.msra.mxu0 %v5315
  %5810 = vmatprep.subr.mxu0 0.0
  %5811 = vmatpush1.msra.mxu0 %v5316
  %5812 = vmatprep.subr.mxu0 0.0
  %5813 = vmatpush1.msra.mxu0 %v5317
  %5814 = vmatprep.subr.mxu0 0.0
  %5815 = vmatpush1.msra.mxu0 %v5318
  %5816 = vmatprep.subr.mxu0 0.0
  %5817 = vmatpush1.msra.mxu0 %v5319
  %5818 = vmatprep.subr.mxu0 0.0
  %5819 = vmatpush1.msra.mxu0 0.0
  %5820 = vmatprep.subr.mxu0 0.0
  %5821 = vmatpush1.msra.mxu0 0.0
  %5822 = vmatprep.subr.mxu0 0.0
  %5823 = vmatpush1.msra.mxu0 0.0
  %5824 = vmatprep.subr.mxu0 0.0
  %5825 = vmatpush1.msra.mxu0 0.0
  %5826 = vmatprep.subr.mxu0 0.0
  %5827 = vmatpush1.msra.mxu0 0.0
  %5828 = vmatprep.subr.mxu0 0.0
  %5829 = vmatpush1.msra.mxu0 0.0
  %5830 = vmatprep.subr.mxu0 0.0
  %5831 = vmatpush1.msra.mxu0 0.0
  %5832 = vmatprep.subr.mxu0 0.0
  %5833 = vmatpush1.msra.mxu0 0.0
  %5834 = vmatprep.subr.mxu0 0.0
  %5835 = vmatpush1.msra.mxu0 0.0
  %5836 = vmatprep.subr.mxu0 0.0
  %5837 = vmatpush1.msra.mxu0 0.0
  %5838 = vmatprep.subr.mxu0 0.0
  %5839 = vmatpush1.msra.mxu0 0.0
  %5840 = vmatprep.subr.mxu0 0.0
  %5841 = vmatpush1.msra.mxu0 0.0
  %5842 = vmatprep.subr.mxu0 0.0
  %5843 = vmatpush1.msra.mxu0 0.0
  %5844 = vmatprep.subr.mxu0 0.0
  %5845 = vmatpush1.msra.mxu0 0.0
  %5846 = vmatprep.subr.mxu0 0.0
  %5847 = vmatpush1.msra.mxu0 0.0
  %5848 = vmatprep.subr.mxu0 0.0
  %5849 = vmatpush1.msra.mxu0 0.0
  %5850 = vmatprep.mubr.f32.mxu0 0.0
  %5851 = vmatmul.mubr.f32.gmra.mrb[0].mxu0 %v5240
  %v5852 = vpop.f32.mrb[0].mxu0
  %v5853 = vadd.f32 %v5468, %v5852
  %v5854 = vpop.f32.mrb[0].mxu0
  %5855 = vmatprep.mubr.f32.mxu0 0.0
  %5856 = vmatmul.mubr.f32.gmra.mrb[0].mxu0 %v5241
  %v5857 = vpop.f32.mrb[0].mxu0
  %v5858 = vadd.f32 %v5473, %v5857
  %v5859 = vpop.f32.mrb[0].mxu0
  %5860 = vmatprep.mubr.f32.mxu0 0.0
  %5861 = vmatmul.mubr.f32.gmra.mrb[0].mxu0 %v5242
  %v5862 = vpop.f32.mrb[0].mxu0
  %v5863 = vadd.f32 %v5478, %v5862
  %v5864 = vpop.f32.mrb[0].mxu0
  %5865 = vmatprep.mubr.f32.mxu0 0.0
  %5866 = vmatmul.mubr.f32.gmra.mrb[0].mxu0 %v5243
  %v5867 = vpop.f32.mrb[0].mxu0
  %v5868 = vadd.f32 %v5483, %v5867
  %v5869 = vpop.f32.mrb[0].mxu0
  %5870 = vmatprep.mubr.f32.mxu0 0.0
  %5871 = vmatmul.mubr.f32.gmra.mrb[0].mxu0 %v5244
  %v5872 = vpop.f32.mrb[0].mxu0
  %v5873 = vadd.f32 %v5488, %v5872
  %v5874 = vpop.f32.mrb[0].mxu0
  %5875 = vmatprep.mubr.f32.mxu0 0.0
  %5876 = vmatmul.mubr.f32.gmra.mrb[0].mxu0 %v5245
  %v5877 = vpop.f32.mrb[0].mxu0
  %v5878 = vadd.f32 %v5493, %v5877
  %v5879 = vpop.f32.mrb[0].mxu0
  %5880 = vmatprep.mubr.f32.mxu0 0.0
  %5881 = vmatmul.mubr.f32.gmra.mrb[0].mxu0 %v5246
  %v5882 = vpop.f32.mrb[0].mxu0
  %v5883 = vadd.f32 %v5498, %v5882
  %v5884 = vpop.f32.mrb[0].mxu0
  %5885 = vmatprep.mubr.f32.mxu0 0.0
  %5886 = vmatmul.mubr.f32.gmra.mrb[0].mxu0 %v5247
  %v5887 = vpop.f32.mrb[0].mxu0
  %v5888 = vadd.f32 %v5503, %v5887
  %v5889 = vpop.f32.mrb[0].mxu0
  %5890 = vmatprep.mubr.f32.mxu0 0.0
  %5891 = vmatmul.mubr.f32.gmra.mrb[0].mxu0 %v5248
  %v5892 = vpop.f32.mrb[0].mxu0
  %v5893 = vadd.f32 %v5508, %v5892
  %v5894 = vpop.f32.mrb[0].mxu0
  %5895 = vmatprep.mubr.f32.mxu0 0.0
  %5896 = vmatmul.mubr.f32.gmra.mrb[0].mxu0 %v5249
  %v5897 = vpop.f32.mrb[0].mxu0
  %v5898 = vadd.f32 %v5513, %v5897
  %v5899 = vpop.f32.mrb[0].mxu0
  %5900 = vmatprep.mubr.f32.mxu0 0.0
  %5901 = vmatmul.mubr.f32.gmra.mrb[0].mxu0 %v5250
  %v5902 = vpop.f32.mrb[0].mxu0
  %v5903 = vadd.f32 %v5518, %v5902
  %v5904 = vpop.f32.mrb[0].mxu0
  %5905 = vmatprep.mubr.f32.mxu0 0.0
  %5906 = vmatmul.mubr.f32.gmra.mrb[0].mxu0 %v5251
  %v5907 = vpop.f32.mrb[0].mxu0
  %v5908 = vadd.f32 %v5523, %v5907
  %v5909 = vpop.f32.mrb[0].mxu0
  %5910 = vmatprep.mubr.f32.mxu0 0.0
  %5911 = vmatmul.mubr.f32.gmra.mrb[0].mxu0 %v5252
  %v5912 = vpop.f32.mrb[0].mxu0
  %v5913 = vadd.f32 %v5528, %v5912
  %v5914 = vpop.f32.mrb[0].mxu0
  %5915 = vmatprep.mubr.f32.mxu0 0.0
  %5916 = vmatmul.mubr.f32.gmra.mrb[0].mxu0 %v5253
  %v5917 = vpop.f32.mrb[0].mxu0
  %v5918 = vadd.f32 %v5533, %v5917
  %v5919 = vpop.f32.mrb[0].mxu0
  %5920 = vmatprep.mubr.f32.mxu0 0.0
  %5921 = vmatmul.mubr.f32.gmra.mrb[0].mxu0 %v5254
  %v5922 = vpop.f32.mrb[0].mxu0
  %v5923 = vadd.f32 %v5538, %v5922
  %v5924 = vpop.f32.mrb[0].mxu0
  %5925 = vmatprep.mubr.f32.mxu0 0.0
  %5926 = vmatmul.mubr.f32.gmra.mrb[0].mxu0 %v5255
  %v5927 = vpop.f32.mrb[0].mxu0
  %v5928 = vadd.f32 %v5543, %v5927
  %v5929 = vpop.f32.mrb[0].mxu0
  %5930 = vmatprep.mubr.f32.mxu0 0.0
  %5931 = vmatmul.mubr.f32.gmra.mrb[0].mxu0 %v5256
  %v5932 = vpop.f32.mrb[0].mxu0
  %v5933 = vadd.f32 %v5548, %v5932
  %v5934 = vpop.f32.mrb[0].mxu0
  %5935 = vmatprep.mubr.f32.mxu0 0.0
  %5936 = vmatmul.mubr.f32.gmra.mrb[0].mxu0 %v5257
  %v5937 = vpop.f32.mrb[0].mxu0
  %v5938 = vadd.f32 %v5553, %v5937
  %v5939 = vpop.f32.mrb[0].mxu0
  %5940 = vmatprep.mubr.f32.mxu0 0.0
  %5941 = vmatmul.mubr.f32.gmra.mrb[0].mxu0 %v5258
  %v5942 = vpop.f32.mrb[0].mxu0
  %v5943 = vadd.f32 %v5558, %v5942
  %v5944 = vpop.f32.mrb[0].mxu0
  %5945 = vmatprep.mubr.f32.mxu0 0.0
  %5946 = vmatmul.mubr.f32.gmra.mrb[0].mxu0 %v5259
  %v5947 = vpop.f32.mrb[0].mxu0
  %v5948 = vadd.f32 %v5563, %v5947
  %v5949 = vpop.f32.mrb[0].mxu0
  %5950 = vmatprep.mubr.f32.mxu0 0.0
  %5951 = vmatmul.mubr.f32.gmra.mrb[0].mxu0 %v5260
  %v5952 = vpop.f32.mrb[0].mxu0
  %v5953 = vadd.f32 %v5568, %v5952
  %v5954 = vpop.f32.mrb[0].mxu0
  %5955 = vmatprep.mubr.f32.mxu0 0.0
  %5956 = vmatmul.mubr.f32.gmra.mrb[0].mxu0 %v5261
  %v5957 = vpop.f32.mrb[0].mxu0
  %v5958 = vadd.f32 %v5573, %v5957
  %v5959 = vpop.f32.mrb[0].mxu0
  %5960 = vmatprep.mubr.f32.mxu0 0.0
  %5961 = vmatmul.mubr.f32.gmra.mrb[0].mxu0 %v5262
  %v5962 = vpop.f32.mrb[0].mxu0
  %v5963 = vadd.f32 %v5578, %v5962
  %v5964 = vpop.f32.mrb[0].mxu0
  %5965 = vmatprep.mubr.f32.mxu0 0.0
  %5966 = vmatmul.mubr.f32.gmra.mrb[0].mxu0 %v5263
  %v5967 = vpop.f32.mrb[0].mxu0
  %v5968 = vadd.f32 %v5583, %v5967
  %v5969 = vpop.f32.mrb[0].mxu0
  %5970 = vmatprep.mubr.f32.mxu0 0.0
  %5971 = vmatmul.mubr.f32.gmra.mrb[0].mxu0 %v5264
  %v5972 = vpop.f32.mrb[0].mxu0
  %v5973 = vadd.f32 %v5588, %v5972
  %v5974 = vpop.f32.mrb[0].mxu0
  %5975 = vmatprep.mubr.f32.mxu0 0.0
  %5976 = vmatmul.mubr.f32.gmra.mrb[0].mxu0 %v5265
  %v5977 = vpop.f32.mrb[0].mxu0
  %v5978 = vadd.f32 %v5593, %v5977
  %v5979 = vpop.f32.mrb[0].mxu0
  %5980 = vmatprep.mubr.f32.mxu0 0.0
  %5981 = vmatmul.mubr.f32.gmra.mrb[0].mxu0 %v5266
  %v5982 = vpop.f32.mrb[0].mxu0
  %v5983 = vadd.f32 %v5598, %v5982
  %v5984 = vpop.f32.mrb[0].mxu0
  %5985 = vmatprep.mubr.f32.mxu0 0.0
  %5986 = vmatmul.mubr.f32.gmra.mrb[0].mxu0 %v5267
  %v5987 = vpop.f32.mrb[0].mxu0
  %v5988 = vadd.f32 %v5603, %v5987
  %v5989 = vpop.f32.mrb[0].mxu0
  %5990 = vmatprep.mubr.f32.mxu0 0.0
  %5991 = vmatmul.mubr.f32.gmra.mrb[0].mxu0 %v5268
  %v5992 = vpop.f32.mrb[0].mxu0
  %v5993 = vadd.f32 %v5608, %v5992
  %v5994 = vpop.f32.mrb[0].mxu0
  %5995 = vmatprep.mubr.f32.mxu0 0.0
  %5996 = vmatmul.mubr.f32.gmra.mrb[0].mxu0 %v5269
  %v5997 = vpop.f32.mrb[0].mxu0
  %v5998 = vadd.f32 %v5613, %v5997
  %v5999 = vpop.f32.mrb[0].mxu0
  %6000 = vmatprep.mubr.f32.mxu0 0.0
  %6001 = vmatmul.mubr.f32.gmra.mrb[0].mxu0 %v5270
  %v6002 = vpop.f32.mrb[0].mxu0
  %v6003 = vadd.f32 %v5618, %v6002
  %v6004 = vpop.f32.mrb[0].mxu0
  %6005 = vmatprep.mubr.f32.mxu0 0.0
  %6006 = vmatmul.mubr.f32.gmra.mrb[0].mxu0 %v5271
  %v6007 = vpop.f32.mrb[0].mxu0
  %v6008 = vadd.f32 %v5623, %v6007
  %v6009 = vpop.f32.mrb[0].mxu0
  %6010 = vmatprep.mubr.f32.mxu0 0.0
  %6011 = vmatmul.mubr.f32.gmra.mrb[0].mxu0 %v5272
  %v6012 = vpop.f32.mrb[0].mxu0
  %v6013 = vadd.f32 %v5628, %v6012
  %v6014 = vpop.f32.mrb[0].mxu0
  %6015 = vmatprep.mubr.f32.mxu0 0.0
  %6016 = vmatmul.mubr.f32.gmra.mrb[0].mxu0 %v5273
  %v6017 = vpop.f32.mrb[0].mxu0
  %v6018 = vadd.f32 %v5633, %v6017
  %v6019 = vpop.f32.mrb[0].mxu0
  %6020 = vmatprep.mubr.f32.mxu0 0.0
  %6021 = vmatmul.mubr.f32.gmra.mrb[0].mxu0 %v5274
  %v6022 = vpop.f32.mrb[0].mxu0
  %v6023 = vadd.f32 %v5638, %v6022
  %v6024 = vpop.f32.mrb[0].mxu0
  %6025 = vmatprep.mubr.f32.mxu0 0.0
  %6026 = vmatmul.mubr.f32.gmra.mrb[0].mxu0 %v5275
  %v6027 = vpop.f32.mrb[0].mxu0
  %v6028 = vadd.f32 %v5643, %v6027
  %v6029 = vpop.f32.mrb[0].mxu0
  %6030 = vmatprep.mubr.f32.mxu0 0.0
  %6031 = vmatmul.mubr.f32.gmra.mrb[0].mxu0 %v5276
  %v6032 = vpop.f32.mrb[0].mxu0
  %v6033 = vadd.f32 %v5648, %v6032
  %v6034 = vpop.f32.mrb[0].mxu0
  %6035 = vmatprep.mubr.f32.mxu0 0.0
  %6036 = vmatmul.mubr.f32.gmra.mrb[0].mxu0 %v5277
  %v6037 = vpop.f32.mrb[0].mxu0
  %v6038 = vadd.f32 %v5653, %v6037
  %v6039 = vpop.f32.mrb[0].mxu0
  %6040 = vmatprep.mubr.f32.mxu0 0.0
  %6041 = vmatmul.mubr.f32.gmra.mrb[0].mxu0 %v5278
  %v6042 = vpop.f32.mrb[0].mxu0
  %v6043 = vadd.f32 %v5658, %v6042
  %v6044 = vpop.f32.mrb[0].mxu0
  %6045 = vmatprep.mubr.f32.mxu0 0.0
  %6046 = vmatmul.mubr.f32.gmra.mrb[0].mxu0 %v5279
  %v6047 = vpop.f32.mrb[0].mxu0
  %v6048 = vadd.f32 %v5663, %v6047
  %v6049 = vpop.f32.mrb[0].mxu0
  %6050 = vmatprep.mubr.f32.mxu0 0.0
  %6051 = vmatmul.mubr.f32.gmra.mrb[0].mxu0 %v5280
  %v6052 = vpop.f32.mrb[0].mxu0
  %v6053 = vadd.f32 %v5668, %v6052
  %v6054 = vpop.f32.mrb[0].mxu0
  %6055 = vmatprep.mubr.f32.mxu0 0.0
  %6056 = vmatmul.mubr.f32.gmra.mrb[0].mxu0 %v5281
  %v6057 = vpop.f32.mrb[0].mxu0
  %v6058 = vadd.f32 %v5673, %v6057
  %v6059 = vpop.f32.mrb[0].mxu0
  %6060 = vmatprep.mubr.f32.mxu0 0.0
  %6061 = vmatmul.mubr.f32.gmra.mrb[0].mxu0 %v5282
  %v6062 = vpop.f32.mrb[0].mxu0
  %v6063 = vadd.f32 %v5678, %v6062
  %v6064 = vpop.f32.mrb[0].mxu0
  %6065 = vmatprep.mubr.f32.mxu0 0.0
  %6066 = vmatmul.mubr.f32.gmra.mrb[0].mxu0 %v5283
  %v6067 = vpop.f32.mrb[0].mxu0
  %v6068 = vadd.f32 %v5683, %v6067
  %v6069 = vpop.f32.mrb[0].mxu0
  %6070 = vmatprep.mubr.f32.mxu0 0.0
  %6071 = vmatmul.mubr.f32.gmra.mrb[0].mxu0 %v5284
  %v6072 = vpop.f32.mrb[0].mxu0
  %v6073 = vadd.f32 %v5688, %v6072
  %v6074 = vpop.f32.mrb[0].mxu0
  %6075 = vmatprep.mubr.f32.mxu0 0.0
  %6076 = vmatmul.mubr.f32.gmra.mrb[0].mxu0 %v5285
  %v6077 = vpop.f32.mrb[0].mxu0
  %v6078 = vadd.f32 %v5693, %v6077
  %v6079 = vpop.f32.mrb[0].mxu0
  %6080 = vmatprep.mubr.f32.mxu0 0.0
  %6081 = vmatmul.mubr.f32.gmra.mrb[0].mxu0 %v5286
  %v6082 = vpop.f32.mrb[0].mxu0
  %v6083 = vadd.f32 %v5698, %v6082
  %v6084 = vpop.f32.mrb[0].mxu0
  %6085 = vmatprep.mubr.f32.mxu0 0.0
  %6086 = vmatmul.mubr.f32.gmra.mrb[0].mxu0 %v5287
  %v6087 = vpop.f32.mrb[0].mxu0
  %v6088 = vadd.f32 %v5703, %v6087
  %v6089 = vpop.f32.mrb[0].mxu0
  %6090 = vmatprep.mubr.f32.mxu0 0.0
  %6091 = vmatmul.mubr.f32.gmra.mrb[0].mxu0 %v5288
  %v6092 = vpop.f32.mrb[0].mxu0
  %v6093 = vadd.f32 %v5708, %v6092
  %v6094 = vpop.f32.mrb[0].mxu0
  %6095 = vmatprep.mubr.f32.mxu0 0.0
  %6096 = vmatmul.mubr.f32.gmra.mrb[0].mxu0 %v5289
  %v6097 = vpop.f32.mrb[0].mxu0
  %v6098 = vadd.f32 %v5713, %v6097
  %v6099 = vpop.f32.mrb[0].mxu0
  %6100 = vmatprep.mubr.f32.mxu0 0.0
  %6101 = vmatmul.mubr.f32.gmra.mrb[0].mxu0 %v5290
  %v6102 = vpop.f32.mrb[0].mxu0
  %v6103 = vadd.f32 %v5718, %v6102
  %v6104 = vpop.f32.mrb[0].mxu0
  %6105 = vmatprep.mubr.f32.mxu0 0.0
  %6106 = vmatmul.mubr.f32.gmra.mrb[0].mxu0 %v5291
  %v6107 = vpop.f32.mrb[0].mxu0
  %v6108 = vadd.f32 %v5723, %v6107
  %v6109 = vpop.f32.mrb[0].mxu0
  %6110 = vmatprep.mubr.f32.mxu0 0.0
  %6111 = vmatmul.mubr.f32.gmra.mrb[0].mxu0 %v5292
  %v6112 = vpop.f32.mrb[0].mxu0
  %v6113 = vadd.f32 %v5728, %v6112
  %v6114 = vpop.f32.mrb[0].mxu0
  %6115 = vmatprep.mubr.f32.mxu0 0.0
  %6116 = vmatmul.mubr.f32.gmra.mrb[0].mxu0 %v5293
  %v6117 = vpop.f32.mrb[0].mxu0
  %v6118 = vadd.f32 %v5733, %v6117
  %v6119 = vpop.f32.mrb[0].mxu0
  %6120 = vmatprep.mubr.f32.mxu0 0.0
  %6121 = vmatmul.mubr.f32.gmra.mrb[0].mxu0 %v5294
  %v6122 = vpop.f32.mrb[0].mxu0
  %v6123 = vadd.f32 %v5738, %v6122
  %v6124 = vpop.f32.mrb[0].mxu0
  %6125 = vmatprep.mubr.f32.mxu0 0.0
  %6126 = vmatmul.mubr.f32.gmra.mrb[0].mxu0 %v5295
  %v6127 = vpop.f32.mrb[0].mxu0
  %v6128 = vadd.f32 %v5743, %v6127
  %v6129 = vpop.f32.mrb[0].mxu0
  %6130 = vmatprep.mubr.f32.mxu0 0.0
  %6131 = vmatmul.mubr.f32.gmra.mrb[0].mxu0 %v5296
  %v6132 = vpop.f32.mrb[0].mxu0
  %v6133 = vadd.f32 %v5748, %v6132
  %v6134 = vpop.f32.mrb[0].mxu0
  %6135 = vmatprep.mubr.f32.mxu0 0.0
  %6136 = vmatmul.mubr.f32.gmra.mrb[0].mxu0 %v5297
  %v6137 = vpop.f32.mrb[0].mxu0
  %v6138 = vadd.f32 %v5753, %v6137
  %v6139 = vpop.f32.mrb[0].mxu0
  %6140 = vmatprep.mubr.f32.mxu0 0.0
  %6141 = vmatmul.mubr.f32.gmra.mrb[0].mxu0 %v5298
  %v6142 = vpop.f32.mrb[0].mxu0
  %v6143 = vadd.f32 %v5758, %v6142
  %v6144 = vpop.f32.mrb[0].mxu0
  %6145 = vmatprep.mubr.f32.mxu0 0.0
  %6146 = vmatmul.mubr.f32.gmra.mrb[0].mxu0 %v5299
  %v6147 = vpop.f32.mrb[0].mxu0
  %v6148 = vadd.f32 %v5763, %v6147
  %v6149 = vpop.f32.mrb[0].mxu0
  %6150 = vmatprep.mubr.f32.mxu0 0.0
  %6151 = vmatmul.mubr.f32.gmra.mrb[0].mxu0 %v5300
  %v6152 = vpop.f32.mrb[0].mxu0
  %v6153 = vadd.f32 %v5768, %v6152
  %v6154 = vpop.f32.mrb[0].mxu0
  %6155 = vmatprep.mubr.f32.mxu0 0.0
  %6156 = vmatmul.mubr.f32.gmra.mrb[0].mxu0 %v5301
  %v6157 = vpop.f32.mrb[0].mxu0
  %v6158 = vadd.f32 %v5773, %v6157
  %v6159 = vpop.f32.mrb[0].mxu0
  %6160 = vmatprep.mubr.f32.mxu0 0.0
  %6161 = vmatmul.mubr.f32.gmra.mrb[0].mxu0 %v5302
  %v6162 = vpop.f32.mrb[0].mxu0
  %v6163 = vadd.f32 %v5778, %v6162
  %v6164 = vpop.f32.mrb[0].mxu0
  %6165 = vmatprep.mubr.f32.mxu0 0.0
  %6166 = vmatmul.mubr.f32.gmra.mrb[0].mxu0 %v5303
  %v6167 = vpop.f32.mrb[0].mxu0
  %v6168 = vadd.f32 %v5783, %v6167
  %v6169 = vpop.f32.mrb[0].mxu0
  %6170 = vdwg.mxu0
  %v6171 = vld [vmem:[#allocation2 + $0x2] sm:$0xff]
  %v6172 = vld [vmem:[#allocation2 + $0xa] sm:$0xff]
  %v6173 = vld [vmem:[#allocation2 + $0x1a] sm:$0xff]
  %v6174 = vld [vmem:[#allocation2 + $0x22] sm:$0xff]
  %v6175 = vld [vmem:[#allocation2 + $0x32] sm:$0xff]
  %v6176 = vld [vmem:[#allocation2 + $0x3a] sm:$0xff]
  %v6177 = vld [vmem:[#allocation2 + $0x4a] sm:$0xff]
  %v6178 = vld [vmem:[#allocation2 + $0x52] sm:$0xff]
  %v6179 = vld [vmem:[#allocation2 + $0x62] sm:$0xff]
  %v6180 = vld [vmem:[#allocation2 + $0x6a] sm:$0xff]
  %v6181 = vld [vmem:[#allocation2 + $0x7a] sm:$0xff]
  %v6182 = vld [vmem:[#allocation2 + $0x82] sm:$0xff]
  %v6183 = vld [vmem:[#allocation2 + $0x92] sm:$0xff]
  %v6184 = vld [vmem:[#allocation2 + $0x9a] sm:$0xff]
  %v6185 = vld [vmem:[#allocation2 + $0xaa] sm:$0xff]
  %v6186 = vld [vmem:[#allocation2 + $0xb2] sm:$0xff]
  %v6187 = vld [vmem:[#allocation2 + $0xc2] sm:$0xff]
  %v6188 = vld [vmem:[#allocation2 + $0xca] sm:$0xff]
  %v6189 = vld [vmem:[#allocation2 + $0xda] sm:$0xff]
  %v6190 = vld [vmem:[#allocation2 + $0xe2] sm:$0xff]
  %v6191 = vld [vmem:[#allocation2 + $0xf2] sm:$0xff]
  %v6192 = vld [vmem:[#allocation2 + $0xfa] sm:$0xff]
  %v6193 = vld [vmem:[#allocation2 + $0x10a] sm:$0xff]
  %v6194 = vld [vmem:[#allocation2 + $0x112] sm:$0xff]
  %v6195 = vld [vmem:[#allocation2 + $0x122] sm:$0xff]
  %v6196 = vld [vmem:[#allocation2 + $0x12a] sm:$0xff]
  %v6197 = vld [vmem:[#allocation2 + $0x13a] sm:$0xff]
  %v6198 = vld [vmem:[#allocation2 + $0x142] sm:$0xff]
  %v6199 = vld [vmem:[#allocation2 + $0x152] sm:$0xff]
  %v6200 = vld [vmem:[#allocation2 + $0x15a] sm:$0xff]
  %v6201 = vld [vmem:[#allocation2 + $0x16a] sm:$0xff]
  %v6202 = vld [vmem:[#allocation2 + $0x172] sm:$0xff]
  %v6203 = vld [vmem:[#allocation2 + $0x1b2] sm:$0xff]
  %v6204 = vld [vmem:[#allocation2 + $0x1ba] sm:$0xff]
  %v6205 = vld [vmem:[#allocation2 + $0x1ca] sm:$0xff]
  %v6206 = vld [vmem:[#allocation2 + $0x1d2] sm:$0xff]
  %v6207 = vld [vmem:[#allocation2 + $0x1e2] sm:$0xff]
  %v6208 = vld [vmem:[#allocation2 + $0x1ea] sm:$0xff]
  %v6209 = vld [vmem:[#allocation2 + $0x1fa] sm:$0xff]
  %v6210 = vld [vmem:[#allocation2 + $0x202] sm:$0xff]
  %v6211 = vld [vmem:[#allocation2 + $0x212] sm:$0xff]
  %v6212 = vld [vmem:[#allocation2 + $0x21a] sm:$0xff]
  %v6213 = vld [vmem:[#allocation2 + $0x22a] sm:$0xff]
  %v6214 = vld [vmem:[#allocation2 + $0x232] sm:$0xff]
  %v6215 = vld [vmem:[#allocation2 + $0x242] sm:$0xff]
  %v6216 = vld [vmem:[#allocation2 + $0x24a] sm:$0xff]
  %v6217 = vld [vmem:[#allocation2 + $0x25a] sm:$0xff]
  %v6218 = vld [vmem:[#allocation2 + $0x262] sm:$0xff]
  %v6219 = vld [vmem:[#allocation2 + $0x272] sm:$0xff]
  %v6220 = vld [vmem:[#allocation2 + $0x27a] sm:$0xff]
  %v6221 = vld [vmem:[#allocation2 + $0x28a] sm:$0xff]
  %v6222 = vld [vmem:[#allocation2 + $0x292] sm:$0xff]
  %v6223 = vld [vmem:[#allocation2 + $0x2a2] sm:$0xff]
  %v6224 = vld [vmem:[#allocation2 + $0x2aa] sm:$0xff]
  %v6225 = vld [vmem:[#allocation2 + $0x2ba] sm:$0xff]
  %v6226 = vld [vmem:[#allocation2 + $0x2c2] sm:$0xff]
  %v6227 = vld [vmem:[#allocation2 + $0x2d2] sm:$0xff]
  %v6228 = vld [vmem:[#allocation2 + $0x2da] sm:$0xff]
  %v6229 = vld [vmem:[#allocation2 + $0x2ea] sm:$0xff]
  %v6230 = vld [vmem:[#allocation2 + $0x2f2] sm:$0xff]
  %v6231 = vld [vmem:[#allocation2 + $0x302] sm:$0xff]
  %v6232 = vld [vmem:[#allocation2 + $0x30a] sm:$0xff]
  %v6233 = vld [vmem:[#allocation2 + $0x31a] sm:$0xff]
  %v6234 = vld [vmem:[#allocation2 + $0x322] sm:$0xff]
  %s6235 = scalar_lea.vmem %s3, 256
  %v6236 = vld [vmem:[%s6235] sm:$0xff]
  %v6237 = vld [vmem:[%s6235 + $0x8] sm:$0xff]
  %v6238 = vld [vmem:[%s6235 + $0x10] sm:$0xff]
  %v6239 = vld [vmem:[%s6235 + $0x18] sm:$0xff]
  %v6240 = vld [vmem:[%s6235 + $0x20] sm:$0xff]
  %v6241 = vld [vmem:[%s6235 + $0x28] sm:$0xff]
  %v6242 = vld [vmem:[%s6235 + $0x30] sm:$0xff]
  %v6243 = vld [vmem:[%s6235 + $0x38] sm:$0xff]
  %v6244 = vld [vmem:[%s6235 + $0x40] sm:$0xff]
  %v6245 = vld [vmem:[%s6235 + $0x48] sm:$0xff]
  %v6246 = vld [vmem:[%s6235 + $0x50] sm:$0xff]
  %v6247 = vld [vmem:[%s6235 + $0x58] sm:$0xff]
  %v6248 = vld [vmem:[%s6235 + $0x60] sm:$0xff]
  %v6249 = vld [vmem:[%s6235 + $0x68] sm:$0xff]
  %v6250 = vld [vmem:[%s6235 + $0x70] sm:$0xff]
  %v6251 = vld [vmem:[%s6235 + $0x78] sm:$0xff]
  %6252 = vmatprep.subr.mxu0 0.0
  %6253 = vmatpush1.msra.mxu0 %v6236
  %6254 = vmatprep.subr.mxu0 0.0
  %6255 = vmatpush1.msra.mxu0 %v6237
  %6256 = vmatprep.subr.mxu0 0.0
  %6257 = vmatpush1.msra.mxu0 %v6238
  %6258 = vmatprep.subr.mxu0 0.0
  %6259 = vmatpush1.msra.mxu0 %v6239
  %6260 = vmatprep.subr.mxu0 0.0
  %6261 = vmatpush1.msra.mxu0 %v6240
  %6262 = vmatprep.subr.mxu0 0.0
  %6263 = vmatpush1.msra.mxu0 %v6241
  %6264 = vmatprep.subr.mxu0 0.0
  %6265 = vmatpush1.msra.mxu0 %v6242
  %6266 = vmatprep.subr.mxu0 0.0
  %6267 = vmatpush1.msra.mxu0 %v6243
  %6268 = vmatprep.subr.mxu0 0.0
  %6269 = vmatpush1.msra.mxu0 %v6244
  %6270 = vmatprep.subr.mxu0 0.0
  %6271 = vmatpush1.msra.mxu0 %v6245
  %6272 = vmatprep.subr.mxu0 0.0
  %6273 = vmatpush1.msra.mxu0 %v6246
  %6274 = vmatprep.subr.mxu0 0.0
  %6275 = vmatpush1.msra.mxu0 %v6247
  %6276 = vmatprep.subr.mxu0 0.0
  %6277 = vmatpush1.msra.mxu0 %v6248
  %6278 = vmatprep.subr.mxu0 0.0
  %6279 = vmatpush1.msra.mxu0 %v6249
  %6280 = vmatprep.subr.mxu0 0.0
  %6281 = vmatpush1.msra.mxu0 %v6250
  %6282 = vmatprep.subr.mxu0 0.0
  %6283 = vmatpush1.msra.mxu0 %v6251
  %6284 = vmatprep.subr.mxu0 0.0
  %6285 = vmatpush1.msra.mxu0 0.0
  %6286 = vmatprep.subr.mxu0 0.0
  %6287 = vmatpush1.msra.mxu0 0.0
  %6288 = vmatprep.subr.mxu0 0.0
  %6289 = vmatpush1.msra.mxu0 0.0
  %6290 = vmatprep.subr.mxu0 0.0
  %6291 = vmatpush1.msra.mxu0 0.0
  %6292 = vmatprep.subr.mxu0 0.0
  %6293 = vmatpush1.msra.mxu0 0.0
  %6294 = vmatprep.subr.mxu0 0.0
  %6295 = vmatpush1.msra.mxu0 0.0
  %6296 = vmatprep.subr.mxu0 0.0
  %6297 = vmatpush1.msra.mxu0 0.0
  %6298 = vmatprep.subr.mxu0 0.0
  %6299 = vmatpush1.msra.mxu0 0.0
  %6300 = vmatprep.subr.mxu0 0.0
  %6301 = vmatpush1.msra.mxu0 0.0
  %6302 = vmatprep.subr.mxu0 0.0
  %6303 = vmatpush1.msra.mxu0 0.0
  %6304 = vmatprep.subr.mxu0 0.0
  %6305 = vmatpush1.msra.mxu0 0.0
  %6306 = vmatprep.subr.mxu0 0.0
  %6307 = vmatpush1.msra.mxu0 0.0
  %6308 = vmatprep.subr.mxu0 0.0
  %6309 = vmatpush1.msra.mxu0 0.0
  %6310 = vmatprep.subr.mxu0 0.0
  %6311 = vmatpush1.msra.mxu0 0.0
  %6312 = vmatprep.subr.mxu0 0.0
  %6313 = vmatpush1.msra.mxu0 0.0
  %6314 = vmatprep.subr.mxu0 0.0
  %6315 = vmatpush1.msra.mxu0 0.0
  %6316 = vmatprep.mubr.f32.mxu0 0.0
  %6317 = vmatmul.mubr.f32.gmra.mrb[0].mxu0 %v6171
  %v6318 = vpop.f32.mrb[0].mxu0
  %v6319 = vadd.f32 0.0, %v6318
  %v6320 = vpop.f32.mrb[0].mxu0
  %6321 = vmatprep.mubr.f32.mxu0 0.0
  %6322 = vmatmul.mubr.f32.gmra.mrb[0].mxu0 %v6172
  %v6323 = vpop.f32.mrb[0].mxu0
  %v6324 = vadd.f32 0.0, %v6323
  %v6325 = vpop.f32.mrb[0].mxu0
  %6326 = vmatprep.mubr.f32.mxu0 0.0
  %6327 = vmatmul.mubr.f32.gmra.mrb[0].mxu0 %v6173
  %v6328 = vpop.f32.mrb[0].mxu0
  %v6329 = vadd.f32 0.0, %v6328
  %v6330 = vpop.f32.mrb[0].mxu0
  %6331 = vmatprep.mubr.f32.mxu0 0.0
  %6332 = vmatmul.mubr.f32.gmra.mrb[0].mxu0 %v6174
  %v6333 = vpop.f32.mrb[0].mxu0
  %v6334 = vadd.f32 0.0, %v6333
  %v6335 = vpop.f32.mrb[0].mxu0
  %6336 = vmatprep.mubr.f32.mxu0 0.0
  %6337 = vmatmul.mubr.f32.gmra.mrb[0].mxu0 %v6175
  %v6338 = vpop.f32.mrb[0].mxu0
  %v6339 = vadd.f32 0.0, %v6338
  %v6340 = vpop.f32.mrb[0].mxu0
  %6341 = vmatprep.mubr.f32.mxu0 0.0
  %6342 = vmatmul.mubr.f32.gmra.mrb[0].mxu0 %v6176
  %v6343 = vpop.f32.mrb[0].mxu0
  %v6344 = vadd.f32 0.0, %v6343
  %v6345 = vpop.f32.mrb[0].mxu0
  %6346 = vmatprep.mubr.f32.mxu0 0.0
  %6347 = vmatmul.mubr.f32.gmra.mrb[0].mxu0 %v6177
  %v6348 = vpop.f32.mrb[0].mxu0
  %v6349 = vadd.f32 0.0, %v6348
  %v6350 = vpop.f32.mrb[0].mxu0
  %6351 = vmatprep.mubr.f32.mxu0 0.0
  %6352 = vmatmul.mubr.f32.gmra.mrb[0].mxu0 %v6178
  %v6353 = vpop.f32.mrb[0].mxu0
  %v6354 = vadd.f32 0.0, %v6353
  %v6355 = vpop.f32.mrb[0].mxu0
  %6356 = vmatprep.mubr.f32.mxu0 0.0
  %6357 = vmatmul.mubr.f32.gmra.mrb[0].mxu0 %v6179
  %v6358 = vpop.f32.mrb[0].mxu0
  %v6359 = vadd.f32 0.0, %v6358
  %v6360 = vpop.f32.mrb[0].mxu0
  %6361 = vmatprep.mubr.f32.mxu0 0.0
  %6362 = vmatmul.mubr.f32.gmra.mrb[0].mxu0 %v6180
  %v6363 = vpop.f32.mrb[0].mxu0
  %v6364 = vadd.f32 0.0, %v6363
  %v6365 = vpop.f32.mrb[0].mxu0
  %6366 = vmatprep.mubr.f32.mxu0 0.0
  %6367 = vmatmul.mubr.f32.gmra.mrb[0].mxu0 %v6181
  %v6368 = vpop.f32.mrb[0].mxu0
  %v6369 = vadd.f32 0.0, %v6368
  %v6370 = vpop.f32.mrb[0].mxu0
  %6371 = vmatprep.mubr.f32.mxu0 0.0
  %6372 = vmatmul.mubr.f32.gmra.mrb[0].mxu0 %v6182
  %v6373 = vpop.f32.mrb[0].mxu0
  %v6374 = vadd.f32 0.0, %v6373
  %v6375 = vpop.f32.mrb[0].mxu0
  %6376 = vmatprep.mubr.f32.mxu0 0.0
  %6377 = vmatmul.mubr.f32.gmra.mrb[0].mxu0 %v6183
  %v6378 = vpop.f32.mrb[0].mxu0
  %v6379 = vadd.f32 0.0, %v6378
  %v6380 = vpop.f32.mrb[0].mxu0
  %6381 = vmatprep.mubr.f32.mxu0 0.0
  %6382 = vmatmul.mubr.f32.gmra.mrb[0].mxu0 %v6184
  %v6383 = vpop.f32.mrb[0].mxu0
  %v6384 = vadd.f32 0.0, %v6383
  %v6385 = vpop.f32.mrb[0].mxu0
  %6386 = vmatprep.mubr.f32.mxu0 0.0
  %6387 = vmatmul.mubr.f32.gmra.mrb[0].mxu0 %v6185
  %v6388 = vpop.f32.mrb[0].mxu0
  %v6389 = vadd.f32 0.0, %v6388
  %v6390 = vpop.f32.mrb[0].mxu0
  %6391 = vmatprep.mubr.f32.mxu0 0.0
  %6392 = vmatmul.mubr.f32.gmra.mrb[0].mxu0 %v6186
  %v6393 = vpop.f32.mrb[0].mxu0
  %v6394 = vadd.f32 0.0, %v6393
  %v6395 = vpop.f32.mrb[0].mxu0
  %6396 = vmatprep.mubr.f32.mxu0 0.0
  %6397 = vmatmul.mubr.f32.gmra.mrb[0].mxu0 %v6187
  %v6398 = vpop.f32.mrb[0].mxu0
  %v6399 = vadd.f32 0.0, %v6398
  %v6400 = vpop.f32.mrb[0].mxu0
  %6401 = vmatprep.mubr.f32.mxu0 0.0
  %6402 = vmatmul.mubr.f32.gmra.mrb[0].mxu0 %v6188
  %v6403 = vpop.f32.mrb[0].mxu0
  %v6404 = vadd.f32 0.0, %v6403
  %v6405 = vpop.f32.mrb[0].mxu0
  %6406 = vmatprep.mubr.f32.mxu0 0.0
  %6407 = vmatmul.mubr.f32.gmra.mrb[0].mxu0 %v6189
  %v6408 = vpop.f32.mrb[0].mxu0
  %v6409 = vadd.f32 0.0, %v6408
  %v6410 = vpop.f32.mrb[0].mxu0
  %6411 = vmatprep.mubr.f32.mxu0 0.0
  %6412 = vmatmul.mubr.f32.gmra.mrb[0].mxu0 %v6190
  %v6413 = vpop.f32.mrb[0].mxu0
  %v6414 = vadd.f32 0.0, %v6413
  %v6415 = vpop.f32.mrb[0].mxu0
  %6416 = vmatprep.mubr.f32.mxu0 0.0
  %6417 = vmatmul.mubr.f32.gmra.mrb[0].mxu0 %v6191
  %v6418 = vpop.f32.mrb[0].mxu0
  %v6419 = vadd.f32 0.0, %v6418
  %v6420 = vpop.f32.mrb[0].mxu0
  %6421 = vmatprep.mubr.f32.mxu0 0.0
  %6422 = vmatmul.mubr.f32.gmra.mrb[0].mxu0 %v6192
  %v6423 = vpop.f32.mrb[0].mxu0
  %v6424 = vadd.f32 0.0, %v6423
  %v6425 = vpop.f32.mrb[0].mxu0
  %6426 = vmatprep.mubr.f32.mxu0 0.0
  %6427 = vmatmul.mubr.f32.gmra.mrb[0].mxu0 %v6193
  %v6428 = vpop.f32.mrb[0].mxu0
  %v6429 = vadd.f32 0.0, %v6428
  %v6430 = vpop.f32.mrb[0].mxu0
  %6431 = vmatprep.mubr.f32.mxu0 0.0
  %6432 = vmatmul.mubr.f32.gmra.mrb[0].mxu0 %v6194
  %v6433 = vpop.f32.mrb[0].mxu0
  %v6434 = vadd.f32 0.0, %v6433
  %v6435 = vpop.f32.mrb[0].mxu0
  %6436 = vmatprep.mubr.f32.mxu0 0.0
  %6437 = vmatmul.mubr.f32.gmra.mrb[0].mxu0 %v6195
  %v6438 = vpop.f32.mrb[0].mxu0
  %v6439 = vadd.f32 0.0, %v6438
  %v6440 = vpop.f32.mrb[0].mxu0
  %6441 = vmatprep.mubr.f32.mxu0 0.0
  %6442 = vmatmul.mubr.f32.gmra.mrb[0].mxu0 %v6196
  %v6443 = vpop.f32.mrb[0].mxu0
  %v6444 = vadd.f32 0.0, %v6443
  %v6445 = vpop.f32.mrb[0].mxu0
  %6446 = vmatprep.mubr.f32.mxu0 0.0
  %6447 = vmatmul.mubr.f32.gmra.mrb[0].mxu0 %v6197
  %v6448 = vpop.f32.mrb[0].mxu0
  %v6449 = vadd.f32 0.0, %v6448
  %v6450 = vpop.f32.mrb[0].mxu0
  %6451 = vmatprep.mubr.f32.mxu0 0.0
  %6452 = vmatmul.mubr.f32.gmra.mrb[0].mxu0 %v6198
  %v6453 = vpop.f32.mrb[0].mxu0
  %v6454 = vadd.f32 0.0, %v6453
  %v6455 = vpop.f32.mrb[0].mxu0
  %6456 = vmatprep.mubr.f32.mxu0 0.0
  %6457 = vmatmul.mubr.f32.gmra.mrb[0].mxu0 %v6199
  %v6458 = vpop.f32.mrb[0].mxu0
  %v6459 = vadd.f32 0.0, %v6458
  %v6460 = vpop.f32.mrb[0].mxu0
  %6461 = vmatprep.mubr.f32.mxu0 0.0
  %6462 = vmatmul.mubr.f32.gmra.mrb[0].mxu0 %v6200
  %v6463 = vpop.f32.mrb[0].mxu0
  %v6464 = vadd.f32 0.0, %v6463
  %v6465 = vpop.f32.mrb[0].mxu0
  %6466 = vmatprep.mubr.f32.mxu0 0.0
  %6467 = vmatmul.mubr.f32.gmra.mrb[0].mxu0 %v6201
  %v6468 = vpop.f32.mrb[0].mxu0
  %v6469 = vadd.f32 0.0, %v6468
  %v6470 = vpop.f32.mrb[0].mxu0
  %6471 = vmatprep.mubr.f32.mxu0 0.0
  %6472 = vmatmul.mubr.f32.gmra.mrb[0].mxu0 %v6202
  %v6473 = vpop.f32.mrb[0].mxu0
  %v6474 = vadd.f32 0.0, %v6473
  %v6475 = vpop.f32.mrb[0].mxu0
  %6476 = vmatprep.mubr.f32.mxu0 0.0
  %6477 = vmatmul.mubr.f32.gmra.mrb[0].mxu0 %v6203
  %v6478 = vpop.f32.mrb[0].mxu0
  %v6479 = vadd.f32 0.0, %v6478
  %v6480 = vpop.f32.mrb[0].mxu0
  %6481 = vmatprep.mubr.f32.mxu0 0.0
  %6482 = vmatmul.mubr.f32.gmra.mrb[0].mxu0 %v6204
  %v6483 = vpop.f32.mrb[0].mxu0
  %v6484 = vadd.f32 0.0, %v6483
  %v6485 = vpop.f32.mrb[0].mxu0
  %6486 = vmatprep.mubr.f32.mxu0 0.0
  %6487 = vmatmul.mubr.f32.gmra.mrb[0].mxu0 %v6205
  %v6488 = vpop.f32.mrb[0].mxu0
  %v6489 = vadd.f32 0.0, %v6488
  %v6490 = vpop.f32.mrb[0].mxu0
  %6491 = vmatprep.mubr.f32.mxu0 0.0
  %6492 = vmatmul.mubr.f32.gmra.mrb[0].mxu0 %v6206
  %v6493 = vpop.f32.mrb[0].mxu0
  %v6494 = vadd.f32 0.0, %v6493
  %v6495 = vpop.f32.mrb[0].mxu0
  %6496 = vmatprep.mubr.f32.mxu0 0.0
  %6497 = vmatmul.mubr.f32.gmra.mrb[0].mxu0 %v6207
  %v6498 = vpop.f32.mrb[0].mxu0
  %v6499 = vadd.f32 0.0, %v6498
  %v6500 = vpop.f32.mrb[0].mxu0
  %6501 = vmatprep.mubr.f32.mxu0 0.0
  %6502 = vmatmul.mubr.f32.gmra.mrb[0].mxu0 %v6208
  %v6503 = vpop.f32.mrb[0].mxu0
  %v6504 = vadd.f32 0.0, %v6503
  %v6505 = vpop.f32.mrb[0].mxu0
  %6506 = vmatprep.mubr.f32.mxu0 0.0
  %6507 = vmatmul.mubr.f32.gmra.mrb[0].mxu0 %v6209
  %v6508 = vpop.f32.mrb[0].mxu0
  %v6509 = vadd.f32 0.0, %v6508
  %v6510 = vpop.f32.mrb[0].mxu0
  %6511 = vmatprep.mubr.f32.mxu0 0.0
  %6512 = vmatmul.mubr.f32.gmra.mrb[0].mxu0 %v6210
  %v6513 = vpop.f32.mrb[0].mxu0
  %v6514 = vadd.f32 0.0, %v6513
  %v6515 = vpop.f32.mrb[0].mxu0
  %6516 = vmatprep.mubr.f32.mxu0 0.0
  %6517 = vmatmul.mubr.f32.gmra.mrb[0].mxu0 %v6211
  %v6518 = vpop.f32.mrb[0].mxu0
  %v6519 = vadd.f32 0.0, %v6518
  %v6520 = vpop.f32.mrb[0].mxu0
  %6521 = vmatprep.mubr.f32.mxu0 0.0
  %6522 = vmatmul.mubr.f32.gmra.mrb[0].mxu0 %v6212
  %v6523 = vpop.f32.mrb[0].mxu0
  %v6524 = vadd.f32 0.0, %v6523
  %v6525 = vpop.f32.mrb[0].mxu0
  %6526 = vmatprep.mubr.f32.mxu0 0.0
  %6527 = vmatmul.mubr.f32.gmra.mrb[0].mxu0 %v6213
  %v6528 = vpop.f32.mrb[0].mxu0
  %v6529 = vadd.f32 0.0, %v6528
  %v6530 = vpop.f32.mrb[0].mxu0
  %6531 = vmatprep.mubr.f32.mxu0 0.0
  %6532 = vmatmul.mubr.f32.gmra.mrb[0].mxu0 %v6214
  %v6533 = vpop.f32.mrb[0].mxu0
  %v6534 = vadd.f32 0.0, %v6533
  %v6535 = vpop.f32.mrb[0].mxu0
  %6536 = vmatprep.mubr.f32.mxu0 0.0
  %6537 = vmatmul.mubr.f32.gmra.mrb[0].mxu0 %v6215
  %v6538 = vpop.f32.mrb[0].mxu0
  %v6539 = vadd.f32 0.0, %v6538
  %v6540 = vpop.f32.mrb[0].mxu0
  %6541 = vmatprep.mubr.f32.mxu0 0.0
  %6542 = vmatmul.mubr.f32.gmra.mrb[0].mxu0 %v6216
  %v6543 = vpop.f32.mrb[0].mxu0
  %v6544 = vadd.f32 0.0, %v6543
  %v6545 = vpop.f32.mrb[0].mxu0
  %6546 = vmatprep.mubr.f32.mxu0 0.0
  %6547 = vmatmul.mubr.f32.gmra.mrb[0].mxu0 %v6217
  %v6548 = vpop.f32.mrb[0].mxu0
  %v6549 = vadd.f32 0.0, %v6548
  %v6550 = vpop.f32.mrb[0].mxu0
  %6551 = vmatprep.mubr.f32.mxu0 0.0
  %6552 = vmatmul.mubr.f32.gmra.mrb[0].mxu0 %v6218
  %v6553 = vpop.f32.mrb[0].mxu0
  %v6554 = vadd.f32 0.0, %v6553
  %v6555 = vpop.f32.mrb[0].mxu0
  %6556 = vmatprep.mubr.f32.mxu0 0.0
  %6557 = vmatmul.mubr.f32.gmra.mrb[0].mxu0 %v6219
  %v6558 = vpop.f32.mrb[0].mxu0
  %v6559 = vadd.f32 0.0, %v6558
  %v6560 = vpop.f32.mrb[0].mxu0
  %6561 = vmatprep.mubr.f32.mxu0 0.0
  %6562 = vmatmul.mubr.f32.gmra.mrb[0].mxu0 %v6220
  %v6563 = vpop.f32.mrb[0].mxu0
  %v6564 = vadd.f32 0.0, %v6563
  %v6565 = vpop.f32.mrb[0].mxu0
  %6566 = vmatprep.mubr.f32.mxu0 0.0
  %6567 = vmatmul.mubr.f32.gmra.mrb[0].mxu0 %v6221
  %v6568 = vpop.f32.mrb[0].mxu0
  %v6569 = vadd.f32 0.0, %v6568
  %v6570 = vpop.f32.mrb[0].mxu0
  %6571 = vmatprep.mubr.f32.mxu0 0.0
  %6572 = vmatmul.mubr.f32.gmra.mrb[0].mxu0 %v6222
  %v6573 = vpop.f32.mrb[0].mxu0
  %v6574 = vadd.f32 0.0, %v6573
  %v6575 = vpop.f32.mrb[0].mxu0
  %6576 = vmatprep.mubr.f32.mxu0 0.0
  %6577 = vmatmul.mubr.f32.gmra.mrb[0].mxu0 %v6223
  %v6578 = vpop.f32.mrb[0].mxu0
  %v6579 = vadd.f32 0.0, %v6578
  %v6580 = vpop.f32.mrb[0].mxu0
  %6581 = vmatprep.mubr.f32.mxu0 0.0
  %6582 = vmatmul.mubr.f32.gmra.mrb[0].mxu0 %v6224
  %v6583 = vpop.f32.mrb[0].mxu0
  %v6584 = vadd.f32 0.0, %v6583
  %v6585 = vpop.f32.mrb[0].mxu0
  %6586 = vmatprep.mubr.f32.mxu0 0.0
  %6587 = vmatmul.mubr.f32.gmra.mrb[0].mxu0 %v6225
  %v6588 = vpop.f32.mrb[0].mxu0
  %v6589 = vadd.f32 0.0, %v6588
  %v6590 = vpop.f32.mrb[0].mxu0
  %6591 = vmatprep.mubr.f32.mxu0 0.0
  %6592 = vmatmul.mubr.f32.gmra.mrb[0].mxu0 %v6226
  %v6593 = vpop.f32.mrb[0].mxu0
  %v6594 = vadd.f32 0.0, %v6593
  %v6595 = vpop.f32.mrb[0].mxu0
  %6596 = vmatprep.mubr.f32.mxu0 0.0
  %6597 = vmatmul.mubr.f32.gmra.mrb[0].mxu0 %v6227
  %v6598 = vpop.f32.mrb[0].mxu0
  %v6599 = vadd.f32 0.0, %v6598
  %v6600 = vpop.f32.mrb[0].mxu0
  %6601 = vmatprep.mubr.f32.mxu0 0.0
  %6602 = vmatmul.mubr.f32.gmra.mrb[0].mxu0 %v6228
  %v6603 = vpop.f32.mrb[0].mxu0
  %v6604 = vadd.f32 0.0, %v6603
  %v6605 = vpop.f32.mrb[0].mxu0
  %6606 = vmatprep.mubr.f32.mxu0 0.0
  %6607 = vmatmul.mubr.f32.gmra.mrb[0].mxu0 %v6229
  %v6608 = vpop.f32.mrb[0].mxu0
  %v6609 = vadd.f32 0.0, %v6608
  %v6610 = vpop.f32.mrb[0].mxu0
  %6611 = vmatprep.mubr.f32.mxu0 0.0
  %6612 = vmatmul.mubr.f32.gmra.mrb[0].mxu0 %v6230
  %v6613 = vpop.f32.mrb[0].mxu0
  %v6614 = vadd.f32 0.0, %v6613
  %v6615 = vpop.f32.mrb[0].mxu0
  %6616 = vmatprep.mubr.f32.mxu0 0.0
  %6617 = vmatmul.mubr.f32.gmra.mrb[0].mxu0 %v6231
  %v6618 = vpop.f32.mrb[0].mxu0
  %v6619 = vadd.f32 0.0, %v6618
  %v6620 = vpop.f32.mrb[0].mxu0
  %6621 = vmatprep.mubr.f32.mxu0 0.0
  %6622 = vmatmul.mubr.f32.gmra.mrb[0].mxu0 %v6232
  %v6623 = vpop.f32.mrb[0].mxu0
  %v6624 = vadd.f32 0.0, %v6623
  %v6625 = vpop.f32.mrb[0].mxu0
  %6626 = vmatprep.mubr.f32.mxu0 0.0
  %6627 = vmatmul.mubr.f32.gmra.mrb[0].mxu0 %v6233
  %v6628 = vpop.f32.mrb[0].mxu0
  %v6629 = vadd.f32 0.0, %v6628
  %v6630 = vpop.f32.mrb[0].mxu0
  %6631 = vmatprep.mubr.f32.mxu0 0.0
  %6632 = vmatmul.mubr.f32.gmra.mrb[0].mxu0 %v6234
  %v6633 = vpop.f32.mrb[0].mxu0
  %v6634 = vadd.f32 0.0, %v6633
  %v6635 = vpop.f32.mrb[0].mxu0
  %6636 = vdwg.mxu0
  %v6637 = vadd.f32 %v5853, %v6319
  %v6638 = vadd.f32 %v5858, %v6324
  %v6639 = vadd.f32 %v5863, %v6329
  %v6640 = vadd.f32 %v5868, %v6334
  %v6641 = vadd.f32 %v5873, %v6339
  %v6642 = vadd.f32 %v5878, %v6344
  %v6643 = vadd.f32 %v5883, %v6349
  %v6644 = vadd.f32 %v5888, %v6354
  %v6645 = vadd.f32 %v5893, %v6359
  %v6646 = vadd.f32 %v5898, %v6364
  %v6647 = vadd.f32 %v5903, %v6369
  %v6648 = vadd.f32 %v5908, %v6374
  %v6649 = vadd.f32 %v5913, %v6379
  %v6650 = vadd.f32 %v5918, %v6384
  %v6651 = vadd.f32 %v5923, %v6389
  %v6652 = vadd.f32 %v5928, %v6394
  %v6653 = vadd.f32 %v5933, %v6399
  %v6654 = vadd.f32 %v5938, %v6404
  %v6655 = vadd.f32 %v5943, %v6409
  %v6656 = vadd.f32 %v5948, %v6414
  %v6657 = vadd.f32 %v5953, %v6419
  %v6658 = vadd.f32 %v5958, %v6424
  %v6659 = vadd.f32 %v5963, %v6429
  %v6660 = vadd.f32 %v5968, %v6434
  %v6661 = vadd.f32 %v5973, %v6439
  %v6662 = vadd.f32 %v5978, %v6444
  %v6663 = vadd.f32 %v5983, %v6449
  %v6664 = vadd.f32 %v5988, %v6454
  %v6665 = vadd.f32 %v5993, %v6459
  %v6666 = vadd.f32 %v5998, %v6464
  %v6667 = vadd.f32 %v6003, %v6469
  %v6668 = vadd.f32 %v6008, %v6474
  %v6669 = vadd.f32 %v6013, %v6479
  %v6670 = vadd.f32 %v6018, %v6484
  %v6671 = vadd.f32 %v6023, %v6489
  %v6672 = vadd.f32 %v6028, %v6494
  %v6673 = vadd.f32 %v6033, %v6499
  %v6674 = vadd.f32 %v6038, %v6504
  %v6675 = vadd.f32 %v6043, %v6509
  %v6676 = vadd.f32 %v6048, %v6514
  %v6677 = vadd.f32 %v6053, %v6519
  %v6678 = vadd.f32 %v6058, %v6524
  %v6679 = vadd.f32 %v6063, %v6529
  %v6680 = vadd.f32 %v6068, %v6534
  %v6681 = vadd.f32 %v6073, %v6539
  %v6682 = vadd.f32 %v6078, %v6544
  %v6683 = vadd.f32 %v6083, %v6549
  %v6684 = vadd.f32 %v6088, %v6554
  %v6685 = vadd.f32 %v6093, %v6559
  %v6686 = vadd.f32 %v6098, %v6564
  %v6687 = vadd.f32 %v6103, %v6569
  %v6688 = vadd.f32 %v6108, %v6574
  %v6689 = vadd.f32 %v6113, %v6579
  %v6690 = vadd.f32 %v6118, %v6584
  %v6691 = vadd.f32 %v6123, %v6589
  %v6692 = vadd.f32 %v6128, %v6594
  %v6693 = vadd.f32 %v6133, %v6599
  %v6694 = vadd.f32 %v6138, %v6604
  %v6695 = vadd.f32 %v6143, %v6609
  %v6696 = vadd.f32 %v6148, %v6614
  %v6697 = vadd.f32 %v6153, %v6619
  %v6698 = vadd.f32 %v6158, %v6624
  %v6699 = vadd.f32 %v6163, %v6629
  %v6700 = vadd.f32 %v6168, %v6634
  %v6701 = vld [vmem:[%s5175] sm:$0xff]
  %v6702 = vld [vmem:[%s5175 + $0x8] sm:$0xff]
  %v6703 = vld [vmem:[%s5175 + $0x18] sm:$0xff]
  %v6704 = vld [vmem:[%s5175 + $0x20] sm:$0xff]
  %v6705 = vld [vmem:[%s5175 + $0x30] sm:$0xff]
  %v6706 = vld [vmem:[%s5175 + $0x38] sm:$0xff]
  %v6707 = vld [vmem:[%s5175 + $0x48] sm:$0xff]
  %v6708 = vld [vmem:[%s5175 + $0x50] sm:$0xff]
  %v6709 = vld [vmem:[%s5175 + $0x60] sm:$0xff]
  %v6710 = vld [vmem:[%s5175 + $0x68] sm:$0xff]
  %v6711 = vld [vmem:[%s5175 + $0x78] sm:$0xff]
  %v6712 = vld [vmem:[%s5175 + $0x80] sm:$0xff]
  %v6713 = vld [vmem:[%s5175 + $0x90] sm:$0xff]
  %v6714 = vld [vmem:[%s5175 + $0x98] sm:$0xff]
  %v6715 = vld [vmem:[%s5175 + $0xa8] sm:$0xff]
  %v6716 = vld [vmem:[%s5175 + $0xb0] sm:$0xff]
  %v6717 = vld [vmem:[%s5175 + $0xc0] sm:$0xff]
  %v6718 = vld [vmem:[%s5175 + $0xc8] sm:$0xff]
  %v6719 = vld [vmem:[%s5175 + $0xd8] sm:$0xff]
  %v6720 = vld [vmem:[%s5175 + $0xe0] sm:$0xff]
  %v6721 = vld [vmem:[%s5175 + $0xf0] sm:$0xff]
  %v6722 = vld [vmem:[%s5175 + $0xf8] sm:$0xff]
  %v6723 = vld [vmem:[%s5175 + $0x108] sm:$0xff]
  %v6724 = vld [vmem:[%s5175 + $0x110] sm:$0xff]
  %v6725 = vld [vmem:[%s5175 + $0x120] sm:$0xff]
  %v6726 = vld [vmem:[%s5175 + $0x128] sm:$0xff]
  %v6727 = vld [vmem:[%s5175 + $0x138] sm:$0xff]
  %v6728 = vld [vmem:[%s5175 + $0x140] sm:$0xff]
  %v6729 = vld [vmem:[%s5175 + $0x150] sm:$0xff]
  %v6730 = vld [vmem:[%s5175 + $0x158] sm:$0xff]
  %v6731 = vld [vmem:[%s5175 + $0x168] sm:$0xff]
  %v6732 = vld [vmem:[%s5175 + $0x170] sm:$0xff]
  %v6733 = vld [vmem:[%s5175 + $0x1b0] sm:$0xff]
  %v6734 = vld [vmem:[%s5175 + $0x1b8] sm:$0xff]
  %v6735 = vld [vmem:[%s5175 + $0x1c8] sm:$0xff]
  %v6736 = vld [vmem:[%s5175 + $0x1d0] sm:$0xff]
  %v6737 = vld [vmem:[%s5175 + $0x1e0] sm:$0xff]
  %v6738 = vld [vmem:[%s5175 + $0x1e8] sm:$0xff]
  %v6739 = vld [vmem:[%s5175 + $0x1f8] sm:$0xff]
  %v6740 = vld [vmem:[%s5175 + $0x200] sm:$0xff]
  %v6741 = vld [vmem:[%s5175 + $0x210] sm:$0xff]
  %v6742 = vld [vmem:[%s5175 + $0x218] sm:$0xff]
  %v6743 = vld [vmem:[%s5175 + $0x228] sm:$0xff]
  %v6744 = vld [vmem:[%s5175 + $0x230] sm:$0xff]
  %v6745 = vld [vmem:[%s5175 + $0x240] sm:$0xff]
  %v6746 = vld [vmem:[%s5175 + $0x248] sm:$0xff]
  %v6747 = vld [vmem:[%s5175 + $0x258] sm:$0xff]
  %v6748 = vld [vmem:[%s5175 + $0x260] sm:$0xff]
  %v6749 = vld [vmem:[%s5175 + $0x270] sm:$0xff]
  %v6750 = vld [vmem:[%s5175 + $0x278] sm:$0xff]
  %v6751 = vld [vmem:[%s5175 + $0x288] sm:$0xff]
  %v6752 = vld [vmem:[%s5175 + $0x290] sm:$0xff]
  %v6753 = vld [vmem:[%s5175 + $0x2a0] sm:$0xff]
  %v6754 = vld [vmem:[%s5175 + $0x2a8] sm:$0xff]
  %v6755 = vld [vmem:[%s5175 + $0x2b8] sm:$0xff]
  %v6756 = vld [vmem:[%s5175 + $0x2c0] sm:$0xff]
  %v6757 = vld [vmem:[%s5175 + $0x2d0] sm:$0xff]
  %v6758 = vld [vmem:[%s5175 + $0x2d8] sm:$0xff]
  %v6759 = vld [vmem:[%s5175 + $0x2e8] sm:$0xff]
  %v6760 = vld [vmem:[%s5175 + $0x2f0] sm:$0xff]
  %v6761 = vld [vmem:[%s5175 + $0x300] sm:$0xff]
  %v6762 = vld [vmem:[%s5175 + $0x308] sm:$0xff]
  %v6763 = vld [vmem:[%s5175 + $0x318] sm:$0xff]
  %v6764 = vld [vmem:[%s5175 + $0x320] sm:$0xff]
  %s6765 = scalar_lea.vmem %s3, 384
  %v6766 = vld [vmem:[%s6765] sm:$0xff]
  %v6767 = vld [vmem:[%s6765 + $0x8] sm:$0xff]
  %v6768 = vld [vmem:[%s6765 + $0x10] sm:$0xff]
  %v6769 = vld [vmem:[%s6765 + $0x18] sm:$0xff]
  %v6770 = vld [vmem:[%s6765 + $0x20] sm:$0xff]
  %v6771 = vld [vmem:[%s6765 + $0x28] sm:$0xff]
  %v6772 = vld [vmem:[%s6765 + $0x30] sm:$0xff]
  %v6773 = vld [vmem:[%s6765 + $0x38] sm:$0xff]
  %v6774 = vld [vmem:[%s6765 + $0x40] sm:$0xff]
  %v6775 = vld [vmem:[%s6765 + $0x48] sm:$0xff]
  %v6776 = vld [vmem:[%s6765 + $0x50] sm:$0xff]
  %v6777 = vld [vmem:[%s6765 + $0x58] sm:$0xff]
  %v6778 = vld [vmem:[%s6765 + $0x60] sm:$0xff]
  %v6779 = vld [vmem:[%s6765 + $0x68] sm:$0xff]
  %v6780 = vld [vmem:[%s6765 + $0x70] sm:$0xff]
  %v6781 = vld [vmem:[%s6765 + $0x78] sm:$0xff]
  %6782 = vmatprep.subr.mxu0 0.0
  %6783 = vmatpush1.msra.mxu0 %v6766
  %6784 = vmatprep.subr.mxu0 0.0
  %6785 = vmatpush1.msra.mxu0 %v6767
  %6786 = vmatprep.subr.mxu0 0.0
  %6787 = vmatpush1.msra.mxu0 %v6768
  %6788 = vmatprep.subr.mxu0 0.0
  %6789 = vmatpush1.msra.mxu0 %v6769
  %6790 = vmatprep.subr.mxu0 0.0
  %6791 = vmatpush1.msra.mxu0 %v6770
  %6792 = vmatprep.subr.mxu0 0.0
  %6793 = vmatpush1.msra.mxu0 %v6771
  %6794 = vmatprep.subr.mxu0 0.0
  %6795 = vmatpush1.msra.mxu0 %v6772
  %6796 = vmatprep.subr.mxu0 0.0
  %6797 = vmatpush1.msra.mxu0 %v6773
  %6798 = vmatprep.subr.mxu0 0.0
  %6799 = vmatpush1.msra.mxu0 %v6774
  %6800 = vmatprep.subr.mxu0 0.0
  %6801 = vmatpush1.msra.mxu0 %v6775
  %6802 = vmatprep.subr.mxu0 0.0
  %6803 = vmatpush1.msra.mxu0 %v6776
  %6804 = vmatprep.subr.mxu0 0.0
  %6805 = vmatpush1.msra.mxu0 %v6777
  %6806 = vmatprep.subr.mxu0 0.0
  %6807 = vmatpush1.msra.mxu0 %v6778
  %6808 = vmatprep.subr.mxu0 0.0
  %6809 = vmatpush1.msra.mxu0 %v6779
  %6810 = vmatprep.subr.mxu0 0.0
  %6811 = vmatpush1.msra.mxu0 %v6780
  %6812 = vmatprep.subr.mxu0 0.0
  %6813 = vmatpush1.msra.mxu0 %v6781
  %6814 = vmatprep.subr.mxu0 0.0
  %6815 = vmatpush1.msra.mxu0 0.0
  %6816 = vmatprep.subr.mxu0 0.0
  %6817 = vmatpush1.msra.mxu0 0.0
  %6818 = vmatprep.subr.mxu0 0.0
  %6819 = vmatpush1.msra.mxu0 0.0
  %6820 = vmatprep.subr.mxu0 0.0
  %6821 = vmatpush1.msra.mxu0 0.0
  %6822 = vmatprep.subr.mxu0 0.0
  %6823 = vmatpush1.msra.mxu0 0.0
  %6824 = vmatprep.subr.mxu0 0.0
  %6825 = vmatpush1.msra.mxu0 0.0
  %6826 = vmatprep.subr.mxu0 0.0
  %6827 = vmatpush1.msra.mxu0 0.0
  %6828 = vmatprep.subr.mxu0 0.0
  %6829 = vmatpush1.msra.mxu0 0.0
  %6830 = vmatprep.subr.mxu0 0.0
  %6831 = vmatpush1.msra.mxu0 0.0
  %6832 = vmatprep.subr.mxu0 0.0
  %6833 = vmatpush1.msra.mxu0 0.0
  %6834 = vmatprep.subr.mxu0 0.0
  %6835 = vmatpush1.msra.mxu0 0.0
  %6836 = vmatprep.subr.mxu0 0.0
  %6837 = vmatpush1.msra.mxu0 0.0
  %6838 = vmatprep.subr.mxu0 0.0
  %6839 = vmatpush1.msra.mxu0 0.0
  %6840 = vmatprep.subr.mxu0 0.0
  %6841 = vmatpush1.msra.mxu0 0.0
  %6842 = vmatprep.subr.mxu0 0.0
  %6843 = vmatpush1.msra.mxu0 0.0
  %6844 = vmatprep.subr.mxu0 0.0
  %6845 = vmatpush1.msra.mxu0 0.0
  %6846 = vmatprep.mubr.f32.mxu0 0.0
  %6847 = vmatmul.mubr.f32.gmra.mrb[0].mxu0 %v6701
  %v6848 = vpop.f32.mrb[0].mxu0
  %v6849 = vadd.f32 0.0, %v6848
  %v6850 = vpop.f32.mrb[0].mxu0
  %6851 = vmatprep.mubr.f32.mxu0 0.0
  %6852 = vmatmul.mubr.f32.gmra.mrb[0].mxu0 %v6702
  %v6853 = vpop.f32.mrb[0].mxu0
  %v6854 = vadd.f32 0.0, %v6853
  %v6855 = vpop.f32.mrb[0].mxu0
  %6856 = vmatprep.mubr.f32.mxu0 0.0
  %6857 = vmatmul.mubr.f32.gmra.mrb[0].mxu0 %v6703
  %v6858 = vpop.f32.mrb[0].mxu0
  %v6859 = vadd.f32 0.0, %v6858
  %v6860 = vpop.f32.mrb[0].mxu0
  %6861 = vmatprep.mubr.f32.mxu0 0.0
  %6862 = vmatmul.mubr.f32.gmra.mrb[0].mxu0 %v6704
  %v6863 = vpop.f32.mrb[0].mxu0
  %v6864 = vadd.f32 0.0, %v6863
  %v6865 = vpop.f32.mrb[0].mxu0
  %6866 = vmatprep.mubr.f32.mxu0 0.0
  %6867 = vmatmul.mubr.f32.gmra.mrb[0].mxu0 %v6705
  %v6868 = vpop.f32.mrb[0].mxu0
  %v6869 = vadd.f32 0.0, %v6868
  %v6870 = vpop.f32.mrb[0].mxu0
  %6871 = vmatprep.mubr.f32.mxu0 0.0
  %6872 = vmatmul.mubr.f32.gmra.mrb[0].mxu0 %v6706
  %v6873 = vpop.f32.mrb[0].mxu0
  %v6874 = vadd.f32 0.0, %v6873
  %v6875 = vpop.f32.mrb[0].mxu0
  %6876 = vmatprep.mubr.f32.mxu0 0.0
  %6877 = vmatmul.mubr.f32.gmra.mrb[0].mxu0 %v6707
  %v6878 = vpop.f32.mrb[0].mxu0
  %v6879 = vadd.f32 0.0, %v6878
  %v6880 = vpop.f32.mrb[0].mxu0
  %6881 = vmatprep.mubr.f32.mxu0 0.0
  %6882 = vmatmul.mubr.f32.gmra.mrb[0].mxu0 %v6708
  %v6883 = vpop.f32.mrb[0].mxu0
  %v6884 = vadd.f32 0.0, %v6883
  %v6885 = vpop.f32.mrb[0].mxu0
  %6886 = vmatprep.mubr.f32.mxu0 0.0
  %6887 = vmatmul.mubr.f32.gmra.mrb[0].mxu0 %v6709
  %v6888 = vpop.f32.mrb[0].mxu0
  %v6889 = vadd.f32 0.0, %v6888
  %v6890 = vpop.f32.mrb[0].mxu0
  %6891 = vmatprep.mubr.f32.mxu0 0.0
  %6892 = vmatmul.mubr.f32.gmra.mrb[0].mxu0 %v6710
  %v6893 = vpop.f32.mrb[0].mxu0
  %v6894 = vadd.f32 0.0, %v6893
  %v6895 = vpop.f32.mrb[0].mxu0
  %6896 = vmatprep.mubr.f32.mxu0 0.0
  %6897 = vmatmul.mubr.f32.gmra.mrb[0].mxu0 %v6711
  %v6898 = vpop.f32.mrb[0].mxu0
  %v6899 = vadd.f32 0.0, %v6898
  %v6900 = vpop.f32.mrb[0].mxu0
  %6901 = vmatprep.mubr.f32.mxu0 0.0
  %6902 = vmatmul.mubr.f32.gmra.mrb[0].mxu0 %v6712
  %v6903 = vpop.f32.mrb[0].mxu0
  %v6904 = vadd.f32 0.0, %v6903
  %v6905 = vpop.f32.mrb[0].mxu0
  %6906 = vmatprep.mubr.f32.mxu0 0.0
  %6907 = vmatmul.mubr.f32.gmra.mrb[0].mxu0 %v6713
  %v6908 = vpop.f32.mrb[0].mxu0
  %v6909 = vadd.f32 0.0, %v6908
  %v6910 = vpop.f32.mrb[0].mxu0
  %6911 = vmatprep.mubr.f32.mxu0 0.0
  %6912 = vmatmul.mubr.f32.gmra.mrb[0].mxu0 %v6714
  %v6913 = vpop.f32.mrb[0].mxu0
  %v6914 = vadd.f32 0.0, %v6913
  %v6915 = vpop.f32.mrb[0].mxu0
  %6916 = vmatprep.mubr.f32.mxu0 0.0
  %6917 = vmatmul.mubr.f32.gmra.mrb[0].mxu0 %v6715
  %v6918 = vpop.f32.mrb[0].mxu0
  %v6919 = vadd.f32 0.0, %v6918
  %v6920 = vpop.f32.mrb[0].mxu0
  %6921 = vmatprep.mubr.f32.mxu0 0.0
  %6922 = vmatmul.mubr.f32.gmra.mrb[0].mxu0 %v6716
  %v6923 = vpop.f32.mrb[0].mxu0
  %v6924 = vadd.f32 0.0, %v6923
  %v6925 = vpop.f32.mrb[0].mxu0
  %6926 = vmatprep.mubr.f32.mxu0 0.0
  %6927 = vmatmul.mubr.f32.gmra.mrb[0].mxu0 %v6717
  %v6928 = vpop.f32.mrb[0].mxu0
  %v6929 = vadd.f32 0.0, %v6928
  %v6930 = vpop.f32.mrb[0].mxu0
  %6931 = vmatprep.mubr.f32.mxu0 0.0
  %6932 = vmatmul.mubr.f32.gmra.mrb[0].mxu0 %v6718
  %v6933 = vpop.f32.mrb[0].mxu0
  %v6934 = vadd.f32 0.0, %v6933
  %v6935 = vpop.f32.mrb[0].mxu0
  %6936 = vmatprep.mubr.f32.mxu0 0.0
  %6937 = vmatmul.mubr.f32.gmra.mrb[0].mxu0 %v6719
  %v6938 = vpop.f32.mrb[0].mxu0
  %v6939 = vadd.f32 0.0, %v6938
  %v6940 = vpop.f32.mrb[0].mxu0
  %6941 = vmatprep.mubr.f32.mxu0 0.0
  %6942 = vmatmul.mubr.f32.gmra.mrb[0].mxu0 %v6720
  %v6943 = vpop.f32.mrb[0].mxu0
  %v6944 = vadd.f32 0.0, %v6943
  %v6945 = vpop.f32.mrb[0].mxu0
  %6946 = vmatprep.mubr.f32.mxu0 0.0
  %6947 = vmatmul.mubr.f32.gmra.mrb[0].mxu0 %v6721
  %v6948 = vpop.f32.mrb[0].mxu0
  %v6949 = vadd.f32 0.0, %v6948
  %v6950 = vpop.f32.mrb[0].mxu0
  %6951 = vmatprep.mubr.f32.mxu0 0.0
  %6952 = vmatmul.mubr.f32.gmra.mrb[0].mxu0 %v6722
  %v6953 = vpop.f32.mrb[0].mxu0
  %v6954 = vadd.f32 0.0, %v6953
  %v6955 = vpop.f32.mrb[0].mxu0
  %6956 = vmatprep.mubr.f32.mxu0 0.0
  %6957 = vmatmul.mubr.f32.gmra.mrb[0].mxu0 %v6723
  %v6958 = vpop.f32.mrb[0].mxu0
  %v6959 = vadd.f32 0.0, %v6958
  %v6960 = vpop.f32.mrb[0].mxu0
  %6961 = vmatprep.mubr.f32.mxu0 0.0
  %6962 = vmatmul.mubr.f32.gmra.mrb[0].mxu0 %v6724
  %v6963 = vpop.f32.mrb[0].mxu0
  %v6964 = vadd.f32 0.0, %v6963
  %v6965 = vpop.f32.mrb[0].mxu0
  %6966 = vmatprep.mubr.f32.mxu0 0.0
  %6967 = vmatmul.mubr.f32.gmra.mrb[0].mxu0 %v6725
  %v6968 = vpop.f32.mrb[0].mxu0
  %v6969 = vadd.f32 0.0, %v6968
  %v6970 = vpop.f32.mrb[0].mxu0
  %6971 = vmatprep.mubr.f32.mxu0 0.0
  %6972 = vmatmul.mubr.f32.gmra.mrb[0].mxu0 %v6726
  %v6973 = vpop.f32.mrb[0].mxu0
  %v6974 = vadd.f32 0.0, %v6973
  %v6975 = vpop.f32.mrb[0].mxu0
  %6976 = vmatprep.mubr.f32.mxu0 0.0
  %6977 = vmatmul.mubr.f32.gmra.mrb[0].mxu0 %v6727
  %v6978 = vpop.f32.mrb[0].mxu0
  %v6979 = vadd.f32 0.0, %v6978
  %v6980 = vpop.f32.mrb[0].mxu0
  %6981 = vmatprep.mubr.f32.mxu0 0.0
  %6982 = vmatmul.mubr.f32.gmra.mrb[0].mxu0 %v6728
  %v6983 = vpop.f32.mrb[0].mxu0
  %v6984 = vadd.f32 0.0, %v6983
  %v6985 = vpop.f32.mrb[0].mxu0
  %6986 = vmatprep.mubr.f32.mxu0 0.0
  %6987 = vmatmul.mubr.f32.gmra.mrb[0].mxu0 %v6729
  %v6988 = vpop.f32.mrb[0].mxu0
  %v6989 = vadd.f32 0.0, %v6988
  %v6990 = vpop.f32.mrb[0].mxu0
  %6991 = vmatprep.mubr.f32.mxu0 0.0
  %6992 = vmatmul.mubr.f32.gmra.mrb[0].mxu0 %v6730
  %v6993 = vpop.f32.mrb[0].mxu0
  %v6994 = vadd.f32 0.0, %v6993
  %v6995 = vpop.f32.mrb[0].mxu0
  %6996 = vmatprep.mubr.f32.mxu0 0.0
  %6997 = vmatmul.mubr.f32.gmra.mrb[0].mxu0 %v6731
  %v6998 = vpop.f32.mrb[0].mxu0
  %v6999 = vadd.f32 0.0, %v6998
  %v7000 = vpop.f32.mrb[0].mxu0
  %7001 = vmatprep.mubr.f32.mxu0 0.0
  %7002 = vmatmul.mubr.f32.gmra.mrb[0].mxu0 %v6732
  %v7003 = vpop.f32.mrb[0].mxu0
  %v7004 = vadd.f32 0.0, %v7003
  %v7005 = vpop.f32.mrb[0].mxu0
  %7006 = vmatprep.mubr.f32.mxu0 0.0
  %7007 = vmatmul.mubr.f32.gmra.mrb[0].mxu0 %v6733
  %v7008 = vpop.f32.mrb[0].mxu0
  %v7009 = vadd.f32 0.0, %v7008
  %v7010 = vpop.f32.mrb[0].mxu0
  %7011 = vmatprep.mubr.f32.mxu0 0.0
  %7012 = vmatmul.mubr.f32.gmra.mrb[0].mxu0 %v6734
  %v7013 = vpop.f32.mrb[0].mxu0
  %v7014 = vadd.f32 0.0, %v7013
  %v7015 = vpop.f32.mrb[0].mxu0
  %7016 = vmatprep.mubr.f32.mxu0 0.0
  %7017 = vmatmul.mubr.f32.gmra.mrb[0].mxu0 %v6735
  %v7018 = vpop.f32.mrb[0].mxu0
  %v7019 = vadd.f32 0.0, %v7018
  %v7020 = vpop.f32.mrb[0].mxu0
  %7021 = vmatprep.mubr.f32.mxu0 0.0
  %7022 = vmatmul.mubr.f32.gmra.mrb[0].mxu0 %v6736
  %v7023 = vpop.f32.mrb[0].mxu0
  %v7024 = vadd.f32 0.0, %v7023
  %v7025 = vpop.f32.mrb[0].mxu0
  %7026 = vmatprep.mubr.f32.mxu0 0.0
  %7027 = vmatmul.mubr.f32.gmra.mrb[0].mxu0 %v6737
  %v7028 = vpop.f32.mrb[0].mxu0
  %v7029 = vadd.f32 0.0, %v7028
  %v7030 = vpop.f32.mrb[0].mxu0
  %7031 = vmatprep.mubr.f32.mxu0 0.0
  %7032 = vmatmul.mubr.f32.gmra.mrb[0].mxu0 %v6738
  %v7033 = vpop.f32.mrb[0].mxu0
  %v7034 = vadd.f32 0.0, %v7033
  %v7035 = vpop.f32.mrb[0].mxu0
  %7036 = vmatprep.mubr.f32.mxu0 0.0
  %7037 = vmatmul.mubr.f32.gmra.mrb[0].mxu0 %v6739
  %v7038 = vpop.f32.mrb[0].mxu0
  %v7039 = vadd.f32 0.0, %v7038
  %v7040 = vpop.f32.mrb[0].mxu0
  %7041 = vmatprep.mubr.f32.mxu0 0.0
  %7042 = vmatmul.mubr.f32.gmra.mrb[0].mxu0 %v6740
  %v7043 = vpop.f32.mrb[0].mxu0
  %v7044 = vadd.f32 0.0, %v7043
  %v7045 = vpop.f32.mrb[0].mxu0
  %7046 = vmatprep.mubr.f32.mxu0 0.0
  %7047 = vmatmul.mubr.f32.gmra.mrb[0].mxu0 %v6741
  %v7048 = vpop.f32.mrb[0].mxu0
  %v7049 = vadd.f32 0.0, %v7048
  %v7050 = vpop.f32.mrb[0].mxu0
  %7051 = vmatprep.mubr.f32.mxu0 0.0
  %7052 = vmatmul.mubr.f32.gmra.mrb[0].mxu0 %v6742
  %v7053 = vpop.f32.mrb[0].mxu0
  %v7054 = vadd.f32 0.0, %v7053
  %v7055 = vpop.f32.mrb[0].mxu0
  %7056 = vmatprep.mubr.f32.mxu0 0.0
  %7057 = vmatmul.mubr.f32.gmra.mrb[0].mxu0 %v6743
  %v7058 = vpop.f32.mrb[0].mxu0
  %v7059 = vadd.f32 0.0, %v7058
  %v7060 = vpop.f32.mrb[0].mxu0
  %7061 = vmatprep.mubr.f32.mxu0 0.0
  %7062 = vmatmul.mubr.f32.gmra.mrb[0].mxu0 %v6744
  %v7063 = vpop.f32.mrb[0].mxu0
  %v7064 = vadd.f32 0.0, %v7063
  %v7065 = vpop.f32.mrb[0].mxu0
  %7066 = vmatprep.mubr.f32.mxu0 0.0
  %7067 = vmatmul.mubr.f32.gmra.mrb[0].mxu0 %v6745
  %v7068 = vpop.f32.mrb[0].mxu0
  %v7069 = vadd.f32 0.0, %v7068
  %v7070 = vpop.f32.mrb[0].mxu0
  %7071 = vmatprep.mubr.f32.mxu0 0.0
  %7072 = vmatmul.mubr.f32.gmra.mrb[0].mxu0 %v6746
  %v7073 = vpop.f32.mrb[0].mxu0
  %v7074 = vadd.f32 0.0, %v7073
  %v7075 = vpop.f32.mrb[0].mxu0
  %7076 = vmatprep.mubr.f32.mxu0 0.0
  %7077 = vmatmul.mubr.f32.gmra.mrb[0].mxu0 %v6747
  %v7078 = vpop.f32.mrb[0].mxu0
  %v7079 = vadd.f32 0.0, %v7078
  %v7080 = vpop.f32.mrb[0].mxu0
  %7081 = vmatprep.mubr.f32.mxu0 0.0
  %7082 = vmatmul.mubr.f32.gmra.mrb[0].mxu0 %v6748
  %v7083 = vpop.f32.mrb[0].mxu0
  %v7084 = vadd.f32 0.0, %v7083
  %v7085 = vpop.f32.mrb[0].mxu0
  %7086 = vmatprep.mubr.f32.mxu0 0.0
  %7087 = vmatmul.mubr.f32.gmra.mrb[0].mxu0 %v6749
  %v7088 = vpop.f32.mrb[0].mxu0
  %v7089 = vadd.f32 0.0, %v7088
  %v7090 = vpop.f32.mrb[0].mxu0
  %7091 = vmatprep.mubr.f32.mxu0 0.0
  %7092 = vmatmul.mubr.f32.gmra.mrb[0].mxu0 %v6750
  %v7093 = vpop.f32.mrb[0].mxu0
  %v7094 = vadd.f32 0.0, %v7093
  %v7095 = vpop.f32.mrb[0].mxu0
  %7096 = vmatprep.mubr.f32.mxu0 0.0
  %7097 = vmatmul.mubr.f32.gmra.mrb[0].mxu0 %v6751
  %v7098 = vpop.f32.mrb[0].mxu0
  %v7099 = vadd.f32 0.0, %v7098
  %v7100 = vpop.f32.mrb[0].mxu0
  %7101 = vmatprep.mubr.f32.mxu0 0.0
  %7102 = vmatmul.mubr.f32.gmra.mrb[0].mxu0 %v6752
  %v7103 = vpop.f32.mrb[0].mxu0
  %v7104 = vadd.f32 0.0, %v7103
  %v7105 = vpop.f32.mrb[0].mxu0
  %7106 = vmatprep.mubr.f32.mxu0 0.0
  %7107 = vmatmul.mubr.f32.gmra.mrb[0].mxu0 %v6753
  %v7108 = vpop.f32.mrb[0].mxu0
  %v7109 = vadd.f32 0.0, %v7108
  %v7110 = vpop.f32.mrb[0].mxu0
  %7111 = vmatprep.mubr.f32.mxu0 0.0
  %7112 = vmatmul.mubr.f32.gmra.mrb[0].mxu0 %v6754
  %v7113 = vpop.f32.mrb[0].mxu0
  %v7114 = vadd.f32 0.0, %v7113
  %v7115 = vpop.f32.mrb[0].mxu0
  %7116 = vmatprep.mubr.f32.mxu0 0.0
  %7117 = vmatmul.mubr.f32.gmra.mrb[0].mxu0 %v6755
  %v7118 = vpop.f32.mrb[0].mxu0
  %v7119 = vadd.f32 0.0, %v7118
  %v7120 = vpop.f32.mrb[0].mxu0
  %7121 = vmatprep.mubr.f32.mxu0 0.0
  %7122 = vmatmul.mubr.f32.gmra.mrb[0].mxu0 %v6756
  %v7123 = vpop.f32.mrb[0].mxu0
  %v7124 = vadd.f32 0.0, %v7123
  %v7125 = vpop.f32.mrb[0].mxu0
  %7126 = vmatprep.mubr.f32.mxu0 0.0
  %7127 = vmatmul.mubr.f32.gmra.mrb[0].mxu0 %v6757
  %v7128 = vpop.f32.mrb[0].mxu0
  %v7129 = vadd.f32 0.0, %v7128
  %v7130 = vpop.f32.mrb[0].mxu0
  %7131 = vmatprep.mubr.f32.mxu0 0.0
  %7132 = vmatmul.mubr.f32.gmra.mrb[0].mxu0 %v6758
  %v7133 = vpop.f32.mrb[0].mxu0
  %v7134 = vadd.f32 0.0, %v7133
  %v7135 = vpop.f32.mrb[0].mxu0
  %7136 = vmatprep.mubr.f32.mxu0 0.0
  %7137 = vmatmul.mubr.f32.gmra.mrb[0].mxu0 %v6759
  %v7138 = vpop.f32.mrb[0].mxu0
  %v7139 = vadd.f32 0.0, %v7138
  %v7140 = vpop.f32.mrb[0].mxu0
  %7141 = vmatprep.mubr.f32.mxu0 0.0
  %7142 = vmatmul.mubr.f32.gmra.mrb[0].mxu0 %v6760
  %v7143 = vpop.f32.mrb[0].mxu0
  %v7144 = vadd.f32 0.0, %v7143
  %v7145 = vpop.f32.mrb[0].mxu0
  %7146 = vmatprep.mubr.f32.mxu0 0.0
  %7147 = vmatmul.mubr.f32.gmra.mrb[0].mxu0 %v6761
  %v7148 = vpop.f32.mrb[0].mxu0
  %v7149 = vadd.f32 0.0, %v7148
  %v7150 = vpop.f32.mrb[0].mxu0
  %7151 = vmatprep.mubr.f32.mxu0 0.0
  %7152 = vmatmul.mubr.f32.gmra.mrb[0].mxu0 %v6762
  %v7153 = vpop.f32.mrb[0].mxu0
  %v7154 = vadd.f32 0.0, %v7153
  %v7155 = vpop.f32.mrb[0].mxu0
  %7156 = vmatprep.mubr.f32.mxu0 0.0
  %7157 = vmatmul.mubr.f32.gmra.mrb[0].mxu0 %v6763
  %v7158 = vpop.f32.mrb[0].mxu0
  %v7159 = vadd.f32 0.0, %v7158
  %v7160 = vpop.f32.mrb[0].mxu0
  %7161 = vmatprep.mubr.f32.mxu0 0.0
  %7162 = vmatmul.mubr.f32.gmra.mrb[0].mxu0 %v6764
  %v7163 = vpop.f32.mrb[0].mxu0
  %v7164 = vadd.f32 0.0, %v7163
  %v7165 = vpop.f32.mrb[0].mxu0
  %7166 = vdwg.mxu0
  %v7167 = vadd.f32 %v6637, %v6849
  %v7168 = vadd.f32 %v6638, %v6854
  %v7169 = vadd.f32 %v6639, %v6859
  %v7170 = vadd.f32 %v6640, %v6864
  %v7171 = vadd.f32 %v6641, %v6869
  %v7172 = vadd.f32 %v6642, %v6874
  %v7173 = vadd.f32 %v6643, %v6879
  %v7174 = vadd.f32 %v6644, %v6884
  %v7175 = vadd.f32 %v6645, %v6889
  %v7176 = vadd.f32 %v6646, %v6894
  %v7177 = vadd.f32 %v6647, %v6899
  %v7178 = vadd.f32 %v6648, %v6904
  %v7179 = vadd.f32 %v6649, %v6909
  %v7180 = vadd.f32 %v6650, %v6914
  %v7181 = vadd.f32 %v6651, %v6919
  %v7182 = vadd.f32 %v6652, %v6924
  %v7183 = vadd.f32 %v6653, %v6929
  %v7184 = vadd.f32 %v6654, %v6934
  %v7185 = vadd.f32 %v6655, %v6939
  %v7186 = vadd.f32 %v6656, %v6944
  %v7187 = vadd.f32 %v6657, %v6949
  %v7188 = vadd.f32 %v6658, %v6954
  %v7189 = vadd.f32 %v6659, %v6959
  %v7190 = vadd.f32 %v6660, %v6964
  %v7191 = vadd.f32 %v6661, %v6969
  %v7192 = vadd.f32 %v6662, %v6974
  %v7193 = vadd.f32 %v6663, %v6979
  %v7194 = vadd.f32 %v6664, %v6984
  %v7195 = vadd.f32 %v6665, %v6989
  %v7196 = vadd.f32 %v6666, %v6994
  %v7197 = vadd.f32 %v6667, %v6999
  %v7198 = vadd.f32 %v6668, %v7004
  %v7199 = vadd.f32 %v6669, %v7009
  %v7200 = vadd.f32 %v6670, %v7014
  %v7201 = vadd.f32 %v6671, %v7019
  %v7202 = vadd.f32 %v6672, %v7024
  %v7203 = vadd.f32 %v6673, %v7029
  %v7204 = vadd.f32 %v6674, %v7034
  %v7205 = vadd.f32 %v6675, %v7039
  %v7206 = vadd.f32 %v6676, %v7044
  %v7207 = vadd.f32 %v6677, %v7049
  %v7208 = vadd.f32 %v6678, %v7054
  %v7209 = vadd.f32 %v6679, %v7059
  %v7210 = vadd.f32 %v6680, %v7064
  %v7211 = vadd.f32 %v6681, %v7069
  %v7212 = vadd.f32 %v6682, %v7074
  %v7213 = vadd.f32 %v6683, %v7079
  %v7214 = vadd.f32 %v6684, %v7084
  %v7215 = vadd.f32 %v6685, %v7089
  %v7216 = vadd.f32 %v6686, %v7094
  %v7217 = vadd.f32 %v6687, %v7099
  %v7218 = vadd.f32 %v6688, %v7104
  %v7219 = vadd.f32 %v6689, %v7109
  %v7220 = vadd.f32 %v6690, %v7114
  %v7221 = vadd.f32 %v6691, %v7119
  %v7222 = vadd.f32 %v6692, %v7124
  %v7223 = vadd.f32 %v6693, %v7129
  %v7224 = vadd.f32 %v6694, %v7134
  %v7225 = vadd.f32 %v6695, %v7139
  %v7226 = vadd.f32 %v6696, %v7144
  %v7227 = vadd.f32 %v6697, %v7149
  %v7228 = vadd.f32 %v6698, %v7154
  %v7229 = vadd.f32 %v6699, %v7159
  %v7230 = vadd.f32 %v6700, %v7164
  %v7231 = vld [vmem:[%s5175 + $0x1] sm:$0xff]
  %v7232 = vld [vmem:[%s5175 + $0x9] sm:$0xff]
  %v7233 = vld [vmem:[%s5175 + $0x19] sm:$0xff]
  %v7234 = vld [vmem:[%s5175 + $0x21] sm:$0xff]
  %v7235 = vld [vmem:[%s5175 + $0x31] sm:$0xff]
  %v7236 = vld [vmem:[%s5175 + $0x39] sm:$0xff]
  %v7237 = vld [vmem:[%s5175 + $0x49] sm:$0xff]
  %v7238 = vld [vmem:[%s5175 + $0x51] sm:$0xff]
  %v7239 = vld [vmem:[%s5175 + $0x61] sm:$0xff]
  %v7240 = vld [vmem:[%s5175 + $0x69] sm:$0xff]
  %v7241 = vld [vmem:[%s5175 + $0x79] sm:$0xff]
  %v7242 = vld [vmem:[%s5175 + $0x81] sm:$0xff]
  %v7243 = vld [vmem:[%s5175 + $0x91] sm:$0xff]
  %v7244 = vld [vmem:[%s5175 + $0x99] sm:$0xff]
  %v7245 = vld [vmem:[%s5175 + $0xa9] sm:$0xff]
  %v7246 = vld [vmem:[%s5175 + $0xb1] sm:$0xff]
  %v7247 = vld [vmem:[%s5175 + $0xc1] sm:$0xff]
  %v7248 = vld [vmem:[%s5175 + $0xc9] sm:$0xff]
  %v7249 = vld [vmem:[%s5175 + $0xd9] sm:$0xff]
  %v7250 = vld [vmem:[%s5175 + $0xe1] sm:$0xff]
  %v7251 = vld [vmem:[%s5175 + $0xf1] sm:$0xff]
  %v7252 = vld [vmem:[%s5175 + $0xf9] sm:$0xff]
  %v7253 = vld [vmem:[%s5175 + $0x109] sm:$0xff]
  %v7254 = vld [vmem:[%s5175 + $0x111] sm:$0xff]
  %v7255 = vld [vmem:[%s5175 + $0x121] sm:$0xff]
  %v7256 = vld [vmem:[%s5175 + $0x129] sm:$0xff]
  %v7257 = vld [vmem:[%s5175 + $0x139] sm:$0xff]
  %v7258 = vld [vmem:[%s5175 + $0x141] sm:$0xff]
  %v7259 = vld [vmem:[%s5175 + $0x151] sm:$0xff]
  %v7260 = vld [vmem:[%s5175 + $0x159] sm:$0xff]
  %v7261 = vld [vmem:[%s5175 + $0x169] sm:$0xff]
  %v7262 = vld [vmem:[%s5175 + $0x171] sm:$0xff]
  %v7263 = vld [vmem:[%s5175 + $0x1b1] sm:$0xff]
  %v7264 = vld [vmem:[%s5175 + $0x1b9] sm:$0xff]
  %v7265 = vld [vmem:[%s5175 + $0x1c9] sm:$0xff]
  %v7266 = vld [vmem:[%s5175 + $0x1d1] sm:$0xff]
  %v7267 = vld [vmem:[%s5175 + $0x1e1] sm:$0xff]
  %v7268 = vld [vmem:[%s5175 + $0x1e9] sm:$0xff]
  %v7269 = vld [vmem:[%s5175 + $0x1f9] sm:$0xff]
  %v7270 = vld [vmem:[%s5175 + $0x201] sm:$0xff]
  %v7271 = vld [vmem:[%s5175 + $0x211] sm:$0xff]
  %v7272 = vld [vmem:[%s5175 + $0x219] sm:$0xff]
  %v7273 = vld [vmem:[%s5175 + $0x229] sm:$0xff]
  %v7274 = vld [vmem:[%s5175 + $0x231] sm:$0xff]
  %v7275 = vld [vmem:[%s5175 + $0x241] sm:$0xff]
  %v7276 = vld [vmem:[%s5175 + $0x249] sm:$0xff]
  %v7277 = vld [vmem:[%s5175 + $0x259] sm:$0xff]
  %v7278 = vld [vmem:[%s5175 + $0x261] sm:$0xff]
  %v7279 = vld [vmem:[%s5175 + $0x271] sm:$0xff]
  %v7280 = vld [vmem:[%s5175 + $0x279] sm:$0xff]
  %v7281 = vld [vmem:[%s5175 + $0x289] sm:$0xff]
  %v7282 = vld [vmem:[%s5175 + $0x291] sm:$0xff]
  %v7283 = vld [vmem:[%s5175 + $0x2a1] sm:$0xff]
  %v7284 = vld [vmem:[%s5175 + $0x2a9] sm:$0xff]
  %v7285 = vld [vmem:[%s5175 + $0x2b9] sm:$0xff]
  %v7286 = vld [vmem:[%s5175 + $0x2c1] sm:$0xff]
  %v7287 = vld [vmem:[%s5175 + $0x2d1] sm:$0xff]
  %v7288 = vld [vmem:[%s5175 + $0x2d9] sm:$0xff]
  %v7289 = vld [vmem:[%s5175 + $0x2e9] sm:$0xff]
  %v7290 = vld [vmem:[%s5175 + $0x2f1] sm:$0xff]
  %v7291 = vld [vmem:[%s5175 + $0x301] sm:$0xff]
  %v7292 = vld [vmem:[%s5175 + $0x309] sm:$0xff]
  %v7293 = vld [vmem:[%s5175 + $0x319] sm:$0xff]
  %v7294 = vld [vmem:[%s5175 + $0x321] sm:$0xff]
  %s7295 = scalar_lea.vmem %s3, 512
  %v7296 = vld [vmem:[%s7295] sm:$0xff]
  %v7297 = vld [vmem:[%s7295 + $0x8] sm:$0xff]
  %v7298 = vld [vmem:[%s7295 + $0x10] sm:$0xff]
  %v7299 = vld [vmem:[%s7295 + $0x18] sm:$0xff]
  %v7300 = vld [vmem:[%s7295 + $0x20] sm:$0xff]
  %v7301 = vld [vmem:[%s7295 + $0x28] sm:$0xff]
  %v7302 = vld [vmem:[%s7295 + $0x30] sm:$0xff]
  %v7303 = vld [vmem:[%s7295 + $0x38] sm:$0xff]
  %v7304 = vld [vmem:[%s7295 + $0x40] sm:$0xff]
  %v7305 = vld [vmem:[%s7295 + $0x48] sm:$0xff]
  %v7306 = vld [vmem:[%s7295 + $0x50] sm:$0xff]
  %v7307 = vld [vmem:[%s7295 + $0x58] sm:$0xff]
  %v7308 = vld [vmem:[%s7295 + $0x60] sm:$0xff]
  %v7309 = vld [vmem:[%s7295 + $0x68] sm:$0xff]
  %v7310 = vld [vmem:[%s7295 + $0x70] sm:$0xff]
  %v7311 = vld [vmem:[%s7295 + $0x78] sm:$0xff]
  %7312 = vmatprep.subr.mxu0 0.0
  %7313 = vmatpush1.msra.mxu0 %v7296
  %7314 = vmatprep.subr.mxu0 0.0
  %7315 = vmatpush1.msra.mxu0 %v7297
  %7316 = vmatprep.subr.mxu0 0.0
  %7317 = vmatpush1.msra.mxu0 %v7298
  %7318 = vmatprep.subr.mxu0 0.0
  %7319 = vmatpush1.msra.mxu0 %v7299
  %7320 = vmatprep.subr.mxu0 0.0
  %7321 = vmatpush1.msra.mxu0 %v7300
  %7322 = vmatprep.subr.mxu0 0.0
  %7323 = vmatpush1.msra.mxu0 %v7301
  %7324 = vmatprep.subr.mxu0 0.0
  %7325 = vmatpush1.msra.mxu0 %v7302
  %7326 = vmatprep.subr.mxu0 0.0
  %7327 = vmatpush1.msra.mxu0 %v7303
  %7328 = vmatprep.subr.mxu0 0.0
  %7329 = vmatpush1.msra.mxu0 %v7304
  %7330 = vmatprep.subr.mxu0 0.0
  %7331 = vmatpush1.msra.mxu0 %v7305
  %7332 = vmatprep.subr.mxu0 0.0
  %7333 = vmatpush1.msra.mxu0 %v7306
  %7334 = vmatprep.subr.mxu0 0.0
  %7335 = vmatpush1.msra.mxu0 %v7307
  %7336 = vmatprep.subr.mxu0 0.0
  %7337 = vmatpush1.msra.mxu0 %v7308
  %7338 = vmatprep.subr.mxu0 0.0
  %7339 = vmatpush1.msra.mxu0 %v7309
  %7340 = vmatprep.subr.mxu0 0.0
  %7341 = vmatpush1.msra.mxu0 %v7310
  %7342 = vmatprep.subr.mxu0 0.0
  %7343 = vmatpush1.msra.mxu0 %v7311
  %7344 = vmatprep.subr.mxu0 0.0
  %7345 = vmatpush1.msra.mxu0 0.0
  %7346 = vmatprep.subr.mxu0 0.0
  %7347 = vmatpush1.msra.mxu0 0.0
  %7348 = vmatprep.subr.mxu0 0.0
  %7349 = vmatpush1.msra.mxu0 0.0
  %7350 = vmatprep.subr.mxu0 0.0
  %7351 = vmatpush1.msra.mxu0 0.0
  %7352 = vmatprep.subr.mxu0 0.0
  %7353 = vmatpush1.msra.mxu0 0.0
  %7354 = vmatprep.subr.mxu0 0.0
  %7355 = vmatpush1.msra.mxu0 0.0
  %7356 = vmatprep.subr.mxu0 0.0
  %7357 = vmatpush1.msra.mxu0 0.0
  %7358 = vmatprep.subr.mxu0 0.0
  %7359 = vmatpush1.msra.mxu0 0.0
  %7360 = vmatprep.subr.mxu0 0.0
  %7361 = vmatpush1.msra.mxu0 0.0
  %7362 = vmatprep.subr.mxu0 0.0
  %7363 = vmatpush1.msra.mxu0 0.0
  %7364 = vmatprep.subr.mxu0 0.0
  %7365 = vmatpush1.msra.mxu0 0.0
  %7366 = vmatprep.subr.mxu0 0.0
  %7367 = vmatpush1.msra.mxu0 0.0
  %7368 = vmatprep.subr.mxu0 0.0
  %7369 = vmatpush1.msra.mxu0 0.0
  %7370 = vmatprep.subr.mxu0 0.0
  %7371 = vmatpush1.msra.mxu0 0.0
  %7372 = vmatprep.subr.mxu0 0.0
  %7373 = vmatpush1.msra.mxu0 0.0
  %7374 = vmatprep.subr.mxu0 0.0
  %7375 = vmatpush1.msra.mxu0 0.0
  %7376 = vmatprep.mubr.f32.mxu0 0.0
  %7377 = vmatmul.mubr.f32.gmra.mrb[0].mxu0 %v7231
  %v7378 = vpop.f32.mrb[0].mxu0
  %v7379 = vadd.f32 0.0, %v7378
  %v7380 = vpop.f32.mrb[0].mxu0
  %7381 = vmatprep.mubr.f32.mxu0 0.0
  %7382 = vmatmul.mubr.f32.gmra.mrb[0].mxu0 %v7232
  %v7383 = vpop.f32.mrb[0].mxu0
  %v7384 = vadd.f32 0.0, %v7383
  %v7385 = vpop.f32.mrb[0].mxu0
  %7386 = vmatprep.mubr.f32.mxu0 0.0
  %7387 = vmatmul.mubr.f32.gmra.mrb[0].mxu0 %v7233
  %v7388 = vpop.f32.mrb[0].mxu0
  %v7389 = vadd.f32 0.0, %v7388
  %v7390 = vpop.f32.mrb[0].mxu0
  %7391 = vmatprep.mubr.f32.mxu0 0.0
  %7392 = vmatmul.mubr.f32.gmra.mrb[0].mxu0 %v7234
  %v7393 = vpop.f32.mrb[0].mxu0
  %v7394 = vadd.f32 0.0, %v7393
  %v7395 = vpop.f32.mrb[0].mxu0
  %7396 = vmatprep.mubr.f32.mxu0 0.0
  %7397 = vmatmul.mubr.f32.gmra.mrb[0].mxu0 %v7235
  %v7398 = vpop.f32.mrb[0].mxu0
  %v7399 = vadd.f32 0.0, %v7398
  %v7400 = vpop.f32.mrb[0].mxu0
  %7401 = vmatprep.mubr.f32.mxu0 0.0
  %7402 = vmatmul.mubr.f32.gmra.mrb[0].mxu0 %v7236
  %v7403 = vpop.f32.mrb[0].mxu0
  %v7404 = vadd.f32 0.0, %v7403
  %v7405 = vpop.f32.mrb[0].mxu0
  %7406 = vmatprep.mubr.f32.mxu0 0.0
  %7407 = vmatmul.mubr.f32.gmra.mrb[0].mxu0 %v7237
  %v7408 = vpop.f32.mrb[0].mxu0
  %v7409 = vadd.f32 0.0, %v7408
  %v7410 = vpop.f32.mrb[0].mxu0
  %7411 = vmatprep.mubr.f32.mxu0 0.0
  %7412 = vmatmul.mubr.f32.gmra.mrb[0].mxu0 %v7238
  %v7413 = vpop.f32.mrb[0].mxu0
  %v7414 = vadd.f32 0.0, %v7413
  %v7415 = vpop.f32.mrb[0].mxu0
  %7416 = vmatprep.mubr.f32.mxu0 0.0
  %7417 = vmatmul.mubr.f32.gmra.mrb[0].mxu0 %v7239
  %v7418 = vpop.f32.mrb[0].mxu0
  %v7419 = vadd.f32 0.0, %v7418
  %v7420 = vpop.f32.mrb[0].mxu0
  %7421 = vmatprep.mubr.f32.mxu0 0.0
  %7422 = vmatmul.mubr.f32.gmra.mrb[0].mxu0 %v7240
  %v7423 = vpop.f32.mrb[0].mxu0
  %v7424 = vadd.f32 0.0, %v7423
  %v7425 = vpop.f32.mrb[0].mxu0
  %7426 = vmatprep.mubr.f32.mxu0 0.0
  %7427 = vmatmul.mubr.f32.gmra.mrb[0].mxu0 %v7241
  %v7428 = vpop.f32.mrb[0].mxu0
  %v7429 = vadd.f32 0.0, %v7428
  %v7430 = vpop.f32.mrb[0].mxu0
  %7431 = vmatprep.mubr.f32.mxu0 0.0
  %7432 = vmatmul.mubr.f32.gmra.mrb[0].mxu0 %v7242
  %v7433 = vpop.f32.mrb[0].mxu0
  %v7434 = vadd.f32 0.0, %v7433
  %v7435 = vpop.f32.mrb[0].mxu0
  %7436 = vmatprep.mubr.f32.mxu0 0.0
  %7437 = vmatmul.mubr.f32.gmra.mrb[0].mxu0 %v7243
  %v7438 = vpop.f32.mrb[0].mxu0
  %v7439 = vadd.f32 0.0, %v7438
  %v7440 = vpop.f32.mrb[0].mxu0
  %7441 = vmatprep.mubr.f32.mxu0 0.0
  %7442 = vmatmul.mubr.f32.gmra.mrb[0].mxu0 %v7244
  %v7443 = vpop.f32.mrb[0].mxu0
  %v7444 = vadd.f32 0.0, %v7443
  %v7445 = vpop.f32.mrb[0].mxu0
  %7446 = vmatprep.mubr.f32.mxu0 0.0
  %7447 = vmatmul.mubr.f32.gmra.mrb[0].mxu0 %v7245
  %v7448 = vpop.f32.mrb[0].mxu0
  %v7449 = vadd.f32 0.0, %v7448
  %v7450 = vpop.f32.mrb[0].mxu0
  %7451 = vmatprep.mubr.f32.mxu0 0.0
  %7452 = vmatmul.mubr.f32.gmra.mrb[0].mxu0 %v7246
  %v7453 = vpop.f32.mrb[0].mxu0
  %v7454 = vadd.f32 0.0, %v7453
  %v7455 = vpop.f32.mrb[0].mxu0
  %7456 = vmatprep.mubr.f32.mxu0 0.0
  %7457 = vmatmul.mubr.f32.gmra.mrb[0].mxu0 %v7247
  %v7458 = vpop.f32.mrb[0].mxu0
  %v7459 = vadd.f32 0.0, %v7458
  %v7460 = vpop.f32.mrb[0].mxu0
  %7461 = vmatprep.mubr.f32.mxu0 0.0
  %7462 = vmatmul.mubr.f32.gmra.mrb[0].mxu0 %v7248
  %v7463 = vpop.f32.mrb[0].mxu0
  %v7464 = vadd.f32 0.0, %v7463
  %v7465 = vpop.f32.mrb[0].mxu0
  %7466 = vmatprep.mubr.f32.mxu0 0.0
  %7467 = vmatmul.mubr.f32.gmra.mrb[0].mxu0 %v7249
  %v7468 = vpop.f32.mrb[0].mxu0
  %v7469 = vadd.f32 0.0, %v7468
  %v7470 = vpop.f32.mrb[0].mxu0
  %7471 = vmatprep.mubr.f32.mxu0 0.0
  %7472 = vmatmul.mubr.f32.gmra.mrb[0].mxu0 %v7250
  %v7473 = vpop.f32.mrb[0].mxu0
  %v7474 = vadd.f32 0.0, %v7473
  %v7475 = vpop.f32.mrb[0].mxu0
  %7476 = vmatprep.mubr.f32.mxu0 0.0
  %7477 = vmatmul.mubr.f32.gmra.mrb[0].mxu0 %v7251
  %v7478 = vpop.f32.mrb[0].mxu0
  %v7479 = vadd.f32 0.0, %v7478
  %v7480 = vpop.f32.mrb[0].mxu0
  %7481 = vmatprep.mubr.f32.mxu0 0.0
  %7482 = vmatmul.mubr.f32.gmra.mrb[0].mxu0 %v7252
  %v7483 = vpop.f32.mrb[0].mxu0
  %v7484 = vadd.f32 0.0, %v7483
  %v7485 = vpop.f32.mrb[0].mxu0
  %7486 = vmatprep.mubr.f32.mxu0 0.0
  %7487 = vmatmul.mubr.f32.gmra.mrb[0].mxu0 %v7253
  %v7488 = vpop.f32.mrb[0].mxu0
  %v7489 = vadd.f32 0.0, %v7488
  %v7490 = vpop.f32.mrb[0].mxu0
  %7491 = vmatprep.mubr.f32.mxu0 0.0
  %7492 = vmatmul.mubr.f32.gmra.mrb[0].mxu0 %v7254
  %v7493 = vpop.f32.mrb[0].mxu0
  %v7494 = vadd.f32 0.0, %v7493
  %v7495 = vpop.f32.mrb[0].mxu0
  %7496 = vmatprep.mubr.f32.mxu0 0.0
  %7497 = vmatmul.mubr.f32.gmra.mrb[0].mxu0 %v7255
  %v7498 = vpop.f32.mrb[0].mxu0
  %v7499 = vadd.f32 0.0, %v7498
  %v7500 = vpop.f32.mrb[0].mxu0
  %7501 = vmatprep.mubr.f32.mxu0 0.0
  %7502 = vmatmul.mubr.f32.gmra.mrb[0].mxu0 %v7256
  %v7503 = vpop.f32.mrb[0].mxu0
  %v7504 = vadd.f32 0.0, %v7503
  %v7505 = vpop.f32.mrb[0].mxu0
  %7506 = vmatprep.mubr.f32.mxu0 0.0
  %7507 = vmatmul.mubr.f32.gmra.mrb[0].mxu0 %v7257
  %v7508 = vpop.f32.mrb[0].mxu0
  %v7509 = vadd.f32 0.0, %v7508
  %v7510 = vpop.f32.mrb[0].mxu0
  %7511 = vmatprep.mubr.f32.mxu0 0.0
  %7512 = vmatmul.mubr.f32.gmra.mrb[0].mxu0 %v7258
  %v7513 = vpop.f32.mrb[0].mxu0
  %v7514 = vadd.f32 0.0, %v7513
  %v7515 = vpop.f32.mrb[0].mxu0
  %7516 = vmatprep.mubr.f32.mxu0 0.0
  %7517 = vmatmul.mubr.f32.gmra.mrb[0].mxu0 %v7259
  %v7518 = vpop.f32.mrb[0].mxu0
  %v7519 = vadd.f32 0.0, %v7518
  %v7520 = vpop.f32.mrb[0].mxu0
  %7521 = vmatprep.mubr.f32.mxu0 0.0
  %7522 = vmatmul.mubr.f32.gmra.mrb[0].mxu0 %v7260
  %v7523 = vpop.f32.mrb[0].mxu0
  %v7524 = vadd.f32 0.0, %v7523
  %v7525 = vpop.f32.mrb[0].mxu0
  %7526 = vmatprep.mubr.f32.mxu0 0.0
  %7527 = vmatmul.mubr.f32.gmra.mrb[0].mxu0 %v7261
  %v7528 = vpop.f32.mrb[0].mxu0
  %v7529 = vadd.f32 0.0, %v7528
  %v7530 = vpop.f32.mrb[0].mxu0
  %7531 = vmatprep.mubr.f32.mxu0 0.0
  %7532 = vmatmul.mubr.f32.gmra.mrb[0].mxu0 %v7262
  %v7533 = vpop.f32.mrb[0].mxu0
  %v7534 = vadd.f32 0.0, %v7533
  %v7535 = vpop.f32.mrb[0].mxu0
  %7536 = vmatprep.mubr.f32.mxu0 0.0
  %7537 = vmatmul.mubr.f32.gmra.mrb[0].mxu0 %v7263
  %v7538 = vpop.f32.mrb[0].mxu0
  %v7539 = vadd.f32 0.0, %v7538
  %v7540 = vpop.f32.mrb[0].mxu0
  %7541 = vmatprep.mubr.f32.mxu0 0.0
  %7542 = vmatmul.mubr.f32.gmra.mrb[0].mxu0 %v7264
  %v7543 = vpop.f32.mrb[0].mxu0
  %v7544 = vadd.f32 0.0, %v7543
  %v7545 = vpop.f32.mrb[0].mxu0
  %7546 = vmatprep.mubr.f32.mxu0 0.0
  %7547 = vmatmul.mubr.f32.gmra.mrb[0].mxu0 %v7265
  %v7548 = vpop.f32.mrb[0].mxu0
  %v7549 = vadd.f32 0.0, %v7548
  %v7550 = vpop.f32.mrb[0].mxu0
  %7551 = vmatprep.mubr.f32.mxu0 0.0
  %7552 = vmatmul.mubr.f32.gmra.mrb[0].mxu0 %v7266
  %v7553 = vpop.f32.mrb[0].mxu0
  %v7554 = vadd.f32 0.0, %v7553
  %v7555 = vpop.f32.mrb[0].mxu0
  %7556 = vmatprep.mubr.f32.mxu0 0.0
  %7557 = vmatmul.mubr.f32.gmra.mrb[0].mxu0 %v7267
  %v7558 = vpop.f32.mrb[0].mxu0
  %v7559 = vadd.f32 0.0, %v7558
  %v7560 = vpop.f32.mrb[0].mxu0
  %7561 = vmatprep.mubr.f32.mxu0 0.0
  %7562 = vmatmul.mubr.f32.gmra.mrb[0].mxu0 %v7268
  %v7563 = vpop.f32.mrb[0].mxu0
  %v7564 = vadd.f32 0.0, %v7563
  %v7565 = vpop.f32.mrb[0].mxu0
  %7566 = vmatprep.mubr.f32.mxu0 0.0
  %7567 = vmatmul.mubr.f32.gmra.mrb[0].mxu0 %v7269
  %v7568 = vpop.f32.mrb[0].mxu0
  %v7569 = vadd.f32 0.0, %v7568
  %v7570 = vpop.f32.mrb[0].mxu0
  %7571 = vmatprep.mubr.f32.mxu0 0.0
  %7572 = vmatmul.mubr.f32.gmra.mrb[0].mxu0 %v7270
  %v7573 = vpop.f32.mrb[0].mxu0
  %v7574 = vadd.f32 0.0, %v7573
  %v7575 = vpop.f32.mrb[0].mxu0
  %7576 = vmatprep.mubr.f32.mxu0 0.0
  %7577 = vmatmul.mubr.f32.gmra.mrb[0].mxu0 %v7271
  %v7578 = vpop.f32.mrb[0].mxu0
  %v7579 = vadd.f32 0.0, %v7578
  %v7580 = vpop.f32.mrb[0].mxu0
  %7581 = vmatprep.mubr.f32.mxu0 0.0
  %7582 = vmatmul.mubr.f32.gmra.mrb[0].mxu0 %v7272
  %v7583 = vpop.f32.mrb[0].mxu0
  %v7584 = vadd.f32 0.0, %v7583
  %v7585 = vpop.f32.mrb[0].mxu0
  %7586 = vmatprep.mubr.f32.mxu0 0.0
  %7587 = vmatmul.mubr.f32.gmra.mrb[0].mxu0 %v7273
  %v7588 = vpop.f32.mrb[0].mxu0
  %v7589 = vadd.f32 0.0, %v7588
  %v7590 = vpop.f32.mrb[0].mxu0
  %7591 = vmatprep.mubr.f32.mxu0 0.0
  %7592 = vmatmul.mubr.f32.gmra.mrb[0].mxu0 %v7274
  %v7593 = vpop.f32.mrb[0].mxu0
  %v7594 = vadd.f32 0.0, %v7593
  %v7595 = vpop.f32.mrb[0].mxu0
  %7596 = vmatprep.mubr.f32.mxu0 0.0
  %7597 = vmatmul.mubr.f32.gmra.mrb[0].mxu0 %v7275
  %v7598 = vpop.f32.mrb[0].mxu0
  %v7599 = vadd.f32 0.0, %v7598
  %v7600 = vpop.f32.mrb[0].mxu0
  %7601 = vmatprep.mubr.f32.mxu0 0.0
  %7602 = vmatmul.mubr.f32.gmra.mrb[0].mxu0 %v7276
  %v7603 = vpop.f32.mrb[0].mxu0
  %v7604 = vadd.f32 0.0, %v7603
  %v7605 = vpop.f32.mrb[0].mxu0
  %7606 = vmatprep.mubr.f32.mxu0 0.0
  %7607 = vmatmul.mubr.f32.gmra.mrb[0].mxu0 %v7277
  %v7608 = vpop.f32.mrb[0].mxu0
  %v7609 = vadd.f32 0.0, %v7608
  %v7610 = vpop.f32.mrb[0].mxu0
  %7611 = vmatprep.mubr.f32.mxu0 0.0
  %7612 = vmatmul.mubr.f32.gmra.mrb[0].mxu0 %v7278
  %v7613 = vpop.f32.mrb[0].mxu0
  %v7614 = vadd.f32 0.0, %v7613
  %v7615 = vpop.f32.mrb[0].mxu0
  %7616 = vmatprep.mubr.f32.mxu0 0.0
  %7617 = vmatmul.mubr.f32.gmra.mrb[0].mxu0 %v7279
  %v7618 = vpop.f32.mrb[0].mxu0
  %v7619 = vadd.f32 0.0, %v7618
  %v7620 = vpop.f32.mrb[0].mxu0
  %7621 = vmatprep.mubr.f32.mxu0 0.0
  %7622 = vmatmul.mubr.f32.gmra.mrb[0].mxu0 %v7280
  %v7623 = vpop.f32.mrb[0].mxu0
  %v7624 = vadd.f32 0.0, %v7623
  %v7625 = vpop.f32.mrb[0].mxu0
  %7626 = vmatprep.mubr.f32.mxu0 0.0
  %7627 = vmatmul.mubr.f32.gmra.mrb[0].mxu0 %v7281
  %v7628 = vpop.f32.mrb[0].mxu0
  %v7629 = vadd.f32 0.0, %v7628
  %v7630 = vpop.f32.mrb[0].mxu0
  %7631 = vmatprep.mubr.f32.mxu0 0.0
  %7632 = vmatmul.mubr.f32.gmra.mrb[0].mxu0 %v7282
  %v7633 = vpop.f32.mrb[0].mxu0
  %v7634 = vadd.f32 0.0, %v7633
  %v7635 = vpop.f32.mrb[0].mxu0
  %7636 = vmatprep.mubr.f32.mxu0 0.0
  %7637 = vmatmul.mubr.f32.gmra.mrb[0].mxu0 %v7283
  %v7638 = vpop.f32.mrb[0].mxu0
  %v7639 = vadd.f32 0.0, %v7638
  %v7640 = vpop.f32.mrb[0].mxu0
  %7641 = vmatprep.mubr.f32.mxu0 0.0
  %7642 = vmatmul.mubr.f32.gmra.mrb[0].mxu0 %v7284
  %v7643 = vpop.f32.mrb[0].mxu0
  %v7644 = vadd.f32 0.0, %v7643
  %v7645 = vpop.f32.mrb[0].mxu0
  %7646 = vmatprep.mubr.f32.mxu0 0.0
  %7647 = vmatmul.mubr.f32.gmra.mrb[0].mxu0 %v7285
  %v7648 = vpop.f32.mrb[0].mxu0
  %v7649 = vadd.f32 0.0, %v7648
  %v7650 = vpop.f32.mrb[0].mxu0
  %7651 = vmatprep.mubr.f32.mxu0 0.0
  %7652 = vmatmul.mubr.f32.gmra.mrb[0].mxu0 %v7286
  %v7653 = vpop.f32.mrb[0].mxu0
  %v7654 = vadd.f32 0.0, %v7653
  %v7655 = vpop.f32.mrb[0].mxu0
  %7656 = vmatprep.mubr.f32.mxu0 0.0
  %7657 = vmatmul.mubr.f32.gmra.mrb[0].mxu0 %v7287
  %v7658 = vpop.f32.mrb[0].mxu0
  %v7659 = vadd.f32 0.0, %v7658
  %v7660 = vpop.f32.mrb[0].mxu0
  %7661 = vmatprep.mubr.f32.mxu0 0.0
  %7662 = vmatmul.mubr.f32.gmra.mrb[0].mxu0 %v7288
  %v7663 = vpop.f32.mrb[0].mxu0
  %v7664 = vadd.f32 0.0, %v7663
  %v7665 = vpop.f32.mrb[0].mxu0
  %7666 = vmatprep.mubr.f32.mxu0 0.0
  %7667 = vmatmul.mubr.f32.gmra.mrb[0].mxu0 %v7289
  %v7668 = vpop.f32.mrb[0].mxu0
  %v7669 = vadd.f32 0.0, %v7668
  %v7670 = vpop.f32.mrb[0].mxu0
  %7671 = vmatprep.mubr.f32.mxu0 0.0
  %7672 = vmatmul.mubr.f32.gmra.mrb[0].mxu0 %v7290
  %v7673 = vpop.f32.mrb[0].mxu0
  %v7674 = vadd.f32 0.0, %v7673
  %v7675 = vpop.f32.mrb[0].mxu0
  %7676 = vmatprep.mubr.f32.mxu0 0.0
  %7677 = vmatmul.mubr.f32.gmra.mrb[0].mxu0 %v7291
  %v7678 = vpop.f32.mrb[0].mxu0
  %v7679 = vadd.f32 0.0, %v7678
  %v7680 = vpop.f32.mrb[0].mxu0
  %7681 = vmatprep.mubr.f32.mxu0 0.0
  %7682 = vmatmul.mubr.f32.gmra.mrb[0].mxu0 %v7292
  %v7683 = vpop.f32.mrb[0].mxu0
  %v7684 = vadd.f32 0.0, %v7683
  %v7685 = vpop.f32.mrb[0].mxu0
  %7686 = vmatprep.mubr.f32.mxu0 0.0
  %7687 = vmatmul.mubr.f32.gmra.mrb[0].mxu0 %v7293
  %v7688 = vpop.f32.mrb[0].mxu0
  %v7689 = vadd.f32 0.0, %v7688
  %v7690 = vpop.f32.mrb[0].mxu0
  %7691 = vmatprep.mubr.f32.mxu0 0.0
  %7692 = vmatmul.mubr.f32.gmra.mrb[0].mxu0 %v7294
  %v7693 = vpop.f32.mrb[0].mxu0
  %v7694 = vadd.f32 0.0, %v7693
  %v7695 = vpop.f32.mrb[0].mxu0
  %7696 = vdwg.mxu0
  %v7697 = vadd.f32 %v7167, %v7379
  %v7698 = vadd.f32 %v7168, %v7384
  %v7699 = vadd.f32 %v7169, %v7389
  %v7700 = vadd.f32 %v7170, %v7394
  %v7701 = vadd.f32 %v7171, %v7399
  %v7702 = vadd.f32 %v7172, %v7404
  %v7703 = vadd.f32 %v7173, %v7409
  %v7704 = vadd.f32 %v7174, %v7414
  %v7705 = vadd.f32 %v7175, %v7419
  %v7706 = vadd.f32 %v7176, %v7424
  %v7707 = vadd.f32 %v7177, %v7429
  %v7708 = vadd.f32 %v7178, %v7434
  %v7709 = vadd.f32 %v7179, %v7439
  %v7710 = vadd.f32 %v7180, %v7444
  %v7711 = vadd.f32 %v7181, %v7449
  %v7712 = vadd.f32 %v7182, %v7454
  %v7713 = vadd.f32 %v7183, %v7459
  %v7714 = vadd.f32 %v7184, %v7464
  %v7715 = vadd.f32 %v7185, %v7469
  %v7716 = vadd.f32 %v7186, %v7474
  %v7717 = vadd.f32 %v7187, %v7479
  %v7718 = vadd.f32 %v7188, %v7484
  %v7719 = vadd.f32 %v7189, %v7489
  %v7720 = vadd.f32 %v7190, %v7494
  %v7721 = vadd.f32 %v7191, %v7499
  %v7722 = vadd.f32 %v7192, %v7504
  %v7723 = vadd.f32 %v7193, %v7509
  %v7724 = vadd.f32 %v7194, %v7514
  %v7725 = vadd.f32 %v7195, %v7519
  %v7726 = vadd.f32 %v7196, %v7524
  %v7727 = vadd.f32 %v7197, %v7529
  %v7728 = vadd.f32 %v7198, %v7534
  %v7729 = vadd.f32 %v7199, %v7539
  %v7730 = vadd.f32 %v7200, %v7544
  %v7731 = vadd.f32 %v7201, %v7549
  %v7732 = vadd.f32 %v7202, %v7554
  %v7733 = vadd.f32 %v7203, %v7559
  %v7734 = vadd.f32 %v7204, %v7564
  %v7735 = vadd.f32 %v7205, %v7569
  %v7736 = vadd.f32 %v7206, %v7574
  %v7737 = vadd.f32 %v7207, %v7579
  %v7738 = vadd.f32 %v7208, %v7584
  %v7739 = vadd.f32 %v7209, %v7589
  %v7740 = vadd.f32 %v7210, %v7594
  %v7741 = vadd.f32 %v7211, %v7599
  %v7742 = vadd.f32 %v7212, %v7604
  %v7743 = vadd.f32 %v7213, %v7609
  %v7744 = vadd.f32 %v7214, %v7614
  %v7745 = vadd.f32 %v7215, %v7619
  %v7746 = vadd.f32 %v7216, %v7624
  %v7747 = vadd.f32 %v7217, %v7629
  %v7748 = vadd.f32 %v7218, %v7634
  %v7749 = vadd.f32 %v7219, %v7639
  %v7750 = vadd.f32 %v7220, %v7644
  %v7751 = vadd.f32 %v7221, %v7649
  %v7752 = vadd.f32 %v7222, %v7654
  %v7753 = vadd.f32 %v7223, %v7659
  %v7754 = vadd.f32 %v7224, %v7664
  %v7755 = vadd.f32 %v7225, %v7669
  %v7756 = vadd.f32 %v7226, %v7674
  %v7757 = vadd.f32 %v7227, %v7679
  %v7758 = vadd.f32 %v7228, %v7684
  %v7759 = vadd.f32 %v7229, %v7689
  %v7760 = vadd.f32 %v7230, %v7694
  %v7761 = vld [vmem:[%s5175 + $0x2] sm:$0xff]
  %v7762 = vld [vmem:[%s5175 + $0xa] sm:$0xff]
  %v7763 = vld [vmem:[%s5175 + $0x1a] sm:$0xff]
  %v7764 = vld [vmem:[%s5175 + $0x22] sm:$0xff]
  %v7765 = vld [vmem:[%s5175 + $0x32] sm:$0xff]
  %v7766 = vld [vmem:[%s5175 + $0x3a] sm:$0xff]
  %v7767 = vld [vmem:[%s5175 + $0x4a] sm:$0xff]
  %v7768 = vld [vmem:[%s5175 + $0x52] sm:$0xff]
  %v7769 = vld [vmem:[%s5175 + $0x62] sm:$0xff]
  %v7770 = vld [vmem:[%s5175 + $0x6a] sm:$0xff]
  %v7771 = vld [vmem:[%s5175 + $0x7a] sm:$0xff]
  %v7772 = vld [vmem:[%s5175 + $0x82] sm:$0xff]
  %v7773 = vld [vmem:[%s5175 + $0x92] sm:$0xff]
  %v7774 = vld [vmem:[%s5175 + $0x9a] sm:$0xff]
  %v7775 = vld [vmem:[%s5175 + $0xaa] sm:$0xff]
  %v7776 = vld [vmem:[%s5175 + $0xb2] sm:$0xff]
  %v7777 = vld [vmem:[%s5175 + $0xc2] sm:$0xff]
  %v7778 = vld [vmem:[%s5175 + $0xca] sm:$0xff]
  %v7779 = vld [vmem:[%s5175 + $0xda] sm:$0xff]
  %v7780 = vld [vmem:[%s5175 + $0xe2] sm:$0xff]
  %v7781 = vld [vmem:[%s5175 + $0xf2] sm:$0xff]
  %v7782 = vld [vmem:[%s5175 + $0xfa] sm:$0xff]
  %v7783 = vld [vmem:[%s5175 + $0x10a] sm:$0xff]
  %v7784 = vld [vmem:[%s5175 + $0x112] sm:$0xff]
  %v7785 = vld [vmem:[%s5175 + $0x122] sm:$0xff]
  %v7786 = vld [vmem:[%s5175 + $0x12a] sm:$0xff]
  %v7787 = vld [vmem:[%s5175 + $0x13a] sm:$0xff]
  %v7788 = vld [vmem:[%s5175 + $0x142] sm:$0xff]
  %v7789 = vld [vmem:[%s5175 + $0x152] sm:$0xff]
  %v7790 = vld [vmem:[%s5175 + $0x15a] sm:$0xff]
  %v7791 = vld [vmem:[%s5175 + $0x16a] sm:$0xff]
  %v7792 = vld [vmem:[%s5175 + $0x172] sm:$0xff]
  %v7793 = vld [vmem:[%s5175 + $0x1b2] sm:$0xff]
  %v7794 = vld [vmem:[%s5175 + $0x1ba] sm:$0xff]
  %v7795 = vld [vmem:[%s5175 + $0x1ca] sm:$0xff]
  %v7796 = vld [vmem:[%s5175 + $0x1d2] sm:$0xff]
  %v7797 = vld [vmem:[%s5175 + $0x1e2] sm:$0xff]
  %v7798 = vld [vmem:[%s5175 + $0x1ea] sm:$0xff]
  %v7799 = vld [vmem:[%s5175 + $0x1fa] sm:$0xff]
  %v7800 = vld [vmem:[%s5175 + $0x202] sm:$0xff]
  %v7801 = vld [vmem:[%s5175 + $0x212] sm:$0xff]
  %v7802 = vld [vmem:[%s5175 + $0x21a] sm:$0xff]
  %v7803 = vld [vmem:[%s5175 + $0x22a] sm:$0xff]
  %v7804 = vld [vmem:[%s5175 + $0x232] sm:$0xff]
  %v7805 = vld [vmem:[%s5175 + $0x242] sm:$0xff]
  %v7806 = vld [vmem:[%s5175 + $0x24a] sm:$0xff]
  %v7807 = vld [vmem:[%s5175 + $0x25a] sm:$0xff]
  %v7808 = vld [vmem:[%s5175 + $0x262] sm:$0xff]
  %v7809 = vld [vmem:[%s5175 + $0x272] sm:$0xff]
  %v7810 = vld [vmem:[%s5175 + $0x27a] sm:$0xff]
  %v7811 = vld [vmem:[%s5175 + $0x28a] sm:$0xff]
  %v7812 = vld [vmem:[%s5175 + $0x292] sm:$0xff]
  %v7813 = vld [vmem:[%s5175 + $0x2a2] sm:$0xff]
  %v7814 = vld [vmem:[%s5175 + $0x2aa] sm:$0xff]
  %v7815 = vld [vmem:[%s5175 + $0x2ba] sm:$0xff]
  %v7816 = vld [vmem:[%s5175 + $0x2c2] sm:$0xff]
  %v7817 = vld [vmem:[%s5175 + $0x2d2] sm:$0xff]
  %v7818 = vld [vmem:[%s5175 + $0x2da] sm:$0xff]
  %v7819 = vld [vmem:[%s5175 + $0x2ea] sm:$0xff]
  %v7820 = vld [vmem:[%s5175 + $0x2f2] sm:$0xff]
  %v7821 = vld [vmem:[%s5175 + $0x302] sm:$0xff]
  %v7822 = vld [vmem:[%s5175 + $0x30a] sm:$0xff]
  %v7823 = vld [vmem:[%s5175 + $0x31a] sm:$0xff]
  %v7824 = vld [vmem:[%s5175 + $0x322] sm:$0xff]
  %s7825 = scalar_lea.vmem %s3, 640
  %v7826 = vld [vmem:[%s7825] sm:$0xff]
  %v7827 = vld [vmem:[%s7825 + $0x8] sm:$0xff]
  %v7828 = vld [vmem:[%s7825 + $0x10] sm:$0xff]
  %v7829 = vld [vmem:[%s7825 + $0x18] sm:$0xff]
  %v7830 = vld [vmem:[%s7825 + $0x20] sm:$0xff]
  %v7831 = vld [vmem:[%s7825 + $0x28] sm:$0xff]
  %v7832 = vld [vmem:[%s7825 + $0x30] sm:$0xff]
  %v7833 = vld [vmem:[%s7825 + $0x38] sm:$0xff]
  %v7834 = vld [vmem:[%s7825 + $0x40] sm:$0xff]
  %v7835 = vld [vmem:[%s7825 + $0x48] sm:$0xff]
  %v7836 = vld [vmem:[%s7825 + $0x50] sm:$0xff]
  %v7837 = vld [vmem:[%s7825 + $0x58] sm:$0xff]
  %v7838 = vld [vmem:[%s7825 + $0x60] sm:$0xff]
  %v7839 = vld [vmem:[%s7825 + $0x68] sm:$0xff]
  %v7840 = vld [vmem:[%s7825 + $0x70] sm:$0xff]
  %v7841 = vld [vmem:[%s7825 + $0x78] sm:$0xff]
  %7842 = vmatprep.subr.mxu0 0.0
  %7843 = vmatpush1.msra.mxu0 %v7826
  %7844 = vmatprep.subr.mxu0 0.0
  %7845 = vmatpush1.msra.mxu0 %v7827
  %7846 = vmatprep.subr.mxu0 0.0
  %7847 = vmatpush1.msra.mxu0 %v7828
  %7848 = vmatprep.subr.mxu0 0.0
  %7849 = vmatpush1.msra.mxu0 %v7829
  %7850 = vmatprep.subr.mxu0 0.0
  %7851 = vmatpush1.msra.mxu0 %v7830
  %7852 = vmatprep.subr.mxu0 0.0
  %7853 = vmatpush1.msra.mxu0 %v7831
  %7854 = vmatprep.subr.mxu0 0.0
  %7855 = vmatpush1.msra.mxu0 %v7832
  %7856 = vmatprep.subr.mxu0 0.0
  %7857 = vmatpush1.msra.mxu0 %v7833
  %7858 = vmatprep.subr.mxu0 0.0
  %7859 = vmatpush1.msra.mxu0 %v7834
  %7860 = vmatprep.subr.mxu0 0.0
  %7861 = vmatpush1.msra.mxu0 %v7835
  %7862 = vmatprep.subr.mxu0 0.0
  %7863 = vmatpush1.msra.mxu0 %v7836
  %7864 = vmatprep.subr.mxu0 0.0
  %7865 = vmatpush1.msra.mxu0 %v7837
  %7866 = vmatprep.subr.mxu0 0.0
  %7867 = vmatpush1.msra.mxu0 %v7838
  %7868 = vmatprep.subr.mxu0 0.0
  %7869 = vmatpush1.msra.mxu0 %v7839
  %7870 = vmatprep.subr.mxu0 0.0
  %7871 = vmatpush1.msra.mxu0 %v7840
  %7872 = vmatprep.subr.mxu0 0.0
  %7873 = vmatpush1.msra.mxu0 %v7841
  %7874 = vmatprep.subr.mxu0 0.0
  %7875 = vmatpush1.msra.mxu0 0.0
  %7876 = vmatprep.subr.mxu0 0.0
  %7877 = vmatpush1.msra.mxu0 0.0
  %7878 = vmatprep.subr.mxu0 0.0
  %7879 = vmatpush1.msra.mxu0 0.0
  %7880 = vmatprep.subr.mxu0 0.0
  %7881 = vmatpush1.msra.mxu0 0.0
  %7882 = vmatprep.subr.mxu0 0.0
  %7883 = vmatpush1.msra.mxu0 0.0
  %7884 = vmatprep.subr.mxu0 0.0
  %7885 = vmatpush1.msra.mxu0 0.0
  %7886 = vmatprep.subr.mxu0 0.0
  %7887 = vmatpush1.msra.mxu0 0.0
  %7888 = vmatprep.subr.mxu0 0.0
  %7889 = vmatpush1.msra.mxu0 0.0
  %7890 = vmatprep.subr.mxu0 0.0
  %7891 = vmatpush1.msra.mxu0 0.0
  %7892 = vmatprep.subr.mxu0 0.0
  %7893 = vmatpush1.msra.mxu0 0.0
  %7894 = vmatprep.subr.mxu0 0.0
  %7895 = vmatpush1.msra.mxu0 0.0
  %7896 = vmatprep.subr.mxu0 0.0
  %7897 = vmatpush1.msra.mxu0 0.0
  %7898 = vmatprep.subr.mxu0 0.0
  %7899 = vmatpush1.msra.mxu0 0.0
  %7900 = vmatprep.subr.mxu0 0.0
  %7901 = vmatpush1.msra.mxu0 0.0
  %7902 = vmatprep.subr.mxu0 0.0
  %7903 = vmatpush1.msra.mxu0 0.0
  %7904 = vmatprep.subr.mxu0 0.0
  %7905 = vmatpush1.msra.mxu0 0.0
  %7906 = vmatprep.mubr.f32.mxu0 0.0
  %7907 = vmatmul.mubr.f32.gmra.mrb[0].mxu0 %v7761
  %v7908 = vpop.f32.mrb[0].mxu0
  %v7909 = vadd.f32 0.0, %v7908
  %v7910 = vpop.f32.mrb[0].mxu0
  %7911 = vmatprep.mubr.f32.mxu0 0.0
  %7912 = vmatmul.mubr.f32.gmra.mrb[0].mxu0 %v7762
  %v7913 = vpop.f32.mrb[0].mxu0
  %v7914 = vadd.f32 0.0, %v7913
  %v7915 = vpop.f32.mrb[0].mxu0
  %7916 = vmatprep.mubr.f32.mxu0 0.0
  %7917 = vmatmul.mubr.f32.gmra.mrb[0].mxu0 %v7763
  %v7918 = vpop.f32.mrb[0].mxu0
  %v7919 = vadd.f32 0.0, %v7918
  %v7920 = vpop.f32.mrb[0].mxu0
  %7921 = vmatprep.mubr.f32.mxu0 0.0
  %7922 = vmatmul.mubr.f32.gmra.mrb[0].mxu0 %v7764
  %v7923 = vpop.f32.mrb[0].mxu0
  %v7924 = vadd.f32 0.0, %v7923
  %v7925 = vpop.f32.mrb[0].mxu0
  %7926 = vmatprep.mubr.f32.mxu0 0.0
  %7927 = vmatmul.mubr.f32.gmra.mrb[0].mxu0 %v7765
  %v7928 = vpop.f32.mrb[0].mxu0
  %v7929 = vadd.f32 0.0, %v7928
  %v7930 = vpop.f32.mrb[0].mxu0
  %7931 = vmatprep.mubr.f32.mxu0 0.0
  %7932 = vmatmul.mubr.f32.gmra.mrb[0].mxu0 %v7766
  %v7933 = vpop.f32.mrb[0].mxu0
  %v7934 = vadd.f32 0.0, %v7933
  %v7935 = vpop.f32.mrb[0].mxu0
  %7936 = vmatprep.mubr.f32.mxu0 0.0
  %7937 = vmatmul.mubr.f32.gmra.mrb[0].mxu0 %v7767
  %v7938 = vpop.f32.mrb[0].mxu0
  %v7939 = vadd.f32 0.0, %v7938
  %v7940 = vpop.f32.mrb[0].mxu0
  %7941 = vmatprep.mubr.f32.mxu0 0.0
  %7942 = vmatmul.mubr.f32.gmra.mrb[0].mxu0 %v7768
  %v7943 = vpop.f32.mrb[0].mxu0
  %v7944 = vadd.f32 0.0, %v7943
  %v7945 = vpop.f32.mrb[0].mxu0
  %7946 = vmatprep.mubr.f32.mxu0 0.0
  %7947 = vmatmul.mubr.f32.gmra.mrb[0].mxu0 %v7769
  %v7948 = vpop.f32.mrb[0].mxu0
  %v7949 = vadd.f32 0.0, %v7948
  %v7950 = vpop.f32.mrb[0].mxu0
  %7951 = vmatprep.mubr.f32.mxu0 0.0
  %7952 = vmatmul.mubr.f32.gmra.mrb[0].mxu0 %v7770
  %v7953 = vpop.f32.mrb[0].mxu0
  %v7954 = vadd.f32 0.0, %v7953
  %v7955 = vpop.f32.mrb[0].mxu0
  %7956 = vmatprep.mubr.f32.mxu0 0.0
  %7957 = vmatmul.mubr.f32.gmra.mrb[0].mxu0 %v7771
  %v7958 = vpop.f32.mrb[0].mxu0
  %v7959 = vadd.f32 0.0, %v7958
  %v7960 = vpop.f32.mrb[0].mxu0
  %7961 = vmatprep.mubr.f32.mxu0 0.0
  %7962 = vmatmul.mubr.f32.gmra.mrb[0].mxu0 %v7772
  %v7963 = vpop.f32.mrb[0].mxu0
  %v7964 = vadd.f32 0.0, %v7963
  %v7965 = vpop.f32.mrb[0].mxu0
  %7966 = vmatprep.mubr.f32.mxu0 0.0
  %7967 = vmatmul.mubr.f32.gmra.mrb[0].mxu0 %v7773
  %v7968 = vpop.f32.mrb[0].mxu0
  %v7969 = vadd.f32 0.0, %v7968
  %v7970 = vpop.f32.mrb[0].mxu0
  %7971 = vmatprep.mubr.f32.mxu0 0.0
  %7972 = vmatmul.mubr.f32.gmra.mrb[0].mxu0 %v7774
  %v7973 = vpop.f32.mrb[0].mxu0
  %v7974 = vadd.f32 0.0, %v7973
  %v7975 = vpop.f32.mrb[0].mxu0
  %7976 = vmatprep.mubr.f32.mxu0 0.0
  %7977 = vmatmul.mubr.f32.gmra.mrb[0].mxu0 %v7775
  %v7978 = vpop.f32.mrb[0].mxu0
  %v7979 = vadd.f32 0.0, %v7978
  %v7980 = vpop.f32.mrb[0].mxu0
  %7981 = vmatprep.mubr.f32.mxu0 0.0
  %7982 = vmatmul.mubr.f32.gmra.mrb[0].mxu0 %v7776
  %v7983 = vpop.f32.mrb[0].mxu0
  %v7984 = vadd.f32 0.0, %v7983
  %v7985 = vpop.f32.mrb[0].mxu0
  %7986 = vmatprep.mubr.f32.mxu0 0.0
  %7987 = vmatmul.mubr.f32.gmra.mrb[0].mxu0 %v7777
  %v7988 = vpop.f32.mrb[0].mxu0
  %v7989 = vadd.f32 0.0, %v7988
  %v7990 = vpop.f32.mrb[0].mxu0
  %7991 = vmatprep.mubr.f32.mxu0 0.0
  %7992 = vmatmul.mubr.f32.gmra.mrb[0].mxu0 %v7778
  %v7993 = vpop.f32.mrb[0].mxu0
  %v7994 = vadd.f32 0.0, %v7993
  %v7995 = vpop.f32.mrb[0].mxu0
  %7996 = vmatprep.mubr.f32.mxu0 0.0
  %7997 = vmatmul.mubr.f32.gmra.mrb[0].mxu0 %v7779
  %v7998 = vpop.f32.mrb[0].mxu0
  %v7999 = vadd.f32 0.0, %v7998
  %v8000 = vpop.f32.mrb[0].mxu0
  %8001 = vmatprep.mubr.f32.mxu0 0.0
  %8002 = vmatmul.mubr.f32.gmra.mrb[0].mxu0 %v7780
  %v8003 = vpop.f32.mrb[0].mxu0
  %v8004 = vadd.f32 0.0, %v8003
  %v8005 = vpop.f32.mrb[0].mxu0
  %8006 = vmatprep.mubr.f32.mxu0 0.0
  %8007 = vmatmul.mubr.f32.gmra.mrb[0].mxu0 %v7781
  %v8008 = vpop.f32.mrb[0].mxu0
  %v8009 = vadd.f32 0.0, %v8008
  %v8010 = vpop.f32.mrb[0].mxu0
  %8011 = vmatprep.mubr.f32.mxu0 0.0
  %8012 = vmatmul.mubr.f32.gmra.mrb[0].mxu0 %v7782
  %v8013 = vpop.f32.mrb[0].mxu0
  %v8014 = vadd.f32 0.0, %v8013
  %v8015 = vpop.f32.mrb[0].mxu0
  %8016 = vmatprep.mubr.f32.mxu0 0.0
  %8017 = vmatmul.mubr.f32.gmra.mrb[0].mxu0 %v7783
  %v8018 = vpop.f32.mrb[0].mxu0
  %v8019 = vadd.f32 0.0, %v8018
  %v8020 = vpop.f32.mrb[0].mxu0
  %8021 = vmatprep.mubr.f32.mxu0 0.0
  %8022 = vmatmul.mubr.f32.gmra.mrb[0].mxu0 %v7784
  %v8023 = vpop.f32.mrb[0].mxu0
  %v8024 = vadd.f32 0.0, %v8023
  %v8025 = vpop.f32.mrb[0].mxu0
  %8026 = vmatprep.mubr.f32.mxu0 0.0
  %8027 = vmatmul.mubr.f32.gmra.mrb[0].mxu0 %v7785
  %v8028 = vpop.f32.mrb[0].mxu0
  %v8029 = vadd.f32 0.0, %v8028
  %v8030 = vpop.f32.mrb[0].mxu0
  %8031 = vmatprep.mubr.f32.mxu0 0.0
  %8032 = vmatmul.mubr.f32.gmra.mrb[0].mxu0 %v7786
  %v8033 = vpop.f32.mrb[0].mxu0
  %v8034 = vadd.f32 0.0, %v8033
  %v8035 = vpop.f32.mrb[0].mxu0
  %8036 = vmatprep.mubr.f32.mxu0 0.0
  %8037 = vmatmul.mubr.f32.gmra.mrb[0].mxu0 %v7787
  %v8038 = vpop.f32.mrb[0].mxu0
  %v8039 = vadd.f32 0.0, %v8038
  %v8040 = vpop.f32.mrb[0].mxu0
  %8041 = vmatprep.mubr.f32.mxu0 0.0
  %8042 = vmatmul.mubr.f32.gmra.mrb[0].mxu0 %v7788
  %v8043 = vpop.f32.mrb[0].mxu0
  %v8044 = vadd.f32 0.0, %v8043
  %v8045 = vpop.f32.mrb[0].mxu0
  %8046 = vmatprep.mubr.f32.mxu0 0.0
  %8047 = vmatmul.mubr.f32.gmra.mrb[0].mxu0 %v7789
  %v8048 = vpop.f32.mrb[0].mxu0
  %v8049 = vadd.f32 0.0, %v8048
  %v8050 = vpop.f32.mrb[0].mxu0
  %8051 = vmatprep.mubr.f32.mxu0 0.0
  %8052 = vmatmul.mubr.f32.gmra.mrb[0].mxu0 %v7790
  %v8053 = vpop.f32.mrb[0].mxu0
  %v8054 = vadd.f32 0.0, %v8053
  %v8055 = vpop.f32.mrb[0].mxu0
  %8056 = vmatprep.mubr.f32.mxu0 0.0
  %8057 = vmatmul.mubr.f32.gmra.mrb[0].mxu0 %v7791
  %v8058 = vpop.f32.mrb[0].mxu0
  %v8059 = vadd.f32 0.0, %v8058
  %v8060 = vpop.f32.mrb[0].mxu0
  %8061 = vmatprep.mubr.f32.mxu0 0.0
  %8062 = vmatmul.mubr.f32.gmra.mrb[0].mxu0 %v7792
  %v8063 = vpop.f32.mrb[0].mxu0
  %v8064 = vadd.f32 0.0, %v8063
  %v8065 = vpop.f32.mrb[0].mxu0
  %8066 = vmatprep.mubr.f32.mxu0 0.0
  %8067 = vmatmul.mubr.f32.gmra.mrb[0].mxu0 %v7793
  %v8068 = vpop.f32.mrb[0].mxu0
  %v8069 = vadd.f32 0.0, %v8068
  %v8070 = vpop.f32.mrb[0].mxu0
  %8071 = vmatprep.mubr.f32.mxu0 0.0
  %8072 = vmatmul.mubr.f32.gmra.mrb[0].mxu0 %v7794
  %v8073 = vpop.f32.mrb[0].mxu0
  %v8074 = vadd.f32 0.0, %v8073
  %v8075 = vpop.f32.mrb[0].mxu0
  %8076 = vmatprep.mubr.f32.mxu0 0.0
  %8077 = vmatmul.mubr.f32.gmra.mrb[0].mxu0 %v7795
  %v8078 = vpop.f32.mrb[0].mxu0
  %v8079 = vadd.f32 0.0, %v8078
  %v8080 = vpop.f32.mrb[0].mxu0
  %8081 = vmatprep.mubr.f32.mxu0 0.0
  %8082 = vmatmul.mubr.f32.gmra.mrb[0].mxu0 %v7796
  %v8083 = vpop.f32.mrb[0].mxu0
  %v8084 = vadd.f32 0.0, %v8083
  %v8085 = vpop.f32.mrb[0].mxu0
  %8086 = vmatprep.mubr.f32.mxu0 0.0
  %8087 = vmatmul.mubr.f32.gmra.mrb[0].mxu0 %v7797
  %v8088 = vpop.f32.mrb[0].mxu0
  %v8089 = vadd.f32 0.0, %v8088
  %v8090 = vpop.f32.mrb[0].mxu0
  %8091 = vmatprep.mubr.f32.mxu0 0.0
  %8092 = vmatmul.mubr.f32.gmra.mrb[0].mxu0 %v7798
  %v8093 = vpop.f32.mrb[0].mxu0
  %v8094 = vadd.f32 0.0, %v8093
  %v8095 = vpop.f32.mrb[0].mxu0
  %8096 = vmatprep.mubr.f32.mxu0 0.0
  %8097 = vmatmul.mubr.f32.gmra.mrb[0].mxu0 %v7799
  %v8098 = vpop.f32.mrb[0].mxu0
  %v8099 = vadd.f32 0.0, %v8098
  %v8100 = vpop.f32.mrb[0].mxu0
  %8101 = vmatprep.mubr.f32.mxu0 0.0
  %8102 = vmatmul.mubr.f32.gmra.mrb[0].mxu0 %v7800
  %v8103 = vpop.f32.mrb[0].mxu0
  %v8104 = vadd.f32 0.0, %v8103
  %v8105 = vpop.f32.mrb[0].mxu0
  %8106 = vmatprep.mubr.f32.mxu0 0.0
  %8107 = vmatmul.mubr.f32.gmra.mrb[0].mxu0 %v7801
  %v8108 = vpop.f32.mrb[0].mxu0
  %v8109 = vadd.f32 0.0, %v8108
  %v8110 = vpop.f32.mrb[0].mxu0
  %8111 = vmatprep.mubr.f32.mxu0 0.0
  %8112 = vmatmul.mubr.f32.gmra.mrb[0].mxu0 %v7802
  %v8113 = vpop.f32.mrb[0].mxu0
  %v8114 = vadd.f32 0.0, %v8113
  %v8115 = vpop.f32.mrb[0].mxu0
  %8116 = vmatprep.mubr.f32.mxu0 0.0
  %8117 = vmatmul.mubr.f32.gmra.mrb[0].mxu0 %v7803
  %v8118 = vpop.f32.mrb[0].mxu0
  %v8119 = vadd.f32 0.0, %v8118
  %v8120 = vpop.f32.mrb[0].mxu0
  %8121 = vmatprep.mubr.f32.mxu0 0.0
  %8122 = vmatmul.mubr.f32.gmra.mrb[0].mxu0 %v7804
  %v8123 = vpop.f32.mrb[0].mxu0
  %v8124 = vadd.f32 0.0, %v8123
  %v8125 = vpop.f32.mrb[0].mxu0
  %8126 = vmatprep.mubr.f32.mxu0 0.0
  %8127 = vmatmul.mubr.f32.gmra.mrb[0].mxu0 %v7805
  %v8128 = vpop.f32.mrb[0].mxu0
  %v8129 = vadd.f32 0.0, %v8128
  %v8130 = vpop.f32.mrb[0].mxu0
  %8131 = vmatprep.mubr.f32.mxu0 0.0
  %8132 = vmatmul.mubr.f32.gmra.mrb[0].mxu0 %v7806
  %v8133 = vpop.f32.mrb[0].mxu0
  %v8134 = vadd.f32 0.0, %v8133
  %v8135 = vpop.f32.mrb[0].mxu0
  %8136 = vmatprep.mubr.f32.mxu0 0.0
  %8137 = vmatmul.mubr.f32.gmra.mrb[0].mxu0 %v7807
  %v8138 = vpop.f32.mrb[0].mxu0
  %v8139 = vadd.f32 0.0, %v8138
  %v8140 = vpop.f32.mrb[0].mxu0
  %8141 = vmatprep.mubr.f32.mxu0 0.0
  %8142 = vmatmul.mubr.f32.gmra.mrb[0].mxu0 %v7808
  %v8143 = vpop.f32.mrb[0].mxu0
  %v8144 = vadd.f32 0.0, %v8143
  %v8145 = vpop.f32.mrb[0].mxu0
  %8146 = vmatprep.mubr.f32.mxu0 0.0
  %8147 = vmatmul.mubr.f32.gmra.mrb[0].mxu0 %v7809
  %v8148 = vpop.f32.mrb[0].mxu0
  %v8149 = vadd.f32 0.0, %v8148
  %v8150 = vpop.f32.mrb[0].mxu0
  %8151 = vmatprep.mubr.f32.mxu0 0.0
  %8152 = vmatmul.mubr.f32.gmra.mrb[0].mxu0 %v7810
  %v8153 = vpop.f32.mrb[0].mxu0
  %v8154 = vadd.f32 0.0, %v8153
  %v8155 = vpop.f32.mrb[0].mxu0
  %8156 = vmatprep.mubr.f32.mxu0 0.0
  %8157 = vmatmul.mubr.f32.gmra.mrb[0].mxu0 %v7811
  %v8158 = vpop.f32.mrb[0].mxu0
  %v8159 = vadd.f32 0.0, %v8158
  %v8160 = vpop.f32.mrb[0].mxu0
  %8161 = vmatprep.mubr.f32.mxu0 0.0
  %8162 = vmatmul.mubr.f32.gmra.mrb[0].mxu0 %v7812
  %v8163 = vpop.f32.mrb[0].mxu0
  %v8164 = vadd.f32 0.0, %v8163
  %v8165 = vpop.f32.mrb[0].mxu0
  %8166 = vmatprep.mubr.f32.mxu0 0.0
  %8167 = vmatmul.mubr.f32.gmra.mrb[0].mxu0 %v7813
  %v8168 = vpop.f32.mrb[0].mxu0
  %v8169 = vadd.f32 0.0, %v8168
  %v8170 = vpop.f32.mrb[0].mxu0
  %8171 = vmatprep.mubr.f32.mxu0 0.0
  %8172 = vmatmul.mubr.f32.gmra.mrb[0].mxu0 %v7814
  %v8173 = vpop.f32.mrb[0].mxu0
  %v8174 = vadd.f32 0.0, %v8173
  %v8175 = vpop.f32.mrb[0].mxu0
  %8176 = vmatprep.mubr.f32.mxu0 0.0
  %8177 = vmatmul.mubr.f32.gmra.mrb[0].mxu0 %v7815
  %v8178 = vpop.f32.mrb[0].mxu0
  %v8179 = vadd.f32 0.0, %v8178
  %v8180 = vpop.f32.mrb[0].mxu0
  %8181 = vmatprep.mubr.f32.mxu0 0.0
  %8182 = vmatmul.mubr.f32.gmra.mrb[0].mxu0 %v7816
  %v8183 = vpop.f32.mrb[0].mxu0
  %v8184 = vadd.f32 0.0, %v8183
  %v8185 = vpop.f32.mrb[0].mxu0
  %8186 = vmatprep.mubr.f32.mxu0 0.0
  %8187 = vmatmul.mubr.f32.gmra.mrb[0].mxu0 %v7817
  %v8188 = vpop.f32.mrb[0].mxu0
  %v8189 = vadd.f32 0.0, %v8188
  %v8190 = vpop.f32.mrb[0].mxu0
  %8191 = vmatprep.mubr.f32.mxu0 0.0
  %8192 = vmatmul.mubr.f32.gmra.mrb[0].mxu0 %v7818
  %v8193 = vpop.f32.mrb[0].mxu0
  %v8194 = vadd.f32 0.0, %v8193
  %v8195 = vpop.f32.mrb[0].mxu0
  %8196 = vmatprep.mubr.f32.mxu0 0.0
  %8197 = vmatmul.mubr.f32.gmra.mrb[0].mxu0 %v7819
  %v8198 = vpop.f32.mrb[0].mxu0
  %v8199 = vadd.f32 0.0, %v8198
  %v8200 = vpop.f32.mrb[0].mxu0
  %8201 = vmatprep.mubr.f32.mxu0 0.0
  %8202 = vmatmul.mubr.f32.gmra.mrb[0].mxu0 %v7820
  %v8203 = vpop.f32.mrb[0].mxu0
  %v8204 = vadd.f32 0.0, %v8203
  %v8205 = vpop.f32.mrb[0].mxu0
  %8206 = vmatprep.mubr.f32.mxu0 0.0
  %8207 = vmatmul.mubr.f32.gmra.mrb[0].mxu0 %v7821
  %v8208 = vpop.f32.mrb[0].mxu0
  %v8209 = vadd.f32 0.0, %v8208
  %v8210 = vpop.f32.mrb[0].mxu0
  %8211 = vmatprep.mubr.f32.mxu0 0.0
  %8212 = vmatmul.mubr.f32.gmra.mrb[0].mxu0 %v7822
  %v8213 = vpop.f32.mrb[0].mxu0
  %v8214 = vadd.f32 0.0, %v8213
  %v8215 = vpop.f32.mrb[0].mxu0
  %8216 = vmatprep.mubr.f32.mxu0 0.0
  %8217 = vmatmul.mubr.f32.gmra.mrb[0].mxu0 %v7823
  %v8218 = vpop.f32.mrb[0].mxu0
  %v8219 = vadd.f32 0.0, %v8218
  %v8220 = vpop.f32.mrb[0].mxu0
  %8221 = vmatprep.mubr.f32.mxu0 0.0
  %8222 = vmatmul.mubr.f32.gmra.mrb[0].mxu0 %v7824
  %v8223 = vpop.f32.mrb[0].mxu0
  %v8224 = vadd.f32 0.0, %v8223
  %v8225 = vpop.f32.mrb[0].mxu0
  %8226 = vdwg.mxu0
  %v8227 = vadd.f32 %v7697, %v7909
  %v8228 = vadd.f32 %v7698, %v7914
  %v8229 = vadd.f32 %v7699, %v7919
  %v8230 = vadd.f32 %v7700, %v7924
  %v8231 = vadd.f32 %v7701, %v7929
  %v8232 = vadd.f32 %v7702, %v7934
  %v8233 = vadd.f32 %v7703, %v7939
  %v8234 = vadd.f32 %v7704, %v7944
  %v8235 = vadd.f32 %v7705, %v7949
  %v8236 = vadd.f32 %v7706, %v7954
  %v8237 = vadd.f32 %v7707, %v7959
  %v8238 = vadd.f32 %v7708, %v7964
  %v8239 = vadd.f32 %v7709, %v7969
  %v8240 = vadd.f32 %v7710, %v7974
  %v8241 = vadd.f32 %v7711, %v7979
  %v8242 = vadd.f32 %v7712, %v7984
  %v8243 = vadd.f32 %v7713, %v7989
  %v8244 = vadd.f32 %v7714, %v7994
  %v8245 = vadd.f32 %v7715, %v7999
  %v8246 = vadd.f32 %v7716, %v8004
  %v8247 = vadd.f32 %v7717, %v8009
  %v8248 = vadd.f32 %v7718, %v8014
  %v8249 = vadd.f32 %v7719, %v8019
  %v8250 = vadd.f32 %v7720, %v8024
  %v8251 = vadd.f32 %v7721, %v8029
  %v8252 = vadd.f32 %v7722, %v8034
  %v8253 = vadd.f32 %v7723, %v8039
  %v8254 = vadd.f32 %v7724, %v8044
  %v8255 = vadd.f32 %v7725, %v8049
  %v8256 = vadd.f32 %v7726, %v8054
  %v8257 = vadd.f32 %v7727, %v8059
  %v8258 = vadd.f32 %v7728, %v8064
  %v8259 = vadd.f32 %v7729, %v8069
  %v8260 = vadd.f32 %v7730, %v8074
  %v8261 = vadd.f32 %v7731, %v8079
  %v8262 = vadd.f32 %v7732, %v8084
  %v8263 = vadd.f32 %v7733, %v8089
  %v8264 = vadd.f32 %v7734, %v8094
  %v8265 = vadd.f32 %v7735, %v8099
  %v8266 = vadd.f32 %v7736, %v8104
  %v8267 = vadd.f32 %v7737, %v8109
  %v8268 = vadd.f32 %v7738, %v8114
  %v8269 = vadd.f32 %v7739, %v8119
  %v8270 = vadd.f32 %v7740, %v8124
  %v8271 = vadd.f32 %v7741, %v8129
  %v8272 = vadd.f32 %v7742, %v8134
  %v8273 = vadd.f32 %v7743, %v8139
  %v8274 = vadd.f32 %v7744, %v8144
  %v8275 = vadd.f32 %v7745, %v8149
  %v8276 = vadd.f32 %v7746, %v8154
  %v8277 = vadd.f32 %v7747, %v8159
  %v8278 = vadd.f32 %v7748, %v8164
  %v8279 = vadd.f32 %v7749, %v8169
  %v8280 = vadd.f32 %v7750, %v8174
  %v8281 = vadd.f32 %v7751, %v8179
  %v8282 = vadd.f32 %v7752, %v8184
  %v8283 = vadd.f32 %v7753, %v8189
  %v8284 = vadd.f32 %v7754, %v8194
  %v8285 = vadd.f32 %v7755, %v8199
  %v8286 = vadd.f32 %v7756, %v8204
  %v8287 = vadd.f32 %v7757, %v8209
  %v8288 = vadd.f32 %v7758, %v8214
  %v8289 = vadd.f32 %v7759, %v8219
  %v8290 = vadd.f32 %v7760, %v8224
  %s8291 = scalar_lea.vmem [#allocation2], 48
  %v8292 = vld [vmem:[%s8291] sm:$0xff]
  %v8293 = vld [vmem:[%s8291 + $0x8] sm:$0xff]
  %v8294 = vld [vmem:[%s8291 + $0x18] sm:$0xff]
  %v8295 = vld [vmem:[%s8291 + $0x20] sm:$0xff]
  %v8296 = vld [vmem:[%s8291 + $0x30] sm:$0xff]
  %v8297 = vld [vmem:[%s8291 + $0x38] sm:$0xff]
  %v8298 = vld [vmem:[%s8291 + $0x48] sm:$0xff]
  %v8299 = vld [vmem:[%s8291 + $0x50] sm:$0xff]
  %v8300 = vld [vmem:[%s8291 + $0x60] sm:$0xff]
  %v8301 = vld [vmem:[%s8291 + $0x68] sm:$0xff]
  %v8302 = vld [vmem:[%s8291 + $0x78] sm:$0xff]
  %v8303 = vld [vmem:[%s8291 + $0x80] sm:$0xff]
  %v8304 = vld [vmem:[%s8291 + $0x90] sm:$0xff]
  %v8305 = vld [vmem:[%s8291 + $0x98] sm:$0xff]
  %v8306 = vld [vmem:[%s8291 + $0xa8] sm:$0xff]
  %v8307 = vld [vmem:[%s8291 + $0xb0] sm:$0xff]
  %v8308 = vld [vmem:[%s8291 + $0xc0] sm:$0xff]
  %v8309 = vld [vmem:[%s8291 + $0xc8] sm:$0xff]
  %v8310 = vld [vmem:[%s8291 + $0xd8] sm:$0xff]
  %v8311 = vld [vmem:[%s8291 + $0xe0] sm:$0xff]
  %v8312 = vld [vmem:[%s8291 + $0xf0] sm:$0xff]
  %v8313 = vld [vmem:[%s8291 + $0xf8] sm:$0xff]
  %v8314 = vld [vmem:[%s8291 + $0x108] sm:$0xff]
  %v8315 = vld [vmem:[%s8291 + $0x110] sm:$0xff]
  %v8316 = vld [vmem:[%s8291 + $0x120] sm:$0xff]
  %v8317 = vld [vmem:[%s8291 + $0x128] sm:$0xff]
  %v8318 = vld [vmem:[%s8291 + $0x138] sm:$0xff]
  %v8319 = vld [vmem:[%s8291 + $0x140] sm:$0xff]
  %v8320 = vld [vmem:[%s8291 + $0x150] sm:$0xff]
  %v8321 = vld [vmem:[%s8291 + $0x158] sm:$0xff]
  %v8322 = vld [vmem:[%s8291 + $0x168] sm:$0xff]
  %v8323 = vld [vmem:[%s8291 + $0x170] sm:$0xff]
  %v8324 = vld [vmem:[%s8291 + $0x1b0] sm:$0xff]
  %v8325 = vld [vmem:[%s8291 + $0x1b8] sm:$0xff]
  %v8326 = vld [vmem:[%s8291 + $0x1c8] sm:$0xff]
  %v8327 = vld [vmem:[%s8291 + $0x1d0] sm:$0xff]
  %v8328 = vld [vmem:[%s8291 + $0x1e0] sm:$0xff]
  %v8329 = vld [vmem:[%s8291 + $0x1e8] sm:$0xff]
  %v8330 = vld [vmem:[%s8291 + $0x1f8] sm:$0xff]
  %v8331 = vld [vmem:[%s8291 + $0x200] sm:$0xff]
  %v8332 = vld [vmem:[%s8291 + $0x210] sm:$0xff]
  %v8333 = vld [vmem:[%s8291 + $0x218] sm:$0xff]
  %v8334 = vld [vmem:[%s8291 + $0x228] sm:$0xff]
  %v8335 = vld [vmem:[%s8291 + $0x230] sm:$0xff]
  %v8336 = vld [vmem:[%s8291 + $0x240] sm:$0xff]
  %v8337 = vld [vmem:[%s8291 + $0x248] sm:$0xff]
  %v8338 = vld [vmem:[%s8291 + $0x258] sm:$0xff]
  %v8339 = vld [vmem:[%s8291 + $0x260] sm:$0xff]
  %v8340 = vld [vmem:[%s8291 + $0x270] sm:$0xff]
  %v8341 = vld [vmem:[%s8291 + $0x278] sm:$0xff]
  %v8342 = vld [vmem:[%s8291 + $0x288] sm:$0xff]
  %v8343 = vld [vmem:[%s8291 + $0x290] sm:$0xff]
  %v8344 = vld [vmem:[%s8291 + $0x2a0] sm:$0xff]
  %v8345 = vld [vmem:[%s8291 + $0x2a8] sm:$0xff]
  %v8346 = vld [vmem:[%s8291 + $0x2b8] sm:$0xff]
  %v8347 = vld [vmem:[%s8291 + $0x2c0] sm:$0xff]
  %v8348 = vld [vmem:[%s8291 + $0x2d0] sm:$0xff]
  %v8349 = vld [vmem:[%s8291 + $0x2d8] sm:$0xff]
  %v8350 = vld [vmem:[%s8291 + $0x2e8] sm:$0xff]
  %v8351 = vld [vmem:[%s8291 + $0x2f0] sm:$0xff]
  %v8352 = vld [vmem:[%s8291 + $0x300] sm:$0xff]
  %v8353 = vld [vmem:[%s8291 + $0x308] sm:$0xff]
  %v8354 = vld [vmem:[%s8291 + $0x318] sm:$0xff]
  %v8355 = vld [vmem:[%s8291 + $0x320] sm:$0xff]
  %s8356 = scalar_lea.vmem %s3, 768
  %v8357 = vld [vmem:[%s8356] sm:$0xff]
  %v8358 = vld [vmem:[%s8356 + $0x8] sm:$0xff]
  %v8359 = vld [vmem:[%s8356 + $0x10] sm:$0xff]
  %v8360 = vld [vmem:[%s8356 + $0x18] sm:$0xff]
  %v8361 = vld [vmem:[%s8356 + $0x20] sm:$0xff]
  %v8362 = vld [vmem:[%s8356 + $0x28] sm:$0xff]
  %v8363 = vld [vmem:[%s8356 + $0x30] sm:$0xff]
  %v8364 = vld [vmem:[%s8356 + $0x38] sm:$0xff]
  %v8365 = vld [vmem:[%s8356 + $0x40] sm:$0xff]
  %v8366 = vld [vmem:[%s8356 + $0x48] sm:$0xff]
  %v8367 = vld [vmem:[%s8356 + $0x50] sm:$0xff]
  %v8368 = vld [vmem:[%s8356 + $0x58] sm:$0xff]
  %v8369 = vld [vmem:[%s8356 + $0x60] sm:$0xff]
  %v8370 = vld [vmem:[%s8356 + $0x68] sm:$0xff]
  %v8371 = vld [vmem:[%s8356 + $0x70] sm:$0xff]
  %v8372 = vld [vmem:[%s8356 + $0x78] sm:$0xff]
  %8373 = vmatprep.subr.mxu0 0.0
  %8374 = vmatpush1.msra.mxu0 %v8357
  %8375 = vmatprep.subr.mxu0 0.0
  %8376 = vmatpush1.msra.mxu0 %v8358
  %8377 = vmatprep.subr.mxu0 0.0
  %8378 = vmatpush1.msra.mxu0 %v8359
  %8379 = vmatprep.subr.mxu0 0.0
  %8380 = vmatpush1.msra.mxu0 %v8360
  %8381 = vmatprep.subr.mxu0 0.0
  %8382 = vmatpush1.msra.mxu0 %v8361
  %8383 = vmatprep.subr.mxu0 0.0
  %8384 = vmatpush1.msra.mxu0 %v8362
  %8385 = vmatprep.subr.mxu0 0.0
  %8386 = vmatpush1.msra.mxu0 %v8363
  %8387 = vmatprep.subr.mxu0 0.0
  %8388 = vmatpush1.msra.mxu0 %v8364
  %8389 = vmatprep.subr.mxu0 0.0
  %8390 = vmatpush1.msra.mxu0 %v8365
  %8391 = vmatprep.subr.mxu0 0.0
  %8392 = vmatpush1.msra.mxu0 %v8366
  %8393 = vmatprep.subr.mxu0 0.0
  %8394 = vmatpush1.msra.mxu0 %v8367
  %8395 = vmatprep.subr.mxu0 0.0
  %8396 = vmatpush1.msra.mxu0 %v8368
  %8397 = vmatprep.subr.mxu0 0.0
  %8398 = vmatpush1.msra.mxu0 %v8369
  %8399 = vmatprep.subr.mxu0 0.0
  %8400 = vmatpush1.msra.mxu0 %v8370
  %8401 = vmatprep.subr.mxu0 0.0
  %8402 = vmatpush1.msra.mxu0 %v8371
  %8403 = vmatprep.subr.mxu0 0.0
  %8404 = vmatpush1.msra.mxu0 %v8372
  %8405 = vmatprep.subr.mxu0 0.0
  %8406 = vmatpush1.msra.mxu0 0.0
  %8407 = vmatprep.subr.mxu0 0.0
  %8408 = vmatpush1.msra.mxu0 0.0
  %8409 = vmatprep.subr.mxu0 0.0
  %8410 = vmatpush1.msra.mxu0 0.0
  %8411 = vmatprep.subr.mxu0 0.0
  %8412 = vmatpush1.msra.mxu0 0.0
  %8413 = vmatprep.subr.mxu0 0.0
  %8414 = vmatpush1.msra.mxu0 0.0
  %8415 = vmatprep.subr.mxu0 0.0
  %8416 = vmatpush1.msra.mxu0 0.0
  %8417 = vmatprep.subr.mxu0 0.0
  %8418 = vmatpush1.msra.mxu0 0.0
  %8419 = vmatprep.subr.mxu0 0.0
  %8420 = vmatpush1.msra.mxu0 0.0
  %8421 = vmatprep.subr.mxu0 0.0
  %8422 = vmatpush1.msra.mxu0 0.0
  %8423 = vmatprep.subr.mxu0 0.0
  %8424 = vmatpush1.msra.mxu0 0.0
  %8425 = vmatprep.subr.mxu0 0.0
  %8426 = vmatpush1.msra.mxu0 0.0
  %8427 = vmatprep.subr.mxu0 0.0
  %8428 = vmatpush1.msra.mxu0 0.0
  %8429 = vmatprep.subr.mxu0 0.0
  %8430 = vmatpush1.msra.mxu0 0.0
  %8431 = vmatprep.subr.mxu0 0.0
  %8432 = vmatpush1.msra.mxu0 0.0
  %8433 = vmatprep.subr.mxu0 0.0
  %8434 = vmatpush1.msra.mxu0 0.0
  %8435 = vmatprep.subr.mxu0 0.0
  %8436 = vmatpush1.msra.mxu0 0.0
  %8437 = vmatprep.mubr.f32.mxu0 0.0
  %8438 = vmatmul.mubr.f32.gmra.mrb[0].mxu0 %v8292
  %v8439 = vpop.f32.mrb[0].mxu0
  %v8440 = vadd.f32 0.0, %v8439
  %v8441 = vpop.f32.mrb[0].mxu0
  %8442 = vmatprep.mubr.f32.mxu0 0.0
  %8443 = vmatmul.mubr.f32.gmra.mrb[0].mxu0 %v8293
  %v8444 = vpop.f32.mrb[0].mxu0
  %v8445 = vadd.f32 0.0, %v8444
  %v8446 = vpop.f32.mrb[0].mxu0
  %8447 = vmatprep.mubr.f32.mxu0 0.0
  %8448 = vmatmul.mubr.f32.gmra.mrb[0].mxu0 %v8294
  %v8449 = vpop.f32.mrb[0].mxu0
  %v8450 = vadd.f32 0.0, %v8449
  %v8451 = vpop.f32.mrb[0].mxu0
  %8452 = vmatprep.mubr.f32.mxu0 0.0
  %8453 = vmatmul.mubr.f32.gmra.mrb[0].mxu0 %v8295
  %v8454 = vpop.f32.mrb[0].mxu0
  %v8455 = vadd.f32 0.0, %v8454
  %v8456 = vpop.f32.mrb[0].mxu0
  %8457 = vmatprep.mubr.f32.mxu0 0.0
  %8458 = vmatmul.mubr.f32.gmra.mrb[0].mxu0 %v8296
  %v8459 = vpop.f32.mrb[0].mxu0
  %v8460 = vadd.f32 0.0, %v8459
  %v8461 = vpop.f32.mrb[0].mxu0
  %8462 = vmatprep.mubr.f32.mxu0 0.0
  %8463 = vmatmul.mubr.f32.gmra.mrb[0].mxu0 %v8297
  %v8464 = vpop.f32.mrb[0].mxu0
  %v8465 = vadd.f32 0.0, %v8464
  %v8466 = vpop.f32.mrb[0].mxu0
  %8467 = vmatprep.mubr.f32.mxu0 0.0
  %8468 = vmatmul.mubr.f32.gmra.mrb[0].mxu0 %v8298
  %v8469 = vpop.f32.mrb[0].mxu0
  %v8470 = vadd.f32 0.0, %v8469
  %v8471 = vpop.f32.mrb[0].mxu0
  %8472 = vmatprep.mubr.f32.mxu0 0.0
  %8473 = vmatmul.mubr.f32.gmra.mrb[0].mxu0 %v8299
  %v8474 = vpop.f32.mrb[0].mxu0
  %v8475 = vadd.f32 0.0, %v8474
  %v8476 = vpop.f32.mrb[0].mxu0
  %8477 = vmatprep.mubr.f32.mxu0 0.0
  %8478 = vmatmul.mubr.f32.gmra.mrb[0].mxu0 %v8300
  %v8479 = vpop.f32.mrb[0].mxu0
  %v8480 = vadd.f32 0.0, %v8479
  %v8481 = vpop.f32.mrb[0].mxu0
  %8482 = vmatprep.mubr.f32.mxu0 0.0
  %8483 = vmatmul.mubr.f32.gmra.mrb[0].mxu0 %v8301
  %v8484 = vpop.f32.mrb[0].mxu0
  %v8485 = vadd.f32 0.0, %v8484
  %v8486 = vpop.f32.mrb[0].mxu0
  %8487 = vmatprep.mubr.f32.mxu0 0.0
  %8488 = vmatmul.mubr.f32.gmra.mrb[0].mxu0 %v8302
  %v8489 = vpop.f32.mrb[0].mxu0
  %v8490 = vadd.f32 0.0, %v8489
  %v8491 = vpop.f32.mrb[0].mxu0
  %8492 = vmatprep.mubr.f32.mxu0 0.0
  %8493 = vmatmul.mubr.f32.gmra.mrb[0].mxu0 %v8303
  %v8494 = vpop.f32.mrb[0].mxu0
  %v8495 = vadd.f32 0.0, %v8494
  %v8496 = vpop.f32.mrb[0].mxu0
  %8497 = vmatprep.mubr.f32.mxu0 0.0
  %8498 = vmatmul.mubr.f32.gmra.mrb[0].mxu0 %v8304
  %v8499 = vpop.f32.mrb[0].mxu0
  %v8500 = vadd.f32 0.0, %v8499
  %v8501 = vpop.f32.mrb[0].mxu0
  %8502 = vmatprep.mubr.f32.mxu0 0.0
  %8503 = vmatmul.mubr.f32.gmra.mrb[0].mxu0 %v8305
  %v8504 = vpop.f32.mrb[0].mxu0
  %v8505 = vadd.f32 0.0, %v8504
  %v8506 = vpop.f32.mrb[0].mxu0
  %8507 = vmatprep.mubr.f32.mxu0 0.0
  %8508 = vmatmul.mubr.f32.gmra.mrb[0].mxu0 %v8306
  %v8509 = vpop.f32.mrb[0].mxu0
  %v8510 = vadd.f32 0.0, %v8509
  %v8511 = vpop.f32.mrb[0].mxu0
  %8512 = vmatprep.mubr.f32.mxu0 0.0
  %8513 = vmatmul.mubr.f32.gmra.mrb[0].mxu0 %v8307
  %v8514 = vpop.f32.mrb[0].mxu0
  %v8515 = vadd.f32 0.0, %v8514
  %v8516 = vpop.f32.mrb[0].mxu0
  %8517 = vmatprep.mubr.f32.mxu0 0.0
  %8518 = vmatmul.mubr.f32.gmra.mrb[0].mxu0 %v8308
  %v8519 = vpop.f32.mrb[0].mxu0
  %v8520 = vadd.f32 0.0, %v8519
  %v8521 = vpop.f32.mrb[0].mxu0
  %8522 = vmatprep.mubr.f32.mxu0 0.0
  %8523 = vmatmul.mubr.f32.gmra.mrb[0].mxu0 %v8309
  %v8524 = vpop.f32.mrb[0].mxu0
  %v8525 = vadd.f32 0.0, %v8524
  %v8526 = vpop.f32.mrb[0].mxu0
  %8527 = vmatprep.mubr.f32.mxu0 0.0
  %8528 = vmatmul.mubr.f32.gmra.mrb[0].mxu0 %v8310
  %v8529 = vpop.f32.mrb[0].mxu0
  %v8530 = vadd.f32 0.0, %v8529
  %v8531 = vpop.f32.mrb[0].mxu0
  %8532 = vmatprep.mubr.f32.mxu0 0.0
  %8533 = vmatmul.mubr.f32.gmra.mrb[0].mxu0 %v8311
  %v8534 = vpop.f32.mrb[0].mxu0
  %v8535 = vadd.f32 0.0, %v8534
  %v8536 = vpop.f32.mrb[0].mxu0
  %8537 = vmatprep.mubr.f32.mxu0 0.0
  %8538 = vmatmul.mubr.f32.gmra.mrb[0].mxu0 %v8312
  %v8539 = vpop.f32.mrb[0].mxu0
  %v8540 = vadd.f32 0.0, %v8539
  %v8541 = vpop.f32.mrb[0].mxu0
  %8542 = vmatprep.mubr.f32.mxu0 0.0
  %8543 = vmatmul.mubr.f32.gmra.mrb[0].mxu0 %v8313
  %v8544 = vpop.f32.mrb[0].mxu0
  %v8545 = vadd.f32 0.0, %v8544
  %v8546 = vpop.f32.mrb[0].mxu0
  %8547 = vmatprep.mubr.f32.mxu0 0.0
  %8548 = vmatmul.mubr.f32.gmra.mrb[0].mxu0 %v8314
  %v8549 = vpop.f32.mrb[0].mxu0
  %v8550 = vadd.f32 0.0, %v8549
  %v8551 = vpop.f32.mrb[0].mxu0
  %8552 = vmatprep.mubr.f32.mxu0 0.0
  %8553 = vmatmul.mubr.f32.gmra.mrb[0].mxu0 %v8315
  %v8554 = vpop.f32.mrb[0].mxu0
  %v8555 = vadd.f32 0.0, %v8554
  %v8556 = vpop.f32.mrb[0].mxu0
  %8557 = vmatprep.mubr.f32.mxu0 0.0
  %8558 = vmatmul.mubr.f32.gmra.mrb[0].mxu0 %v8316
  %v8559 = vpop.f32.mrb[0].mxu0
  %v8560 = vadd.f32 0.0, %v8559
  %v8561 = vpop.f32.mrb[0].mxu0
  %8562 = vmatprep.mubr.f32.mxu0 0.0
  %8563 = vmatmul.mubr.f32.gmra.mrb[0].mxu0 %v8317
  %v8564 = vpop.f32.mrb[0].mxu0
  %v8565 = vadd.f32 0.0, %v8564
  %v8566 = vpop.f32.mrb[0].mxu0
  %8567 = vmatprep.mubr.f32.mxu0 0.0
  %8568 = vmatmul.mubr.f32.gmra.mrb[0].mxu0 %v8318
  %v8569 = vpop.f32.mrb[0].mxu0
  %v8570 = vadd.f32 0.0, %v8569
  %v8571 = vpop.f32.mrb[0].mxu0
  %8572 = vmatprep.mubr.f32.mxu0 0.0
  %8573 = vmatmul.mubr.f32.gmra.mrb[0].mxu0 %v8319
  %v8574 = vpop.f32.mrb[0].mxu0
  %v8575 = vadd.f32 0.0, %v8574
  %v8576 = vpop.f32.mrb[0].mxu0
  %8577 = vmatprep.mubr.f32.mxu0 0.0
  %8578 = vmatmul.mubr.f32.gmra.mrb[0].mxu0 %v8320
  %v8579 = vpop.f32.mrb[0].mxu0
  %v8580 = vadd.f32 0.0, %v8579
  %v8581 = vpop.f32.mrb[0].mxu0
  %8582 = vmatprep.mubr.f32.mxu0 0.0
  %8583 = vmatmul.mubr.f32.gmra.mrb[0].mxu0 %v8321
  %v8584 = vpop.f32.mrb[0].mxu0
  %v8585 = vadd.f32 0.0, %v8584
  %v8586 = vpop.f32.mrb[0].mxu0
  %8587 = vmatprep.mubr.f32.mxu0 0.0
  %8588 = vmatmul.mubr.f32.gmra.mrb[0].mxu0 %v8322
  %v8589 = vpop.f32.mrb[0].mxu0
  %v8590 = vadd.f32 0.0, %v8589
  %v8591 = vpop.f32.mrb[0].mxu0
  %8592 = vmatprep.mubr.f32.mxu0 0.0
  %8593 = vmatmul.mubr.f32.gmra.mrb[0].mxu0 %v8323
  %v8594 = vpop.f32.mrb[0].mxu0
  %v8595 = vadd.f32 0.0, %v8594
  %v8596 = vpop.f32.mrb[0].mxu0
  %8597 = vmatprep.mubr.f32.mxu0 0.0
  %8598 = vmatmul.mubr.f32.gmra.mrb[0].mxu0 %v8324
  %v8599 = vpop.f32.mrb[0].mxu0
  %v8600 = vadd.f32 0.0, %v8599
  %v8601 = vpop.f32.mrb[0].mxu0
  %8602 = vmatprep.mubr.f32.mxu0 0.0
  %8603 = vmatmul.mubr.f32.gmra.mrb[0].mxu0 %v8325
  %v8604 = vpop.f32.mrb[0].mxu0
  %v8605 = vadd.f32 0.0, %v8604
  %v8606 = vpop.f32.mrb[0].mxu0
  %8607 = vmatprep.mubr.f32.mxu0 0.0
  %8608 = vmatmul.mubr.f32.gmra.mrb[0].mxu0 %v8326
  %v8609 = vpop.f32.mrb[0].mxu0
  %v8610 = vadd.f32 0.0, %v8609
  %v8611 = vpop.f32.mrb[0].mxu0
  %8612 = vmatprep.mubr.f32.mxu0 0.0
  %8613 = vmatmul.mubr.f32.gmra.mrb[0].mxu0 %v8327
  %v8614 = vpop.f32.mrb[0].mxu0
  %v8615 = vadd.f32 0.0, %v8614
  %v8616 = vpop.f32.mrb[0].mxu0
  %8617 = vmatprep.mubr.f32.mxu0 0.0
  %8618 = vmatmul.mubr.f32.gmra.mrb[0].mxu0 %v8328
  %v8619 = vpop.f32.mrb[0].mxu0
  %v8620 = vadd.f32 0.0, %v8619
  %v8621 = vpop.f32.mrb[0].mxu0
  %8622 = vmatprep.mubr.f32.mxu0 0.0
  %8623 = vmatmul.mubr.f32.gmra.mrb[0].mxu0 %v8329
  %v8624 = vpop.f32.mrb[0].mxu0
  %v8625 = vadd.f32 0.0, %v8624
  %v8626 = vpop.f32.mrb[0].mxu0
  %8627 = vmatprep.mubr.f32.mxu0 0.0
  %8628 = vmatmul.mubr.f32.gmra.mrb[0].mxu0 %v8330
  %v8629 = vpop.f32.mrb[0].mxu0
  %v8630 = vadd.f32 0.0, %v8629
  %v8631 = vpop.f32.mrb[0].mxu0
  %8632 = vmatprep.mubr.f32.mxu0 0.0
  %8633 = vmatmul.mubr.f32.gmra.mrb[0].mxu0 %v8331
  %v8634 = vpop.f32.mrb[0].mxu0
  %v8635 = vadd.f32 0.0, %v8634
  %v8636 = vpop.f32.mrb[0].mxu0
  %8637 = vmatprep.mubr.f32.mxu0 0.0
  %8638 = vmatmul.mubr.f32.gmra.mrb[0].mxu0 %v8332
  %v8639 = vpop.f32.mrb[0].mxu0
  %v8640 = vadd.f32 0.0, %v8639
  %v8641 = vpop.f32.mrb[0].mxu0
  %8642 = vmatprep.mubr.f32.mxu0 0.0
  %8643 = vmatmul.mubr.f32.gmra.mrb[0].mxu0 %v8333
  %v8644 = vpop.f32.mrb[0].mxu0
  %v8645 = vadd.f32 0.0, %v8644
  %v8646 = vpop.f32.mrb[0].mxu0
  %8647 = vmatprep.mubr.f32.mxu0 0.0
  %8648 = vmatmul.mubr.f32.gmra.mrb[0].mxu0 %v8334
  %v8649 = vpop.f32.mrb[0].mxu0
  %v8650 = vadd.f32 0.0, %v8649
  %v8651 = vpop.f32.mrb[0].mxu0
  %8652 = vmatprep.mubr.f32.mxu0 0.0
  %8653 = vmatmul.mubr.f32.gmra.mrb[0].mxu0 %v8335
  %v8654 = vpop.f32.mrb[0].mxu0
  %v8655 = vadd.f32 0.0, %v8654
  %v8656 = vpop.f32.mrb[0].mxu0
  %8657 = vmatprep.mubr.f32.mxu0 0.0
  %8658 = vmatmul.mubr.f32.gmra.mrb[0].mxu0 %v8336
  %v8659 = vpop.f32.mrb[0].mxu0
  %v8660 = vadd.f32 0.0, %v8659
  %v8661 = vpop.f32.mrb[0].mxu0
  %8662 = vmatprep.mubr.f32.mxu0 0.0
  %8663 = vmatmul.mubr.f32.gmra.mrb[0].mxu0 %v8337
  %v8664 = vpop.f32.mrb[0].mxu0
  %v8665 = vadd.f32 0.0, %v8664
  %v8666 = vpop.f32.mrb[0].mxu0
  %8667 = vmatprep.mubr.f32.mxu0 0.0
  %8668 = vmatmul.mubr.f32.gmra.mrb[0].mxu0 %v8338
  %v8669 = vpop.f32.mrb[0].mxu0
  %v8670 = vadd.f32 0.0, %v8669
  %v8671 = vpop.f32.mrb[0].mxu0
  %8672 = vmatprep.mubr.f32.mxu0 0.0
  %8673 = vmatmul.mubr.f32.gmra.mrb[0].mxu0 %v8339
  %v8674 = vpop.f32.mrb[0].mxu0
  %v8675 = vadd.f32 0.0, %v8674
  %v8676 = vpop.f32.mrb[0].mxu0
  %8677 = vmatprep.mubr.f32.mxu0 0.0
  %8678 = vmatmul.mubr.f32.gmra.mrb[0].mxu0 %v8340
  %v8679 = vpop.f32.mrb[0].mxu0
  %v8680 = vadd.f32 0.0, %v8679
  %v8681 = vpop.f32.mrb[0].mxu0
  %8682 = vmatprep.mubr.f32.mxu0 0.0
  %8683 = vmatmul.mubr.f32.gmra.mrb[0].mxu0 %v8341
  %v8684 = vpop.f32.mrb[0].mxu0
  %v8685 = vadd.f32 0.0, %v8684
  %v8686 = vpop.f32.mrb[0].mxu0
  %8687 = vmatprep.mubr.f32.mxu0 0.0
  %8688 = vmatmul.mubr.f32.gmra.mrb[0].mxu0 %v8342
  %v8689 = vpop.f32.mrb[0].mxu0
  %v8690 = vadd.f32 0.0, %v8689
  %v8691 = vpop.f32.mrb[0].mxu0
  %8692 = vmatprep.mubr.f32.mxu0 0.0
  %8693 = vmatmul.mubr.f32.gmra.mrb[0].mxu0 %v8343
  %v8694 = vpop.f32.mrb[0].mxu0
  %v8695 = vadd.f32 0.0, %v8694
  %v8696 = vpop.f32.mrb[0].mxu0
  %8697 = vmatprep.mubr.f32.mxu0 0.0
  %8698 = vmatmul.mubr.f32.gmra.mrb[0].mxu0 %v8344
  %v8699 = vpop.f32.mrb[0].mxu0
  %v8700 = vadd.f32 0.0, %v8699
  %v8701 = vpop.f32.mrb[0].mxu0
  %8702 = vmatprep.mubr.f32.mxu0 0.0
  %8703 = vmatmul.mubr.f32.gmra.mrb[0].mxu0 %v8345
  %v8704 = vpop.f32.mrb[0].mxu0
  %v8705 = vadd.f32 0.0, %v8704
  %v8706 = vpop.f32.mrb[0].mxu0
  %8707 = vmatprep.mubr.f32.mxu0 0.0
  %8708 = vmatmul.mubr.f32.gmra.mrb[0].mxu0 %v8346
  %v8709 = vpop.f32.mrb[0].mxu0
  %v8710 = vadd.f32 0.0, %v8709
  %v8711 = vpop.f32.mrb[0].mxu0
  %8712 = vmatprep.mubr.f32.mxu0 0.0
  %8713 = vmatmul.mubr.f32.gmra.mrb[0].mxu0 %v8347
  %v8714 = vpop.f32.mrb[0].mxu0
  %v8715 = vadd.f32 0.0, %v8714
  %v8716 = vpop.f32.mrb[0].mxu0
  %8717 = vmatprep.mubr.f32.mxu0 0.0
  %8718 = vmatmul.mubr.f32.gmra.mrb[0].mxu0 %v8348
  %v8719 = vpop.f32.mrb[0].mxu0
  %v8720 = vadd.f32 0.0, %v8719
  %v8721 = vpop.f32.mrb[0].mxu0
  %8722 = vmatprep.mubr.f32.mxu0 0.0
  %8723 = vmatmul.mubr.f32.gmra.mrb[0].mxu0 %v8349
  %v8724 = vpop.f32.mrb[0].mxu0
  %v8725 = vadd.f32 0.0, %v8724
  %v8726 = vpop.f32.mrb[0].mxu0
  %8727 = vmatprep.mubr.f32.mxu0 0.0
  %8728 = vmatmul.mubr.f32.gmra.mrb[0].mxu0 %v8350
  %v8729 = vpop.f32.mrb[0].mxu0
  %v8730 = vadd.f32 0.0, %v8729
  %v8731 = vpop.f32.mrb[0].mxu0
  %8732 = vmatprep.mubr.f32.mxu0 0.0
  %8733 = vmatmul.mubr.f32.gmra.mrb[0].mxu0 %v8351
  %v8734 = vpop.f32.mrb[0].mxu0
  %v8735 = vadd.f32 0.0, %v8734
  %v8736 = vpop.f32.mrb[0].mxu0
  %8737 = vmatprep.mubr.f32.mxu0 0.0
  %8738 = vmatmul.mubr.f32.gmra.mrb[0].mxu0 %v8352
  %v8739 = vpop.f32.mrb[0].mxu0
  %v8740 = vadd.f32 0.0, %v8739
  %v8741 = vpop.f32.mrb[0].mxu0
  %8742 = vmatprep.mubr.f32.mxu0 0.0
  %8743 = vmatmul.mubr.f32.gmra.mrb[0].mxu0 %v8353
  %v8744 = vpop.f32.mrb[0].mxu0
  %v8745 = vadd.f32 0.0, %v8744
  %v8746 = vpop.f32.mrb[0].mxu0
  %8747 = vmatprep.mubr.f32.mxu0 0.0
  %8748 = vmatmul.mubr.f32.gmra.mrb[0].mxu0 %v8354
  %v8749 = vpop.f32.mrb[0].mxu0
  %v8750 = vadd.f32 0.0, %v8749
  %v8751 = vpop.f32.mrb[0].mxu0
  %8752 = vmatprep.mubr.f32.mxu0 0.0
  %8753 = vmatmul.mubr.f32.gmra.mrb[0].mxu0 %v8355
  %v8754 = vpop.f32.mrb[0].mxu0
  %v8755 = vadd.f32 0.0, %v8754
  %v8756 = vpop.f32.mrb[0].mxu0
  %8757 = vdwg.mxu0
  %v8758 = vadd.f32 %v8227, %v8440
  %v8759 = vadd.f32 %v8228, %v8445
  %v8760 = vadd.f32 %v8229, %v8450
  %v8761 = vadd.f32 %v8230, %v8455
  %v8762 = vadd.f32 %v8231, %v8460
  %v8763 = vadd.f32 %v8232, %v8465
  %v8764 = vadd.f32 %v8233, %v8470
  %v8765 = vadd.f32 %v8234, %v8475
  %v8766 = vadd.f32 %v8235, %v8480
  %v8767 = vadd.f32 %v8236, %v8485
  %v8768 = vadd.f32 %v8237, %v8490
  %v8769 = vadd.f32 %v8238, %v8495
  %v8770 = vadd.f32 %v8239, %v8500
  %v8771 = vadd.f32 %v8240, %v8505
  %v8772 = vadd.f32 %v8241, %v8510
  %v8773 = vadd.f32 %v8242, %v8515
  %v8774 = vadd.f32 %v8243, %v8520
  %v8775 = vadd.f32 %v8244, %v8525
  %v8776 = vadd.f32 %v8245, %v8530
  %v8777 = vadd.f32 %v8246, %v8535
  %v8778 = vadd.f32 %v8247, %v8540
  %v8779 = vadd.f32 %v8248, %v8545
  %v8780 = vadd.f32 %v8249, %v8550
  %v8781 = vadd.f32 %v8250, %v8555
  %v8782 = vadd.f32 %v8251, %v8560
  %v8783 = vadd.f32 %v8252, %v8565
  %v8784 = vadd.f32 %v8253, %v8570
  %v8785 = vadd.f32 %v8254, %v8575
  %v8786 = vadd.f32 %v8255, %v8580
  %v8787 = vadd.f32 %v8256, %v8585
  %v8788 = vadd.f32 %v8257, %v8590
  %v8789 = vadd.f32 %v8258, %v8595
  %v8790 = vadd.f32 %v8259, %v8600
  %v8791 = vadd.f32 %v8260, %v8605
  %v8792 = vadd.f32 %v8261, %v8610
  %v8793 = vadd.f32 %v8262, %v8615
  %v8794 = vadd.f32 %v8263, %v8620
  %v8795 = vadd.f32 %v8264, %v8625
  %v8796 = vadd.f32 %v8265, %v8630
  %v8797 = vadd.f32 %v8266, %v8635
  %v8798 = vadd.f32 %v8267, %v8640
  %v8799 = vadd.f32 %v8268, %v8645
  %v8800 = vadd.f32 %v8269, %v8650
  %v8801 = vadd.f32 %v8270, %v8655
  %v8802 = vadd.f32 %v8271, %v8660
  %v8803 = vadd.f32 %v8272, %v8665
  %v8804 = vadd.f32 %v8273, %v8670
  %v8805 = vadd.f32 %v8274, %v8675
  %v8806 = vadd.f32 %v8275, %v8680
  %v8807 = vadd.f32 %v8276, %v8685
  %v8808 = vadd.f32 %v8277, %v8690
  %v8809 = vadd.f32 %v8278, %v8695
  %v8810 = vadd.f32 %v8279, %v8700
  %v8811 = vadd.f32 %v8280, %v8705
  %v8812 = vadd.f32 %v8281, %v8710
  %v8813 = vadd.f32 %v8282, %v8715
  %v8814 = vadd.f32 %v8283, %v8720
  %v8815 = vadd.f32 %v8284, %v8725
  %v8816 = vadd.f32 %v8285, %v8730
  %v8817 = vadd.f32 %v8286, %v8735
  %v8818 = vadd.f32 %v8287, %v8740
  %v8819 = vadd.f32 %v8288, %v8745
  %v8820 = vadd.f32 %v8289, %v8750
  %v8821 = vadd.f32 %v8290, %v8755
  %v8822 = vld [vmem:[%s8291 + $0x1] sm:$0xff]
  %v8823 = vld [vmem:[%s8291 + $0x9] sm:$0xff]
  %v8824 = vld [vmem:[%s8291 + $0x19] sm:$0xff]
  %v8825 = vld [vmem:[%s8291 + $0x21] sm:$0xff]
  %v8826 = vld [vmem:[%s8291 + $0x31] sm:$0xff]
  %v8827 = vld [vmem:[%s8291 + $0x39] sm:$0xff]
  %v8828 = vld [vmem:[%s8291 + $0x49] sm:$0xff]
  %v8829 = vld [vmem:[%s8291 + $0x51] sm:$0xff]
  %v8830 = vld [vmem:[%s8291 + $0x61] sm:$0xff]
  %v8831 = vld [vmem:[%s8291 + $0x69] sm:$0xff]
  %v8832 = vld [vmem:[%s8291 + $0x79] sm:$0xff]
  %v8833 = vld [vmem:[%s8291 + $0x81] sm:$0xff]
  %v8834 = vld [vmem:[%s8291 + $0x91] sm:$0xff]
  %v8835 = vld [vmem:[%s8291 + $0x99] sm:$0xff]
  %v8836 = vld [vmem:[%s8291 + $0xa9] sm:$0xff]
  %v8837 = vld [vmem:[%s8291 + $0xb1] sm:$0xff]
  %v8838 = vld [vmem:[%s8291 + $0xc1] sm:$0xff]
  %v8839 = vld [vmem:[%s8291 + $0xc9] sm:$0xff]
  %v8840 = vld [vmem:[%s8291 + $0xd9] sm:$0xff]
  %v8841 = vld [vmem:[%s8291 + $0xe1] sm:$0xff]
  %v8842 = vld [vmem:[%s8291 + $0xf1] sm:$0xff]
  %v8843 = vld [vmem:[%s8291 + $0xf9] sm:$0xff]
  %v8844 = vld [vmem:[%s8291 + $0x109] sm:$0xff]
  %v8845 = vld [vmem:[%s8291 + $0x111] sm:$0xff]
  %v8846 = vld [vmem:[%s8291 + $0x121] sm:$0xff]
  %v8847 = vld [vmem:[%s8291 + $0x129] sm:$0xff]
  %v8848 = vld [vmem:[%s8291 + $0x139] sm:$0xff]
  %v8849 = vld [vmem:[%s8291 + $0x141] sm:$0xff]
  %v8850 = vld [vmem:[%s8291 + $0x151] sm:$0xff]
  %v8851 = vld [vmem:[%s8291 + $0x159] sm:$0xff]
  %v8852 = vld [vmem:[%s8291 + $0x169] sm:$0xff]
  %v8853 = vld [vmem:[%s8291 + $0x171] sm:$0xff]
  %v8854 = vld [vmem:[%s8291 + $0x1b1] sm:$0xff]
  %v8855 = vld [vmem:[%s8291 + $0x1b9] sm:$0xff]
  %v8856 = vld [vmem:[%s8291 + $0x1c9] sm:$0xff]
  %v8857 = vld [vmem:[%s8291 + $0x1d1] sm:$0xff]
  %v8858 = vld [vmem:[%s8291 + $0x1e1] sm:$0xff]
  %v8859 = vld [vmem:[%s8291 + $0x1e9] sm:$0xff]
  %v8860 = vld [vmem:[%s8291 + $0x1f9] sm:$0xff]
  %v8861 = vld [vmem:[%s8291 + $0x201] sm:$0xff]
  %v8862 = vld [vmem:[%s8291 + $0x211] sm:$0xff]
  %v8863 = vld [vmem:[%s8291 + $0x219] sm:$0xff]
  %v8864 = vld [vmem:[%s8291 + $0x229] sm:$0xff]
  %v8865 = vld [vmem:[%s8291 + $0x231] sm:$0xff]
  %v8866 = vld [vmem:[%s8291 + $0x241] sm:$0xff]
  %v8867 = vld [vmem:[%s8291 + $0x249] sm:$0xff]
  %v8868 = vld [vmem:[%s8291 + $0x259] sm:$0xff]
  %v8869 = vld [vmem:[%s8291 + $0x261] sm:$0xff]
  %v8870 = vld [vmem:[%s8291 + $0x271] sm:$0xff]
  %v8871 = vld [vmem:[%s8291 + $0x279] sm:$0xff]
  %v8872 = vld [vmem:[%s8291 + $0x289] sm:$0xff]
  %v8873 = vld [vmem:[%s8291 + $0x291] sm:$0xff]
  %v8874 = vld [vmem:[%s8291 + $0x2a1] sm:$0xff]
  %v8875 = vld [vmem:[%s8291 + $0x2a9] sm:$0xff]
  %v8876 = vld [vmem:[%s8291 + $0x2b9] sm:$0xff]
  %v8877 = vld [vmem:[%s8291 + $0x2c1] sm:$0xff]
  %v8878 = vld [vmem:[%s8291 + $0x2d1] sm:$0xff]
  %v8879 = vld [vmem:[%s8291 + $0x2d9] sm:$0xff]
  %v8880 = vld [vmem:[%s8291 + $0x2e9] sm:$0xff]
  %v8881 = vld [vmem:[%s8291 + $0x2f1] sm:$0xff]
  %v8882 = vld [vmem:[%s8291 + $0x301] sm:$0xff]
  %v8883 = vld [vmem:[%s8291 + $0x309] sm:$0xff]
  %v8884 = vld [vmem:[%s8291 + $0x319] sm:$0xff]
  %v8885 = vld [vmem:[%s8291 + $0x321] sm:$0xff]
  %s8886 = scalar_lea.vmem %s3, 896
  %v8887 = vld [vmem:[%s8886] sm:$0xff]
  %v8888 = vld [vmem:[%s8886 + $0x8] sm:$0xff]
  %v8889 = vld [vmem:[%s8886 + $0x10] sm:$0xff]
  %v8890 = vld [vmem:[%s8886 + $0x18] sm:$0xff]
  %v8891 = vld [vmem:[%s8886 + $0x20] sm:$0xff]
  %v8892 = vld [vmem:[%s8886 + $0x28] sm:$0xff]
  %v8893 = vld [vmem:[%s8886 + $0x30] sm:$0xff]
  %v8894 = vld [vmem:[%s8886 + $0x38] sm:$0xff]
  %v8895 = vld [vmem:[%s8886 + $0x40] sm:$0xff]
  %v8896 = vld [vmem:[%s8886 + $0x48] sm:$0xff]
  %v8897 = vld [vmem:[%s8886 + $0x50] sm:$0xff]
  %v8898 = vld [vmem:[%s8886 + $0x58] sm:$0xff]
  %v8899 = vld [vmem:[%s8886 + $0x60] sm:$0xff]
  %v8900 = vld [vmem:[%s8886 + $0x68] sm:$0xff]
  %v8901 = vld [vmem:[%s8886 + $0x70] sm:$0xff]
  %v8902 = vld [vmem:[%s8886 + $0x78] sm:$0xff]
  %8903 = vmatprep.subr.mxu0 0.0
  %8904 = vmatpush1.msra.mxu0 %v8887
  %8905 = vmatprep.subr.mxu0 0.0
  %8906 = vmatpush1.msra.mxu0 %v8888
  %8907 = vmatprep.subr.mxu0 0.0
  %8908 = vmatpush1.msra.mxu0 %v8889
  %8909 = vmatprep.subr.mxu0 0.0
  %8910 = vmatpush1.msra.mxu0 %v8890
  %8911 = vmatprep.subr.mxu0 0.0
  %8912 = vmatpush1.msra.mxu0 %v8891
  %8913 = vmatprep.subr.mxu0 0.0
  %8914 = vmatpush1.msra.mxu0 %v8892
  %8915 = vmatprep.subr.mxu0 0.0
  %8916 = vmatpush1.msra.mxu0 %v8893
  %8917 = vmatprep.subr.mxu0 0.0
  %8918 = vmatpush1.msra.mxu0 %v8894
  %8919 = vmatprep.subr.mxu0 0.0
  %8920 = vmatpush1.msra.mxu0 %v8895
  %8921 = vmatprep.subr.mxu0 0.0
  %8922 = vmatpush1.msra.mxu0 %v8896
  %8923 = vmatprep.subr.mxu0 0.0
  %8924 = vmatpush1.msra.mxu0 %v8897
  %8925 = vmatprep.subr.mxu0 0.0
  %8926 = vmatpush1.msra.mxu0 %v8898
  %8927 = vmatprep.subr.mxu0 0.0
  %8928 = vmatpush1.msra.mxu0 %v8899
  %8929 = vmatprep.subr.mxu0 0.0
  %8930 = vmatpush1.msra.mxu0 %v8900
  %8931 = vmatprep.subr.mxu0 0.0
  %8932 = vmatpush1.msra.mxu0 %v8901
  %8933 = vmatprep.subr.mxu0 0.0
  %8934 = vmatpush1.msra.mxu0 %v8902
  %8935 = vmatprep.subr.mxu0 0.0
  %8936 = vmatpush1.msra.mxu0 0.0
  %8937 = vmatprep.subr.mxu0 0.0
  %8938 = vmatpush1.msra.mxu0 0.0
  %8939 = vmatprep.subr.mxu0 0.0
  %8940 = vmatpush1.msra.mxu0 0.0
  %8941 = vmatprep.subr.mxu0 0.0
  %8942 = vmatpush1.msra.mxu0 0.0
  %8943 = vmatprep.subr.mxu0 0.0
  %8944 = vmatpush1.msra.mxu0 0.0
  %8945 = vmatprep.subr.mxu0 0.0
  %8946 = vmatpush1.msra.mxu0 0.0
  %8947 = vmatprep.subr.mxu0 0.0
  %8948 = vmatpush1.msra.mxu0 0.0
  %8949 = vmatprep.subr.mxu0 0.0
  %8950 = vmatpush1.msra.mxu0 0.0
  %8951 = vmatprep.subr.mxu0 0.0
  %8952 = vmatpush1.msra.mxu0 0.0
  %8953 = vmatprep.subr.mxu0 0.0
  %8954 = vmatpush1.msra.mxu0 0.0
  %8955 = vmatprep.subr.mxu0 0.0
  %8956 = vmatpush1.msra.mxu0 0.0
  %8957 = vmatprep.subr.mxu0 0.0
  %8958 = vmatpush1.msra.mxu0 0.0
  %8959 = vmatprep.subr.mxu0 0.0
  %8960 = vmatpush1.msra.mxu0 0.0
  %8961 = vmatprep.subr.mxu0 0.0
  %8962 = vmatpush1.msra.mxu0 0.0
  %8963 = vmatprep.subr.mxu0 0.0
  %8964 = vmatpush1.msra.mxu0 0.0
  %8965 = vmatprep.subr.mxu0 0.0
  %8966 = vmatpush1.msra.mxu0 0.0
  %8967 = vmatprep.mubr.f32.mxu0 0.0
  %8968 = vmatmul.mubr.f32.gmra.mrb[0].mxu0 %v8822
  %v8969 = vpop.f32.mrb[0].mxu0
  %v8970 = vadd.f32 0.0, %v8969
  %v8971 = vpop.f32.mrb[0].mxu0
  %8972 = vmatprep.mubr.f32.mxu0 0.0
  %8973 = vmatmul.mubr.f32.gmra.mrb[0].mxu0 %v8823
  %v8974 = vpop.f32.mrb[0].mxu0
  %v8975 = vadd.f32 0.0, %v8974
  %v8976 = vpop.f32.mrb[0].mxu0
  %8977 = vmatprep.mubr.f32.mxu0 0.0
  %8978 = vmatmul.mubr.f32.gmra.mrb[0].mxu0 %v8824
  %v8979 = vpop.f32.mrb[0].mxu0
  %v8980 = vadd.f32 0.0, %v8979
  %v8981 = vpop.f32.mrb[0].mxu0
  %8982 = vmatprep.mubr.f32.mxu0 0.0
  %8983 = vmatmul.mubr.f32.gmra.mrb[0].mxu0 %v8825
  %v8984 = vpop.f32.mrb[0].mxu0
  %v8985 = vadd.f32 0.0, %v8984
  %v8986 = vpop.f32.mrb[0].mxu0
  %8987 = vmatprep.mubr.f32.mxu0 0.0
  %8988 = vmatmul.mubr.f32.gmra.mrb[0].mxu0 %v8826
  %v8989 = vpop.f32.mrb[0].mxu0
  %v8990 = vadd.f32 0.0, %v8989
  %v8991 = vpop.f32.mrb[0].mxu0
  %8992 = vmatprep.mubr.f32.mxu0 0.0
  %8993 = vmatmul.mubr.f32.gmra.mrb[0].mxu0 %v8827
  %v8994 = vpop.f32.mrb[0].mxu0
  %v8995 = vadd.f32 0.0, %v8994
  %v8996 = vpop.f32.mrb[0].mxu0
  %8997 = vmatprep.mubr.f32.mxu0 0.0
  %8998 = vmatmul.mubr.f32.gmra.mrb[0].mxu0 %v8828
  %v8999 = vpop.f32.mrb[0].mxu0
  %v9000 = vadd.f32 0.0, %v8999
  %v9001 = vpop.f32.mrb[0].mxu0
  %9002 = vmatprep.mubr.f32.mxu0 0.0
  %9003 = vmatmul.mubr.f32.gmra.mrb[0].mxu0 %v8829
  %v9004 = vpop.f32.mrb[0].mxu0
  %v9005 = vadd.f32 0.0, %v9004
  %v9006 = vpop.f32.mrb[0].mxu0
  %9007 = vmatprep.mubr.f32.mxu0 0.0
  %9008 = vmatmul.mubr.f32.gmra.mrb[0].mxu0 %v8830
  %v9009 = vpop.f32.mrb[0].mxu0
  %v9010 = vadd.f32 0.0, %v9009
  %v9011 = vpop.f32.mrb[0].mxu0
  %9012 = vmatprep.mubr.f32.mxu0 0.0
  %9013 = vmatmul.mubr.f32.gmra.mrb[0].mxu0 %v8831
  %v9014 = vpop.f32.mrb[0].mxu0
  %v9015 = vadd.f32 0.0, %v9014
  %v9016 = vpop.f32.mrb[0].mxu0
  %9017 = vmatprep.mubr.f32.mxu0 0.0
  %9018 = vmatmul.mubr.f32.gmra.mrb[0].mxu0 %v8832
  %v9019 = vpop.f32.mrb[0].mxu0
  %v9020 = vadd.f32 0.0, %v9019
  %v9021 = vpop.f32.mrb[0].mxu0
  %9022 = vmatprep.mubr.f32.mxu0 0.0
  %9023 = vmatmul.mubr.f32.gmra.mrb[0].mxu0 %v8833
  %v9024 = vpop.f32.mrb[0].mxu0
  %v9025 = vadd.f32 0.0, %v9024
  %v9026 = vpop.f32.mrb[0].mxu0
  %9027 = vmatprep.mubr.f32.mxu0 0.0
  %9028 = vmatmul.mubr.f32.gmra.mrb[0].mxu0 %v8834
  %v9029 = vpop.f32.mrb[0].mxu0
  %v9030 = vadd.f32 0.0, %v9029
  %v9031 = vpop.f32.mrb[0].mxu0
  %9032 = vmatprep.mubr.f32.mxu0 0.0
  %9033 = vmatmul.mubr.f32.gmra.mrb[0].mxu0 %v8835
  %v9034 = vpop.f32.mrb[0].mxu0
  %v9035 = vadd.f32 0.0, %v9034
  %v9036 = vpop.f32.mrb[0].mxu0
  %9037 = vmatprep.mubr.f32.mxu0 0.0
  %9038 = vmatmul.mubr.f32.gmra.mrb[0].mxu0 %v8836
  %v9039 = vpop.f32.mrb[0].mxu0
  %v9040 = vadd.f32 0.0, %v9039
  %v9041 = vpop.f32.mrb[0].mxu0
  %9042 = vmatprep.mubr.f32.mxu0 0.0
  %9043 = vmatmul.mubr.f32.gmra.mrb[0].mxu0 %v8837
  %v9044 = vpop.f32.mrb[0].mxu0
  %v9045 = vadd.f32 0.0, %v9044
  %v9046 = vpop.f32.mrb[0].mxu0
  %9047 = vmatprep.mubr.f32.mxu0 0.0
  %9048 = vmatmul.mubr.f32.gmra.mrb[0].mxu0 %v8838
  %v9049 = vpop.f32.mrb[0].mxu0
  %v9050 = vadd.f32 0.0, %v9049
  %v9051 = vpop.f32.mrb[0].mxu0
  %9052 = vmatprep.mubr.f32.mxu0 0.0
  %9053 = vmatmul.mubr.f32.gmra.mrb[0].mxu0 %v8839
  %v9054 = vpop.f32.mrb[0].mxu0
  %v9055 = vadd.f32 0.0, %v9054
  %v9056 = vpop.f32.mrb[0].mxu0
  %9057 = vmatprep.mubr.f32.mxu0 0.0
  %9058 = vmatmul.mubr.f32.gmra.mrb[0].mxu0 %v8840
  %v9059 = vpop.f32.mrb[0].mxu0
  %v9060 = vadd.f32 0.0, %v9059
  %v9061 = vpop.f32.mrb[0].mxu0
  %9062 = vmatprep.mubr.f32.mxu0 0.0
  %9063 = vmatmul.mubr.f32.gmra.mrb[0].mxu0 %v8841
  %v9064 = vpop.f32.mrb[0].mxu0
  %v9065 = vadd.f32 0.0, %v9064
  %v9066 = vpop.f32.mrb[0].mxu0
  %9067 = vmatprep.mubr.f32.mxu0 0.0
  %9068 = vmatmul.mubr.f32.gmra.mrb[0].mxu0 %v8842
  %v9069 = vpop.f32.mrb[0].mxu0
  %v9070 = vadd.f32 0.0, %v9069
  %v9071 = vpop.f32.mrb[0].mxu0
  %9072 = vmatprep.mubr.f32.mxu0 0.0
  %9073 = vmatmul.mubr.f32.gmra.mrb[0].mxu0 %v8843
  %v9074 = vpop.f32.mrb[0].mxu0
  %v9075 = vadd.f32 0.0, %v9074
  %v9076 = vpop.f32.mrb[0].mxu0
  %9077 = vmatprep.mubr.f32.mxu0 0.0
  %9078 = vmatmul.mubr.f32.gmra.mrb[0].mxu0 %v8844
  %v9079 = vpop.f32.mrb[0].mxu0
  %v9080 = vadd.f32 0.0, %v9079
  %v9081 = vpop.f32.mrb[0].mxu0
  %9082 = vmatprep.mubr.f32.mxu0 0.0
  %9083 = vmatmul.mubr.f32.gmra.mrb[0].mxu0 %v8845
  %v9084 = vpop.f32.mrb[0].mxu0
  %v9085 = vadd.f32 0.0, %v9084
  %v9086 = vpop.f32.mrb[0].mxu0
  %9087 = vmatprep.mubr.f32.mxu0 0.0
  %9088 = vmatmul.mubr.f32.gmra.mrb[0].mxu0 %v8846
  %v9089 = vpop.f32.mrb[0].mxu0
  %v9090 = vadd.f32 0.0, %v9089
  %v9091 = vpop.f32.mrb[0].mxu0
  %9092 = vmatprep.mubr.f32.mxu0 0.0
  %9093 = vmatmul.mubr.f32.gmra.mrb[0].mxu0 %v8847
  %v9094 = vpop.f32.mrb[0].mxu0
  %v9095 = vadd.f32 0.0, %v9094
  %v9096 = vpop.f32.mrb[0].mxu0
  %9097 = vmatprep.mubr.f32.mxu0 0.0
  %9098 = vmatmul.mubr.f32.gmra.mrb[0].mxu0 %v8848
  %v9099 = vpop.f32.mrb[0].mxu0
  %v9100 = vadd.f32 0.0, %v9099
  %v9101 = vpop.f32.mrb[0].mxu0
  %9102 = vmatprep.mubr.f32.mxu0 0.0
  %9103 = vmatmul.mubr.f32.gmra.mrb[0].mxu0 %v8849
  %v9104 = vpop.f32.mrb[0].mxu0
  %v9105 = vadd.f32 0.0, %v9104
  %v9106 = vpop.f32.mrb[0].mxu0
  %9107 = vmatprep.mubr.f32.mxu0 0.0
  %9108 = vmatmul.mubr.f32.gmra.mrb[0].mxu0 %v8850
  %v9109 = vpop.f32.mrb[0].mxu0
  %v9110 = vadd.f32 0.0, %v9109
  %v9111 = vpop.f32.mrb[0].mxu0
  %9112 = vmatprep.mubr.f32.mxu0 0.0
  %9113 = vmatmul.mubr.f32.gmra.mrb[0].mxu0 %v8851
  %v9114 = vpop.f32.mrb[0].mxu0
  %v9115 = vadd.f32 0.0, %v9114
  %v9116 = vpop.f32.mrb[0].mxu0
  %9117 = vmatprep.mubr.f32.mxu0 0.0
  %9118 = vmatmul.mubr.f32.gmra.mrb[0].mxu0 %v8852
  %v9119 = vpop.f32.mrb[0].mxu0
  %v9120 = vadd.f32 0.0, %v9119
  %v9121 = vpop.f32.mrb[0].mxu0
  %9122 = vmatprep.mubr.f32.mxu0 0.0
  %9123 = vmatmul.mubr.f32.gmra.mrb[0].mxu0 %v8853
  %v9124 = vpop.f32.mrb[0].mxu0
  %v9125 = vadd.f32 0.0, %v9124
  %v9126 = vpop.f32.mrb[0].mxu0
  %9127 = vmatprep.mubr.f32.mxu0 0.0
  %9128 = vmatmul.mubr.f32.gmra.mrb[0].mxu0 %v8854
  %v9129 = vpop.f32.mrb[0].mxu0
  %v9130 = vadd.f32 0.0, %v9129
  %v9131 = vpop.f32.mrb[0].mxu0
  %9132 = vmatprep.mubr.f32.mxu0 0.0
  %9133 = vmatmul.mubr.f32.gmra.mrb[0].mxu0 %v8855
  %v9134 = vpop.f32.mrb[0].mxu0
  %v9135 = vadd.f32 0.0, %v9134
  %v9136 = vpop.f32.mrb[0].mxu0
  %9137 = vmatprep.mubr.f32.mxu0 0.0
  %9138 = vmatmul.mubr.f32.gmra.mrb[0].mxu0 %v8856
  %v9139 = vpop.f32.mrb[0].mxu0
  %v9140 = vadd.f32 0.0, %v9139
  %v9141 = vpop.f32.mrb[0].mxu0
  %9142 = vmatprep.mubr.f32.mxu0 0.0
  %9143 = vmatmul.mubr.f32.gmra.mrb[0].mxu0 %v8857
  %v9144 = vpop.f32.mrb[0].mxu0
  %v9145 = vadd.f32 0.0, %v9144
  %v9146 = vpop.f32.mrb[0].mxu0
  %9147 = vmatprep.mubr.f32.mxu0 0.0
  %9148 = vmatmul.mubr.f32.gmra.mrb[0].mxu0 %v8858
  %v9149 = vpop.f32.mrb[0].mxu0
  %v9150 = vadd.f32 0.0, %v9149
  %v9151 = vpop.f32.mrb[0].mxu0
  %9152 = vmatprep.mubr.f32.mxu0 0.0
  %9153 = vmatmul.mubr.f32.gmra.mrb[0].mxu0 %v8859
  %v9154 = vpop.f32.mrb[0].mxu0
  %v9155 = vadd.f32 0.0, %v9154
  %v9156 = vpop.f32.mrb[0].mxu0
  %9157 = vmatprep.mubr.f32.mxu0 0.0
  %9158 = vmatmul.mubr.f32.gmra.mrb[0].mxu0 %v8860
  %v9159 = vpop.f32.mrb[0].mxu0
  %v9160 = vadd.f32 0.0, %v9159
  %v9161 = vpop.f32.mrb[0].mxu0
  %9162 = vmatprep.mubr.f32.mxu0 0.0
  %9163 = vmatmul.mubr.f32.gmra.mrb[0].mxu0 %v8861
  %v9164 = vpop.f32.mrb[0].mxu0
  %v9165 = vadd.f32 0.0, %v9164
  %v9166 = vpop.f32.mrb[0].mxu0
  %9167 = vmatprep.mubr.f32.mxu0 0.0
  %9168 = vmatmul.mubr.f32.gmra.mrb[0].mxu0 %v8862
  %v9169 = vpop.f32.mrb[0].mxu0
  %v9170 = vadd.f32 0.0, %v9169
  %v9171 = vpop.f32.mrb[0].mxu0
  %9172 = vmatprep.mubr.f32.mxu0 0.0
  %9173 = vmatmul.mubr.f32.gmra.mrb[0].mxu0 %v8863
  %v9174 = vpop.f32.mrb[0].mxu0
  %v9175 = vadd.f32 0.0, %v9174
  %v9176 = vpop.f32.mrb[0].mxu0
  %9177 = vmatprep.mubr.f32.mxu0 0.0
  %9178 = vmatmul.mubr.f32.gmra.mrb[0].mxu0 %v8864
  %v9179 = vpop.f32.mrb[0].mxu0
  %v9180 = vadd.f32 0.0, %v9179
  %v9181 = vpop.f32.mrb[0].mxu0
  %9182 = vmatprep.mubr.f32.mxu0 0.0
  %9183 = vmatmul.mubr.f32.gmra.mrb[0].mxu0 %v8865
  %v9184 = vpop.f32.mrb[0].mxu0
  %v9185 = vadd.f32 0.0, %v9184
  %v9186 = vpop.f32.mrb[0].mxu0
  %9187 = vmatprep.mubr.f32.mxu0 0.0
  %9188 = vmatmul.mubr.f32.gmra.mrb[0].mxu0 %v8866
  %v9189 = vpop.f32.mrb[0].mxu0
  %v9190 = vadd.f32 0.0, %v9189
  %v9191 = vpop.f32.mrb[0].mxu0
  %9192 = vmatprep.mubr.f32.mxu0 0.0
  %9193 = vmatmul.mubr.f32.gmra.mrb[0].mxu0 %v8867
  %v9194 = vpop.f32.mrb[0].mxu0
  %v9195 = vadd.f32 0.0, %v9194
  %v9196 = vpop.f32.mrb[0].mxu0
  %9197 = vmatprep.mubr.f32.mxu0 0.0
  %9198 = vmatmul.mubr.f32.gmra.mrb[0].mxu0 %v8868
  %v9199 = vpop.f32.mrb[0].mxu0
  %v9200 = vadd.f32 0.0, %v9199
  %v9201 = vpop.f32.mrb[0].mxu0
  %9202 = vmatprep.mubr.f32.mxu0 0.0
  %9203 = vmatmul.mubr.f32.gmra.mrb[0].mxu0 %v8869
  %v9204 = vpop.f32.mrb[0].mxu0
  %v9205 = vadd.f32 0.0, %v9204
  %v9206 = vpop.f32.mrb[0].mxu0
  %9207 = vmatprep.mubr.f32.mxu0 0.0
  %9208 = vmatmul.mubr.f32.gmra.mrb[0].mxu0 %v8870
  %v9209 = vpop.f32.mrb[0].mxu0
  %v9210 = vadd.f32 0.0, %v9209
  %v9211 = vpop.f32.mrb[0].mxu0
  %9212 = vmatprep.mubr.f32.mxu0 0.0
  %9213 = vmatmul.mubr.f32.gmra.mrb[0].mxu0 %v8871
  %v9214 = vpop.f32.mrb[0].mxu0
  %v9215 = vadd.f32 0.0, %v9214
  %v9216 = vpop.f32.mrb[0].mxu0
  %9217 = vmatprep.mubr.f32.mxu0 0.0
  %9218 = vmatmul.mubr.f32.gmra.mrb[0].mxu0 %v8872
  %v9219 = vpop.f32.mrb[0].mxu0
  %v9220 = vadd.f32 0.0, %v9219
  %v9221 = vpop.f32.mrb[0].mxu0
  %9222 = vmatprep.mubr.f32.mxu0 0.0
  %9223 = vmatmul.mubr.f32.gmra.mrb[0].mxu0 %v8873
  %v9224 = vpop.f32.mrb[0].mxu0
  %v9225 = vadd.f32 0.0, %v9224
  %v9226 = vpop.f32.mrb[0].mxu0
  %9227 = vmatprep.mubr.f32.mxu0 0.0
  %9228 = vmatmul.mubr.f32.gmra.mrb[0].mxu0 %v8874
  %v9229 = vpop.f32.mrb[0].mxu0
  %v9230 = vadd.f32 0.0, %v9229
  %v9231 = vpop.f32.mrb[0].mxu0
  %9232 = vmatprep.mubr.f32.mxu0 0.0
  %9233 = vmatmul.mubr.f32.gmra.mrb[0].mxu0 %v8875
  %v9234 = vpop.f32.mrb[0].mxu0
  %v9235 = vadd.f32 0.0, %v9234
  %v9236 = vpop.f32.mrb[0].mxu0
  %9237 = vmatprep.mubr.f32.mxu0 0.0
  %9238 = vmatmul.mubr.f32.gmra.mrb[0].mxu0 %v8876
  %v9239 = vpop.f32.mrb[0].mxu0
  %v9240 = vadd.f32 0.0, %v9239
  %v9241 = vpop.f32.mrb[0].mxu0
  %9242 = vmatprep.mubr.f32.mxu0 0.0
  %9243 = vmatmul.mubr.f32.gmra.mrb[0].mxu0 %v8877
  %v9244 = vpop.f32.mrb[0].mxu0
  %v9245 = vadd.f32 0.0, %v9244
  %v9246 = vpop.f32.mrb[0].mxu0
  %9247 = vmatprep.mubr.f32.mxu0 0.0
  %9248 = vmatmul.mubr.f32.gmra.mrb[0].mxu0 %v8878
  %v9249 = vpop.f32.mrb[0].mxu0
  %v9250 = vadd.f32 0.0, %v9249
  %v9251 = vpop.f32.mrb[0].mxu0
  %9252 = vmatprep.mubr.f32.mxu0 0.0
  %9253 = vmatmul.mubr.f32.gmra.mrb[0].mxu0 %v8879
  %v9254 = vpop.f32.mrb[0].mxu0
  %v9255 = vadd.f32 0.0, %v9254
  %v9256 = vpop.f32.mrb[0].mxu0
  %9257 = vmatprep.mubr.f32.mxu0 0.0
  %9258 = vmatmul.mubr.f32.gmra.mrb[0].mxu0 %v8880
  %v9259 = vpop.f32.mrb[0].mxu0
  %v9260 = vadd.f32 0.0, %v9259
  %v9261 = vpop.f32.mrb[0].mxu0
  %9262 = vmatprep.mubr.f32.mxu0 0.0
  %9263 = vmatmul.mubr.f32.gmra.mrb[0].mxu0 %v8881
  %v9264 = vpop.f32.mrb[0].mxu0
  %v9265 = vadd.f32 0.0, %v9264
  %v9266 = vpop.f32.mrb[0].mxu0
  %9267 = vmatprep.mubr.f32.mxu0 0.0
  %9268 = vmatmul.mubr.f32.gmra.mrb[0].mxu0 %v8882
  %v9269 = vpop.f32.mrb[0].mxu0
  %v9270 = vadd.f32 0.0, %v9269
  %v9271 = vpop.f32.mrb[0].mxu0
  %9272 = vmatprep.mubr.f32.mxu0 0.0
  %9273 = vmatmul.mubr.f32.gmra.mrb[0].mxu0 %v8883
  %v9274 = vpop.f32.mrb[0].mxu0
  %v9275 = vadd.f32 0.0, %v9274
  %v9276 = vpop.f32.mrb[0].mxu0
  %9277 = vmatprep.mubr.f32.mxu0 0.0
  %9278 = vmatmul.mubr.f32.gmra.mrb[0].mxu0 %v8884
  %v9279 = vpop.f32.mrb[0].mxu0
  %v9280 = vadd.f32 0.0, %v9279
  %v9281 = vpop.f32.mrb[0].mxu0
  %9282 = vmatprep.mubr.f32.mxu0 0.0
  %9283 = vmatmul.mubr.f32.gmra.mrb[0].mxu0 %v8885
  %v9284 = vpop.f32.mrb[0].mxu0
  %v9285 = vadd.f32 0.0, %v9284
  %v9286 = vpop.f32.mrb[0].mxu0
  %9287 = vdwg.mxu0
  %v9288 = vadd.f32 %v8758, %v8970
  %v9289 = vadd.f32 %v8759, %v8975
  %v9290 = vadd.f32 %v8760, %v8980
  %v9291 = vadd.f32 %v8761, %v8985
  %v9292 = vadd.f32 %v8762, %v8990
  %v9293 = vadd.f32 %v8763, %v8995
  %v9294 = vadd.f32 %v8764, %v9000
  %v9295 = vadd.f32 %v8765, %v9005
  %v9296 = vadd.f32 %v8766, %v9010
  %v9297 = vadd.f32 %v8767, %v9015
  %v9298 = vadd.f32 %v8768, %v9020
  %v9299 = vadd.f32 %v8769, %v9025
  %v9300 = vadd.f32 %v8770, %v9030
  %v9301 = vadd.f32 %v8771, %v9035
  %v9302 = vadd.f32 %v8772, %v9040
  %v9303 = vadd.f32 %v8773, %v9045
  %v9304 = vadd.f32 %v8774, %v9050
  %v9305 = vadd.f32 %v8775, %v9055
  %v9306 = vadd.f32 %v8776, %v9060
  %v9307 = vadd.f32 %v8777, %v9065
  %v9308 = vadd.f32 %v8778, %v9070
  %v9309 = vadd.f32 %v8779, %v9075
  %v9310 = vadd.f32 %v8780, %v9080
  %v9311 = vadd.f32 %v8781, %v9085
  %v9312 = vadd.f32 %v8782, %v9090
  %v9313 = vadd.f32 %v8783, %v9095
  %v9314 = vadd.f32 %v8784, %v9100
  %v9315 = vadd.f32 %v8785, %v9105
  %v9316 = vadd.f32 %v8786, %v9110
  %v9317 = vadd.f32 %v8787, %v9115
  %v9318 = vadd.f32 %v8788, %v9120
  %v9319 = vadd.f32 %v8789, %v9125
  %v9320 = vadd.f32 %v8790, %v9130
  %v9321 = vadd.f32 %v8791, %v9135
  %v9322 = vadd.f32 %v8792, %v9140
  %v9323 = vadd.f32 %v8793, %v9145
  %v9324 = vadd.f32 %v8794, %v9150
  %v9325 = vadd.f32 %v8795, %v9155
  %v9326 = vadd.f32 %v8796, %v9160
  %v9327 = vadd.f32 %v8797, %v9165
  %v9328 = vadd.f32 %v8798, %v9170
  %v9329 = vadd.f32 %v8799, %v9175
  %v9330 = vadd.f32 %v8800, %v9180
  %v9331 = vadd.f32 %v8801, %v9185
  %v9332 = vadd.f32 %v8802, %v9190
  %v9333 = vadd.f32 %v8803, %v9195
  %v9334 = vadd.f32 %v8804, %v9200
  %v9335 = vadd.f32 %v8805, %v9205
  %v9336 = vadd.f32 %v8806, %v9210
  %v9337 = vadd.f32 %v8807, %v9215
  %v9338 = vadd.f32 %v8808, %v9220
  %v9339 = vadd.f32 %v8809, %v9225
  %v9340 = vadd.f32 %v8810, %v9230
  %v9341 = vadd.f32 %v8811, %v9235
  %v9342 = vadd.f32 %v8812, %v9240
  %v9343 = vadd.f32 %v8813, %v9245
  %v9344 = vadd.f32 %v8814, %v9250
  %v9345 = vadd.f32 %v8815, %v9255
  %v9346 = vadd.f32 %v8816, %v9260
  %v9347 = vadd.f32 %v8817, %v9265
  %v9348 = vadd.f32 %v8818, %v9270
  %v9349 = vadd.f32 %v8819, %v9275
  %v9350 = vadd.f32 %v8820, %v9280
  %v9351 = vadd.f32 %v8821, %v9285
  %v9352 = vld [vmem:[%s8291 + $0x2] sm:$0xff]
  %v9353 = vld [vmem:[%s8291 + $0xa] sm:$0xff]
  %v9354 = vld [vmem:[%s8291 + $0x1a] sm:$0xff]
  %v9355 = vld [vmem:[%s8291 + $0x22] sm:$0xff]
  %v9356 = vld [vmem:[%s8291 + $0x32] sm:$0xff]
  %v9357 = vld [vmem:[%s8291 + $0x3a] sm:$0xff]
  %v9358 = vld [vmem:[%s8291 + $0x4a] sm:$0xff]
  %v9359 = vld [vmem:[%s8291 + $0x52] sm:$0xff]
  %v9360 = vld [vmem:[%s8291 + $0x62] sm:$0xff]
  %v9361 = vld [vmem:[%s8291 + $0x6a] sm:$0xff]
  %v9362 = vld [vmem:[%s8291 + $0x7a] sm:$0xff]
  %v9363 = vld [vmem:[%s8291 + $0x82] sm:$0xff]
  %v9364 = vld [vmem:[%s8291 + $0x92] sm:$0xff]
  %v9365 = vld [vmem:[%s8291 + $0x9a] sm:$0xff]
  %v9366 = vld [vmem:[%s8291 + $0xaa] sm:$0xff]
  %v9367 = vld [vmem:[%s8291 + $0xb2] sm:$0xff]
  %v9368 = vld [vmem:[%s8291 + $0xc2] sm:$0xff]
  %v9369 = vld [vmem:[%s8291 + $0xca] sm:$0xff]
  %v9370 = vld [vmem:[%s8291 + $0xda] sm:$0xff]
  %v9371 = vld [vmem:[%s8291 + $0xe2] sm:$0xff]
  %v9372 = vld [vmem:[%s8291 + $0xf2] sm:$0xff]
  %v9373 = vld [vmem:[%s8291 + $0xfa] sm:$0xff]
  %v9374 = vld [vmem:[%s8291 + $0x10a] sm:$0xff]
  %v9375 = vld [vmem:[%s8291 + $0x112] sm:$0xff]
  %v9376 = vld [vmem:[%s8291 + $0x122] sm:$0xff]
  %v9377 = vld [vmem:[%s8291 + $0x12a] sm:$0xff]
  %v9378 = vld [vmem:[%s8291 + $0x13a] sm:$0xff]
  %v9379 = vld [vmem:[%s8291 + $0x142] sm:$0xff]
  %v9380 = vld [vmem:[%s8291 + $0x152] sm:$0xff]
  %v9381 = vld [vmem:[%s8291 + $0x15a] sm:$0xff]
  %v9382 = vld [vmem:[%s8291 + $0x16a] sm:$0xff]
  %v9383 = vld [vmem:[%s8291 + $0x172] sm:$0xff]
  %v9384 = vld [vmem:[%s8291 + $0x1b2] sm:$0xff]
  %v9385 = vld [vmem:[%s8291 + $0x1ba] sm:$0xff]
  %v9386 = vld [vmem:[%s8291 + $0x1ca] sm:$0xff]
  %v9387 = vld [vmem:[%s8291 + $0x1d2] sm:$0xff]
  %v9388 = vld [vmem:[%s8291 + $0x1e2] sm:$0xff]
  %v9389 = vld [vmem:[%s8291 + $0x1ea] sm:$0xff]
  %v9390 = vld [vmem:[%s8291 + $0x1fa] sm:$0xff]
  %v9391 = vld [vmem:[%s8291 + $0x202] sm:$0xff]
  %v9392 = vld [vmem:[%s8291 + $0x212] sm:$0xff]
  %v9393 = vld [vmem:[%s8291 + $0x21a] sm:$0xff]
  %v9394 = vld [vmem:[%s8291 + $0x22a] sm:$0xff]
  %v9395 = vld [vmem:[%s8291 + $0x232] sm:$0xff]
  %v9396 = vld [vmem:[%s8291 + $0x242] sm:$0xff]
  %v9397 = vld [vmem:[%s8291 + $0x24a] sm:$0xff]
  %v9398 = vld [vmem:[%s8291 + $0x25a] sm:$0xff]
  %v9399 = vld [vmem:[%s8291 + $0x262] sm:$0xff]
  %v9400 = vld [vmem:[%s8291 + $0x272] sm:$0xff]
  %v9401 = vld [vmem:[%s8291 + $0x27a] sm:$0xff]
  %v9402 = vld [vmem:[%s8291 + $0x28a] sm:$0xff]
  %v9403 = vld [vmem:[%s8291 + $0x292] sm:$0xff]
  %v9404 = vld [vmem:[%s8291 + $0x2a2] sm:$0xff]
  %v9405 = vld [vmem:[%s8291 + $0x2aa] sm:$0xff]
  %v9406 = vld [vmem:[%s8291 + $0x2ba] sm:$0xff]
  %v9407 = vld [vmem:[%s8291 + $0x2c2] sm:$0xff]
  %v9408 = vld [vmem:[%s8291 + $0x2d2] sm:$0xff]
  %v9409 = vld [vmem:[%s8291 + $0x2da] sm:$0xff]
  %v9410 = vld [vmem:[%s8291 + $0x2ea] sm:$0xff]
  %v9411 = vld [vmem:[%s8291 + $0x2f2] sm:$0xff]
  %v9412 = vld [vmem:[%s8291 + $0x302] sm:$0xff]
  %v9413 = vld [vmem:[%s8291 + $0x30a] sm:$0xff]
  %v9414 = vld [vmem:[%s8291 + $0x31a] sm:$0xff]
  %v9415 = vld [vmem:[%s8291 + $0x322] sm:$0xff]
  %s9416 = scalar_lea.vmem %s3, 1024
  %v9417 = vld [vmem:[%s9416] sm:$0xff]
  %v9418 = vld [vmem:[%s9416 + $0x8] sm:$0xff]
  %v9419 = vld [vmem:[%s9416 + $0x10] sm:$0xff]
  %v9420 = vld [vmem:[%s9416 + $0x18] sm:$0xff]
  %v9421 = vld [vmem:[%s9416 + $0x20] sm:$0xff]
  %v9422 = vld [vmem:[%s9416 + $0x28] sm:$0xff]
  %v9423 = vld [vmem:[%s9416 + $0x30] sm:$0xff]
  %v9424 = vld [vmem:[%s9416 + $0x38] sm:$0xff]
  %v9425 = vld [vmem:[%s9416 + $0x40] sm:$0xff]
  %v9426 = vld [vmem:[%s9416 + $0x48] sm:$0xff]
  %v9427 = vld [vmem:[%s9416 + $0x50] sm:$0xff]
  %v9428 = vld [vmem:[%s9416 + $0x58] sm:$0xff]
  %v9429 = vld [vmem:[%s9416 + $0x60] sm:$0xff]
  %v9430 = vld [vmem:[%s9416 + $0x68] sm:$0xff]
  %v9431 = vld [vmem:[%s9416 + $0x70] sm:$0xff]
  %v9432 = vld [vmem:[%s9416 + $0x78] sm:$0xff]
  %9433 = vmatprep.subr.mxu0 0.0
  %9434 = vmatpush1.msra.mxu0 %v9417
  %9435 = vmatprep.subr.mxu0 0.0
  %9436 = vmatpush1.msra.mxu0 %v9418
  %9437 = vmatprep.subr.mxu0 0.0
  %9438 = vmatpush1.msra.mxu0 %v9419
  %9439 = vmatprep.subr.mxu0 0.0
  %9440 = vmatpush1.msra.mxu0 %v9420
  %9441 = vmatprep.subr.mxu0 0.0
  %9442 = vmatpush1.msra.mxu0 %v9421
  %9443 = vmatprep.subr.mxu0 0.0
  %9444 = vmatpush1.msra.mxu0 %v9422
  %9445 = vmatprep.subr.mxu0 0.0
  %9446 = vmatpush1.msra.mxu0 %v9423
  %9447 = vmatprep.subr.mxu0 0.0
  %9448 = vmatpush1.msra.mxu0 %v9424
  %9449 = vmatprep.subr.mxu0 0.0
  %9450 = vmatpush1.msra.mxu0 %v9425
  %9451 = vmatprep.subr.mxu0 0.0
  %9452 = vmatpush1.msra.mxu0 %v9426
  %9453 = vmatprep.subr.mxu0 0.0
  %9454 = vmatpush1.msra.mxu0 %v9427
  %9455 = vmatprep.subr.mxu0 0.0
  %9456 = vmatpush1.msra.mxu0 %v9428
  %9457 = vmatprep.subr.mxu0 0.0
  %9458 = vmatpush1.msra.mxu0 %v9429
  %9459 = vmatprep.subr.mxu0 0.0
  %9460 = vmatpush1.msra.mxu0 %v9430
  %9461 = vmatprep.subr.mxu0 0.0
  %9462 = vmatpush1.msra.mxu0 %v9431
  %9463 = vmatprep.subr.mxu0 0.0
  %9464 = vmatpush1.msra.mxu0 %v9432
  %9465 = vmatprep.subr.mxu0 0.0
  %9466 = vmatpush1.msra.mxu0 0.0
  %9467 = vmatprep.subr.mxu0 0.0
  %9468 = vmatpush1.msra.mxu0 0.0
  %9469 = vmatprep.subr.mxu0 0.0
  %9470 = vmatpush1.msra.mxu0 0.0
  %9471 = vmatprep.subr.mxu0 0.0
  %9472 = vmatpush1.msra.mxu0 0.0
  %9473 = vmatprep.subr.mxu0 0.0
  %9474 = vmatpush1.msra.mxu0 0.0
  %9475 = vmatprep.subr.mxu0 0.0
  %9476 = vmatpush1.msra.mxu0 0.0
  %9477 = vmatprep.subr.mxu0 0.0
  %9478 = vmatpush1.msra.mxu0 0.0
  %9479 = vmatprep.subr.mxu0 0.0
  %9480 = vmatpush1.msra.mxu0 0.0
  %9481 = vmatprep.subr.mxu0 0.0
  %9482 = vmatpush1.msra.mxu0 0.0
  %9483 = vmatprep.subr.mxu0 0.0
  %9484 = vmatpush1.msra.mxu0 0.0
  %9485 = vmatprep.subr.mxu0 0.0
  %9486 = vmatpush1.msra.mxu0 0.0
  %9487 = vmatprep.subr.mxu0 0.0
  %9488 = vmatpush1.msra.mxu0 0.0
  %9489 = vmatprep.subr.mxu0 0.0
  %9490 = vmatpush1.msra.mxu0 0.0
  %9491 = vmatprep.subr.mxu0 0.0
  %9492 = vmatpush1.msra.mxu0 0.0
  %9493 = vmatprep.subr.mxu0 0.0
  %9494 = vmatpush1.msra.mxu0 0.0
  %9495 = vmatprep.subr.mxu0 0.0
  %9496 = vmatpush1.msra.mxu0 0.0
  %9497 = vmatprep.mubr.f32.mxu0 0.0
  %9498 = vmatmul.mubr.f32.gmra.mrb[0].mxu0 %v9352
  %v9499 = vpop.f32.mrb[0].mxu0
  %v9500 = vadd.f32 0.0, %v9499
  %v9501 = vpop.f32.mrb[0].mxu0
  %9502 = vmatprep.mubr.f32.mxu0 0.0
  %9503 = vmatmul.mubr.f32.gmra.mrb[0].mxu0 %v9353
  %v9504 = vpop.f32.mrb[0].mxu0
  %v9505 = vadd.f32 0.0, %v9504
  %v9506 = vpop.f32.mrb[0].mxu0
  %9507 = vmatprep.mubr.f32.mxu0 0.0
  %9508 = vmatmul.mubr.f32.gmra.mrb[0].mxu0 %v9354
  %v9509 = vpop.f32.mrb[0].mxu0
  %v9510 = vadd.f32 0.0, %v9509
  %v9511 = vpop.f32.mrb[0].mxu0
  %9512 = vmatprep.mubr.f32.mxu0 0.0
  %9513 = vmatmul.mubr.f32.gmra.mrb[0].mxu0 %v9355
  %v9514 = vpop.f32.mrb[0].mxu0
  %v9515 = vadd.f32 0.0, %v9514
  %v9516 = vpop.f32.mrb[0].mxu0
  %9517 = vmatprep.mubr.f32.mxu0 0.0
  %9518 = vmatmul.mubr.f32.gmra.mrb[0].mxu0 %v9356
  %v9519 = vpop.f32.mrb[0].mxu0
  %v9520 = vadd.f32 0.0, %v9519
  %v9521 = vpop.f32.mrb[0].mxu0
  %9522 = vmatprep.mubr.f32.mxu0 0.0
  %9523 = vmatmul.mubr.f32.gmra.mrb[0].mxu0 %v9357
  %v9524 = vpop.f32.mrb[0].mxu0
  %v9525 = vadd.f32 0.0, %v9524
  %v9526 = vpop.f32.mrb[0].mxu0
  %9527 = vmatprep.mubr.f32.mxu0 0.0
  %9528 = vmatmul.mubr.f32.gmra.mrb[0].mxu0 %v9358
  %v9529 = vpop.f32.mrb[0].mxu0
  %v9530 = vadd.f32 0.0, %v9529
  %v9531 = vpop.f32.mrb[0].mxu0
  %9532 = vmatprep.mubr.f32.mxu0 0.0
  %9533 = vmatmul.mubr.f32.gmra.mrb[0].mxu0 %v9359
  %v9534 = vpop.f32.mrb[0].mxu0
  %v9535 = vadd.f32 0.0, %v9534
  %v9536 = vpop.f32.mrb[0].mxu0
  %9537 = vmatprep.mubr.f32.mxu0 0.0
  %9538 = vmatmul.mubr.f32.gmra.mrb[0].mxu0 %v9360
  %v9539 = vpop.f32.mrb[0].mxu0
  %v9540 = vadd.f32 0.0, %v9539
  %v9541 = vpop.f32.mrb[0].mxu0
  %9542 = vmatprep.mubr.f32.mxu0 0.0
  %9543 = vmatmul.mubr.f32.gmra.mrb[0].mxu0 %v9361
  %v9544 = vpop.f32.mrb[0].mxu0
  %v9545 = vadd.f32 0.0, %v9544
  %v9546 = vpop.f32.mrb[0].mxu0
  %9547 = vmatprep.mubr.f32.mxu0 0.0
  %9548 = vmatmul.mubr.f32.gmra.mrb[0].mxu0 %v9362
  %v9549 = vpop.f32.mrb[0].mxu0
  %v9550 = vadd.f32 0.0, %v9549
  %v9551 = vpop.f32.mrb[0].mxu0
  %9552 = vmatprep.mubr.f32.mxu0 0.0
  %9553 = vmatmul.mubr.f32.gmra.mrb[0].mxu0 %v9363
  %v9554 = vpop.f32.mrb[0].mxu0
  %v9555 = vadd.f32 0.0, %v9554
  %v9556 = vpop.f32.mrb[0].mxu0
  %9557 = vmatprep.mubr.f32.mxu0 0.0
  %9558 = vmatmul.mubr.f32.gmra.mrb[0].mxu0 %v9364
  %v9559 = vpop.f32.mrb[0].mxu0
  %v9560 = vadd.f32 0.0, %v9559
  %v9561 = vpop.f32.mrb[0].mxu0
  %9562 = vmatprep.mubr.f32.mxu0 0.0
  %9563 = vmatmul.mubr.f32.gmra.mrb[0].mxu0 %v9365
  %v9564 = vpop.f32.mrb[0].mxu0
  %v9565 = vadd.f32 0.0, %v9564
  %v9566 = vpop.f32.mrb[0].mxu0
  %9567 = vmatprep.mubr.f32.mxu0 0.0
  %9568 = vmatmul.mubr.f32.gmra.mrb[0].mxu0 %v9366
  %v9569 = vpop.f32.mrb[0].mxu0
  %v9570 = vadd.f32 0.0, %v9569
  %v9571 = vpop.f32.mrb[0].mxu0
  %9572 = vmatprep.mubr.f32.mxu0 0.0
  %9573 = vmatmul.mubr.f32.gmra.mrb[0].mxu0 %v9367
  %v9574 = vpop.f32.mrb[0].mxu0
  %v9575 = vadd.f32 0.0, %v9574
  %v9576 = vpop.f32.mrb[0].mxu0
  %9577 = vmatprep.mubr.f32.mxu0 0.0
  %9578 = vmatmul.mubr.f32.gmra.mrb[0].mxu0 %v9368
  %v9579 = vpop.f32.mrb[0].mxu0
  %v9580 = vadd.f32 0.0, %v9579
  %v9581 = vpop.f32.mrb[0].mxu0
  %9582 = vmatprep.mubr.f32.mxu0 0.0
  %9583 = vmatmul.mubr.f32.gmra.mrb[0].mxu0 %v9369
  %v9584 = vpop.f32.mrb[0].mxu0
  %v9585 = vadd.f32 0.0, %v9584
  %v9586 = vpop.f32.mrb[0].mxu0
  %9587 = vmatprep.mubr.f32.mxu0 0.0
  %9588 = vmatmul.mubr.f32.gmra.mrb[0].mxu0 %v9370
  %v9589 = vpop.f32.mrb[0].mxu0
  %v9590 = vadd.f32 0.0, %v9589
  %v9591 = vpop.f32.mrb[0].mxu0
  %9592 = vmatprep.mubr.f32.mxu0 0.0
  %9593 = vmatmul.mubr.f32.gmra.mrb[0].mxu0 %v9371
  %v9594 = vpop.f32.mrb[0].mxu0
  %v9595 = vadd.f32 0.0, %v9594
  %v9596 = vpop.f32.mrb[0].mxu0
  %9597 = vmatprep.mubr.f32.mxu0 0.0
  %9598 = vmatmul.mubr.f32.gmra.mrb[0].mxu0 %v9372
  %v9599 = vpop.f32.mrb[0].mxu0
  %v9600 = vadd.f32 0.0, %v9599
  %v9601 = vpop.f32.mrb[0].mxu0
  %9602 = vmatprep.mubr.f32.mxu0 0.0
  %9603 = vmatmul.mubr.f32.gmra.mrb[0].mxu0 %v9373
  %v9604 = vpop.f32.mrb[0].mxu0
  %v9605 = vadd.f32 0.0, %v9604
  %v9606 = vpop.f32.mrb[0].mxu0
  %9607 = vmatprep.mubr.f32.mxu0 0.0
  %9608 = vmatmul.mubr.f32.gmra.mrb[0].mxu0 %v9374
  %v9609 = vpop.f32.mrb[0].mxu0
  %v9610 = vadd.f32 0.0, %v9609
  %v9611 = vpop.f32.mrb[0].mxu0
  %9612 = vmatprep.mubr.f32.mxu0 0.0
  %9613 = vmatmul.mubr.f32.gmra.mrb[0].mxu0 %v9375
  %v9614 = vpop.f32.mrb[0].mxu0
  %v9615 = vadd.f32 0.0, %v9614
  %v9616 = vpop.f32.mrb[0].mxu0
  %9617 = vmatprep.mubr.f32.mxu0 0.0
  %9618 = vmatmul.mubr.f32.gmra.mrb[0].mxu0 %v9376
  %v9619 = vpop.f32.mrb[0].mxu0
  %v9620 = vadd.f32 0.0, %v9619
  %v9621 = vpop.f32.mrb[0].mxu0
  %9622 = vmatprep.mubr.f32.mxu0 0.0
  %9623 = vmatmul.mubr.f32.gmra.mrb[0].mxu0 %v9377
  %v9624 = vpop.f32.mrb[0].mxu0
  %v9625 = vadd.f32 0.0, %v9624
  %v9626 = vpop.f32.mrb[0].mxu0
  %9627 = vmatprep.mubr.f32.mxu0 0.0
  %9628 = vmatmul.mubr.f32.gmra.mrb[0].mxu0 %v9378
  %v9629 = vpop.f32.mrb[0].mxu0
  %v9630 = vadd.f32 0.0, %v9629
  %v9631 = vpop.f32.mrb[0].mxu0
  %9632 = vmatprep.mubr.f32.mxu0 0.0
  %9633 = vmatmul.mubr.f32.gmra.mrb[0].mxu0 %v9379
  %v9634 = vpop.f32.mrb[0].mxu0
  %v9635 = vadd.f32 0.0, %v9634
  %v9636 = vpop.f32.mrb[0].mxu0
  %9637 = vmatprep.mubr.f32.mxu0 0.0
  %9638 = vmatmul.mubr.f32.gmra.mrb[0].mxu0 %v9380
  %v9639 = vpop.f32.mrb[0].mxu0
  %v9640 = vadd.f32 0.0, %v9639
  %v9641 = vpop.f32.mrb[0].mxu0
  %9642 = vmatprep.mubr.f32.mxu0 0.0
  %9643 = vmatmul.mubr.f32.gmra.mrb[0].mxu0 %v9381
  %v9644 = vpop.f32.mrb[0].mxu0
  %v9645 = vadd.f32 0.0, %v9644
  %v9646 = vpop.f32.mrb[0].mxu0
  %9647 = vmatprep.mubr.f32.mxu0 0.0
  %9648 = vmatmul.mubr.f32.gmra.mrb[0].mxu0 %v9382
  %v9649 = vpop.f32.mrb[0].mxu0
  %v9650 = vadd.f32 0.0, %v9649
  %v9651 = vpop.f32.mrb[0].mxu0
  %9652 = vmatprep.mubr.f32.mxu0 0.0
  %9653 = vmatmul.mubr.f32.gmra.mrb[0].mxu0 %v9383
  %v9654 = vpop.f32.mrb[0].mxu0
  %v9655 = vadd.f32 0.0, %v9654
  %v9656 = vpop.f32.mrb[0].mxu0
  %9657 = vmatprep.mubr.f32.mxu0 0.0
  %9658 = vmatmul.mubr.f32.gmra.mrb[0].mxu0 %v9384
  %v9659 = vpop.f32.mrb[0].mxu0
  %v9660 = vadd.f32 0.0, %v9659
  %v9661 = vpop.f32.mrb[0].mxu0
  %9662 = vmatprep.mubr.f32.mxu0 0.0
  %9663 = vmatmul.mubr.f32.gmra.mrb[0].mxu0 %v9385
  %v9664 = vpop.f32.mrb[0].mxu0
  %v9665 = vadd.f32 0.0, %v9664
  %v9666 = vpop.f32.mrb[0].mxu0
  %9667 = vmatprep.mubr.f32.mxu0 0.0
  %9668 = vmatmul.mubr.f32.gmra.mrb[0].mxu0 %v9386
  %v9669 = vpop.f32.mrb[0].mxu0
  %v9670 = vadd.f32 0.0, %v9669
  %v9671 = vpop.f32.mrb[0].mxu0
  %9672 = vmatprep.mubr.f32.mxu0 0.0
  %9673 = vmatmul.mubr.f32.gmra.mrb[0].mxu0 %v9387
  %v9674 = vpop.f32.mrb[0].mxu0
  %v9675 = vadd.f32 0.0, %v9674
  %v9676 = vpop.f32.mrb[0].mxu0
  %9677 = vmatprep.mubr.f32.mxu0 0.0
  %9678 = vmatmul.mubr.f32.gmra.mrb[0].mxu0 %v9388
  %v9679 = vpop.f32.mrb[0].mxu0
  %v9680 = vadd.f32 0.0, %v9679
  %v9681 = vpop.f32.mrb[0].mxu0
  %9682 = vmatprep.mubr.f32.mxu0 0.0
  %9683 = vmatmul.mubr.f32.gmra.mrb[0].mxu0 %v9389
  %v9684 = vpop.f32.mrb[0].mxu0
  %v9685 = vadd.f32 0.0, %v9684
  %v9686 = vpop.f32.mrb[0].mxu0
  %9687 = vmatprep.mubr.f32.mxu0 0.0
  %9688 = vmatmul.mubr.f32.gmra.mrb[0].mxu0 %v9390
  %v9689 = vpop.f32.mrb[0].mxu0
  %v9690 = vadd.f32 0.0, %v9689
  %v9691 = vpop.f32.mrb[0].mxu0
  %9692 = vmatprep.mubr.f32.mxu0 0.0
  %9693 = vmatmul.mubr.f32.gmra.mrb[0].mxu0 %v9391
  %v9694 = vpop.f32.mrb[0].mxu0
  %v9695 = vadd.f32 0.0, %v9694
  %v9696 = vpop.f32.mrb[0].mxu0
  %9697 = vmatprep.mubr.f32.mxu0 0.0
  %9698 = vmatmul.mubr.f32.gmra.mrb[0].mxu0 %v9392
  %v9699 = vpop.f32.mrb[0].mxu0
  %v9700 = vadd.f32 0.0, %v9699
  %v9701 = vpop.f32.mrb[0].mxu0
  %9702 = vmatprep.mubr.f32.mxu0 0.0
  %9703 = vmatmul.mubr.f32.gmra.mrb[0].mxu0 %v9393
  %v9704 = vpop.f32.mrb[0].mxu0
  %v9705 = vadd.f32 0.0, %v9704
  %v9706 = vpop.f32.mrb[0].mxu0
  %9707 = vmatprep.mubr.f32.mxu0 0.0
  %9708 = vmatmul.mubr.f32.gmra.mrb[0].mxu0 %v9394
  %v9709 = vpop.f32.mrb[0].mxu0
  %v9710 = vadd.f32 0.0, %v9709
  %v9711 = vpop.f32.mrb[0].mxu0
  %9712 = vmatprep.mubr.f32.mxu0 0.0
  %9713 = vmatmul.mubr.f32.gmra.mrb[0].mxu0 %v9395
  %v9714 = vpop.f32.mrb[0].mxu0
  %v9715 = vadd.f32 0.0, %v9714
  %v9716 = vpop.f32.mrb[0].mxu0
  %9717 = vmatprep.mubr.f32.mxu0 0.0
  %9718 = vmatmul.mubr.f32.gmra.mrb[0].mxu0 %v9396
  %v9719 = vpop.f32.mrb[0].mxu0
  %v9720 = vadd.f32 0.0, %v9719
  %v9721 = vpop.f32.mrb[0].mxu0
  %9722 = vmatprep.mubr.f32.mxu0 0.0
  %9723 = vmatmul.mubr.f32.gmra.mrb[0].mxu0 %v9397
  %v9724 = vpop.f32.mrb[0].mxu0
  %v9725 = vadd.f32 0.0, %v9724
  %v9726 = vpop.f32.mrb[0].mxu0
  %9727 = vmatprep.mubr.f32.mxu0 0.0
  %9728 = vmatmul.mubr.f32.gmra.mrb[0].mxu0 %v9398
  %v9729 = vpop.f32.mrb[0].mxu0
  %v9730 = vadd.f32 0.0, %v9729
  %v9731 = vpop.f32.mrb[0].mxu0
  %9732 = vmatprep.mubr.f32.mxu0 0.0
  %9733 = vmatmul.mubr.f32.gmra.mrb[0].mxu0 %v9399
  %v9734 = vpop.f32.mrb[0].mxu0
  %v9735 = vadd.f32 0.0, %v9734
  %v9736 = vpop.f32.mrb[0].mxu0
  %9737 = vmatprep.mubr.f32.mxu0 0.0
  %9738 = vmatmul.mubr.f32.gmra.mrb[0].mxu0 %v9400
  %v9739 = vpop.f32.mrb[0].mxu0
  %v9740 = vadd.f32 0.0, %v9739
  %v9741 = vpop.f32.mrb[0].mxu0
  %9742 = vmatprep.mubr.f32.mxu0 0.0
  %9743 = vmatmul.mubr.f32.gmra.mrb[0].mxu0 %v9401
  %v9744 = vpop.f32.mrb[0].mxu0
  %v9745 = vadd.f32 0.0, %v9744
  %v9746 = vpop.f32.mrb[0].mxu0
  %9747 = vmatprep.mubr.f32.mxu0 0.0
  %9748 = vmatmul.mubr.f32.gmra.mrb[0].mxu0 %v9402
  %v9749 = vpop.f32.mrb[0].mxu0
  %v9750 = vadd.f32 0.0, %v9749
  %v9751 = vpop.f32.mrb[0].mxu0
  %9752 = vmatprep.mubr.f32.mxu0 0.0
  %9753 = vmatmul.mubr.f32.gmra.mrb[0].mxu0 %v9403
  %v9754 = vpop.f32.mrb[0].mxu0
  %v9755 = vadd.f32 0.0, %v9754
  %v9756 = vpop.f32.mrb[0].mxu0
  %9757 = vmatprep.mubr.f32.mxu0 0.0
  %9758 = vmatmul.mubr.f32.gmra.mrb[0].mxu0 %v9404
  %v9759 = vpop.f32.mrb[0].mxu0
  %v9760 = vadd.f32 0.0, %v9759
  %v9761 = vpop.f32.mrb[0].mxu0
  %9762 = vmatprep.mubr.f32.mxu0 0.0
  %9763 = vmatmul.mubr.f32.gmra.mrb[0].mxu0 %v9405
  %v9764 = vpop.f32.mrb[0].mxu0
  %v9765 = vadd.f32 0.0, %v9764
  %v9766 = vpop.f32.mrb[0].mxu0
  %9767 = vmatprep.mubr.f32.mxu0 0.0
  %9768 = vmatmul.mubr.f32.gmra.mrb[0].mxu0 %v9406
  %v9769 = vpop.f32.mrb[0].mxu0
  %v9770 = vadd.f32 0.0, %v9769
  %v9771 = vpop.f32.mrb[0].mxu0
  %9772 = vmatprep.mubr.f32.mxu0 0.0
  %9773 = vmatmul.mubr.f32.gmra.mrb[0].mxu0 %v9407
  %v9774 = vpop.f32.mrb[0].mxu0
  %v9775 = vadd.f32 0.0, %v9774
  %v9776 = vpop.f32.mrb[0].mxu0
  %9777 = vmatprep.mubr.f32.mxu0 0.0
  %9778 = vmatmul.mubr.f32.gmra.mrb[0].mxu0 %v9408
  %v9779 = vpop.f32.mrb[0].mxu0
  %v9780 = vadd.f32 0.0, %v9779
  %v9781 = vpop.f32.mrb[0].mxu0
  %9782 = vmatprep.mubr.f32.mxu0 0.0
  %9783 = vmatmul.mubr.f32.gmra.mrb[0].mxu0 %v9409
  %v9784 = vpop.f32.mrb[0].mxu0
  %v9785 = vadd.f32 0.0, %v9784
  %v9786 = vpop.f32.mrb[0].mxu0
  %9787 = vmatprep.mubr.f32.mxu0 0.0
  %9788 = vmatmul.mubr.f32.gmra.mrb[0].mxu0 %v9410
  %v9789 = vpop.f32.mrb[0].mxu0
  %v9790 = vadd.f32 0.0, %v9789
  %v9791 = vpop.f32.mrb[0].mxu0
  %9792 = vmatprep.mubr.f32.mxu0 0.0
  %9793 = vmatmul.mubr.f32.gmra.mrb[0].mxu0 %v9411
  %v9794 = vpop.f32.mrb[0].mxu0
  %v9795 = vadd.f32 0.0, %v9794
  %v9796 = vpop.f32.mrb[0].mxu0
  %9797 = vmatprep.mubr.f32.mxu0 0.0
  %9798 = vmatmul.mubr.f32.gmra.mrb[0].mxu0 %v9412
  %v9799 = vpop.f32.mrb[0].mxu0
  %v9800 = vadd.f32 0.0, %v9799
  %v9801 = vpop.f32.mrb[0].mxu0
  %9802 = vmatprep.mubr.f32.mxu0 0.0
  %9803 = vmatmul.mubr.f32.gmra.mrb[0].mxu0 %v9413
  %v9804 = vpop.f32.mrb[0].mxu0
  %v9805 = vadd.f32 0.0, %v9804
  %v9806 = vpop.f32.mrb[0].mxu0
  %9807 = vmatprep.mubr.f32.mxu0 0.0
  %9808 = vmatmul.mubr.f32.gmra.mrb[0].mxu0 %v9414
  %v9809 = vpop.f32.mrb[0].mxu0
  %v9810 = vadd.f32 0.0, %v9809
  %v9811 = vpop.f32.mrb[0].mxu0
  %9812 = vmatprep.mubr.f32.mxu0 0.0
  %9813 = vmatmul.mubr.f32.gmra.mrb[0].mxu0 %v9415
  %v9814 = vpop.f32.mrb[0].mxu0
  %v9815 = vadd.f32 0.0, %v9814
  %v9816 = vpop.f32.mrb[0].mxu0
  %9817 = vdwg.mxu0
  %v9818 = vadd.f32 %v9288, %v9500
  %v9819 = vadd.f32 %v9289, %v9505
  %v9820 = vadd.f32 %v9290, %v9510
  %v9821 = vadd.f32 %v9291, %v9515
  %v9822 = vadd.f32 %v9292, %v9520
  %v9823 = vadd.f32 %v9293, %v9525
  %v9824 = vadd.f32 %v9294, %v9530
  %v9825 = vadd.f32 %v9295, %v9535
  %v9826 = vadd.f32 %v9296, %v9540
  %v9827 = vadd.f32 %v9297, %v9545
  %v9828 = vadd.f32 %v9298, %v9550
  %v9829 = vadd.f32 %v9299, %v9555
  %v9830 = vadd.f32 %v9300, %v9560
  %v9831 = vadd.f32 %v9301, %v9565
  %v9832 = vadd.f32 %v9302, %v9570
  %v9833 = vadd.f32 %v9303, %v9575
  %v9834 = vadd.f32 %v9304, %v9580
  %v9835 = vadd.f32 %v9305, %v9585
  %v9836 = vadd.f32 %v9306, %v9590
  %v9837 = vadd.f32 %v9307, %v9595
  %v9838 = vadd.f32 %v9308, %v9600
  %v9839 = vadd.f32 %v9309, %v9605
  %v9840 = vadd.f32 %v9310, %v9610
  %v9841 = vadd.f32 %v9311, %v9615
  %v9842 = vadd.f32 %v9312, %v9620
  %v9843 = vadd.f32 %v9313, %v9625
  %v9844 = vadd.f32 %v9314, %v9630
  %v9845 = vadd.f32 %v9315, %v9635
  %v9846 = vadd.f32 %v9316, %v9640
  %v9847 = vadd.f32 %v9317, %v9645
  %v9848 = vadd.f32 %v9318, %v9650
  %v9849 = vadd.f32 %v9319, %v9655
  %v9850 = vadd.f32 %v9320, %v9660
  %v9851 = vadd.f32 %v9321, %v9665
  %v9852 = vadd.f32 %v9322, %v9670
  %v9853 = vadd.f32 %v9323, %v9675
  %v9854 = vadd.f32 %v9324, %v9680
  %v9855 = vadd.f32 %v9325, %v9685
  %v9856 = vadd.f32 %v9326, %v9690
  %v9857 = vadd.f32 %v9327, %v9695
  %v9858 = vadd.f32 %v9328, %v9700
  %v9859 = vadd.f32 %v9329, %v9705
  %v9860 = vadd.f32 %v9330, %v9710
  %v9861 = vadd.f32 %v9331, %v9715
  %v9862 = vadd.f32 %v9332, %v9720
  %v9863 = vadd.f32 %v9333, %v9725
  %v9864 = vadd.f32 %v9334, %v9730
  %v9865 = vadd.f32 %v9335, %v9735
  %v9866 = vadd.f32 %v9336, %v9740
  %v9867 = vadd.f32 %v9337, %v9745
  %v9868 = vadd.f32 %v9338, %v9750
  %v9869 = vadd.f32 %v9339, %v9755
  %v9870 = vadd.f32 %v9340, %v9760
  %v9871 = vadd.f32 %v9341, %v9765
  %v9872 = vadd.f32 %v9342, %v9770
  %v9873 = vadd.f32 %v9343, %v9775
  %v9874 = vadd.f32 %v9344, %v9780
  %v9875 = vadd.f32 %v9345, %v9785
  %v9876 = vadd.f32 %v9346, %v9790
  %v9877 = vadd.f32 %v9347, %v9795
  %v9878 = vadd.f32 %v9348, %v9800
  %v9879 = vadd.f32 %v9349, %v9805
  %v9880 = vadd.f32 %v9350, %v9810
  %v9881 = vadd.f32 %v9351, %v9815
  %v9882 = vadd.f32 %v9818, %v9819
  %v9883 = vadd.f32 %v9882, %v9820
  %v9884 = vadd.f32 %v9883, %v9821
  %v9885 = vadd.f32 %v9884, %v9822
  %v9886 = vadd.f32 %v9885, %v9823
  %v9887 = vadd.f32 %v9886, %v9824
  %v9888 = vadd.f32 %v9887, %v9825
  %v9889 = vadd.f32 %v9888, %v9826
  %v9890 = vadd.f32 %v9889, %v9827
  %v9891 = vadd.f32 %v9890, %v9828
  %v9892 = vadd.f32 %v9891, %v9829
  %v9893 = vadd.f32 %v9892, %v9830
  %v9894 = vadd.f32 %v9893, %v9831
  %v9895 = vadd.f32 %v9894, %v9832
  %v9896 = vadd.f32 %v9895, %v9833
  %v9897 = vadd.f32 %v9896, %v9834
  %v9898 = vadd.f32 %v9897, %v9835
  %v9899 = vadd.f32 %v9898, %v9836
  %v9900 = vadd.f32 %v9899, %v9837
  %v9901 = vadd.f32 %v9900, %v9838
  %v9902 = vadd.f32 %v9901, %v9839
  %v9903 = vadd.f32 %v9902, %v9840
  %v9904 = vadd.f32 %v9903, %v9841
  %v9905 = vadd.f32 %v9904, %v9842
  %v9906 = vadd.f32 %v9905, %v9843
  %v9907 = vadd.f32 %v9906, %v9844
  %v9908 = vadd.f32 %v9907, %v9845
  %v9909 = vadd.f32 %v9908, %v9846
  %v9910 = vadd.f32 %v9909, %v9847
  %v9911 = vadd.f32 %v9910, %v9848
  %v9912 = vadd.f32 %v9911, %v9849
  %v9913 = vadd.f32 %v9912, %v9850
  %v9914 = vadd.f32 %v9913, %v9851
  %v9915 = vadd.f32 %v9914, %v9852
  %v9916 = vadd.f32 %v9915, %v9853
  %v9917 = vadd.f32 %v9916, %v9854
  %v9918 = vadd.f32 %v9917, %v9855
  %v9919 = vadd.f32 %v9918, %v9856
  %v9920 = vadd.f32 %v9919, %v9857
  %v9921 = vadd.f32 %v9920, %v9858
  %v9922 = vadd.f32 %v9921, %v9859
  %v9923 = vadd.f32 %v9922, %v9860
  %v9924 = vadd.f32 %v9923, %v9861
  %v9925 = vadd.f32 %v9924, %v9862
  %v9926 = vadd.f32 %v9925, %v9863
  %v9927 = vadd.f32 %v9926, %v9864
  %v9928 = vadd.f32 %v9927, %v9865
  %v9929 = vadd.f32 %v9928, %v9866
  %v9930 = vadd.f32 %v9929, %v9867
  %v9931 = vadd.f32 %v9930, %v9868
  %v9932 = vadd.f32 %v9931, %v9869
  %v9933 = vadd.f32 %v9932, %v9870
  %v9934 = vadd.f32 %v9933, %v9871
  %v9935 = vadd.f32 %v9934, %v9872
  %v9936 = vadd.f32 %v9935, %v9873
  %v9937 = vadd.f32 %v9936, %v9874
  %v9938 = vadd.f32 %v9937, %v9875
  %v9939 = vadd.f32 %v9938, %v9876
  %v9940 = vadd.f32 %v9939, %v9877
  %v9941 = vadd.f32 %v9940, %v9878
  %v9942 = vadd.f32 %v9941, %v9879
  %v9943 = vadd.f32 %v9942, %v9880
  %v9944 = vadd.f32 %v9943, %v9881
  %v9945 = vrot.slane %v9944, 4
  %v9946 = vadd.f32 %v9944, %v9945
  %v9947 = vrot.slane %v9946, 2
  %v9948 = vadd.f32 %v9946, %v9947
  %v9949 = vrot.slane %v9948, 1
  %v9950 = vadd.f32 %v9948, %v9949
  %v9951 = vmul.f32 %v9818, %v9818
  %v9952 = vmul.f32 %v9819, %v9819
  %v9953 = vmul.f32 %v9820, %v9820
  %v9954 = vmul.f32 %v9821, %v9821
  %v9955 = vmul.f32 %v9822, %v9822
  %v9956 = vmul.f32 %v9823, %v9823
  %v9957 = vmul.f32 %v9824, %v9824
  %v9958 = vmul.f32 %v9825, %v9825
  %v9959 = vmul.f32 %v9826, %v9826
  %v9960 = vmul.f32 %v9827, %v9827
  %v9961 = vmul.f32 %v9828, %v9828
  %v9962 = vmul.f32 %v9829, %v9829
  %v9963 = vmul.f32 %v9830, %v9830
  %v9964 = vmul.f32 %v9831, %v9831
  %v9965 = vmul.f32 %v9832, %v9832
  %v9966 = vmul.f32 %v9833, %v9833
  %v9967 = vmul.f32 %v9834, %v9834
  %v9968 = vmul.f32 %v9835, %v9835
  %v9969 = vmul.f32 %v9836, %v9836
  %v9970 = vmul.f32 %v9837, %v9837
  %v9971 = vmul.f32 %v9838, %v9838
  %v9972 = vmul.f32 %v9839, %v9839
  %v9973 = vmul.f32 %v9840, %v9840
  %v9974 = vmul.f32 %v9841, %v9841
  %v9975 = vmul.f32 %v9842, %v9842
  %v9976 = vmul.f32 %v9843, %v9843
  %v9977 = vmul.f32 %v9844, %v9844
  %v9978 = vmul.f32 %v9845, %v9845
  %v9979 = vmul.f32 %v9846, %v9846
  %v9980 = vmul.f32 %v9847, %v9847
  %v9981 = vmul.f32 %v9848, %v9848
  %v9982 = vmul.f32 %v9849, %v9849
  %v9983 = vmul.f32 %v9850, %v9850
  %v9984 = vmul.f32 %v9851, %v9851
  %v9985 = vmul.f32 %v9852, %v9852
  %v9986 = vmul.f32 %v9853, %v9853
  %v9987 = vmul.f32 %v9854, %v9854
  %v9988 = vmul.f32 %v9855, %v9855
  %v9989 = vmul.f32 %v9856, %v9856
  %v9990 = vmul.f32 %v9857, %v9857
  %v9991 = vmul.f32 %v9858, %v9858
  %v9992 = vmul.f32 %v9859, %v9859
  %v9993 = vmul.f32 %v9860, %v9860
  %v9994 = vmul.f32 %v9861, %v9861
  %v9995 = vmul.f32 %v9862, %v9862
  %v9996 = vmul.f32 %v9863, %v9863
  %v9997 = vmul.f32 %v9864, %v9864
  %v9998 = vmul.f32 %v9865, %v9865
  %v9999 = vmul.f32 %v9866, %v9866
  %v10000 = vmul.f32 %v9867, %v9867
  %v10001 = vmul.f32 %v9868, %v9868
  %v10002 = vmul.f32 %v9869, %v9869
  %v10003 = vmul.f32 %v9870, %v9870
  %v10004 = vmul.f32 %v9871, %v9871
  %v10005 = vmul.f32 %v9872, %v9872
  %v10006 = vmul.f32 %v9873, %v9873
  %v10007 = vmul.f32 %v9874, %v9874
  %v10008 = vmul.f32 %v9875, %v9875
  %v10009 = vmul.f32 %v9876, %v9876
  %v10010 = vmul.f32 %v9877, %v9877
  %v10011 = vmul.f32 %v9878, %v9878
  %v10012 = vmul.f32 %v9879, %v9879
  %v10013 = vmul.f32 %v9880, %v9880
  %v10014 = vmul.f32 %v9881, %v9881
  %v10015 = vadd.f32 %v9951, %v9952
  %v10016 = vadd.f32 %v10015, %v9953
  %v10017 = vadd.f32 %v10016, %v9954
  %v10018 = vadd.f32 %v10017, %v9955
  %v10019 = vadd.f32 %v10018, %v9956
  %v10020 = vadd.f32 %v10019, %v9957
  %v10021 = vadd.f32 %v10020, %v9958
  %v10022 = vadd.f32 %v10021, %v9959
  %v10023 = vadd.f32 %v10022, %v9960
  %v10024 = vadd.f32 %v10023, %v9961
  %v10025 = vadd.f32 %v10024, %v9962
  %v10026 = vadd.f32 %v10025, %v9963
  %v10027 = vadd.f32 %v10026, %v9964
  %v10028 = vadd.f32 %v10027, %v9965
  %v10029 = vadd.f32 %v10028, %v9966
  %v10030 = vadd.f32 %v10029, %v9967
  %v10031 = vadd.f32 %v10030, %v9968
  %v10032 = vadd.f32 %v10031, %v9969
  %v10033 = vadd.f32 %v10032, %v9970
  %v10034 = vadd.f32 %v10033, %v9971
  %v10035 = vadd.f32 %v10034, %v9972
  %v10036 = vadd.f32 %v10035, %v9973
  %v10037 = vadd.f32 %v10036, %v9974
  %v10038 = vadd.f32 %v10037, %v9975
  %v10039 = vadd.f32 %v10038, %v9976
  %v10040 = vadd.f32 %v10039, %v9977
  %v10041 = vadd.f32 %v10040, %v9978
  %v10042 = vadd.f32 %v10041, %v9979
  %v10043 = vadd.f32 %v10042, %v9980
  %v10044 = vadd.f32 %v10043, %v9981
  %v10045 = vadd.f32 %v10044, %v9982
  %v10046 = vadd.f32 %v10045, %v9983
  %v10047 = vadd.f32 %v10046, %v9984
  %v10048 = vadd.f32 %v10047, %v9985
  %v10049 = vadd.f32 %v10048, %v9986
  %v10050 = vadd.f32 %v10049, %v9987
  %v10051 = vadd.f32 %v10050, %v9988
  %v10052 = vadd.f32 %v10051, %v9989
  %v10053 = vadd.f32 %v10052, %v9990
  %v10054 = vadd.f32 %v10053, %v9991
  %v10055 = vadd.f32 %v10054, %v9992
  %v10056 = vadd.f32 %v10055, %v9993
  %v10057 = vadd.f32 %v10056, %v9994
  %v10058 = vadd.f32 %v10057, %v9995
  %v10059 = vadd.f32 %v10058, %v9996
  %v10060 = vadd.f32 %v10059, %v9997
  %v10061 = vadd.f32 %v10060, %v9998
  %v10062 = vadd.f32 %v10061, %v9999
  %v10063 = vadd.f32 %v10062, %v10000
  %v10064 = vadd.f32 %v10063, %v10001
  %v10065 = vadd.f32 %v10064, %v10002
  %v10066 = vadd.f32 %v10065, %v10003
  %v10067 = vadd.f32 %v10066, %v10004
  %v10068 = vadd.f32 %v10067, %v10005
  %v10069 = vadd.f32 %v10068, %v10006
  %v10070 = vadd.f32 %v10069, %v10007
  %v10071 = vadd.f32 %v10070, %v10008
  %v10072 = vadd.f32 %v10071, %v10009
  %v10073 = vadd.f32 %v10072, %v10010
  %v10074 = vadd.f32 %v10073, %v10011
  %v10075 = vadd.f32 %v10074, %v10012
  %v10076 = vadd.f32 %v10075, %v10013
  %v10077 = vadd.f32 %v10076, %v10014
  %v10078 = vrot.slane %v10077, 4
  %v10079 = vadd.f32 %v10077, %v10078
  %v10080 = vrot.slane %v10079, 2
  %v10081 = vadd.f32 %v10079, %v10080
  %v10082 = vrot.slane %v10081, 1
  %v10083 = vadd.f32 %v10081, %v10082
  %v10084 = vmul.f32 %v9950, 0.001953125
  %v10085 = vmul.f32 %v10083, 0.001953125
  %v10086 = vmul.f32 %v10084, %v10084
  %v10087 = vsub.f32 %v10085, %v10086
  %v10088 = vmax.f32 %v10087, 0.0
  %v10089 = vld [vmem:[%s6] sm:$0x1]
  %v10090 = vadd.f32 %v10088, 1e-05
  %v10091 = vrsqrt.pop %v10090
  %v10092 = vmul.f32 %v10089, %v10091
  %v10093 = vld [vmem:[%s7] sm:$0x1]
  %v10094 = vmul.f32 %v10084, %v10092
  %v10095 = vsub.f32 %v10093, %v10094
  %v10097 = vlaneseq
  %v10098 = vshrl.u32 %v10097, 7
  %v10099 = vsub.s32 0, %v10098
  %v10100 = vrot.slane %v10092, %v10099
  %v10102 = vmul.f32 %v9818, %v10100
  %v10103 = vmul.f32 %v9819, %v10100
  %v10104 = vmul.f32 %v9820, %v10100
  %v10105 = vmul.f32 %v9821, %v10100
  %v10106 = vmul.f32 %v9822, %v10100
  %v10107 = vmul.f32 %v9823, %v10100
  %v10108 = vmul.f32 %v9824, %v10100
  %v10109 = vmul.f32 %v9825, %v10100
  %v10110 = vmul.f32 %v9826, %v10100
  %v10111 = vmul.f32 %v9827, %v10100
  %v10112 = vmul.f32 %v9828, %v10100
  %v10113 = vmul.f32 %v9829, %v10100
  %v10114 = vmul.f32 %v9830, %v10100
  %v10115 = vmul.f32 %v9831, %v10100
  %v10116 = vmul.f32 %v9832, %v10100
  %v10117 = vmul.f32 %v9833, %v10100
  %v10118 = vmul.f32 %v9834, %v10100
  %v10119 = vmul.f32 %v9835, %v10100
  %v10120 = vmul.f32 %v9836, %v10100
  %v10121 = vmul.f32 %v9837, %v10100
  %v10122 = vmul.f32 %v9838, %v10100
  %v10123 = vmul.f32 %v9839, %v10100
  %v10124 = vmul.f32 %v9840, %v10100
  %v10125 = vmul.f32 %v9841, %v10100
  %v10126 = vmul.f32 %v9842, %v10100
  %v10127 = vmul.f32 %v9843, %v10100
  %v10128 = vmul.f32 %v9844, %v10100
  %v10129 = vmul.f32 %v9845, %v10100
  %v10130 = vmul.f32 %v9846, %v10100
  %v10131 = vmul.f32 %v9847, %v10100
  %v10132 = vmul.f32 %v9848, %v10100
  %v10133 = vmul.f32 %v9849, %v10100
  %v10134 = vmul.f32 %v9850, %v10100
  %v10135 = vmul.f32 %v9851, %v10100
  %v10136 = vmul.f32 %v9852, %v10100
  %v10137 = vmul.f32 %v9853, %v10100
  %v10138 = vmul.f32 %v9854, %v10100
  %v10139 = vmul.f32 %v9855, %v10100
  %v10140 = vmul.f32 %v9856, %v10100
  %v10141 = vmul.f32 %v9857, %v10100
  %v10142 = vmul.f32 %v9858, %v10100
  %v10143 = vmul.f32 %v9859, %v10100
  %v10144 = vmul.f32 %v9860, %v10100
  %v10145 = vmul.f32 %v9861, %v10100
  %v10146 = vmul.f32 %v9862, %v10100
  %v10147 = vmul.f32 %v9863, %v10100
  %v10148 = vmul.f32 %v9864, %v10100
  %v10149 = vmul.f32 %v9865, %v10100
  %v10150 = vmul.f32 %v9866, %v10100
  %v10151 = vmul.f32 %v9867, %v10100
  %v10152 = vmul.f32 %v9868, %v10100
  %v10153 = vmul.f32 %v9869, %v10100
  %v10154 = vmul.f32 %v9870, %v10100
  %v10155 = vmul.f32 %v9871, %v10100
  %v10156 = vmul.f32 %v9872, %v10100
  %v10157 = vmul.f32 %v9873, %v10100
  %v10158 = vmul.f32 %v9874, %v10100
  %v10159 = vmul.f32 %v9875, %v10100
  %v10160 = vmul.f32 %v9876, %v10100
  %v10161 = vmul.f32 %v9877, %v10100
  %v10162 = vmul.f32 %v9878, %v10100
  %v10163 = vmul.f32 %v9879, %v10100
  %v10164 = vmul.f32 %v9880, %v10100
  %v10165 = vmul.f32 %v9881, %v10100
  %v10167 = vlaneseq
  %v10168 = vshrl.u32 %v10167, 7
  %v10169 = vsub.s32 0, %v10168
  %v10170 = vrot.slane %v10095, %v10169
  %v10172 = vadd.f32 %v10102, %v10170
  %v10173 = vadd.f32 %v10103, %v10170
  %v10174 = vadd.f32 %v10104, %v10170
  %v10175 = vadd.f32 %v10105, %v10170
  %v10176 = vadd.f32 %v10106, %v10170
  %v10177 = vadd.f32 %v10107, %v10170
  %v10178 = vadd.f32 %v10108, %v10170
  %v10179 = vadd.f32 %v10109, %v10170
  %v10180 = vadd.f32 %v10110, %v10170
  %v10181 = vadd.f32 %v10111, %v10170
  %v10182 = vadd.f32 %v10112, %v10170
  %v10183 = vadd.f32 %v10113, %v10170
  %v10184 = vadd.f32 %v10114, %v10170
  %v10185 = vadd.f32 %v10115, %v10170
  %v10186 = vadd.f32 %v10116, %v10170
  %v10187 = vadd.f32 %v10117, %v10170
  %v10188 = vadd.f32 %v10118, %v10170
  %v10189 = vadd.f32 %v10119, %v10170
  %v10190 = vadd.f32 %v10120, %v10170
  %v10191 = vadd.f32 %v10121, %v10170
  %v10192 = vadd.f32 %v10122, %v10170
  %v10193 = vadd.f32 %v10123, %v10170
  %v10194 = vadd.f32 %v10124, %v10170
  %v10195 = vadd.f32 %v10125, %v10170
  %v10196 = vadd.f32 %v10126, %v10170
  %v10197 = vadd.f32 %v10127, %v10170
  %v10198 = vadd.f32 %v10128, %v10170
  %v10199 = vadd.f32 %v10129, %v10170
  %v10200 = vadd.f32 %v10130, %v10170
  %v10201 = vadd.f32 %v10131, %v10170
  %v10202 = vadd.f32 %v10132, %v10170
  %v10203 = vadd.f32 %v10133, %v10170
  %v10204 = vadd.f32 %v10134, %v10170
  %v10205 = vadd.f32 %v10135, %v10170
  %v10206 = vadd.f32 %v10136, %v10170
  %v10207 = vadd.f32 %v10137, %v10170
  %v10208 = vadd.f32 %v10138, %v10170
  %v10209 = vadd.f32 %v10139, %v10170
  %v10210 = vadd.f32 %v10140, %v10170
  %v10211 = vadd.f32 %v10141, %v10170
  %v10212 = vadd.f32 %v10142, %v10170
  %v10213 = vadd.f32 %v10143, %v10170
  %v10214 = vadd.f32 %v10144, %v10170
  %v10215 = vadd.f32 %v10145, %v10170
  %v10216 = vadd.f32 %v10146, %v10170
  %v10217 = vadd.f32 %v10147, %v10170
  %v10218 = vadd.f32 %v10148, %v10170
  %v10219 = vadd.f32 %v10149, %v10170
  %v10220 = vadd.f32 %v10150, %v10170
  %v10221 = vadd.f32 %v10151, %v10170
  %v10222 = vadd.f32 %v10152, %v10170
  %v10223 = vadd.f32 %v10153, %v10170
  %v10224 = vadd.f32 %v10154, %v10170
  %v10225 = vadd.f32 %v10155, %v10170
  %v10226 = vadd.f32 %v10156, %v10170
  %v10227 = vadd.f32 %v10157, %v10170
  %v10228 = vadd.f32 %v10158, %v10170
  %v10229 = vadd.f32 %v10159, %v10170
  %v10230 = vadd.f32 %v10160, %v10170
  %v10231 = vadd.f32 %v10161, %v10170
  %v10232 = vadd.f32 %v10162, %v10170
  %v10233 = vadd.f32 %v10163, %v10170
  %v10234 = vadd.f32 %v10164, %v10170
  %v10235 = vadd.f32 %v10165, %v10170
  %v10236 = vld [vmem:[%s1] sm:$0xff]
  %v10237 = vld [vmem:[%s1 + $0x8] sm:$0xff]
  %v10238 = vld [vmem:[%s1 + $0x10] sm:$0xff]
  %v10239 = vld [vmem:[%s1 + $0x18] sm:$0xff]
  %v10240 = vld [vmem:[%s1 + $0x20] sm:$0xff]
  %v10241 = vld [vmem:[%s1 + $0x28] sm:$0xff]
  %v10242 = vld [vmem:[%s1 + $0x30] sm:$0xff]
  %v10243 = vld [vmem:[%s1 + $0x38] sm:$0xff]
  %v10244 = vld [vmem:[%s1 + $0x40] sm:$0xff]
  %v10245 = vld [vmem:[%s1 + $0x48] sm:$0xff]
  %v10246 = vld [vmem:[%s1 + $0x50] sm:$0xff]
  %v10247 = vld [vmem:[%s1 + $0x58] sm:$0xff]
  %v10248 = vld [vmem:[%s1 + $0x60] sm:$0xff]
  %v10249 = vld [vmem:[%s1 + $0x68] sm:$0xff]
  %v10250 = vld [vmem:[%s1 + $0x70] sm:$0xff]
  %v10251 = vld [vmem:[%s1 + $0x78] sm:$0xff]
  %v10252 = vld [vmem:[%s1 + $0x80] sm:$0xff]
  %v10253 = vld [vmem:[%s1 + $0x88] sm:$0xff]
  %v10254 = vld [vmem:[%s1 + $0x90] sm:$0xff]
  %v10255 = vld [vmem:[%s1 + $0x98] sm:$0xff]
  %v10256 = vld [vmem:[%s1 + $0xa0] sm:$0xff]
  %v10257 = vld [vmem:[%s1 + $0xa8] sm:$0xff]
  %v10258 = vld [vmem:[%s1 + $0xb0] sm:$0xff]
  %v10259 = vld [vmem:[%s1 + $0xb8] sm:$0xff]
  %v10260 = vld [vmem:[%s1 + $0xc0] sm:$0xff]
  %v10261 = vld [vmem:[%s1 + $0xc8] sm:$0xff]
  %v10262 = vld [vmem:[%s1 + $0xd0] sm:$0xff]
  %v10263 = vld [vmem:[%s1 + $0xd8] sm:$0xff]
  %v10264 = vld [vmem:[%s1 + $0xe0] sm:$0xff]
  %v10265 = vld [vmem:[%s1 + $0xe8] sm:$0xff]
  %v10266 = vld [vmem:[%s1 + $0xf0] sm:$0xff]
  %v10267 = vld [vmem:[%s1 + $0xf8] sm:$0xff]
  %v10268 = vld [vmem:[%s1 + $0x100] sm:$0xff]
  %v10269 = vld [vmem:[%s1 + $0x108] sm:$0xff]
  %v10270 = vld [vmem:[%s1 + $0x110] sm:$0xff]
  %v10271 = vld [vmem:[%s1 + $0x118] sm:$0xff]
  %v10272 = vld [vmem:[%s1 + $0x120] sm:$0xff]
  %v10273 = vld [vmem:[%s1 + $0x128] sm:$0xff]
  %v10274 = vld [vmem:[%s1 + $0x130] sm:$0xff]
  %v10275 = vld [vmem:[%s1 + $0x138] sm:$0xff]
  %v10276 = vld [vmem:[%s1 + $0x140] sm:$0xff]
  %v10277 = vld [vmem:[%s1 + $0x148] sm:$0xff]
  %v10278 = vld [vmem:[%s1 + $0x150] sm:$0xff]
  %v10279 = vld [vmem:[%s1 + $0x158] sm:$0xff]
  %v10280 = vld [vmem:[%s1 + $0x160] sm:$0xff]
  %v10281 = vld [vmem:[%s1 + $0x168] sm:$0xff]
  %v10282 = vld [vmem:[%s1 + $0x170] sm:$0xff]
  %v10283 = vld [vmem:[%s1 + $0x178] sm:$0xff]
  %v10284 = vld [vmem:[%s1 + $0x180] sm:$0xff]
  %v10285 = vld [vmem:[%s1 + $0x188] sm:$0xff]
  %v10286 = vld [vmem:[%s1 + $0x190] sm:$0xff]
  %v10287 = vld [vmem:[%s1 + $0x198] sm:$0xff]
  %v10288 = vld [vmem:[%s1 + $0x1a0] sm:$0xff]
  %v10289 = vld [vmem:[%s1 + $0x1a8] sm:$0xff]
  %v10290 = vld [vmem:[%s1 + $0x1b0] sm:$0xff]
  %v10291 = vld [vmem:[%s1 + $0x1b8] sm:$0xff]
  %v10292 = vld [vmem:[%s1 + $0x1c0] sm:$0xff]
  %v10293 = vld [vmem:[%s1 + $0x1c8] sm:$0xff]
  %v10294 = vld [vmem:[%s1 + $0x1d0] sm:$0xff]
  %v10295 = vld [vmem:[%s1 + $0x1d8] sm:$0xff]
  %v10296 = vld [vmem:[%s1 + $0x1e0] sm:$0xff]
  %v10297 = vld [vmem:[%s1 + $0x1e8] sm:$0xff]
  %v10298 = vld [vmem:[%s1 + $0x1f0] sm:$0xff]
  %v10299 = vld [vmem:[%s1 + $0x1f8] sm:$0xff]
  %v10300 = vadd.f32 %v10172, %v10236
  %v10301 = vadd.f32 %v10173, %v10237
  %v10302 = vadd.f32 %v10174, %v10238
  %v10303 = vadd.f32 %v10175, %v10239
  %v10304 = vadd.f32 %v10176, %v10240
  %v10305 = vadd.f32 %v10177, %v10241
  %v10306 = vadd.f32 %v10178, %v10242
  %v10307 = vadd.f32 %v10179, %v10243
  %v10308 = vadd.f32 %v10180, %v10244
  %v10309 = vadd.f32 %v10181, %v10245
  %v10310 = vadd.f32 %v10182, %v10246
  %v10311 = vadd.f32 %v10183, %v10247
  %v10312 = vadd.f32 %v10184, %v10248
  %v10313 = vadd.f32 %v10185, %v10249
  %v10314 = vadd.f32 %v10186, %v10250
  %v10315 = vadd.f32 %v10187, %v10251
  %v10316 = vadd.f32 %v10188, %v10252
  %v10317 = vadd.f32 %v10189, %v10253
  %v10318 = vadd.f32 %v10190, %v10254
  %v10319 = vadd.f32 %v10191, %v10255
  %v10320 = vadd.f32 %v10192, %v10256
  %v10321 = vadd.f32 %v10193, %v10257
  %v10322 = vadd.f32 %v10194, %v10258
  %v10323 = vadd.f32 %v10195, %v10259
  %v10324 = vadd.f32 %v10196, %v10260
  %v10325 = vadd.f32 %v10197, %v10261
  %v10326 = vadd.f32 %v10198, %v10262
  %v10327 = vadd.f32 %v10199, %v10263
  %v10328 = vadd.f32 %v10200, %v10264
  %v10329 = vadd.f32 %v10201, %v10265
  %v10330 = vadd.f32 %v10202, %v10266
  %v10331 = vadd.f32 %v10203, %v10267
  %v10332 = vadd.f32 %v10204, %v10268
  %v10333 = vadd.f32 %v10205, %v10269
  %v10334 = vadd.f32 %v10206, %v10270
  %v10335 = vadd.f32 %v10207, %v10271
  %v10336 = vadd.f32 %v10208, %v10272
  %v10337 = vadd.f32 %v10209, %v10273
  %v10338 = vadd.f32 %v10210, %v10274
  %v10339 = vadd.f32 %v10211, %v10275
  %v10340 = vadd.f32 %v10212, %v10276
  %v10341 = vadd.f32 %v10213, %v10277
  %v10342 = vadd.f32 %v10214, %v10278
  %v10343 = vadd.f32 %v10215, %v10279
  %v10344 = vadd.f32 %v10216, %v10280
  %v10345 = vadd.f32 %v10217, %v10281
  %v10346 = vadd.f32 %v10218, %v10282
  %v10347 = vadd.f32 %v10219, %v10283
  %v10348 = vadd.f32 %v10220, %v10284
  %v10349 = vadd.f32 %v10221, %v10285
  %v10350 = vadd.f32 %v10222, %v10286
  %v10351 = vadd.f32 %v10223, %v10287
  %v10352 = vadd.f32 %v10224, %v10288
  %v10353 = vadd.f32 %v10225, %v10289
  %v10354 = vadd.f32 %v10226, %v10290
  %v10355 = vadd.f32 %v10227, %v10291
  %v10356 = vadd.f32 %v10228, %v10292
  %v10357 = vadd.f32 %v10229, %v10293
  %v10358 = vadd.f32 %v10230, %v10294
  %v10359 = vadd.f32 %v10231, %v10295
  %v10360 = vadd.f32 %v10232, %v10296
  %v10361 = vadd.f32 %v10233, %v10297
  %v10362 = vadd.f32 %v10234, %v10298
  %v10363 = vadd.f32 %v10235, %v10299
  %v10364 = vmax.f32 %v10300, 0.0
  %v10365 = vmax.f32 %v10301, 0.0
  %v10366 = vmax.f32 %v10302, 0.0
  %v10367 = vmax.f32 %v10303, 0.0
  %v10368 = vmax.f32 %v10304, 0.0
  %v10369 = vmax.f32 %v10305, 0.0
  %v10370 = vmax.f32 %v10306, 0.0
  %v10371 = vmax.f32 %v10307, 0.0
  %v10372 = vmax.f32 %v10308, 0.0
  %v10373 = vmax.f32 %v10309, 0.0
  %v10374 = vmax.f32 %v10310, 0.0
  %v10375 = vmax.f32 %v10311, 0.0
  %v10376 = vmax.f32 %v10312, 0.0
  %v10377 = vmax.f32 %v10313, 0.0
  %v10378 = vmax.f32 %v10314, 0.0
  %v10379 = vmax.f32 %v10315, 0.0
  %v10380 = vmax.f32 %v10316, 0.0
  %v10381 = vmax.f32 %v10317, 0.0
  %v10382 = vmax.f32 %v10318, 0.0
  %v10383 = vmax.f32 %v10319, 0.0
  %v10384 = vmax.f32 %v10320, 0.0
  %v10385 = vmax.f32 %v10321, 0.0
  %v10386 = vmax.f32 %v10322, 0.0
  %v10387 = vmax.f32 %v10323, 0.0
  %v10388 = vmax.f32 %v10324, 0.0
  %v10389 = vmax.f32 %v10325, 0.0
  %v10390 = vmax.f32 %v10326, 0.0
  %v10391 = vmax.f32 %v10327, 0.0
  %v10392 = vmax.f32 %v10328, 0.0
  %v10393 = vmax.f32 %v10329, 0.0
  %v10394 = vmax.f32 %v10330, 0.0
  %v10395 = vmax.f32 %v10331, 0.0
  %v10396 = vmax.f32 %v10332, 0.0
  %v10397 = vmax.f32 %v10333, 0.0
  %v10398 = vmax.f32 %v10334, 0.0
  %v10399 = vmax.f32 %v10335, 0.0
  %v10400 = vmax.f32 %v10336, 0.0
  %v10401 = vmax.f32 %v10337, 0.0
  %v10402 = vmax.f32 %v10338, 0.0
  %v10403 = vmax.f32 %v10339, 0.0
  %v10404 = vmax.f32 %v10340, 0.0
  %v10405 = vmax.f32 %v10341, 0.0
  %v10406 = vmax.f32 %v10342, 0.0
  %v10407 = vmax.f32 %v10343, 0.0
  %v10408 = vmax.f32 %v10344, 0.0
  %v10409 = vmax.f32 %v10345, 0.0
  %v10410 = vmax.f32 %v10346, 0.0
  %v10411 = vmax.f32 %v10347, 0.0
  %v10412 = vmax.f32 %v10348, 0.0
  %v10413 = vmax.f32 %v10349, 0.0
  %v10414 = vmax.f32 %v10350, 0.0
  %v10415 = vmax.f32 %v10351, 0.0
  %v10416 = vmax.f32 %v10352, 0.0
  %v10417 = vmax.f32 %v10353, 0.0
  %v10418 = vmax.f32 %v10354, 0.0
  %v10419 = vmax.f32 %v10355, 0.0
  %v10420 = vmax.f32 %v10356, 0.0
  %v10421 = vmax.f32 %v10357, 0.0
  %v10422 = vmax.f32 %v10358, 0.0
  %v10423 = vmax.f32 %v10359, 0.0
  %v10424 = vmax.f32 %v10360, 0.0
  %v10425 = vmax.f32 %v10361, 0.0
  %v10426 = vmax.f32 %v10362, 0.0
  %v10427 = vmax.f32 %v10363, 0.0
  %10428 = vst [vmem:[%s8] sm:$0xff] %v10364
  %10429 = vst [vmem:[%s8 + $0x8] sm:$0xff] %v10365
  %10430 = vst [vmem:[%s8 + $0x10] sm:$0xff] %v10366
  %10431 = vst [vmem:[%s8 + $0x18] sm:$0xff] %v10367
  %10432 = vst [vmem:[%s8 + $0x20] sm:$0xff] %v10368
  %10433 = vst [vmem:[%s8 + $0x28] sm:$0xff] %v10369
  %10434 = vst [vmem:[%s8 + $0x30] sm:$0xff] %v10370
  %10435 = vst [vmem:[%s8 + $0x38] sm:$0xff] %v10371
  %10436 = vst [vmem:[%s8 + $0x40] sm:$0xff] %v10372
  %10437 = vst [vmem:[%s8 + $0x48] sm:$0xff] %v10373
  %10438 = vst [vmem:[%s8 + $0x50] sm:$0xff] %v10374
  %10439 = vst [vmem:[%s8 + $0x58] sm:$0xff] %v10375
  %10440 = vst [vmem:[%s8 + $0x60] sm:$0xff] %v10376
  %10441 = vst [vmem:[%s8 + $0x68] sm:$0xff] %v10377
  %10442 = vst [vmem:[%s8 + $0x70] sm:$0xff] %v10378
  %10443 = vst [vmem:[%s8 + $0x78] sm:$0xff] %v10379
  %10444 = vst [vmem:[%s8 + $0x80] sm:$0xff] %v10380
  %10445 = vst [vmem:[%s8 + $0x88] sm:$0xff] %v10381
  %10446 = vst [vmem:[%s8 + $0x90] sm:$0xff] %v10382
  %10447 = vst [vmem:[%s8 + $0x98] sm:$0xff] %v10383
  %10448 = vst [vmem:[%s8 + $0xa0] sm:$0xff] %v10384
  %10449 = vst [vmem:[%s8 + $0xa8] sm:$0xff] %v10385
  %10450 = vst [vmem:[%s8 + $0xb0] sm:$0xff] %v10386
  %10451 = vst [vmem:[%s8 + $0xb8] sm:$0xff] %v10387
  %10452 = vst [vmem:[%s8 + $0xc0] sm:$0xff] %v10388
  %10453 = vst [vmem:[%s8 + $0xc8] sm:$0xff] %v10389
  %10454 = vst [vmem:[%s8 + $0xd0] sm:$0xff] %v10390
  %10455 = vst [vmem:[%s8 + $0xd8] sm:$0xff] %v10391
  %10456 = vst [vmem:[%s8 + $0xe0] sm:$0xff] %v10392
  %10457 = vst [vmem:[%s8 + $0xe8] sm:$0xff] %v10393
  %10458 = vst [vmem:[%s8 + $0xf0] sm:$0xff] %v10394
  %10459 = vst [vmem:[%s8 + $0xf8] sm:$0xff] %v10395
  %10460 = vst [vmem:[%s8 + $0x100] sm:$0xff] %v10396
  %10461 = vst [vmem:[%s8 + $0x108] sm:$0xff] %v10397
  %10462 = vst [vmem:[%s8 + $0x110] sm:$0xff] %v10398
  %10463 = vst [vmem:[%s8 + $0x118] sm:$0xff] %v10399
  %10464 = vst [vmem:[%s8 + $0x120] sm:$0xff] %v10400
  %10465 = vst [vmem:[%s8 + $0x128] sm:$0xff] %v10401
  %10466 = vst [vmem:[%s8 + $0x130] sm:$0xff] %v10402
  %10467 = vst [vmem:[%s8 + $0x138] sm:$0xff] %v10403
  %10468 = vst [vmem:[%s8 + $0x140] sm:$0xff] %v10404
  %10469 = vst [vmem:[%s8 + $0x148] sm:$0xff] %v10405
  %10470 = vst [vmem:[%s8 + $0x150] sm:$0xff] %v10406
  %10471 = vst [vmem:[%s8 + $0x158] sm:$0xff] %v10407
  %10472 = vst [vmem:[%s8 + $0x160] sm:$0xff] %v10408
  %10473 = vst [vmem:[%s8 + $0x168] sm:$0xff] %v10409
  %10474 = vst [vmem:[%s8 + $0x170] sm:$0xff] %v10410
  %10475 = vst [vmem:[%s8 + $0x178] sm:$0xff] %v10411
  %10476 = vst [vmem:[%s8 + $0x180] sm:$0xff] %v10412
  %10477 = vst [vmem:[%s8 + $0x188] sm:$0xff] %v10413
  %10478 = vst [vmem:[%s8 + $0x190] sm:$0xff] %v10414
  %10479 = vst [vmem:[%s8 + $0x198] sm:$0xff] %v10415
  %10480 = vst [vmem:[%s8 + $0x1a0] sm:$0xff] %v10416
  %10481 = vst [vmem:[%s8 + $0x1a8] sm:$0xff] %v10417
  %10482 = vst [vmem:[%s8 + $0x1b0] sm:$0xff] %v10418
  %10483 = vst [vmem:[%s8 + $0x1b8] sm:$0xff] %v10419
  %10484 = vst [vmem:[%s8 + $0x1c0] sm:$0xff] %v10420
  %10485 = vst [vmem:[%s8 + $0x1c8] sm:$0xff] %v10421
  %10486 = vst [vmem:[%s8 + $0x1d0] sm:$0xff] %v10422
  %10487 = vst [vmem:[%s8 + $0x1d8] sm:$0xff] %v10423
  %10488 = vst [vmem:[%s8 + $0x1e0] sm:$0xff] %v10424
  %10489 = vst [vmem:[%s8 + $0x1e8] sm:$0xff] %v10425
  %10490 = vst [vmem:[%s8 + $0x1f0] sm:$0xff] %v10426
  %10491 = vst [vmem:[%s8 + $0x1f8] sm:$0xff] %v10427
  // Predicated region
  $region34: #{residual_block.1} parent=0 // pred_check
    _
  $region35: #{residual_block.1} parent=0 // pred_check_branch
    %10493 = sbr.rel (0) target = $region37
  $region36: #{residual_block.1} parent=0 // pred_region
    _
  $region37: #{residual_block.1} parent=0 // pred_fallthru
    _
  // Predicated region
  $region38: #{residual_block.1} parent=0 // pred_check
    _
  $region39: #{residual_block.1} parent=0 // pred_check_branch
    %10495 = sbr.rel (0) target = $region41
  $region40: #{residual_block.1} parent=0 // pred_region
    _
  $region41: #{residual_block.1} parent=0 // pred_fallthru
    _

</llo_original>
